<compile_context>
chip_gen: v7x
topology: tpu7x:2x2x1
jax: 0.10.0
libtpu: 0.0.40
codegen_flags: <defaults>
</compile_context>

<pallas_src>
import jax
import jax.numpy as jnp
from jax.experimental import pallas as pl
from jax.experimental.pallas import tpu as pltpu

EPS = 1e-5


# --------------------------- VMEM budgeting --------------------------------- #

def _vmem_capacity_bytes():
    try:
        return int(pltpu.get_tpu_info().vmem_capacity_bytes)
    except Exception:
        return 64 * 1024 * 1024          # conservative fallback (fits every gen)


_VMEM_CAP = _vmem_capacity_bytes()
# v5e/v6e (128 MiB) -> 96 MiB limit / 48 MiB tile budget; v7x (64 MiB) -> 48 / 24.
VMEM_LIMIT = min(int(_VMEM_CAP * 3 // 4), 96 * 1024 * 1024)
TILE_BUDGET = VMEM_LIMIT // 2


def _divisor_tile(total, align, max_elems):
    """Largest tile t with t | total, (t % align == 0 or t == total), t <= max_elems.

    Exact division guarantees no partial blocks (required for correct cross-tile
    BN statistics) and satisfies the (8,128) block-shape rule.
    """
    best = None
    smallest_valid = total
    for t in range(1, total + 1):
        if total % t:
            continue
        if (t % align != 0) and (t != total):
            continue
        smallest_valid = min(smallest_valid, t)
        if t <= max_elems:
            best = t
    return best if best is not None else smallest_valid


# ----------------------------- Pallas kernels ------------------------------- #

def _linear_kernel(x_ref, w_ref, b_ref, o_ref):
    o_ref[...] = (
        jnp.dot(x_ref[...], w_ref[...], preferred_element_type=jnp.float32)
        + b_ref[...]
    )


def _bn_stats_kernel(y_ref, sum_ref, ssq_ref):
    # Accumulate per-channel sum / sum-of-squares across the row grid.
    @pl.when(pl.program_id(0) == 0)
    def _():
        sum_ref[...] = jnp.zeros_like(sum_ref)
        ssq_ref[...] = jnp.zeros_like(ssq_ref)

    y = y_ref[...]
    sum_ref[...] += jnp.sum(y, axis=0, keepdims=True)
    ssq_ref[...] += jnp.sum(y * y, axis=0, keepdims=True)


def _scale_relu_kernel(y_ref, sc_ref, sh_ref, o_ref):
    # Per-channel affine (folded BN) + ReLU, f32 math, bf16 store.
    y = y_ref[...] * sc_ref[...] + sh_ref[...]
    o_ref[...] = jnp.maximum(y, 0.0).astype(o_ref.dtype)


def _deconv_gemm_kernel(a_ref, w_ref, b_ref, y_ref, sum_ref, ssq_ref):
    # One phase GEMM row-tile: (tr, K) @ (K, Co) + bias, with fused per-channel
    # BN-statistics accumulation across the whole (phase, row-tile) grid.
    @pl.when((pl.program_id(0) == 0) & (pl.program_id(1) == 0))
    def _():
        sum_ref[...] = jnp.zeros_like(sum_ref)
        ssq_ref[...] = jnp.zeros_like(ssq_ref)

    y = jnp.dot(a_ref[0], w_ref[0], preferred_element_type=jnp.float32) + b_ref[...]
    y_ref[0] = y
    sum_ref[...] += jnp.sum(y, axis=0, keepdims=True)
    ssq_ref[...] += jnp.sum(y * y, axis=0, keepdims=True)


def _deconv_tanh_kernel(a_ref, w_ref, b_ref, o_ref):
    # Transposed GEMM: (Co, K) @ (K, tr) so the (Co=6, tr) store is lane-dense.
    acc = jnp.dot(w_ref[0], a_ref[0], preferred_element_type=jnp.float32)
    o_ref[0] = jnp.tanh(acc + b_ref[...])


# ------------------------------ kernel wrappers ------------------------------ #

def _linear(xpad, w, b):
    """(bs, 128) @ (128, 27*256) + b  (single block: a few MB, fits every gen)."""
    bs = xpad.shape[0]
    N = w.shape[1]
    return pl.pallas_call(
        _linear_kernel,
        out_shape=jax.ShapeDtypeStruct((bs, N), jnp.float32),
        compiler_params=pltpu.CompilerParams(vmem_limit_bytes=VMEM_LIMIT),
    )(xpad, w, b)


def _bn_stats(y2d):
    rows, C = y2d.shape
    t = _divisor_tile(rows, 8, max(8, TILE_BUDGET // (8 * C)))
    return pl.pallas_call(
        _bn_stats_kernel,
        out_shape=(jax.ShapeDtypeStruct((1, C), jnp.float32),
                   jax.ShapeDtypeStruct((1, C), jnp.float32)),
        grid_spec=pltpu.PrefetchScalarGridSpec(
            num_scalar_prefetch=0,
            grid=(rows // t,),
            in_specs=[pl.BlockSpec((t, C), lambda i: (i, 0))],
            out_specs=[pl.BlockSpec((1, C), lambda i: (0, 0)),
                       pl.BlockSpec((1, C), lambda i: (0, 0))]),
        compiler_params=pltpu.CompilerParams(
            dimension_semantics=("arbitrary",),      # cross-tile accumulator
            vmem_limit_bytes=VMEM_LIMIT),
    )(y2d)


def _scale_relu(y2d, scale, shift):
    rows, C = y2d.shape
    t = _divisor_tile(rows, 8, max(8, TILE_BUDGET // (12 * C)))
    return pl.pallas_call(
        _scale_relu_kernel,
        out_shape=jax.ShapeDtypeStruct((rows, C), jnp.bfloat16),
        grid_spec=pltpu.PrefetchScalarGridSpec(
            num_scalar_prefetch=0,
            grid=(rows // t,),
            in_specs=[pl.BlockSpec((t, C), lambda i: (i, 0)),
                      pl.BlockSpec((1, C), lambda i: (0, 0)),
                      pl.BlockSpec((1, C), lambda i: (0, 0))],
            out_specs=pl.BlockSpec((t, C), lambda i: (i, 0))),
        compiler_params=pltpu.CompilerParams(
            dimension_semantics=("parallel",),
            vmem_limit_bytes=VMEM_LIMIT),
    )(y2d, scale, shift)


def _deconv_gemm_stats(A, wph, bias):
    """A:(4,R,K) bf16, wph:(4,K,Co) bf16, bias:(1,Co) f32 -> y:(4,R,Co) f32 + stats."""
    P, R, K = A.shape
    Co = wph.shape[-1]
    w_bytes = 2 * K * Co * 2                       # double-buffered bf16 weight block
    row_bytes = 2 * (K * 2 + Co * 4)               # double-buffered A (bf16) + y (f32)
    t = _divisor_tile(R, 8, max(8, (TILE_BUDGET - w_bytes) // row_bytes))
    return pl.pallas_call(
        _deconv_gemm_kernel,
        out_shape=(jax.ShapeDtypeStruct((P, R, Co), jnp.float32),
                   jax.ShapeDtypeStruct((1, Co), jnp.float32),
                   jax.ShapeDtypeStruct((1, Co), jnp.float32)),
        grid_spec=pltpu.PrefetchScalarGridSpec(
            num_scalar_prefetch=0,
            grid=(P, R // t),                                   # phase outer: weight re-DMA'd 4x only
            in_specs=[pl.BlockSpec((1, t, K), lambda p, i: (p, i, 0)),
                      pl.BlockSpec((1, K, Co), lambda p, i: (p, 0, 0)),
                      pl.BlockSpec((1, Co), lambda p, i: (0, 0))],
            out_specs=[pl.BlockSpec((1, t, Co), lambda p, i: (p, i, 0)),
                       pl.BlockSpec((1, Co), lambda p, i: (0, 0)),
                       pl.BlockSpec((1, Co), lambda p, i: (0, 0))]),
        compiler_params=pltpu.CompilerParams(
            # both axes "arbitrary": the BN-stat accumulator is resident across the
            # whole grid (global batch statistics), so no megacore sharding here.
            dimension_semantics=("arbitrary", "arbitrary"),
            vmem_limit_bytes=VMEM_LIMIT),
    )(A, wph, bias)


# ------------------------------ XLA data-movement glue ----------------------- #

def _phase_gather(act):
    """(N,H,W,C) bf16 -> A:(4, N*H*W, 4*C) bf16 (sub-pixel neighborhoods, row-major)."""
    N, H, W, C = act.shape
    xp = jnp.pad(act, ((0, 0), (1, 1), (1, 1), (0, 0)))
    phases = []
    for r in (0, 1):
        for s in (0, 1):
            cols = []
            for di in (0, 1):
                for dj in (0, 1):
                    cols.append(xp[:, r + di:r + di + H, s + dj:s + dj + W, :])
            phases.append(jnp.concatenate(cols, axis=-1).reshape(N * H * W, 4 * C))
    return jnp.stack(phases, axis=0).astype(jnp.bfloat16)


def _phase_gather_T(act):
    """(N,H,W,C) bf16 -> A^T:(4, 4*C, N*H*W) bf16 (for the lane-dense transposed GEMM)."""
    N, H, W, C = act.shape
    xp = jnp.pad(act, ((0, 0), (1, 1), (1, 1), (0, 0)))
    phases = []
    for r in (0, 1):
        for s in (0, 1):
            rows = []
            for di in (0, 1):
                for dj in (0, 1):
                    blk = xp[:, r + di:r + di + H, s + dj:s + dj + W, :]
                    rows.append(jnp.transpose(blk, (3, 0, 1, 2)).reshape(C, N * H * W))
            phases.append(jnp.concatenate(rows, axis=0))
    return jnp.stack(phases, axis=0).astype(jnp.bfloat16)


def _bn_scale_shift(stats, n_rows, gamma, beta):
    s, ss = stats
    mean = s / n_rows
    var = jnp.maximum(ss / n_rows - mean * mean, 0.0)
    scale = gamma * jax.lax.rsqrt(var + EPS)
    shift = beta - mean * scale
    return scale, shift


# ------------------------------ layer wrappers ------------------------------- #

def _deconv_bn_relu(act, wph, bias, gamma, beta):
    """ConvTranspose2d(4,2,1) + BatchNorm2d + ReLU, NHWC in/out, bf16 activations."""
    N, H, W, Ci = act.shape
    Co = wph.shape[-1]
    A = _phase_gather(act)                                        # (4, R, 4*Ci)
    y, s, ss = _deconv_gemm_stats(A, wph, bias)                   # (4, R, Co) f32 + stats
    scale, shift = _bn_scale_shift((s, ss), 4 * N * H * W, gamma, beta)
    a = _scale_relu(y.reshape(4 * N * H * W, Co), scale, shift)   # bf16
    a = a.reshape(2, 2, N, H, W, Co)
    # interleave phases: out[n, 2h+r, 2w+s, c] = a[r, s, n, h, w, c]
    return jnp.transpose(a, (2, 3, 0, 4, 1, 5)).reshape(N, 2 * H, 2 * W, Co)


def _deconv_tanh(act, wT, bias_col):
    """Final ConvTranspose2d(4,2,1) + tanh; channel-major GEMM -> NCHW output."""
    N, H, W, Ci = act.shape
    Co = wT.shape[1]
    K = 4 * Ci
    R = N * H * W
    AT = _phase_gather_T(act)                                     # (4, K, R)
    w_bytes = 2 * Co * K * 2
    col_bytes = 2 * (K * 2 + Co * 4)
    t = _divisor_tile(R, 128, max(128, (TILE_BUDGET - w_bytes) // col_bytes))
    y = pl.pallas_call(
        _deconv_tanh_kernel,
        out_shape=jax.ShapeDtypeStruct((4, Co, R), jnp.float32),
        grid_spec=pltpu.PrefetchScalarGridSpec(
            num_scalar_prefetch=0,
            grid=(4, R // t),
            in_specs=[pl.BlockSpec((1, K, t), lambda p, i: (p, 0, i)),
                      pl.BlockSpec((1, Co, K), lambda p, i: (p, 0, 0)),
                      pl.BlockSpec((Co, 1), lambda p, i: (0, 0))],
            out_specs=pl.BlockSpec((1, Co, t), lambda p, i: (p, 0, i))),
        compiler_params=pltpu.CompilerParams(
            dimension_semantics=("parallel", "parallel"),   # no accumulator -> megacore OK
            vmem_limit_bytes=VMEM_LIMIT),
    )(AT, wT, bias_col)
    # assemble NCHW: out[n, c, 2h+r, 2w+s] = y[r*2+s, c, flat(n,h,w)]
    y = y.reshape(2, 2, Co, N, H, W)
    return jnp.transpose(y, (3, 2, 4, 0, 5, 1)).reshape(N, Co, 2 * H, 2 * W)


# ------------------------- parameters & preparation -------------------------- #

def init_params(key):
    ks = jax.random.split(key, 14)
    f32 = jnp.float32
    p = {}
    p["w_lin"] = jax.random.normal(ks[0], (100, 6912), f32) * 0.05   # Linear(100, 6912)
    p["b_lin"] = jax.random.normal(ks[1], (1, 6912), f32) * 0.05
    p["g0"] = 1.0 + 0.1 * jax.random.normal(ks[2], (1, 256), f32)    # BatchNorm2d(256)
    p["bt0"] = 0.1 * jax.random.normal(ks[3], (1, 256), f32)
    p["w1"] = jax.random.normal(ks[4], (256, 128, 4, 4), f32) * 0.05  # deconv1
    p["b1"] = jax.random.normal(ks[5], (1, 128), f32) * 0.05
    p["g1"] = 1.0 + 0.1 * jax.random.normal(ks[6], (1, 128), f32)
    p["bt1"] = 0.1 * jax.random.normal(ks[7], (1, 128), f32)
    p["w2"] = jax.random.normal(ks[8], (128, 64, 4, 4), f32) * 0.05   # deconv2
    p["b2"] = jax.random.normal(ks[9], (1, 64), f32) * 0.05
    p["g2"] = 1.0 + 0.1 * jax.random.normal(ks[10], (1, 64), f32)
    p["bt2"] = 0.1 * jax.random.normal(ks[11], (1, 64), f32)
    p["w3"] = jax.random.normal(ks[12], (64, 6, 4, 4), f32) * 0.05    # deconv3
    p["b3"] = jax.random.normal(ks[13], (1, 6), f32) * 0.05
    return p


def _phase_weights(w_t):
    """PyTorch ConvTranspose2d weight (Ci, Co, 4, 4) -> per-phase GEMM mats (4, 4*Ci, Co)."""
    Ci, Co = w_t.shape[0], w_t.shape[1]
    wf = jnp.transpose(w_t, (2, 3, 0, 1))[::-1, ::-1]     # flipped HWIO (4,4,Ci,Co)
    mats = []
    for r in (0, 1):
        for s in (0, 1):
            sub = wf[r::2, s::2]                          # (2,2,Ci,Co), (di,dj) order
            mats.append(sub.reshape(2 * 2 * Ci, Co))
    return jnp.stack(mats, axis=0).astype(jnp.bfloat16)


def prepare_params(p):
    """One-time weight layout prep (column reorder, K pad, sub-pixel kernel slices)."""
    f32 = jnp.float32
    # Reorder Linear columns (c*27+s) -> (s*256+c) so the GEMM output is already
    # channels-last (bs, 27, 256), and zero-pad K 100 -> 128 for MXU alignment.
    w_r = p["w_lin"].reshape(100, 256, 27).transpose(0, 2, 1).reshape(100, 6912)
    w_r = jnp.pad(w_r, ((0, 28), (0, 0))).astype(f32)
    b_r = p["b_lin"].reshape(1, 256, 27).transpose(0, 2, 1).reshape(1, 6912).astype(f32)
    return {
        "w_lin": w_r, "b_lin": b_r,
        "g0": p["g0"], "bt0": p["bt0"],
        "w1": _phase_weights(p["w1"]), "b1": p["b1"], "g1": p["g1"], "bt1": p["bt1"],
        "w2": _phase_weights(p["w2"]), "b2": p["b2"], "g2": p["g2"], "bt2": p["bt2"],
        "w3T": jnp.transpose(_phase_weights(p["w3"]), (0, 2, 1)),   # (4, Co=6, 4*Ci)
        "b3": p["b3"].reshape(-1, 1).astype(f32),                   # (6, 1)
    }


# --------------------------------- forward ----------------------------------- #

def wgan_g_forward(x, wp):
    bs = x.shape[0]
    # Linear(100 -> 6912) with pre-reordered weights -> channels-last (bs*27, 256)
    xpad = jnp.pad(x.astype(jnp.float32), ((0, 0), (0, 28)))
    y2d = _linear(xpad, wp["w_lin"], wp["b_lin"]).reshape(bs * 27, 256)
    # BatchNorm2d(256) + ReLU (tiled stats + tiled apply, bf16 activation out)
    scale, shift = _bn_scale_shift(_bn_stats(y2d), bs * 27, wp["g0"], wp["bt0"])
    act = _scale_relu(y2d, scale, shift).reshape(bs, 3, 9, 256)       # NHWC
    # deconv1 + BN + ReLU -> (bs, 6, 18, 128)
    act = _deconv_bn_relu(act, wp["w1"], wp["b1"], wp["g1"], wp["bt1"])
    # deconv2 + BN + ReLU -> (bs, 12, 36, 64)
    act = _deconv_bn_relu(act, wp["w2"], wp["b2"], wp["g2"], wp["bt2"])
    # deconv3 + tanh -> NCHW (bs, 6, 24, 72)
    return _deconv_tanh(act, wp["w3T"], wp["b3"])


if __name__ == "__main__":
    key = jax.random.PRNGKey(0)
    kx, kp = jax.random.split(key)
    params = init_params(kp)
    wp = prepare_params(params)
    x = jax.random.normal(kx, (2, 100), jnp.float32)     # small batch (PyTorch implies 400)

    fwd = jax.jit(wgan_g_forward)
    out = fwd(x, wp)
    jax.block_until_ready(out)
    assert out.shape == (2, 6, 24, 72), out.shape
    assert bool(jnp.all(jnp.isfinite(out)))
    print("KERNEL_OK")
</pallas_src>

<mosaic_0001>
module attributes {stable_mosaic.version = 11 : i64} {
  func.func @_linear_kernel(%arg0: memref<2x128xf32, #tpu.memory_space<vmem>>, %arg1: memref<128x6912xf32, #tpu.memory_space<vmem>>, %arg2: memref<1x6912xf32, #tpu.memory_space<vmem>>, %arg3: memref<2x6912xf32, #tpu.memory_space<vmem>>) attributes {dimension_semantics = [], scalar_prefetch = 0 : i64, scratch_operands = 0 : i64, tpu.core_type = #tpu.core_type<tc>} {
    %c0 = arith.constant 0 : index
    %c0_0 = arith.constant 0 : index
    %0 = vector.load %arg0[%c0, %c0_0] : memref<2x128xf32, #tpu.memory_space<vmem>>, vector<2x128xf32>
    %c0_1 = arith.constant 0 : index
    %c0_2 = arith.constant 0 : index
    %1 = vector.load %arg1[%c0_1, %c0_2] : memref<128x6912xf32, #tpu.memory_space<vmem>>, vector<128x6912xf32>
    %cst = arith.constant dense<0.000000e+00> : vector<2x6912xf32>
    %2 = tpu.matmul %0, %1, %cst {dimension_numbers = #tpu.dot_dimension_numbers<[1], [0], [0], [1], [0, 0, 1, 1], [], []>} : vector<2x128xf32>, vector<128x6912xf32>, vector<2x6912xf32> -> vector<2x6912xf32>
    %c0_3 = arith.constant 0 : index
    %c0_4 = arith.constant 0 : index
    %3 = vector.load %arg2[%c0_3, %c0_4] : memref<1x6912xf32, #tpu.memory_space<vmem>>, vector<1x6912xf32>
    %4 = vector.broadcast %3 : vector<1x6912xf32> to vector<2x6912xf32>
    %5 = arith.addf %2, %4 : vector<2x6912xf32>
    %c0_5 = arith.constant 0 : index
    %c0_6 = arith.constant 0 : index
    %6 = vector.load %arg3[%c0_5, %c0_6] : memref<2x6912xf32, #tpu.memory_space<vmem>>, vector<2x6912xf32>
    tpu.vector_store %arg3[%c0_5, %c0_6], %5 {strides = array<i32>} : memref<2x6912xf32, #tpu.memory_space<vmem>>, vector<2x6912xf32>,
    return
  }
}

module attributes {stable_mosaic.version = 11 : i64} {
  func.func @_bn_stats_kernel(%arg0: i32, %arg1: memref<54x256xf32, #tpu.memory_space<vmem>>, %arg2: memref<1x256xf32, #tpu.memory_space<vmem>>, %arg3: memref<1x256xf32, #tpu.memory_space<vmem>>) attributes {dimension_semantics = [#tpu.dimension_semantics<arbitrary>], iteration_bounds = array<i64: 1>, scalar_prefetch = 0 : i64, scratch_operands = 0 : i64, tpu.core_type = #tpu.core_type<tc>, window_params = [{transform_indices = @transform_0, window_bounds = array<i64: 54, 256>}, {pipeline_mode = #tpu.pipeline_mode<synchronous>, transform_indices = @transform_1, window_bounds = array<i64: 1, 256>}, {pipeline_mode = #tpu.pipeline_mode<synchronous>, transform_indices = @transform_2, window_bounds = array<i64: 1, 256>}]} {
    %c0_i32 = arith.constant 0 : i32
    %0 = arith.cmpi eq, %arg0, %c0_i32 : i32
    %1 = arith.extui %0 : i1 to i32
    %c0_i32_0 = arith.constant 0 : i32
    %2 = arith.cmpi ne, %1, %c0_i32_0 : i32
    scf.if %2 {
      %cst_11 = arith.constant 0.000000e+00 : f32
      %15 = vector.broadcast %cst_11 : f32 to vector<1x256xf32>
      %c0_12 = arith.constant 0 : index
      %c0_13 = arith.constant 0 : index
      %16 = vector.load %arg2[%c0_12, %c0_13] : memref<1x256xf32, #tpu.memory_space<vmem>>, vector<1x256xf32>
      tpu.vector_store %arg2[%c0_12, %c0_13], %15 {strides = array<i32>} : memref<1x256xf32, #tpu.memory_space<vmem>>, vector<1x256xf32>,
      %cst_14 = arith.constant 0.000000e+00 : f32
      %17 = vector.broadcast %cst_14 : f32 to vector<1x256xf32>
      %c0_15 = arith.constant 0 : index
      %c0_16 = arith.constant 0 : index
      %18 = vector.load %arg3[%c0_15, %c0_16] : memref<1x256xf32, #tpu.memory_space<vmem>>, vector<1x256xf32>
      tpu.vector_store %arg3[%c0_15, %c0_16], %17 {strides = array<i32>} : memref<1x256xf32, #tpu.memory_space<vmem>>, vector<1x256xf32>,
    } else {
    }
    %c0 = arith.constant 0 : index
    %c0_1 = arith.constant 0 : index
    %3 = vector.load %arg1[%c0, %c0_1] : memref<54x256xf32, #tpu.memory_space<vmem>>, vector<54x256xf32>
    %c0_2 = arith.constant 0 : index
    %c0_3 = arith.constant 0 : index
    %4 = vector.load %arg2[%c0_2, %c0_3] : memref<1x256xf32, #tpu.memory_space<vmem>>, vector<1x256xf32>
    %cst = arith.constant dense<0.000000e+00> : vector<256xf32>
    %5 = vector.multi_reduction <add>, %3, %cst [0] : vector<54x256xf32> to vector<256xf32>
    %6 = vector.shape_cast %5 : vector<256xf32> to vector<1x256xf32>
    %7 = arith.addf %4, %6 : vector<1x256xf32>
    %c0_4 = arith.constant 0 : index
    %c0_5 = arith.constant 0 : index
    %8 = vector.load %arg2[%c0_4, %c0_5] : memref<1x256xf32, #tpu.memory_space<vmem>>, vector<1x256xf32>
    tpu.vector_store %arg2[%c0_4, %c0_5], %7 {strides = array<i32>} : memref<1x256xf32, #tpu.memory_space<vmem>>, vector<1x256xf32>,
    %c0_6 = arith.constant 0 : index
    %c0_7 = arith.constant 0 : index
    %9 = vector.load %arg3[%c0_6, %c0_7] : memref<1x256xf32, #tpu.memory_space<vmem>>, vector<1x256xf32>
    %10 = arith.mulf %3, %3 : vector<54x256xf32>
    %cst_8 = arith.constant dense<0.000000e+00> : vector<256xf32>
    %11 = vector.multi_reduction <add>, %10, %cst_8 [0] : vector<54x256xf32> to vector<256xf32>
    %12 = vector.shape_cast %11 : vector<256xf32> to vector<1x256xf32>
    %13 = arith.addf %9, %12 : vector<1x256xf32>
    %c0_9 = arith.constant 0 : index
    %c0_10 = arith.constant 0 : index
    %14 = vector.load %arg3[%c0_9, %c0_10] : memref<1x256xf32, #tpu.memory_space<vmem>>, vector<1x256xf32>
    tpu.vector_store %arg3[%c0_9, %c0_10], %13 {strides = array<i32>} : memref<1x256xf32, #tpu.memory_space<vmem>>, vector<1x256xf32>,
    return
  }
  func.func @transform_0(%arg0: i32) -> (i32, i32) {
    %c0_i32 = arith.constant 0 : i32
    %c0_i32_0 = arith.constant 0 : i32
    return %arg0, %c0_i32 : i32, i32
  }
  func.func @transform_1(%arg0: i32) -> (i32, i32) {
    %c0_i32 = arith.constant 0 : i32
    %c0_i32_0 = arith.constant 0 : i32
    %c0_i32_1 = arith.constant 0 : i32
    return %c0_i32, %c0_i32_0 : i32, i32
  }
  func.func @transform_2(%arg0: i32) -> (i32, i32) {
    %c0_i32 = arith.constant 0 : i32
    %c0_i32_0 = arith.constant 0 : i32
    %c0_i32_1 = arith.constant 0 : i32
    return %c0_i32, %c0_i32_0 : i32, i32
  }
}

module attributes {stable_mosaic.version = 11 : i64} {
  func.func @_scale_relu_kernel(%arg0: i32, %arg1: memref<54x256xf32, #tpu.memory_space<vmem>>, %arg2: memref<1x256xf32, #tpu.memory_space<vmem>>, %arg3: memref<1x256xf32, #tpu.memory_space<vmem>>, %arg4: memref<54x256xbf16, #tpu.memory_space<vmem>>) attributes {dimension_semantics = [#tpu.dimension_semantics<parallel>], iteration_bounds = array<i64: 1>, scalar_prefetch = 0 : i64, scratch_operands = 0 : i64, tpu.core_type = #tpu.core_type<tc>, window_params = [{transform_indices = @transform_0, window_bounds = array<i64: 54, 256>}, {pipeline_mode = #tpu.pipeline_mode<synchronous>, transform_indices = @transform_1, window_bounds = array<i64: 1, 256>}, {pipeline_mode = #tpu.pipeline_mode<synchronous>, transform_indices = @transform_2, window_bounds = array<i64: 1, 256>}, {transform_indices = @transform_3, window_bounds = array<i64: 54, 256>}]} {
    %c0 = arith.constant 0 : index
    %c0_0 = arith.constant 0 : index
    %0 = vector.load %arg1[%c0, %c0_0] : memref<54x256xf32, #tpu.memory_space<vmem>>, vector<54x256xf32>
    %c0_1 = arith.constant 0 : index
    %c0_2 = arith.constant 0 : index
    %1 = vector.load %arg2[%c0_1, %c0_2] : memref<1x256xf32, #tpu.memory_space<vmem>>, vector<1x256xf32>
    %2 = vector.broadcast %1 : vector<1x256xf32> to vector<54x256xf32>
    %3 = arith.mulf %0, %2 : vector<54x256xf32>
    %c0_3 = arith.constant 0 : index
    %c0_4 = arith.constant 0 : index
    %4 = vector.load %arg3[%c0_3, %c0_4] : memref<1x256xf32, #tpu.memory_space<vmem>>, vector<1x256xf32>
    %5 = vector.broadcast %4 : vector<1x256xf32> to vector<54x256xf32>
    %6 = arith.addf %3, %5 : vector<54x256xf32>
    %cst = arith.constant 0.000000e+00 : f32
    %7 = vector.broadcast %cst : f32 to vector<54x256xf32>
    %8 = arith.maximumf %6, %7 : vector<54x256xf32>
    %9 = arith.truncf %8 : vector<54x256xf32> to vector<54x256xbf16>
    %c0_5 = arith.constant 0 : index
    %c0_6 = arith.constant 0 : index
    %10 = vector.load %arg4[%c0_5, %c0_6] : memref<54x256xbf16, #tpu.memory_space<vmem>>, vector<54x256xbf16>
    tpu.vector_store %arg4[%c0_5, %c0_6], %9 {strides = array<i32>} : memref<54x256xbf16, #tpu.memory_space<vmem>>, vector<54x256xbf16>,
    return
  }
  func.func @transform_0(%arg0: i32) -> (i32, i32) {
    %c0_i32 = arith.constant 0 : i32
    %c0_i32_0 = arith.constant 0 : i32
    return %arg0, %c0_i32 : i32, i32
  }
  func.func @transform_1(%arg0: i32) -> (i32, i32) {
    %c0_i32 = arith.constant 0 : i32
    %c0_i32_0 = arith.constant 0 : i32
    %c0_i32_1 = arith.constant 0 : i32
    return %c0_i32, %c0_i32_0 : i32, i32
  }
  func.func @transform_2(%arg0: i32) -> (i32, i32) {
    %c0_i32 = arith.constant 0 : i32
    %c0_i32_0 = arith.constant 0 : i32
    %c0_i32_1 = arith.constant 0 : i32
    return %c0_i32, %c0_i32_0 : i32, i32
  }
  func.func @transform_3(%arg0: i32) -> (i32, i32) {
    %c0_i32 = arith.constant 0 : i32
    %c0_i32_0 = arith.constant 0 : i32
    return %arg0, %c0_i32 : i32, i32
  }
}

module attributes {stable_mosaic.version = 11 : i64} {
  func.func @_deconv_gemm_kernel(%arg0: i32, %arg1: i32, %arg2: memref<1x54x1024xbf16, #tpu.memory_space<vmem>>, %arg3: memref<1x1024x128xbf16, #tpu.memory_space<vmem>>, %arg4: memref<1x128xf32, #tpu.memory_space<vmem>>, %arg5: memref<1x54x128xf32, #tpu.memory_space<vmem>>, %arg6: memref<1x128xf32, #tpu.memory_space<vmem>>, %arg7: memref<1x128xf32, #tpu.memory_space<vmem>>) attributes {dimension_semantics = [#tpu.dimension_semantics<arbitrary>, #tpu.dimension_semantics<arbitrary>], iteration_bounds = array<i64: 4, 1>, scalar_prefetch = 0 : i64, scratch_operands = 0 : i64, tpu.core_type = #tpu.core_type<tc>, window_params = [{transform_indices = @transform_0, window_bounds = array<i64: 1, 54, 1024>}, {transform_indices = @transform_1, window_bounds = array<i64: 1, 1024, 128>}, {pipeline_mode = #tpu.pipeline_mode<synchronous>, transform_indices = @transform_2, window_bounds = array<i64: 1, 128>}, {transform_indices = @transform_3, window_bounds = array<i64: 1, 54, 128>}, {pipeline_mode = #tpu.pipeline_mode<synchronous>, transform_indices = @transform_4, window_bounds = array<i64: 1, 128>}, {pipeline_mode = #tpu.pipeline_mode<synchronous>, transform_indices = @transform_5, window_bounds = array<i64: 1, 128>}]} {
    %c0_i32 = arith.constant 0 : i32
    %0 = arith.cmpi eq, %arg0, %c0_i32 : i32
    %c0_i32_0 = arith.constant 0 : i32
    %1 = arith.cmpi eq, %arg1, %c0_i32_0 : i32
    %2 = arith.andi %0, %1 : i1
    %3 = arith.extui %2 : i1 to i32
    %c0_i32_1 = arith.constant 0 : i32
    %4 = arith.cmpi ne, %3, %c0_i32_1 : i32
    scf.if %4 {
      %cst_22 = arith.constant 0.000000e+00 : f32
      %27 = vector.broadcast %cst_22 : f32 to vector<1x128xf32>
      %c0_23 = arith.constant 0 : index
      %c0_24 = arith.constant 0 : index
      %28 = vector.load %arg6[%c0_23, %c0_24] : memref<1x128xf32, #tpu.memory_space<vmem>>, vector<1x128xf32>
      tpu.vector_store %arg6[%c0_23, %c0_24], %27 {strides = array<i32>} : memref<1x128xf32, #tpu.memory_space<vmem>>, vector<1x128xf32>,
      %cst_25 = arith.constant 0.000000e+00 : f32
      %29 = vector.broadcast %cst_25 : f32 to vector<1x128xf32>
      %c0_26 = arith.constant 0 : index
      %c0_27 = arith.constant 0 : index
      %30 = vector.load %arg7[%c0_26, %c0_27] : memref<1x128xf32, #tpu.memory_space<vmem>>, vector<1x128xf32>
      tpu.vector_store %arg7[%c0_26, %c0_27], %29 {strides = array<i32>} : memref<1x128xf32, #tpu.memory_space<vmem>>, vector<1x128xf32>,
    } else {
    }
    %c0 = arith.constant 0 : index
    %c0_2 = arith.constant 0 : index
    %c0_3 = arith.constant 0 : index
    %5 = vector.load %arg2[%c0, %c0_2, %c0_3] : memref<1x54x1024xbf16, #tpu.memory_space<vmem>>, vector<1x54x1024xbf16>
    %6 = vector.shape_cast %5 : vector<1x54x1024xbf16> to vector<54x1024xbf16>
    %c0_4 = arith.constant 0 : index
    %c0_5 = arith.constant 0 : index
    %c0_6 = arith.constant 0 : index
    %7 = vector.load %arg3[%c0_4, %c0_5, %c0_6] : memref<1x1024x128xbf16, #tpu.memory_space<vmem>>, vector<1x1024x128xbf16>
    %8 = vector.shape_cast %7 : vector<1x1024x128xbf16> to vector<1024x128xbf16>
    %cst = arith.constant dense<0.000000e+00> : vector<54x128xf32>
    %9 = tpu.matmul %6, %8, %cst {dimension_numbers = #tpu.dot_dimension_numbers<[1], [0], [0], [1], [0, 0, 1, 1], [], []>} : vector<54x1024xbf16>, vector<1024x128xbf16>, vector<54x128xf32> -> vector<54x128xf32>
    %c0_7 = arith.constant 0 : index
    %c0_8 = arith.constant 0 : index
    %10 = vector.load %arg4[%c0_7, %c0_8] : memref<1x128xf32, #tpu.memory_space<vmem>>, vector<1x128xf32>
    %11 = vector.broadcast %10 : vector<1x128xf32> to vector<54x128xf32>
    %12 = arith.addf %9, %11 : vector<54x128xf32>
    %c0_9 = arith.constant 0 : index
    %c0_10 = arith.constant 0 : index
    %c0_11 = arith.constant 0 : index
    %13 = vector.load %arg5[%c0_9, %c0_10, %c0_11] : memref<1x54x128xf32, #tpu.memory_space<vmem>>, vector<1x54x128xf32>
    %14 = vector.shape_cast %13 : vector<1x54x128xf32> to vector<54x128xf32>
    %15 = vector.shape_cast %12 : vector<54x128xf32> to vector<1x54x128xf32>
    tpu.vector_store %arg5[%c0_9, %c0_10, %c0_11], %15 {strides = array<i32>} : memref<1x54x128xf32, #tpu.memory_space<vmem>>, vector<1x54x128xf32>,
    %c0_12 = arith.constant 0 : index
    %c0_13 = arith.constant 0 : index
    %16 = vector.load %arg6[%c0_12, %c0_13] : memref<1x128xf32, #tpu.memory_space<vmem>>, vector<1x128xf32>
    %cst_14 = arith.constant dense<0.000000e+00> : vector<128xf32>
    %17 = vector.multi_reduction <add>, %12, %cst_14 [0] : vector<54x128xf32> to vector<128xf32>
    %18 = vector.shape_cast %17 : vector<128xf32> to vector<1x128xf32>
    %19 = arith.addf %16, %18 : vector<1x128xf32>
    %c0_15 = arith.constant 0 : index
    %c0_16 = arith.constant 0 : index
    %20 = vector.load %arg6[%c0_15, %c0_16] : memref<1x128xf32, #tpu.memory_space<vmem>>, vector<1x128xf32>
    tpu.vector_store %arg6[%c0_15, %c0_16], %19 {strides = array<i32>} : memref<1x128xf32, #tpu.memory_space<vmem>>, vector<1x128xf32>,
    %c0_17 = arith.constant 0 : index
    %c0_18 = arith.constant 0 : index
    %21 = vector.load %arg7[%c0_17, %c0_18] : memref<1x128xf32, #tpu.memory_space<vmem>>, vector<1x128xf32>
    %22 = arith.mulf %12, %12 : vector<54x128xf32>
    %cst_19 = arith.constant dense<0.000000e+00> : vector<128xf32>
    %23 = vector.multi_reduction <add>, %22, %cst_19 [0] : vector<54x128xf32> to vector<128xf32>
    %24 = vector.shape_cast %23 : vector<128xf32> to vector<1x128xf32>
    %25 = arith.addf %21, %24 : vector<1x128xf32>
    %c0_20 = arith.constant 0 : index
    %c0_21 = arith.constant 0 : index
    %26 = vector.load %arg7[%c0_20, %c0_21] : memref<1x128xf32, #tpu.memory_space<vmem>>, vector<1x128xf32>
    tpu.vector_store %arg7[%c0_20, %c0_21], %25 {strides = array<i32>} : memref<1x128xf32, #tpu.memory_space<vmem>>, vector<1x128xf32>,
    return
  }
  func.func @transform_0(%arg0: i32, %arg1: i32) -> (i32, i32, i32) {
    %c0_i32 = arith.constant 0 : i32
    %c0_i32_0 = arith.constant 0 : i32
    return %arg0, %arg1, %c0_i32 : i32, i32, i32
  }
  func.func @transform_1(%arg0: i32, %arg1: i32) -> (i32, i32, i32) {
    %c0_i32 = arith.constant 0 : i32
    %c0_i32_0 = arith.constant 0 : i32
    %c0_i32_1 = arith.constant 0 : i32
    return %arg0, %c0_i32, %c0_i32_0 : i32, i32, i32
  }
  func.func @transform_2(%arg0: i32, %arg1: i32) -> (i32, i32) {
    %c0_i32 = arith.constant 0 : i32
    %c0_i32_0 = arith.constant 0 : i32
    %c0_i32_1 = arith.constant 0 : i32
    return %c0_i32, %c0_i32_0 : i32, i32
  }
  func.func @transform_3(%arg0: i32, %arg1: i32) -> (i32, i32, i32) {
    %c0_i32 = arith.constant 0 : i32
    %c0_i32_0 = arith.constant 0 : i32
    return %arg0, %arg1, %c0_i32 : i32, i32, i32
  }
  func.func @transform_4(%arg0: i32, %arg1: i32) -> (i32, i32) {
    %c0_i32 = arith.constant 0 : i32
    %c0_i32_0 = arith.constant 0 : i32
    %c0_i32_1 = arith.constant 0 : i32
    return %c0_i32, %c0_i32_0 : i32, i32
  }
  func.func @transform_5(%arg0: i32, %arg1: i32) -> (i32, i32) {
    %c0_i32 = arith.constant 0 : i32
    %c0_i32_0 = arith.constant 0 : i32
    %c0_i32_1 = arith.constant 0 : i32
    return %c0_i32, %c0_i32_0 : i32, i32
  }
}

module attributes {stable_mosaic.version = 11 : i64} {
  func.func @_scale_relu_kernel(%arg0: i32, %arg1: memref<216x128xf32, #tpu.memory_space<vmem>>, %arg2: memref<1x128xf32, #tpu.memory_space<vmem>>, %arg3: memref<1x128xf32, #tpu.memory_space<vmem>>, %arg4: memref<216x128xbf16, #tpu.memory_space<vmem>>) attributes {dimension_semantics = [#tpu.dimension_semantics<parallel>], iteration_bounds = array<i64: 1>, scalar_prefetch = 0 : i64, scratch_operands = 0 : i64, tpu.core_type = #tpu.core_type<tc>, window_params = [{transform_indices = @transform_0, window_bounds = array<i64: 216, 128>}, {pipeline_mode = #tpu.pipeline_mode<synchronous>, transform_indices = @transform_1, window_bounds = array<i64: 1, 128>}, {pipeline_mode = #tpu.pipeline_mode<synchronous>, transform_indices = @transform_2, window_bounds = array<i64: 1, 128>}, {transform_indices = @transform_3, window_bounds = array<i64: 216, 128>}]} {
    %c0 = arith.constant 0 : index
    %c0_0 = arith.constant 0 : index
    %0 = vector.load %arg1[%c0, %c0_0] : memref<216x128xf32, #tpu.memory_space<vmem>>, vector<216x128xf32>
    %c0_1 = arith.constant 0 : index
    %c0_2 = arith.constant 0 : index
    %1 = vector.load %arg2[%c0_1, %c0_2] : memref<1x128xf32, #tpu.memory_space<vmem>>, vector<1x128xf32>
    %2 = vector.broadcast %1 : vector<1x128xf32> to vector<216x128xf32>
    %3 = arith.mulf %0, %2 : vector<216x128xf32>
    %c0_3 = arith.constant 0 : index
    %c0_4 = arith.constant 0 : index
    %4 = vector.load %arg3[%c0_3, %c0_4] : memref<1x128xf32, #tpu.memory_space<vmem>>, vector<1x128xf32>
    %5 = vector.broadcast %4 : vector<1x128xf32> to vector<216x128xf32>
    %6 = arith.addf %3, %5 : vector<216x128xf32>
    %cst = arith.constant 0.000000e+00 : f32
    %7 = vector.broadcast %cst : f32 to vector<216x128xf32>
    %8 = arith.maximumf %6, %7 : vector<216x128xf32>
    %9 = arith.truncf %8 : vector<216x128xf32> to vector<216x128xbf16>
    %c0_5 = arith.constant 0 : index
    %c0_6 = arith.constant 0 : index
    %10 = vector.load %arg4[%c0_5, %c0_6] : memref<216x128xbf16, #tpu.memory_space<vmem>>, vector<216x128xbf16>
    tpu.vector_store %arg4[%c0_5, %c0_6], %9 {strides = array<i32>} : memref<216x128xbf16, #tpu.memory_space<vmem>>, vector<216x128xbf16>,
    return
  }
  func.func @transform_0(%arg0: i32) -> (i32, i32) {
    %c0_i32 = arith.constant 0 : i32
    %c0_i32_0 = arith.constant 0 : i32
    return %arg0, %c0_i32 : i32, i32
  }
  func.func @transform_1(%arg0: i32) -> (i32, i32) {
    %c0_i32 = arith.constant 0 : i32
    %c0_i32_0 = arith.constant 0 : i32
    %c0_i32_1 = arith.constant 0 : i32
    return %c0_i32, %c0_i32_0 : i32, i32
  }
  func.func @transform_2(%arg0: i32) -> (i32, i32) {
    %c0_i32 = arith.constant 0 : i32
    %c0_i32_0 = arith.constant 0 : i32
    %c0_i32_1 = arith.constant 0 : i32
    return %c0_i32, %c0_i32_0 : i32, i32
  }
  func.func @transform_3(%arg0: i32) -> (i32, i32) {
    %c0_i32 = arith.constant 0 : i32
    %c0_i32_0 = arith.constant 0 : i32
    return %arg0, %c0_i32 : i32, i32
  }
}

module attributes {stable_mosaic.version = 11 : i64} {
  func.func @_deconv_gemm_kernel(%arg0: i32, %arg1: i32, %arg2: memref<1x216x512xbf16, #tpu.memory_space<vmem>>, %arg3: memref<1x512x64xbf16, #tpu.memory_space<vmem>>, %arg4: memref<1x64xf32, #tpu.memory_space<vmem>>, %arg5: memref<1x216x64xf32, #tpu.memory_space<vmem>>, %arg6: memref<1x64xf32, #tpu.memory_space<vmem>>, %arg7: memref<1x64xf32, #tpu.memory_space<vmem>>) attributes {dimension_semantics = [#tpu.dimension_semantics<arbitrary>, #tpu.dimension_semantics<arbitrary>], iteration_bounds = array<i64: 4, 1>, scalar_prefetch = 0 : i64, scratch_operands = 0 : i64, tpu.core_type = #tpu.core_type<tc>, window_params = [{transform_indices = @transform_0, window_bounds = array<i64: 1, 216, 512>}, {transform_indices = @transform_1, window_bounds = array<i64: 1, 512, 64>}, {pipeline_mode = #tpu.pipeline_mode<synchronous>, transform_indices = @transform_2, window_bounds = array<i64: 1, 64>}, {transform_indices = @transform_3, window_bounds = array<i64: 1, 216, 64>}, {pipeline_mode = #tpu.pipeline_mode<synchronous>, transform_indices = @transform_4, window_bounds = array<i64: 1, 64>}, {pipeline_mode = #tpu.pipeline_mode<synchronous>, transform_indices = @transform_5, window_bounds = array<i64: 1, 64>}]} {
    %c0_i32 = arith.constant 0 : i32
    %0 = arith.cmpi eq, %arg0, %c0_i32 : i32
    %c0_i32_0 = arith.constant 0 : i32
    %1 = arith.cmpi eq, %arg1, %c0_i32_0 : i32
    %2 = arith.andi %0, %1 : i1
    %3 = arith.extui %2 : i1 to i32
    %c0_i32_1 = arith.constant 0 : i32
    %4 = arith.cmpi ne, %3, %c0_i32_1 : i32
    scf.if %4 {
      %cst_22 = arith.constant 0.000000e+00 : f32
      %27 = vector.broadcast %cst_22 : f32 to vector<1x64xf32>
      %c0_23 = arith.constant 0 : index
      %c0_24 = arith.constant 0 : index
      %28 = vector.load %arg6[%c0_23, %c0_24] : memref<1x64xf32, #tpu.memory_space<vmem>>, vector<1x64xf32>
      tpu.vector_store %arg6[%c0_23, %c0_24], %27 {strides = array<i32>} : memref<1x64xf32, #tpu.memory_space<vmem>>, vector<1x64xf32>,
      %cst_25 = arith.constant 0.000000e+00 : f32
      %29 = vector.broadcast %cst_25 : f32 to vector<1x64xf32>
      %c0_26 = arith.constant 0 : index
      %c0_27 = arith.constant 0 : index
      %30 = vector.load %arg7[%c0_26, %c0_27] : memref<1x64xf32, #tpu.memory_space<vmem>>, vector<1x64xf32>
      tpu.vector_store %arg7[%c0_26, %c0_27], %29 {strides = array<i32>} : memref<1x64xf32, #tpu.memory_space<vmem>>, vector<1x64xf32>,
    } else {
    }
    %c0 = arith.constant 0 : index
    %c0_2 = arith.constant 0 : index
    %c0_3 = arith.constant 0 : index
    %5 = vector.load %arg2[%c0, %c0_2, %c0_3] : memref<1x216x512xbf16, #tpu.memory_space<vmem>>, vector<1x216x512xbf16>
    %6 = vector.shape_cast %5 : vector<1x216x512xbf16> to vector<216x512xbf16>
    %c0_4 = arith.constant 0 : index
    %c0_5 = arith.constant 0 : index
    %c0_6 = arith.constant 0 : index
    %7 = vector.load %arg3[%c0_4, %c0_5, %c0_6] : memref<1x512x64xbf16, #tpu.memory_space<vmem>>, vector<1x512x64xbf16>
    %8 = vector.shape_cast %7 : vector<1x512x64xbf16> to vector<512x64xbf16>
    %cst = arith.constant dense<0.000000e+00> : vector<216x64xf32>
    %9 = tpu.matmul %6, %8, %cst {dimension_numbers = #tpu.dot_dimension_numbers<[1], [0], [0], [1], [0, 0, 1, 1], [], []>} : vector<216x512xbf16>, vector<512x64xbf16>, vector<216x64xf32> -> vector<216x64xf32>
    %c0_7 = arith.constant 0 : index
    %c0_8 = arith.constant 0 : index
    %10 = vector.load %arg4[%c0_7, %c0_8] : memref<1x64xf32, #tpu.memory_space<vmem>>, vector<1x64xf32>
    %11 = vector.broadcast %10 : vector<1x64xf32> to vector<216x64xf32>
    %12 = arith.addf %9, %11 : vector<216x64xf32>
    %c0_9 = arith.constant 0 : index
    %c0_10 = arith.constant 0 : index
    %c0_11 = arith.constant 0 : index
    %13 = vector.load %arg5[%c0_9, %c0_10, %c0_11] : memref<1x216x64xf32, #tpu.memory_space<vmem>>, vector<1x216x64xf32>
    %14 = vector.shape_cast %13 : vector<1x216x64xf32> to vector<216x64xf32>
    %15 = vector.shape_cast %12 : vector<216x64xf32> to vector<1x216x64xf32>
    tpu.vector_store %arg5[%c0_9, %c0_10, %c0_11], %15 {strides = array<i32>} : memref<1x216x64xf32, #tpu.memory_space<vmem>>, vector<1x216x64xf32>,
    %c0_12 = arith.constant 0 : index
    %c0_13 = arith.constant 0 : index
    %16 = vector.load %arg6[%c0_12, %c0_13] : memref<1x64xf32, #tpu.memory_space<vmem>>, vector<1x64xf32>
    %cst_14 = arith.constant dense<0.000000e+00> : vector<64xf32>
    %17 = vector.multi_reduction <add>, %12, %cst_14 [0] : vector<216x64xf32> to vector<64xf32>
    %18 = vector.shape_cast %17 : vector<64xf32> to vector<1x64xf32>
    %19 = arith.addf %16, %18 : vector<1x64xf32>
    %c0_15 = arith.constant 0 : index
    %c0_16 = arith.constant 0 : index
    %20 = vector.load %arg6[%c0_15, %c0_16] : memref<1x64xf32, #tpu.memory_space<vmem>>, vector<1x64xf32>
    tpu.vector_store %arg6[%c0_15, %c0_16], %19 {strides = array<i32>} : memref<1x64xf32, #tpu.memory_space<vmem>>, vector<1x64xf32>,
    %c0_17 = arith.constant 0 : index
    %c0_18 = arith.constant 0 : index
    %21 = vector.load %arg7[%c0_17, %c0_18] : memref<1x64xf32, #tpu.memory_space<vmem>>, vector<1x64xf32>
    %22 = arith.mulf %12, %12 : vector<216x64xf32>
    %cst_19 = arith.constant dense<0.000000e+00> : vector<64xf32>
    %23 = vector.multi_reduction <add>, %22, %cst_19 [0] : vector<216x64xf32> to vector<64xf32>
    %24 = vector.shape_cast %23 : vector<64xf32> to vector<1x64xf32>
    %25 = arith.addf %21, %24 : vector<1x64xf32>
    %c0_20 = arith.constant 0 : index
    %c0_21 = arith.constant 0 : index
    %26 = vector.load %arg7[%c0_20, %c0_21] : memref<1x64xf32, #tpu.memory_space<vmem>>, vector<1x64xf32>
    tpu.vector_store %arg7[%c0_20, %c0_21], %25 {strides = array<i32>} : memref<1x64xf32, #tpu.memory_space<vmem>>, vector<1x64xf32>,
    return
  }
  func.func @transform_0(%arg0: i32, %arg1: i32) -> (i32, i32, i32) {
    %c0_i32 = arith.constant 0 : i32
    %c0_i32_0 = arith.constant 0 : i32
    return %arg0, %arg1, %c0_i32 : i32, i32, i32
  }
  func.func @transform_1(%arg0: i32, %arg1: i32) -> (i32, i32, i32) {
    %c0_i32 = arith.constant 0 : i32
    %c0_i32_0 = arith.constant 0 : i32
    %c0_i32_1 = arith.constant 0 : i32
    return %arg0, %c0_i32, %c0_i32_0 : i32, i32, i32
  }
  func.func @transform_2(%arg0: i32, %arg1: i32) -> (i32, i32) {
    %c0_i32 = arith.constant 0 : i32
    %c0_i32_0 = arith.constant 0 : i32
    %c0_i32_1 = arith.constant 0 : i32
    return %c0_i32, %c0_i32_0 : i32, i32
  }
  func.func @transform_3(%arg0: i32, %arg1: i32) -> (i32, i32, i32) {
    %c0_i32 = arith.constant 0 : i32
    %c0_i32_0 = arith.constant 0 : i32
    return %arg0, %arg1, %c0_i32 : i32, i32, i32
  }
  func.func @transform_4(%arg0: i32, %arg1: i32) -> (i32, i32) {
    %c0_i32 = arith.constant 0 : i32
    %c0_i32_0 = arith.constant 0 : i32
    %c0_i32_1 = arith.constant 0 : i32
    return %c0_i32, %c0_i32_0 : i32, i32
  }
  func.func @transform_5(%arg0: i32, %arg1: i32) -> (i32, i32) {
    %c0_i32 = arith.constant 0 : i32
    %c0_i32_0 = arith.constant 0 : i32
    %c0_i32_1 = arith.constant 0 : i32
    return %c0_i32, %c0_i32_0 : i32, i32
  }
}

module attributes {stable_mosaic.version = 11 : i64} {
  func.func @_scale_relu_kernel(%arg0: i32, %arg1: memref<864x64xf32, #tpu.memory_space<vmem>>, %arg2: memref<1x64xf32, #tpu.memory_space<vmem>>, %arg3: memref<1x64xf32, #tpu.memory_space<vmem>>, %arg4: memref<864x64xbf16, #tpu.memory_space<vmem>>) attributes {dimension_semantics = [#tpu.dimension_semantics<parallel>], iteration_bounds = array<i64: 1>, scalar_prefetch = 0 : i64, scratch_operands = 0 : i64, tpu.core_type = #tpu.core_type<tc>, window_params = [{transform_indices = @transform_0, window_bounds = array<i64: 864, 64>}, {pipeline_mode = #tpu.pipeline_mode<synchronous>, transform_indices = @transform_1, window_bounds = array<i64: 1, 64>}, {pipeline_mode = #tpu.pipeline_mode<synchronous>, transform_indices = @transform_2, window_bounds = array<i64: 1, 64>}, {transform_indices = @transform_3, window_bounds = array<i64: 864, 64>}]} {
    %c0 = arith.constant 0 : index
    %c0_0 = arith.constant 0 : index
    %0 = vector.load %arg1[%c0, %c0_0] : memref<864x64xf32, #tpu.memory_space<vmem>>, vector<864x64xf32>
    %c0_1 = arith.constant 0 : index
    %c0_2 = arith.constant 0 : index
    %1 = vector.load %arg2[%c0_1, %c0_2] : memref<1x64xf32, #tpu.memory_space<vmem>>, vector<1x64xf32>
    %2 = vector.broadcast %1 : vector<1x64xf32> to vector<864x64xf32>
    %3 = arith.mulf %0, %2 : vector<864x64xf32>
    %c0_3 = arith.constant 0 : index
    %c0_4 = arith.constant 0 : index
    %4 = vector.load %arg3[%c0_3, %c0_4] : memref<1x64xf32, #tpu.memory_space<vmem>>, vector<1x64xf32>
    %5 = vector.broadcast %4 : vector<1x64xf32> to vector<864x64xf32>
    %6 = arith.addf %3, %5 : vector<864x64xf32>
    %cst = arith.constant 0.000000e+00 : f32
    %7 = vector.broadcast %cst : f32 to vector<864x64xf32>
    %8 = arith.maximumf %6, %7 : vector<864x64xf32>
    %9 = arith.truncf %8 : vector<864x64xf32> to vector<864x64xbf16>
    %c0_5 = arith.constant 0 : index
    %c0_6 = arith.constant 0 : index
    %10 = vector.load %arg4[%c0_5, %c0_6] : memref<864x64xbf16, #tpu.memory_space<vmem>>, vector<864x64xbf16>
    tpu.vector_store %arg4[%c0_5, %c0_6], %9 {strides = array<i32>} : memref<864x64xbf16, #tpu.memory_space<vmem>>, vector<864x64xbf16>,
    return
  }
  func.func @transform_0(%arg0: i32) -> (i32, i32) {
    %c0_i32 = arith.constant 0 : i32
    %c0_i32_0 = arith.constant 0 : i32
    return %arg0, %c0_i32 : i32, i32
  }
  func.func @transform_1(%arg0: i32) -> (i32, i32) {
    %c0_i32 = arith.constant 0 : i32
    %c0_i32_0 = arith.constant 0 : i32
    %c0_i32_1 = arith.constant 0 : i32
    return %c0_i32, %c0_i32_0 : i32, i32
  }
  func.func @transform_2(%arg0: i32) -> (i32, i32) {
    %c0_i32 = arith.constant 0 : i32
    %c0_i32_0 = arith.constant 0 : i32
    %c0_i32_1 = arith.constant 0 : i32
    return %c0_i32, %c0_i32_0 : i32, i32
  }
  func.func @transform_3(%arg0: i32) -> (i32, i32) {
    %c0_i32 = arith.constant 0 : i32
    %c0_i32_0 = arith.constant 0 : i32
    return %arg0, %c0_i32 : i32, i32
  }
}

module attributes {stable_mosaic.version = 11 : i64} {
  func.func @_deconv_tanh_kernel(%arg0: i32, %arg1: i32, %arg2: memref<1x256x864xbf16, #tpu.memory_space<vmem>>, %arg3: memref<1x6x256xbf16, #tpu.memory_space<vmem>>, %arg4: memref<6x1xf32, #tpu.memory_space<vmem>>, %arg5: memref<1x6x864xf32, #tpu.memory_space<vmem>>) attributes {dimension_semantics = [#tpu.dimension_semantics<parallel>, #tpu.dimension_semantics<parallel>], iteration_bounds = array<i64: 4, 1>, scalar_prefetch = 0 : i64, scratch_operands = 0 : i64, tpu.core_type = #tpu.core_type<tc>, window_params = [{transform_indices = @transform_0, window_bounds = array<i64: 1, 256, 864>}, {transform_indices = @transform_1, window_bounds = array<i64: 1, 6, 256>}, {pipeline_mode = #tpu.pipeline_mode<synchronous>, transform_indices = @transform_2, window_bounds = array<i64: 6, 1>}, {transform_indices = @transform_3, window_bounds = array<i64: 1, 6, 864>}]} {
    %c0 = arith.constant 0 : index
    %c0_0 = arith.constant 0 : index
    %c0_1 = arith.constant 0 : index
    %0 = vector.load %arg3[%c0, %c0_0, %c0_1] : memref<1x6x256xbf16, #tpu.memory_space<vmem>>, vector<1x6x256xbf16>
    %1 = vector.shape_cast %0 : vector<1x6x256xbf16> to vector<6x256xbf16>
    %c0_2 = arith.constant 0 : index
    %c0_3 = arith.constant 0 : index
    %c0_4 = arith.constant 0 : index
    %2 = vector.load %arg2[%c0_2, %c0_3, %c0_4] : memref<1x256x864xbf16, #tpu.memory_space<vmem>>, vector<1x256x864xbf16>
    %3 = vector.shape_cast %2 : vector<1x256x864xbf16> to vector<256x864xbf16>
    %cst = arith.constant dense<0.000000e+00> : vector<6x864xf32>
    %4 = tpu.matmul %1, %3, %cst {dimension_numbers = #tpu.dot_dimension_numbers<[1], [0], [0], [1], [0, 0, 1, 1], [], []>} : vector<6x256xbf16>, vector<256x864xbf16>, vector<6x864xf32> -> vector<6x864xf32>
    %c0_5 = arith.constant 0 : index
    %c0_6 = arith.constant 0 : index
    %5 = vector.load %arg4[%c0_5, %c0_6] : memref<6x1xf32, #tpu.memory_space<vmem>>, vector<6x1xf32>
    %6 = vector.broadcast %5 : vector<6x1xf32> to vector<6x864xf32>
    %7 = arith.addf %4, %6 : vector<6x864xf32>
    %8 = math.tanh %7 : vector<6x864xf32>
    %c0_7 = arith.constant 0 : index
    %c0_8 = arith.constant 0 : index
    %c0_9 = arith.constant 0 : index
    %9 = vector.load %arg5[%c0_7, %c0_8, %c0_9] : memref<1x6x864xf32, #tpu.memory_space<vmem>>, vector<1x6x864xf32>
    %10 = vector.shape_cast %9 : vector<1x6x864xf32> to vector<6x864xf32>
    %11 = vector.shape_cast %8 : vector<6x864xf32> to vector<1x6x864xf32>
    tpu.vector_store %arg5[%c0_7, %c0_8, %c0_9], %11 {strides = array<i32>} : memref<1x6x864xf32, #tpu.memory_space<vmem>>, vector<1x6x864xf32>,
    return
  }
  func.func @transform_0(%arg0: i32, %arg1: i32) -> (i32, i32, i32) {
    %c0_i32 = arith.constant 0 : i32
    %c0_i32_0 = arith.constant 0 : i32
    return %arg0, %c0_i32, %arg1 : i32, i32, i32
  }
  func.func @transform_1(%arg0: i32, %arg1: i32) -> (i32, i32, i32) {
    %c0_i32 = arith.constant 0 : i32
    %c0_i32_0 = arith.constant 0 : i32
    %c0_i32_1 = arith.constant 0 : i32
    return %arg0, %c0_i32, %c0_i32_0 : i32, i32, i32
  }
  func.func @transform_2(%arg0: i32, %arg1: i32) -> (i32, i32) {
    %c0_i32 = arith.constant 0 : i32
    %c0_i32_0 = arith.constant 0 : i32
    %c0_i32_1 = arith.constant 0 : i32
    return %c0_i32, %c0_i32_0 : i32, i32
  }
  func.func @transform_3(%arg0: i32, %arg1: i32) -> (i32, i32, i32) {
    %c0_i32 = arith.constant 0 : i32
    %c0_i32_0 = arith.constant 0 : i32
    return %arg0, %c0_i32, %arg1 : i32, i32, i32
  }
}

</mosaic_0001>

<llo_original>
// kernel: wgan_g_forward.9
$region0: #{wgan_g_forward.9}
  #allocation0 [shape = 'u32[]', space=smem, size = 0x4, offset = 0x4, fixed_abs, tag = 'smem constant byte address 0x4 - core index']
  #allocation1 [shape = 'u32[144,128]{1,0:T(1,128)}', space=vmem, size = 0x12000, scoped, tag = 'internal scratch']
  %s0 = inlined_call_operand.vmem [shape: f32[54,256], index: 0, kind: input, shape index: {}]
  %s1 = inlined_call_operand.vmem [shape: f32[1,256], index: 1, kind: output, shape index: {0}]
  %s2 = inlined_call_operand.vmem [shape: f32[1,256], index: 2, kind: output, shape index: {1}]
  %3 = xla_tuple %s1, %s2
  %s4 = sld [smem:[#allocation0]]
  $region26: #{wgan_g_forward.9} parent=0
    _
  %s6 = ssub.s32 1, %s4
  %s7 = scalar_select 0, %s6, %s4
  // Predicated region
  $region2: #{wgan_g_forward.9} parent=0 // pred_check
    _
  $region3: #{wgan_g_forward.9} parent=0 // pred_check_branch
    %9 = sbr.rel (0) target = $region5
  $region4: #{wgan_g_forward.9} parent=0 // pred_region
    _
  $region5: #{wgan_g_forward.9} parent=0 // pred_fallthru
    _
  %p10 = scmp.eq.s32.totalorder 0, 0
  // Predicated region
  $region6: #{wgan_g_forward.9} parent=0 // pred_check
    %p11 = pneg %p10
  $region7: #{wgan_g_forward.9} parent=0 // pred_check_branch
    %13 = sbr.rel (%p11) target = $region9
  $region8: #{wgan_g_forward.9} parent=0 // pred_region
    %v14 = vlaneseq
    %vm15 = vcmp.ge.s32.totalorder %v14, 0
    %vm16 = vcmp.lt.s32.totalorder %v14, 256
    %vm17 = vmand %vm15, %vm16
    %18 = vst.msk [vmem:[%s1] sm:$0x3] %vm17, 0.0
    %19 = vst.msk [vmem:[%s2] sm:$0x3] %vm17, 0.0
  $region9: #{wgan_g_forward.9} parent=0 // pred_fallthru
    _
  %v20 = vld [vmem:[%s0] sm:$0xff]
  %v21 = vld [vmem:[%s0 + $0x8] sm:$0xff]
  %v22 = vld [vmem:[%s0 + $0x10] sm:$0xff]
  %v23 = vld [vmem:[%s0 + $0x18] sm:$0xff]
  %v24 = vld [vmem:[%s0 + $0x20] sm:$0xff]
  %v25 = vld [vmem:[%s0 + $0x28] sm:$0xff]
  %v26 = vld [vmem:[%s0 + $0x30] sm:$0xff]
  %v27 = vld [vmem:[%s0 + $0x38] sm:$0xff]
  %v28 = vld [vmem:[%s0 + $0x40] sm:$0xff]
  %v29 = vld [vmem:[%s0 + $0x48] sm:$0xff]
  %v30 = vld [vmem:[%s0 + $0x50] sm:$0xff]
  %v31 = vld [vmem:[%s0 + $0x58] sm:$0xff]
  %v32 = vld [vmem:[%s0 + $0x60] sm:$0x3f]
  %v33 = vld [vmem:[%s0 + $0x68] sm:$0x3f]
  %v34 = vld [vmem:[%s1] sm:$0x3]
  %v35 = vadd.f32 %v20, %v22
  %v36 = vadd.f32 %v35, %v24
  %v37 = vadd.f32 %v36, %v26
  %v38 = vadd.f32 %v37, %v28
  %v39 = vadd.f32 %v38, %v30
  %vm40 = vcmask 1045504
  %v41 = vsel %vm40, %v32, 0.0
  %v42 = vadd.f32 %v39, %v41
  %v43 = vrot.slane %v42, 4
  %v44 = vadd.f32 %v42, %v43
  %v45 = vrot.slane %v44, 2
  %v46 = vadd.f32 %v44, %v45
  %v47 = vrot.slane %v46, 1
  %v48 = vadd.f32 %v46, %v47
  %v49 = vadd.f32 %v21, %v23
  %v50 = vadd.f32 %v49, %v25
  %v51 = vadd.f32 %v50, %v27
  %v52 = vadd.f32 %v51, %v29
  %v53 = vadd.f32 %v52, %v31
  %v54 = vsel %vm40, %v33, 0.0
  %v55 = vadd.f32 %v53, %v54
  %v56 = vrot.slane %v55, 4
  %v57 = vadd.f32 %v55, %v56
  %v58 = vrot.slane %v57, 2
  %v59 = vadd.f32 %v57, %v58
  %v60 = vrot.slane %v59, 1
  %v61 = vadd.f32 %v59, %v60
  %v64 = vcombine.low %v48, %v61
  %v66 = vunpack.c.l.s4 1966171168
  %v67 = vunpack.c.0.s8 %v66
  %v68 = vlaneseq
  %v69 = vshrl.u32 %v68, 7
  %v70 = vsub.s32 %v67, %v69
  %v71 = vrot.slane %v64, %v70
  %v73 = vunpack.c.l.s4 1966171168
  %v74 = vunpack.c.0.s8 %v73
  %v75 = vlaneseq
  %v76 = vshrl.u32 %v75, 7
  %v77 = vsub.s32 %v74, %v76
  %v78 = vrot.slane %v71, %v77
  %v80 = vadd.f32 %v34, %v78
  %v81 = vlaneseq
  %vm82 = vcmp.ge.s32.totalorder %v81, 0
  %vm83 = vcmp.lt.s32.totalorder %v81, 256
  %vm84 = vmand %vm82, %vm83
  %85 = vst.msk [vmem:[%s1] sm:$0x3] %vm84, %v80
  %v86 = vld [vmem:[%s2] sm:$0x3]
  %v87 = vmul.f32 %v20, %v20
  %v88 = vmul.f32 %v21, %v21
  %v89 = vmul.f32 %v22, %v22
  %v90 = vmul.f32 %v23, %v23
  %v91 = vmul.f32 %v24, %v24
  %v92 = vmul.f32 %v25, %v25
  %v93 = vmul.f32 %v26, %v26
  %v94 = vmul.f32 %v27, %v27
  %v95 = vmul.f32 %v28, %v28
  %v96 = vmul.f32 %v29, %v29
  %v97 = vmul.f32 %v30, %v30
  %v98 = vmul.f32 %v31, %v31
  %v99 = vmul.f32 %v32, %v32
  %v100 = vmul.f32 %v33, %v33
  %v101 = vadd.f32 %v87, %v89
  %v102 = vadd.f32 %v101, %v91
  %v103 = vadd.f32 %v102, %v93
  %v104 = vadd.f32 %v103, %v95
  %v105 = vadd.f32 %v104, %v97
  %v106 = vsel %vm40, %v99, 0.0
  %v107 = vadd.f32 %v105, %v106
  %v108 = vrot.slane %v107, 4
  %v109 = vadd.f32 %v107, %v108
  %v110 = vrot.slane %v109, 2
  %v111 = vadd.f32 %v109, %v110
  %v112 = vrot.slane %v111, 1
  %v113 = vadd.f32 %v111, %v112
  %v114 = vadd.f32 %v88, %v90
  %v115 = vadd.f32 %v114, %v92
  %v116 = vadd.f32 %v115, %v94
  %v117 = vadd.f32 %v116, %v96
  %v118 = vadd.f32 %v117, %v98
  %v119 = vsel %vm40, %v100, 0.0
  %v120 = vadd.f32 %v118, %v119
  %v121 = vrot.slane %v120, 4
  %v122 = vadd.f32 %v120, %v121
  %v123 = vrot.slane %v122, 2
  %v124 = vadd.f32 %v122, %v123
  %v125 = vrot.slane %v124, 1
  %v126 = vadd.f32 %v124, %v125
  %v129 = vcombine.low %v113, %v126
  %v131 = vunpack.c.l.s4 1966171168
  %v132 = vunpack.c.0.s8 %v131
  %v133 = vlaneseq
  %v134 = vshrl.u32 %v133, 7
  %v135 = vsub.s32 %v132, %v134
  %v136 = vrot.slane %v129, %v135
  %v138 = vunpack.c.l.s4 1966171168
  %v139 = vunpack.c.0.s8 %v138
  %v140 = vlaneseq
  %v141 = vshrl.u32 %v140, 7
  %v142 = vsub.s32 %v139, %v141
  %v143 = vrot.slane %v136, %v142
  %v145 = vadd.f32 %v86, %v143
  %146 = vst.msk [vmem:[%s2] sm:$0x3] %vm84, %v145
  // Predicated region
  $region10: #{wgan_g_forward.9} parent=0 // pred_check
    _
  $region11: #{wgan_g_forward.9} parent=0 // pred_check_branch
    %148 = sbr.rel (0) target = $region13
  $region12: #{wgan_g_forward.9} parent=0 // pred_region
    _
  $region13: #{wgan_g_forward.9} parent=0 // pred_fallthru
    _
  // Predicated region
  $region14: #{wgan_g_forward.9} parent=0 // pred_check
    _
  $region15: #{wgan_g_forward.9} parent=0 // pred_check_branch
    %150 = sbr.rel (0) target = $region17
  $region16: #{wgan_g_forward.9} parent=0 // pred_region
    _
  $region17: #{wgan_g_forward.9} parent=0 // pred_fallthru
    _
  // Predicated region
  $region18: #{wgan_g_forward.9} parent=0 // pred_check
    _
  $region19: #{wgan_g_forward.9} parent=0 // pred_check_branch
    %152 = sbr.rel (0) target = $region21
  $region20: #{wgan_g_forward.9} parent=0 // pred_region
    _
  $region21: #{wgan_g_forward.9} parent=0 // pred_fallthru
    _
  // Predicated region
  $region22: #{wgan_g_forward.9} parent=0 // pred_check
    _
  $region23: #{wgan_g_forward.9} parent=0 // pred_check_branch
    %154 = sbr.rel (0) target = $region25
  $region24: #{wgan_g_forward.9} parent=0 // pred_region
    _
  $region25: #{wgan_g_forward.9} parent=0 // pred_fallthru
    _

// kernel: wgan_g_forward.10
$region0: #{wgan_g_forward.10}
  #allocation0 [shape = 'u32[]', space=smem, size = 0x4, offset = 0x4, fixed_abs, tag = 'smem constant byte address 0x4 - core index']
  #allocation1 [shape = 'u32[144,128]{1,0:T(1,128)}', space=vmem, size = 0x12000, scoped, tag = 'internal scratch']
  %s0 = inlined_call_operand.vmem [shape: f32[54,256], index: 0, kind: input, shape index: {}]
  %s1 = inlined_call_operand.vmem [shape: f32[1,256], index: 1, kind: input, shape index: {}]
  %s2 = inlined_call_operand.vmem [shape: f32[1,256], index: 2, kind: input, shape index: {}]
  %s3 = inlined_call_operand.vmem [shape: bf16[54,256], index: 3, kind: output, shape index: {}]
  %s4 = sld [smem:[#allocation0]]
  $region22: #{wgan_g_forward.10} parent=0
    _
  %s6 = ssub.s32 1, %s4
  %s7 = scalar_select 0, %s6, %s4
  // Predicated region
  $region2: #{wgan_g_forward.10} parent=0 // pred_check
    _
  $region3: #{wgan_g_forward.10} parent=0 // pred_check_branch
    %9 = sbr.rel (0) target = $region5
  $region4: #{wgan_g_forward.10} parent=0 // pred_region
    _
  $region5: #{wgan_g_forward.10} parent=0 // pred_fallthru
    _
  // Predicated region
  $region6: #{wgan_g_forward.10} parent=0 // pred_check
    _
  $region7: #{wgan_g_forward.10} parent=0 // pred_check_branch
    %11 = sbr.rel (0) target = $region9
  $region8: #{wgan_g_forward.10} parent=0 // pred_region
    _
  $region9: #{wgan_g_forward.10} parent=0 // pred_fallthru
    _
  // Predicated region
  $region10: #{wgan_g_forward.10} parent=0 // pred_check
    _
  $region11: #{wgan_g_forward.10} parent=0 // pred_check_branch
    %13 = sbr.rel (0) target = $region13
  $region12: #{wgan_g_forward.10} parent=0 // pred_region
    _
  $region13: #{wgan_g_forward.10} parent=0 // pred_fallthru
    _
  %v14 = vld [vmem:[%s0] sm:$0xff]
  %v15 = vld [vmem:[%s0 + $0x8] sm:$0xff]
  %v16 = vld [vmem:[%s0 + $0x10] sm:$0xff]
  %v17 = vld [vmem:[%s0 + $0x18] sm:$0xff]
  %v18 = vld [vmem:[%s0 + $0x20] sm:$0xff]
  %v19 = vld [vmem:[%s0 + $0x28] sm:$0xff]
  %v20 = vld [vmem:[%s0 + $0x30] sm:$0xff]
  %v21 = vld [vmem:[%s0 + $0x38] sm:$0xff]
  %v22 = vld [vmem:[%s0 + $0x40] sm:$0xff]
  %v23 = vld [vmem:[%s0 + $0x48] sm:$0xff]
  %v24 = vld [vmem:[%s0 + $0x50] sm:$0xff]
  %v25 = vld [vmem:[%s0 + $0x58] sm:$0xff]
  %v26 = vld [vmem:[%s0 + $0x60] sm:$0x3f]
  %v27 = vld [vmem:[%s0 + $0x68] sm:$0x3f]
  %v28 = vld [vmem:[%s1] sm:$0x3]
  %v30 = vlaneseq
  %v31 = vshrl.u32 %v30, 7
  %v32 = vsub.s32 0, %v31
  %v33 = vrot.slane %v28, %v32
  %v34 = vlaneseq
  %v35 = vshrl.u32 %v34, 7
  %v36 = vsub.s32 1, %v35
  %v37 = vrot.slane %v28, %v36
  %v40 = vmul.f32 %v14, %v33
  %v41 = vmul.f32 %v15, %v37
  %v42 = vmul.f32 %v16, %v33
  %v43 = vmul.f32 %v17, %v37
  %v44 = vmul.f32 %v18, %v33
  %v45 = vmul.f32 %v19, %v37
  %v46 = vmul.f32 %v20, %v33
  %v47 = vmul.f32 %v21, %v37
  %v48 = vmul.f32 %v22, %v33
  %v49 = vmul.f32 %v23, %v37
  %v50 = vmul.f32 %v24, %v33
  %v51 = vmul.f32 %v25, %v37
  %v52 = vmul.f32 %v26, %v33
  %v53 = vmul.f32 %v27, %v37
  %v54 = vld [vmem:[%s2] sm:$0x3]
  %v56 = vlaneseq
  %v57 = vshrl.u32 %v56, 7
  %v58 = vsub.s32 0, %v57
  %v59 = vrot.slane %v54, %v58
  %v60 = vlaneseq
  %v61 = vshrl.u32 %v60, 7
  %v62 = vsub.s32 1, %v61
  %v63 = vrot.slane %v54, %v62
  %v66 = vadd.f32 %v40, %v59
  %v67 = vadd.f32 %v41, %v63
  %v68 = vadd.f32 %v42, %v59
  %v69 = vadd.f32 %v43, %v63
  %v70 = vadd.f32 %v44, %v59
  %v71 = vadd.f32 %v45, %v63
  %v72 = vadd.f32 %v46, %v59
  %v73 = vadd.f32 %v47, %v63
  %v74 = vadd.f32 %v48, %v59
  %v75 = vadd.f32 %v49, %v63
  %v76 = vadd.f32 %v50, %v59
  %v77 = vadd.f32 %v51, %v63
  %v78 = vadd.f32 %v52, %v59
  %v79 = vadd.f32 %v53, %v63
  %v80 = vmax.f32 %v66, 0.0
  %v81 = vmax.f32 %v67, 0.0
  %v82 = vmax.f32 %v68, 0.0
  %v83 = vmax.f32 %v69, 0.0
  %v84 = vmax.f32 %v70, 0.0
  %v85 = vmax.f32 %v71, 0.0
  %v86 = vmax.f32 %v72, 0.0
  %v87 = vmax.f32 %v73, 0.0
  %v88 = vmax.f32 %v74, 0.0
  %v89 = vmax.f32 %v75, 0.0
  %v90 = vmax.f32 %v76, 0.0
  %v91 = vmax.f32 %v77, 0.0
  %v92 = vmax.f32 %v78, 0.0
  %v93 = vmax.f32 %v79, 0.0
  %v94 = vpack.c.bf16 %v82, %v80
  %v95 = vpack.c.bf16 %v83, %v81
  %v96 = vpack.c.bf16 %v86, %v84
  %v97 = vpack.c.bf16 %v87, %v85
  %v98 = vpack.c.bf16 %v90, %v88
  %v99 = vpack.c.bf16 %v91, %v89
  %v100 = vpack.c.bf16 %v92, %v92
  %v101 = vpack.c.bf16 %v93, %v93
  %v110 = vunpack.c.l.b16 %v94
  %v111 = vunpack.c.l.b16 %v95
  %v112 = vunpack.c.h.b16 %v94
  %v113 = vunpack.c.h.b16 %v95
  %v114 = vunpack.c.l.b16 %v96
  %v115 = vunpack.c.l.b16 %v97
  %v116 = vunpack.c.h.b16 %v96
  %v117 = vunpack.c.h.b16 %v97
  %v118 = vunpack.c.l.b16 %v98
  %v119 = vunpack.c.l.b16 %v99
  %v120 = vunpack.c.h.b16 %v98
  %v121 = vunpack.c.h.b16 %v99
  %v122 = vunpack.c.l.b16 %v100
  %v123 = vunpack.c.l.b16 %v101
  %v124 = vpack.c.b16 %v111, %v110
  %v125 = vpack.c.b16 %v113, %v112
  %v126 = vpack.c.b16 %v115, %v114
  %v127 = vpack.c.b16 %v117, %v116
  %v128 = vpack.c.b16 %v119, %v118
  %v129 = vpack.c.b16 %v121, %v120
  %v130 = vpack.c.b16 %v123, %v122
  %138 = vst [vmem:[%s3] sm:$0xff] %v124
  %139 = vst [vmem:[%s3 + $0x8] sm:$0xff] %v125
  %140 = vst [vmem:[%s3 + $0x10] sm:$0xff] %v126
  %141 = vst [vmem:[%s3 + $0x18] sm:$0xff] %v127
  %142 = vst [vmem:[%s3 + $0x20] sm:$0xff] %v128
  %143 = vst [vmem:[%s3 + $0x28] sm:$0xff] %v129
  %144 = vst [vmem:[%s3 + $0x30] sm:$0x77] %v130
  // Predicated region
  $region14: #{wgan_g_forward.10} parent=0 // pred_check
    _
  $region15: #{wgan_g_forward.10} parent=0 // pred_check_branch
    %146 = sbr.rel (0) target = $region17
  $region16: #{wgan_g_forward.10} parent=0 // pred_region
    _
  $region17: #{wgan_g_forward.10} parent=0 // pred_fallthru
    _
  // Predicated region
  $region18: #{wgan_g_forward.10} parent=0 // pred_check
    _
  $region19: #{wgan_g_forward.10} parent=0 // pred_check_branch
    %148 = sbr.rel (0) target = $region21
  $region20: #{wgan_g_forward.10} parent=0 // pred_region
    _
  $region21: #{wgan_g_forward.10} parent=0 // pred_fallthru
    _

// kernel: wgan_g_forward.12
$region0: #{wgan_g_forward.12}
  #allocation0 [shape = 'u32[]', space=smem, size = 0x4, offset = 0x4, fixed_abs, tag = 'smem constant byte address 0x4 - core index']
  #allocation1 [shape = 'u32[144,128]{1,0:T(1,128)}', space=vmem, size = 0x12000, scoped, tag = 'internal scratch']
  %s0 = inlined_call_operand.vmem [shape: f32[216,128], index: 0, kind: input, shape index: {}]
  %s1 = inlined_call_operand.vmem [shape: f32[1,128], index: 1, kind: input, shape index: {}]
  %s2 = inlined_call_operand.vmem [shape: f32[1,128], index: 2, kind: input, shape index: {}]
  %s3 = inlined_call_operand.vmem [shape: bf16[216,128], index: 3, kind: output, shape index: {}]
  %s4 = sld [smem:[#allocation0]]
  $region22: #{wgan_g_forward.12} parent=0
    _
  %s6 = ssub.s32 1, %s4
  %s7 = scalar_select 0, %s6, %s4
  // Predicated region
  $region2: #{wgan_g_forward.12} parent=0 // pred_check
    _
  $region3: #{wgan_g_forward.12} parent=0 // pred_check_branch
    %9 = sbr.rel (0) target = $region5
  $region4: #{wgan_g_forward.12} parent=0 // pred_region
    _
  $region5: #{wgan_g_forward.12} parent=0 // pred_fallthru
    _
  // Predicated region
  $region6: #{wgan_g_forward.12} parent=0 // pred_check
    _
  $region7: #{wgan_g_forward.12} parent=0 // pred_check_branch
    %11 = sbr.rel (0) target = $region9
  $region8: #{wgan_g_forward.12} parent=0 // pred_region
    _
  $region9: #{wgan_g_forward.12} parent=0 // pred_fallthru
    _
  // Predicated region
  $region10: #{wgan_g_forward.12} parent=0 // pred_check
    _
  $region11: #{wgan_g_forward.12} parent=0 // pred_check_branch
    %13 = sbr.rel (0) target = $region13
  $region12: #{wgan_g_forward.12} parent=0 // pred_region
    _
  $region13: #{wgan_g_forward.12} parent=0 // pred_fallthru
    _
  %v14 = vld [vmem:[%s0] sm:$0xff]
  %v15 = vld [vmem:[%s0 + $0x8] sm:$0xff]
  %v16 = vld [vmem:[%s0 + $0x10] sm:$0xff]
  %v17 = vld [vmem:[%s0 + $0x18] sm:$0xff]
  %v18 = vld [vmem:[%s0 + $0x20] sm:$0xff]
  %v19 = vld [vmem:[%s0 + $0x28] sm:$0xff]
  %v20 = vld [vmem:[%s0 + $0x30] sm:$0xff]
  %v21 = vld [vmem:[%s0 + $0x38] sm:$0xff]
  %v22 = vld [vmem:[%s0 + $0x40] sm:$0xff]
  %v23 = vld [vmem:[%s0 + $0x48] sm:$0xff]
  %v24 = vld [vmem:[%s0 + $0x50] sm:$0xff]
  %v25 = vld [vmem:[%s0 + $0x58] sm:$0xff]
  %v26 = vld [vmem:[%s0 + $0x60] sm:$0xff]
  %v27 = vld [vmem:[%s0 + $0x68] sm:$0xff]
  %v28 = vld [vmem:[%s0 + $0x70] sm:$0xff]
  %v29 = vld [vmem:[%s0 + $0x78] sm:$0xff]
  %v30 = vld [vmem:[%s0 + $0x80] sm:$0xff]
  %v31 = vld [vmem:[%s0 + $0x88] sm:$0xff]
  %v32 = vld [vmem:[%s0 + $0x90] sm:$0xff]
  %v33 = vld [vmem:[%s0 + $0x98] sm:$0xff]
  %v34 = vld [vmem:[%s0 + $0xa0] sm:$0xff]
  %v35 = vld [vmem:[%s0 + $0xa8] sm:$0xff]
  %v36 = vld [vmem:[%s0 + $0xb0] sm:$0xff]
  %v37 = vld [vmem:[%s0 + $0xb8] sm:$0xff]
  %v38 = vld [vmem:[%s0 + $0xc0] sm:$0xff]
  %v39 = vld [vmem:[%s0 + $0xc8] sm:$0xff]
  %v40 = vld [vmem:[%s0 + $0xd0] sm:$0xff]
  %v41 = vld [vmem:[%s1] sm:$0x1]
  %v43 = vlaneseq
  %v44 = vshrl.u32 %v43, 7
  %v45 = vsub.s32 0, %v44
  %v46 = vrot.slane %v41, %v45
  %v48 = vmul.f32 %v14, %v46
  %v49 = vmul.f32 %v15, %v46
  %v50 = vmul.f32 %v16, %v46
  %v51 = vmul.f32 %v17, %v46
  %v52 = vmul.f32 %v18, %v46
  %v53 = vmul.f32 %v19, %v46
  %v54 = vmul.f32 %v20, %v46
  %v55 = vmul.f32 %v21, %v46
  %v56 = vmul.f32 %v22, %v46
  %v57 = vmul.f32 %v23, %v46
  %v58 = vmul.f32 %v24, %v46
  %v59 = vmul.f32 %v25, %v46
  %v60 = vmul.f32 %v26, %v46
  %v61 = vmul.f32 %v27, %v46
  %v62 = vmul.f32 %v28, %v46
  %v63 = vmul.f32 %v29, %v46
  %v64 = vmul.f32 %v30, %v46
  %v65 = vmul.f32 %v31, %v46
  %v66 = vmul.f32 %v32, %v46
  %v67 = vmul.f32 %v33, %v46
  %v68 = vmul.f32 %v34, %v46
  %v69 = vmul.f32 %v35, %v46
  %v70 = vmul.f32 %v36, %v46
  %v71 = vmul.f32 %v37, %v46
  %v72 = vmul.f32 %v38, %v46
  %v73 = vmul.f32 %v39, %v46
  %v74 = vmul.f32 %v40, %v46
  %v75 = vld [vmem:[%s2] sm:$0x1]
  %v77 = vlaneseq
  %v78 = vshrl.u32 %v77, 7
  %v79 = vsub.s32 0, %v78
  %v80 = vrot.slane %v75, %v79
  %v82 = vadd.f32 %v48, %v80
  %v83 = vadd.f32 %v49, %v80
  %v84 = vadd.f32 %v50, %v80
  %v85 = vadd.f32 %v51, %v80
  %v86 = vadd.f32 %v52, %v80
  %v87 = vadd.f32 %v53, %v80
  %v88 = vadd.f32 %v54, %v80
  %v89 = vadd.f32 %v55, %v80
  %v90 = vadd.f32 %v56, %v80
  %v91 = vadd.f32 %v57, %v80
  %v92 = vadd.f32 %v58, %v80
  %v93 = vadd.f32 %v59, %v80
  %v94 = vadd.f32 %v60, %v80
  %v95 = vadd.f32 %v61, %v80
  %v96 = vadd.f32 %v62, %v80
  %v97 = vadd.f32 %v63, %v80
  %v98 = vadd.f32 %v64, %v80
  %v99 = vadd.f32 %v65, %v80
  %v100 = vadd.f32 %v66, %v80
  %v101 = vadd.f32 %v67, %v80
  %v102 = vadd.f32 %v68, %v80
  %v103 = vadd.f32 %v69, %v80
  %v104 = vadd.f32 %v70, %v80
  %v105 = vadd.f32 %v71, %v80
  %v106 = vadd.f32 %v72, %v80
  %v107 = vadd.f32 %v73, %v80
  %v108 = vadd.f32 %v74, %v80
  %v109 = vmax.f32 %v82, 0.0
  %v110 = vmax.f32 %v83, 0.0
  %v111 = vmax.f32 %v84, 0.0
  %v112 = vmax.f32 %v85, 0.0
  %v113 = vmax.f32 %v86, 0.0
  %v114 = vmax.f32 %v87, 0.0
  %v115 = vmax.f32 %v88, 0.0
  %v116 = vmax.f32 %v89, 0.0
  %v117 = vmax.f32 %v90, 0.0
  %v118 = vmax.f32 %v91, 0.0
  %v119 = vmax.f32 %v92, 0.0
  %v120 = vmax.f32 %v93, 0.0
  %v121 = vmax.f32 %v94, 0.0
  %v122 = vmax.f32 %v95, 0.0
  %v123 = vmax.f32 %v96, 0.0
  %v124 = vmax.f32 %v97, 0.0
  %v125 = vmax.f32 %v98, 0.0
  %v126 = vmax.f32 %v99, 0.0
  %v127 = vmax.f32 %v100, 0.0
  %v128 = vmax.f32 %v101, 0.0
  %v129 = vmax.f32 %v102, 0.0
  %v130 = vmax.f32 %v103, 0.0
  %v131 = vmax.f32 %v104, 0.0
  %v132 = vmax.f32 %v105, 0.0
  %v133 = vmax.f32 %v106, 0.0
  %v134 = vmax.f32 %v107, 0.0
  %v135 = vmax.f32 %v108, 0.0
  %v136 = vpack.c.bf16 %v110, %v109
  %v137 = vpack.c.bf16 %v112, %v111
  %v138 = vpack.c.bf16 %v114, %v113
  %v139 = vpack.c.bf16 %v116, %v115
  %v140 = vpack.c.bf16 %v118, %v117
  %v141 = vpack.c.bf16 %v120, %v119
  %v142 = vpack.c.bf16 %v122, %v121
  %v143 = vpack.c.bf16 %v124, %v123
  %v144 = vpack.c.bf16 %v126, %v125
  %v145 = vpack.c.bf16 %v128, %v127
  %v146 = vpack.c.bf16 %v130, %v129
  %v147 = vpack.c.bf16 %v132, %v131
  %v148 = vpack.c.bf16 %v134, %v133
  %v149 = vpack.c.bf16 %v135, %v135
  %v164 = vunpack.c.l.b16 %v136
  %v165 = vunpack.c.h.b16 %v136
  %v166 = vunpack.c.l.b16 %v137
  %v167 = vunpack.c.h.b16 %v137
  %v168 = vunpack.c.l.b16 %v138
  %v169 = vunpack.c.h.b16 %v138
  %v170 = vunpack.c.l.b16 %v139
  %v171 = vunpack.c.h.b16 %v139
  %v172 = vunpack.c.l.b16 %v140
  %v173 = vunpack.c.h.b16 %v140
  %v174 = vunpack.c.l.b16 %v141
  %v175 = vunpack.c.h.b16 %v141
  %v176 = vunpack.c.l.b16 %v142
  %v177 = vunpack.c.h.b16 %v142
  %v178 = vunpack.c.l.b16 %v143
  %v179 = vunpack.c.h.b16 %v143
  %v180 = vunpack.c.l.b16 %v144
  %v181 = vunpack.c.h.b16 %v144
  %v182 = vunpack.c.l.b16 %v145
  %v183 = vunpack.c.h.b16 %v145
  %v184 = vunpack.c.l.b16 %v146
  %v185 = vunpack.c.h.b16 %v146
  %v186 = vunpack.c.l.b16 %v147
  %v187 = vunpack.c.h.b16 %v147
  %v188 = vunpack.c.l.b16 %v148
  %v189 = vunpack.c.h.b16 %v148
  %v190 = vunpack.c.l.b16 %v149
  %v191 = vpack.c.b16 %v164, %v164
  %v192 = vpack.c.b16 %v165, %v165
  %v193 = vpack.c.b16 %v166, %v166
  %v194 = vpack.c.b16 %v167, %v167
  %v195 = vpack.c.b16 %v168, %v168
  %v196 = vpack.c.b16 %v169, %v169
  %v197 = vpack.c.b16 %v170, %v170
  %v198 = vpack.c.b16 %v171, %v171
  %v199 = vpack.c.b16 %v172, %v172
  %v200 = vpack.c.b16 %v173, %v173
  %v201 = vpack.c.b16 %v174, %v174
  %v202 = vpack.c.b16 %v175, %v175
  %v203 = vpack.c.b16 %v176, %v176
  %v204 = vpack.c.b16 %v177, %v177
  %v205 = vpack.c.b16 %v178, %v178
  %v206 = vpack.c.b16 %v179, %v179
  %v207 = vpack.c.b16 %v180, %v180
  %v208 = vpack.c.b16 %v181, %v181
  %v209 = vpack.c.b16 %v182, %v182
  %v210 = vpack.c.b16 %v183, %v183
  %v211 = vpack.c.b16 %v184, %v184
  %v212 = vpack.c.b16 %v185, %v185
  %v213 = vpack.c.b16 %v186, %v186
  %v214 = vpack.c.b16 %v187, %v187
  %v215 = vpack.c.b16 %v188, %v188
  %v216 = vpack.c.b16 %v189, %v189
  %v217 = vpack.c.b16 %v190, %v190
  %245 = vst [vmem:[%s3] sm:$0xf] %v191
  %246 = vst [vmem:[%s3 + $0x4] sm:$0xf] %v192
  %247 = vst [vmem:[%s3 + $0x8] sm:$0xf] %v193
  %248 = vst [vmem:[%s3 + $0xc] sm:$0xf] %v194
  %249 = vst [vmem:[%s3 + $0x10] sm:$0xf] %v195
  %250 = vst [vmem:[%s3 + $0x14] sm:$0xf] %v196
  %251 = vst [vmem:[%s3 + $0x18] sm:$0xf] %v197
  %252 = vst [vmem:[%s3 + $0x1c] sm:$0xf] %v198
  %253 = vst [vmem:[%s3 + $0x20] sm:$0xf] %v199
  %254 = vst [vmem:[%s3 + $0x24] sm:$0xf] %v200
  %255 = vst [vmem:[%s3 + $0x28] sm:$0xf] %v201
  %256 = vst [vmem:[%s3 + $0x2c] sm:$0xf] %v202
  %257 = vst [vmem:[%s3 + $0x30] sm:$0xf] %v203
  %258 = vst [vmem:[%s3 + $0x34] sm:$0xf] %v204
  %259 = vst [vmem:[%s3 + $0x38] sm:$0xf] %v205
  %260 = vst [vmem:[%s3 + $0x3c] sm:$0xf] %v206
  %261 = vst [vmem:[%s3 + $0x40] sm:$0xf] %v207
  %262 = vst [vmem:[%s3 + $0x44] sm:$0xf] %v208
  %263 = vst [vmem:[%s3 + $0x48] sm:$0xf] %v209
  %264 = vst [vmem:[%s3 + $0x4c] sm:$0xf] %v210
  %265 = vst [vmem:[%s3 + $0x50] sm:$0xf] %v211
  %266 = vst [vmem:[%s3 + $0x54] sm:$0xf] %v212
  %267 = vst [vmem:[%s3 + $0x58] sm:$0xf] %v213
  %268 = vst [vmem:[%s3 + $0x5c] sm:$0xf] %v214
  %269 = vst [vmem:[%s3 + $0x60] sm:$0xf] %v215
  %270 = vst [vmem:[%s3 + $0x64] sm:$0xf] %v216
  %271 = vst [vmem:[%s3 + $0x68] sm:$0xf] %v217
  // Predicated region
  $region14: #{wgan_g_forward.12} parent=0 // pred_check
    _
  $region15: #{wgan_g_forward.12} parent=0 // pred_check_branch
    %273 = sbr.rel (0) target = $region17
  $region16: #{wgan_g_forward.12} parent=0 // pred_region
    _
  $region17: #{wgan_g_forward.12} parent=0 // pred_fallthru
    _
  // Predicated region
  $region18: #{wgan_g_forward.12} parent=0 // pred_check
    _
  $region19: #{wgan_g_forward.12} parent=0 // pred_check_branch
    %275 = sbr.rel (0) target = $region21
  $region20: #{wgan_g_forward.12} parent=0 // pred_region
    _
  $region21: #{wgan_g_forward.12} parent=0 // pred_fallthru
    _

// kernel: wgan_g_forward.8
$region0: #{wgan_g_forward.8}
  #allocation0 [shape = 'u32[]', space=smem, size = 0x4, offset = 0x4, fixed_abs, tag = 'smem constant byte address 0x4 - core index']
  #allocation1 [shape = 'u32[144,128]{1,0:T(1,128)}', space=vmem, size = 0x12000, scoped, tag = 'internal scratch']
  %s0 = inlined_call_operand.vmem [shape: f32[2,128], index: 0, kind: input, shape index: {}]
  %s1 = inlined_call_operand.hbm [shape: f32[128,6912], index: 1, kind: input, shape index: {}]
  %s2 = inlined_call_operand.hbm [shape: f32[1,6912], index: 2, kind: input, shape index: {}]
  %s3 = inlined_call_operand.vmem [shape: f32[2,6912], index: 3, kind: output, shape index: {}]
  %s4 = sld [smem:[#allocation0]]
  $region30: #{wgan_g_forward.8} parent=0
    _
  %s6 = ssub.s32 1, %s4
  %s7 = scalar_select 0, %s6, %s4
  $region1: #{wgan_g_forward.8} parent=0
    #allocation2 [shape = 'u8[3538944]{0}', space=vmem, size = 0x360000, scoped, tag = 'input window, operand 1, single buffered']
    #allocation3 [shape = 's32[1]{0}', space=sflag, size = 0x4, scoped, tag = 'scoped memory for wgan_g_forward.8']
    #allocation4 [shape = 'u8[27648]{0}', space=vmem, size = 0x6c00, scoped, tag = 'input window, operand 2, single buffered']
    #allocation5 [shape = 's32[1]{0}', space=sflag, size = 0x4, scoped, tag = 'scoped memory for wgan_g_forward.8']
    %8 = vsyncpa [#allocation3], 0
    %9 = vsyncpa [#allocation5], 0
    // Predicated region
    $region2: #{wgan_g_forward.8} parent=1 // pred_check
      _
    $region3: #{wgan_g_forward.8} parent=1 // pred_check_branch
      %11 = sbr.rel (0) target = $region5
    $region4: #{wgan_g_forward.8} parent=1 // pred_region
      _
    $region5: #{wgan_g_forward.8} parent=1 // pred_fallthru
      _
    // Predicated region
    $region6: #{wgan_g_forward.8} parent=1 // pred_check
      _
    $region7: #{wgan_g_forward.8} parent=1 // pred_check_branch
      %13 = sbr.rel (0) target = $region9
    $region8: #{wgan_g_forward.8} parent=1 // pred_region
      %s15 = ssub.s32 110592, 110592
      %16 = vsyncadd [#allocation3], %s15
      %s17 = sshll.u32 [#allocation2], 4
      %s18 = int_to_ptr.vmem [resolvable:$true] %s17
      %23 = dma.hbm_to_vmem [thread:$0]  %s1, 110592, %s18, [#allocation3], 6912, 6912, 432
    $region9: #{wgan_g_forward.8} parent=1 // pred_fallthru
      _
    // Predicated region
    $region10: #{wgan_g_forward.8} parent=1 // pred_check
      _
    $region11: #{wgan_g_forward.8} parent=1 // pred_check_branch
      %25 = sbr.rel (0) target = $region13
    $region12: #{wgan_g_forward.8} parent=1 // pred_region
      %s27 = ssub.s32 864, 864
      %28 = vsyncadd [#allocation5], %s27
      %s30 = sshll.u32 [#allocation4], 4
      %s31 = int_to_ptr.vmem [resolvable:$true] %s30
      %33 = dma.hbm_to_vmem [thread:$0]  %s2, 864, %s31, [#allocation5]
    $region13: #{wgan_g_forward.8} parent=1 // pred_fallthru
      _
    // Predicated region
    $region14: #{wgan_g_forward.8} parent=1 // pred_check
      _
    $region15: #{wgan_g_forward.8} parent=1 // pred_check_branch
      %35 = sbr.rel (0) target = $region17
    $region16: #{wgan_g_forward.8} parent=1 // pred_region
      %36 = dma.done [#allocation3], 110592
    $region17: #{wgan_g_forward.8} parent=1 // pred_fallthru
      _
    // Predicated region
    $region18: #{wgan_g_forward.8} parent=1 // pred_check
      _
    $region19: #{wgan_g_forward.8} parent=1 // pred_check_branch
      %38 = sbr.rel (0) target = $region21
    $region20: #{wgan_g_forward.8} parent=1 // pred_region
      %39 = dma.done [#allocation5], 864
    $region21: #{wgan_g_forward.8} parent=1 // pred_fallthru
      _
    %v40 = vld [vmem:[%s0] sm:$0x3]
    %v41 = vld [vmem:[#allocation2] sm:$0xff]
    %v42 = vld [vmem:[#allocation2 + $0x8] sm:$0xff]
    %v43 = vld [vmem:[#allocation2 + $0x10] sm:$0xff]
    %v44 = vld [vmem:[#allocation2 + $0x18] sm:$0xff]
    %v45 = vld [vmem:[#allocation2 + $0x20] sm:$0xff]
    %v46 = vld [vmem:[#allocation2 + $0x28] sm:$0xff]
    %v47 = vld [vmem:[#allocation2 + $0x30] sm:$0xff]
    %v48 = vld [vmem:[#allocation2 + $0x38] sm:$0xff]
    %v49 = vld [vmem:[#allocation2 + $0x40] sm:$0xff]
    %v50 = vld [vmem:[#allocation2 + $0x48] sm:$0xff]
    %v51 = vld [vmem:[#allocation2 + $0x50] sm:$0xff]
    %v52 = vld [vmem:[#allocation2 + $0x58] sm:$0xff]
    %v53 = vld [vmem:[#allocation2 + $0x60] sm:$0xff]
    %v54 = vld [vmem:[#allocation2 + $0x68] sm:$0xff]
    %v55 = vld [vmem:[#allocation2 + $0x70] sm:$0xff]
    %v56 = vld [vmem:[#allocation2 + $0x78] sm:$0xff]
    %v57 = vld [vmem:[#allocation2 + $0x80] sm:$0xff]
    %v58 = vld [vmem:[#allocation2 + $0x88] sm:$0xff]
    %v59 = vld [vmem:[#allocation2 + $0x90] sm:$0xff]
    %v60 = vld [vmem:[#allocation2 + $0x98] sm:$0xff]
    %v61 = vld [vmem:[#allocation2 + $0xa0] sm:$0xff]
    %v62 = vld [vmem:[#allocation2 + $0xa8] sm:$0xff]
    %v63 = vld [vmem:[#allocation2 + $0xb0] sm:$0xff]
    %v64 = vld [vmem:[#allocation2 + $0xb8] sm:$0xff]
    %v65 = vld [vmem:[#allocation2 + $0xc0] sm:$0xff]
    %v66 = vld [vmem:[#allocation2 + $0xc8] sm:$0xff]
    %v67 = vld [vmem:[#allocation2 + $0xd0] sm:$0xff]
    %v68 = vld [vmem:[#allocation2 + $0xd8] sm:$0xff]
    %v69 = vld [vmem:[#allocation2 + $0xe0] sm:$0xff]
    %v70 = vld [vmem:[#allocation2 + $0xe8] sm:$0xff]
    %v71 = vld [vmem:[#allocation2 + $0xf0] sm:$0xff]
    %v72 = vld [vmem:[#allocation2 + $0xf8] sm:$0xff]
    %v73 = vld [vmem:[#allocation2 + $0x100] sm:$0xff]
    %v74 = vld [vmem:[#allocation2 + $0x108] sm:$0xff]
    %v75 = vld [vmem:[#allocation2 + $0x110] sm:$0xff]
    %v76 = vld [vmem:[#allocation2 + $0x118] sm:$0xff]
    %v77 = vld [vmem:[#allocation2 + $0x120] sm:$0xff]
    %v78 = vld [vmem:[#allocation2 + $0x128] sm:$0xff]
    %v79 = vld [vmem:[#allocation2 + $0x130] sm:$0xff]
    %v80 = vld [vmem:[#allocation2 + $0x138] sm:$0xff]
    %v81 = vld [vmem:[#allocation2 + $0x140] sm:$0xff]
    %v82 = vld [vmem:[#allocation2 + $0x148] sm:$0xff]
    %v83 = vld [vmem:[#allocation2 + $0x150] sm:$0xff]
    %v84 = vld [vmem:[#allocation2 + $0x158] sm:$0xff]
    %v85 = vld [vmem:[#allocation2 + $0x160] sm:$0xff]
    %v86 = vld [vmem:[#allocation2 + $0x168] sm:$0xff]
    %v87 = vld [vmem:[#allocation2 + $0x170] sm:$0xff]
    %v88 = vld [vmem:[#allocation2 + $0x178] sm:$0xff]
    %v89 = vld [vmem:[#allocation2 + $0x180] sm:$0xff]
    %v90 = vld [vmem:[#allocation2 + $0x188] sm:$0xff]
    %v91 = vld [vmem:[#allocation2 + $0x190] sm:$0xff]
    %v92 = vld [vmem:[#allocation2 + $0x198] sm:$0xff]
    %v93 = vld [vmem:[#allocation2 + $0x1a0] sm:$0xff]
    %v94 = vld [vmem:[#allocation2 + $0x1a8] sm:$0xff]
    %v95 = vld [vmem:[#allocation2 + $0x1b0] sm:$0xff]
    %v96 = vld [vmem:[#allocation2 + $0x1b8] sm:$0xff]
    %v97 = vld [vmem:[#allocation2 + $0x1c0] sm:$0xff]
    %v98 = vld [vmem:[#allocation2 + $0x1c8] sm:$0xff]
    %v99 = vld [vmem:[#allocation2 + $0x1d0] sm:$0xff]
    %v100 = vld [vmem:[#allocation2 + $0x1d8] sm:$0xff]
    %v101 = vld [vmem:[#allocation2 + $0x1e0] sm:$0xff]
    %v102 = vld [vmem:[#allocation2 + $0x1e8] sm:$0xff]
    %v103 = vld [vmem:[#allocation2 + $0x1f0] sm:$0xff]
    %v104 = vld [vmem:[#allocation2 + $0x1f8] sm:$0xff]
    %v105 = vld [vmem:[#allocation2 + $0x200] sm:$0xff]
    %v106 = vld [vmem:[#allocation2 + $0x208] sm:$0xff]
    %v107 = vld [vmem:[#allocation2 + $0x210] sm:$0xff]
    %v108 = vld [vmem:[#allocation2 + $0x218] sm:$0xff]
    %v109 = vld [vmem:[#allocation2 + $0x220] sm:$0xff]
    %v110 = vld [vmem:[#allocation2 + $0x228] sm:$0xff]
    %v111 = vld [vmem:[#allocation2 + $0x230] sm:$0xff]
    %v112 = vld [vmem:[#allocation2 + $0x238] sm:$0xff]
    %v113 = vld [vmem:[#allocation2 + $0x240] sm:$0xff]
    %v114 = vld [vmem:[#allocation2 + $0x248] sm:$0xff]
    %v115 = vld [vmem:[#allocation2 + $0x250] sm:$0xff]
    %v116 = vld [vmem:[#allocation2 + $0x258] sm:$0xff]
    %v117 = vld [vmem:[#allocation2 + $0x260] sm:$0xff]
    %v118 = vld [vmem:[#allocation2 + $0x268] sm:$0xff]
    %v119 = vld [vmem:[#allocation2 + $0x270] sm:$0xff]
    %v120 = vld [vmem:[#allocation2 + $0x278] sm:$0xff]
    %v121 = vld [vmem:[#allocation2 + $0x280] sm:$0xff]
    %v122 = vld [vmem:[#allocation2 + $0x288] sm:$0xff]
    %v123 = vld [vmem:[#allocation2 + $0x290] sm:$0xff]
    %v124 = vld [vmem:[#allocation2 + $0x298] sm:$0xff]
    %v125 = vld [vmem:[#allocation2 + $0x2a0] sm:$0xff]
    %v126 = vld [vmem:[#allocation2 + $0x2a8] sm:$0xff]
    %v127 = vld [vmem:[#allocation2 + $0x2b0] sm:$0xff]
    %v128 = vld [vmem:[#allocation2 + $0x2b8] sm:$0xff]
    %v129 = vld [vmem:[#allocation2 + $0x2c0] sm:$0xff]
    %v130 = vld [vmem:[#allocation2 + $0x2c8] sm:$0xff]
    %v131 = vld [vmem:[#allocation2 + $0x2d0] sm:$0xff]
    %v132 = vld [vmem:[#allocation2 + $0x2d8] sm:$0xff]
    %v133 = vld [vmem:[#allocation2 + $0x2e0] sm:$0xff]
    %v134 = vld [vmem:[#allocation2 + $0x2e8] sm:$0xff]
    %v135 = vld [vmem:[#allocation2 + $0x2f0] sm:$0xff]
    %v136 = vld [vmem:[#allocation2 + $0x2f8] sm:$0xff]
    %v137 = vld [vmem:[#allocation2 + $0x300] sm:$0xff]
    %v138 = vld [vmem:[#allocation2 + $0x308] sm:$0xff]
    %v139 = vld [vmem:[#allocation2 + $0x310] sm:$0xff]
    %v140 = vld [vmem:[#allocation2 + $0x318] sm:$0xff]
    %v141 = vld [vmem:[#allocation2 + $0x320] sm:$0xff]
    %v142 = vld [vmem:[#allocation2 + $0x328] sm:$0xff]
    %v143 = vld [vmem:[#allocation2 + $0x330] sm:$0xff]
    %v144 = vld [vmem:[#allocation2 + $0x338] sm:$0xff]
    %v145 = vld [vmem:[#allocation2 + $0x340] sm:$0xff]
    %v146 = vld [vmem:[#allocation2 + $0x348] sm:$0xff]
    %v147 = vld [vmem:[#allocation2 + $0x350] sm:$0xff]
    %v148 = vld [vmem:[#allocation2 + $0x358] sm:$0xff]
    %v149 = vld [vmem:[#allocation2 + $0x360] sm:$0xff]
    %v150 = vld [vmem:[#allocation2 + $0x368] sm:$0xff]
    %v151 = vld [vmem:[#allocation2 + $0x370] sm:$0xff]
    %v152 = vld [vmem:[#allocation2 + $0x378] sm:$0xff]
    %v153 = vld [vmem:[#allocation2 + $0x380] sm:$0xff]
    %v154 = vld [vmem:[#allocation2 + $0x388] sm:$0xff]
    %v155 = vld [vmem:[#allocation2 + $0x390] sm:$0xff]
    %v156 = vld [vmem:[#allocation2 + $0x398] sm:$0xff]
    %v157 = vld [vmem:[#allocation2 + $0x3a0] sm:$0xff]
    %v158 = vld [vmem:[#allocation2 + $0x3a8] sm:$0xff]
    %v159 = vld [vmem:[#allocation2 + $0x3b0] sm:$0xff]
    %v160 = vld [vmem:[#allocation2 + $0x3b8] sm:$0xff]
    %v161 = vld [vmem:[#allocation2 + $0x3c0] sm:$0xff]
    %v162 = vld [vmem:[#allocation2 + $0x3c8] sm:$0xff]
    %v163 = vld [vmem:[#allocation2 + $0x3d0] sm:$0xff]
    %v164 = vld [vmem:[#allocation2 + $0x3d8] sm:$0xff]
    %v165 = vld [vmem:[#allocation2 + $0x3e0] sm:$0xff]
    %v166 = vld [vmem:[#allocation2 + $0x3e8] sm:$0xff]
    %v167 = vld [vmem:[#allocation2 + $0x3f0] sm:$0xff]
    %v168 = vld [vmem:[#allocation2 + $0x3f8] sm:$0xff]
    %v169 = vld [vmem:[#allocation2 + $0x400] sm:$0xff]
    %v170 = vld [vmem:[#allocation2 + $0x408] sm:$0xff]
    %v171 = vld [vmem:[#allocation2 + $0x410] sm:$0xff]
    %v172 = vld [vmem:[#allocation2 + $0x418] sm:$0xff]
    %v173 = vld [vmem:[#allocation2 + $0x420] sm:$0xff]
    %v174 = vld [vmem:[#allocation2 + $0x428] sm:$0xff]
    %v175 = vld [vmem:[#allocation2 + $0x430] sm:$0xff]
    %v176 = vld [vmem:[#allocation2 + $0x438] sm:$0xff]
    %v177 = vld [vmem:[#allocation2 + $0x440] sm:$0xff]
    %v178 = vld [vmem:[#allocation2 + $0x448] sm:$0xff]
    %v179 = vld [vmem:[#allocation2 + $0x450] sm:$0xff]
    %v180 = vld [vmem:[#allocation2 + $0x458] sm:$0xff]
    %v181 = vld [vmem:[#allocation2 + $0x460] sm:$0xff]
    %v182 = vld [vmem:[#allocation2 + $0x468] sm:$0xff]
    %v183 = vld [vmem:[#allocation2 + $0x470] sm:$0xff]
    %v184 = vld [vmem:[#allocation2 + $0x478] sm:$0xff]
    %v185 = vld [vmem:[#allocation2 + $0x480] sm:$0xff]
    %v186 = vld [vmem:[#allocation2 + $0x488] sm:$0xff]
    %v187 = vld [vmem:[#allocation2 + $0x490] sm:$0xff]
    %v188 = vld [vmem:[#allocation2 + $0x498] sm:$0xff]
    %v189 = vld [vmem:[#allocation2 + $0x4a0] sm:$0xff]
    %v190 = vld [vmem:[#allocation2 + $0x4a8] sm:$0xff]
    %v191 = vld [vmem:[#allocation2 + $0x4b0] sm:$0xff]
    %v192 = vld [vmem:[#allocation2 + $0x4b8] sm:$0xff]
    %v193 = vld [vmem:[#allocation2 + $0x4c0] sm:$0xff]
    %v194 = vld [vmem:[#allocation2 + $0x4c8] sm:$0xff]
    %v195 = vld [vmem:[#allocation2 + $0x4d0] sm:$0xff]
    %v196 = vld [vmem:[#allocation2 + $0x4d8] sm:$0xff]
    %v197 = vld [vmem:[#allocation2 + $0x4e0] sm:$0xff]
    %v198 = vld [vmem:[#allocation2 + $0x4e8] sm:$0xff]
    %v199 = vld [vmem:[#allocation2 + $0x4f0] sm:$0xff]
    %v200 = vld [vmem:[#allocation2 + $0x4f8] sm:$0xff]
    %v201 = vld [vmem:[#allocation2 + $0x500] sm:$0xff]
    %v202 = vld [vmem:[#allocation2 + $0x508] sm:$0xff]
    %v203 = vld [vmem:[#allocation2 + $0x510] sm:$0xff]
    %v204 = vld [vmem:[#allocation2 + $0x518] sm:$0xff]
    %v205 = vld [vmem:[#allocation2 + $0x520] sm:$0xff]
    %v206 = vld [vmem:[#allocation2 + $0x528] sm:$0xff]
    %v207 = vld [vmem:[#allocation2 + $0x530] sm:$0xff]
    %v208 = vld [vmem:[#allocation2 + $0x538] sm:$0xff]
    %v209 = vld [vmem:[#allocation2 + $0x540] sm:$0xff]
    %v210 = vld [vmem:[#allocation2 + $0x548] sm:$0xff]
    %v211 = vld [vmem:[#allocation2 + $0x550] sm:$0xff]
    %v212 = vld [vmem:[#allocation2 + $0x558] sm:$0xff]
    %v213 = vld [vmem:[#allocation2 + $0x560] sm:$0xff]
    %v214 = vld [vmem:[#allocation2 + $0x568] sm:$0xff]
    %v215 = vld [vmem:[#allocation2 + $0x570] sm:$0xff]
    %v216 = vld [vmem:[#allocation2 + $0x578] sm:$0xff]
    %v217 = vld [vmem:[#allocation2 + $0x580] sm:$0xff]
    %v218 = vld [vmem:[#allocation2 + $0x588] sm:$0xff]
    %v219 = vld [vmem:[#allocation2 + $0x590] sm:$0xff]
    %v220 = vld [vmem:[#allocation2 + $0x598] sm:$0xff]
    %v221 = vld [vmem:[#allocation2 + $0x5a0] sm:$0xff]
    %v222 = vld [vmem:[#allocation2 + $0x5a8] sm:$0xff]
    %v223 = vld [vmem:[#allocation2 + $0x5b0] sm:$0xff]
    %v224 = vld [vmem:[#allocation2 + $0x5b8] sm:$0xff]
    %v225 = vld [vmem:[#allocation2 + $0x5c0] sm:$0xff]
    %v226 = vld [vmem:[#allocation2 + $0x5c8] sm:$0xff]
    %v227 = vld [vmem:[#allocation2 + $0x5d0] sm:$0xff]
    %v228 = vld [vmem:[#allocation2 + $0x5d8] sm:$0xff]
    %v229 = vld [vmem:[#allocation2 + $0x5e0] sm:$0xff]
    %v230 = vld [vmem:[#allocation2 + $0x5e8] sm:$0xff]
    %v231 = vld [vmem:[#allocation2 + $0x5f0] sm:$0xff]
    %v232 = vld [vmem:[#allocation2 + $0x5f8] sm:$0xff]
    %v233 = vld [vmem:[#allocation2 + $0x600] sm:$0xff]
    %v234 = vld [vmem:[#allocation2 + $0x608] sm:$0xff]
    %v235 = vld [vmem:[#allocation2 + $0x610] sm:$0xff]
    %v236 = vld [vmem:[#allocation2 + $0x618] sm:$0xff]
    %v237 = vld [vmem:[#allocation2 + $0x620] sm:$0xff]
    %v238 = vld [vmem:[#allocation2 + $0x628] sm:$0xff]
    %v239 = vld [vmem:[#allocation2 + $0x630] sm:$0xff]
    %v240 = vld [vmem:[#allocation2 + $0x638] sm:$0xff]
    %v241 = vld [vmem:[#allocation2 + $0x640] sm:$0xff]
    %v242 = vld [vmem:[#allocation2 + $0x648] sm:$0xff]
    %v243 = vld [vmem:[#allocation2 + $0x650] sm:$0xff]
    %v244 = vld [vmem:[#allocation2 + $0x658] sm:$0xff]
    %v245 = vld [vmem:[#allocation2 + $0x660] sm:$0xff]
    %v246 = vld [vmem:[#allocation2 + $0x668] sm:$0xff]
    %v247 = vld [vmem:[#allocation2 + $0x670] sm:$0xff]
    %v248 = vld [vmem:[#allocation2 + $0x678] sm:$0xff]
    %v249 = vld [vmem:[#allocation2 + $0x680] sm:$0xff]
    %v250 = vld [vmem:[#allocation2 + $0x688] sm:$0xff]
    %v251 = vld [vmem:[#allocation2 + $0x690] sm:$0xff]
    %v252 = vld [vmem:[#allocation2 + $0x698] sm:$0xff]
    %v253 = vld [vmem:[#allocation2 + $0x6a0] sm:$0xff]
    %v254 = vld [vmem:[#allocation2 + $0x6a8] sm:$0xff]
    %v255 = vld [vmem:[#allocation2 + $0x6b0] sm:$0xff]
    %v256 = vld [vmem:[#allocation2 + $0x6b8] sm:$0xff]
    %v257 = vld [vmem:[#allocation2 + $0x6c0] sm:$0xff]
    %v258 = vld [vmem:[#allocation2 + $0x6c8] sm:$0xff]
    %v259 = vld [vmem:[#allocation2 + $0x6d0] sm:$0xff]
    %v260 = vld [vmem:[#allocation2 + $0x6d8] sm:$0xff]
    %v261 = vld [vmem:[#allocation2 + $0x6e0] sm:$0xff]
    %v262 = vld [vmem:[#allocation2 + $0x6e8] sm:$0xff]
    %v263 = vld [vmem:[#allocation2 + $0x6f0] sm:$0xff]
    %v264 = vld [vmem:[#allocation2 + $0x6f8] sm:$0xff]
    %v265 = vld [vmem:[#allocation2 + $0x700] sm:$0xff]
    %v266 = vld [vmem:[#allocation2 + $0x708] sm:$0xff]
    %v267 = vld [vmem:[#allocation2 + $0x710] sm:$0xff]
    %v268 = vld [vmem:[#allocation2 + $0x718] sm:$0xff]
    %v269 = vld [vmem:[#allocation2 + $0x720] sm:$0xff]
    %v270 = vld [vmem:[#allocation2 + $0x728] sm:$0xff]
    %v271 = vld [vmem:[#allocation2 + $0x730] sm:$0xff]
    %v272 = vld [vmem:[#allocation2 + $0x738] sm:$0xff]
    %v273 = vld [vmem:[#allocation2 + $0x740] sm:$0xff]
    %v274 = vld [vmem:[#allocation2 + $0x748] sm:$0xff]
    %v275 = vld [vmem:[#allocation2 + $0x750] sm:$0xff]
    %v276 = vld [vmem:[#allocation2 + $0x758] sm:$0xff]
    %v277 = vld [vmem:[#allocation2 + $0x760] sm:$0xff]
    %v278 = vld [vmem:[#allocation2 + $0x768] sm:$0xff]
    %v279 = vld [vmem:[#allocation2 + $0x770] sm:$0xff]
    %v280 = vld [vmem:[#allocation2 + $0x778] sm:$0xff]
    %v281 = vld [vmem:[#allocation2 + $0x780] sm:$0xff]
    %v282 = vld [vmem:[#allocation2 + $0x788] sm:$0xff]
    %v283 = vld [vmem:[#allocation2 + $0x790] sm:$0xff]
    %v284 = vld [vmem:[#allocation2 + $0x798] sm:$0xff]
    %v285 = vld [vmem:[#allocation2 + $0x7a0] sm:$0xff]
    %v286 = vld [vmem:[#allocation2 + $0x7a8] sm:$0xff]
    %v287 = vld [vmem:[#allocation2 + $0x7b0] sm:$0xff]
    %v288 = vld [vmem:[#allocation2 + $0x7b8] sm:$0xff]
    %v289 = vld [vmem:[#allocation2 + $0x7c0] sm:$0xff]
    %v290 = vld [vmem:[#allocation2 + $0x7c8] sm:$0xff]
    %v291 = vld [vmem:[#allocation2 + $0x7d0] sm:$0xff]
    %v292 = vld [vmem:[#allocation2 + $0x7d8] sm:$0xff]
    %v293 = vld [vmem:[#allocation2 + $0x7e0] sm:$0xff]
    %v294 = vld [vmem:[#allocation2 + $0x7e8] sm:$0xff]
    %v295 = vld [vmem:[#allocation2 + $0x7f0] sm:$0xff]
    %v296 = vld [vmem:[#allocation2 + $0x7f8] sm:$0xff]
    %v297 = vld [vmem:[#allocation2 + $0x800] sm:$0xff]
    %v298 = vld [vmem:[#allocation2 + $0x808] sm:$0xff]
    %v299 = vld [vmem:[#allocation2 + $0x810] sm:$0xff]
    %v300 = vld [vmem:[#allocation2 + $0x818] sm:$0xff]
    %v301 = vld [vmem:[#allocation2 + $0x820] sm:$0xff]
    %v302 = vld [vmem:[#allocation2 + $0x828] sm:$0xff]
    %v303 = vld [vmem:[#allocation2 + $0x830] sm:$0xff]
    %v304 = vld [vmem:[#allocation2 + $0x838] sm:$0xff]
    %v305 = vld [vmem:[#allocation2 + $0x840] sm:$0xff]
    %v306 = vld [vmem:[#allocation2 + $0x848] sm:$0xff]
    %v307 = vld [vmem:[#allocation2 + $0x850] sm:$0xff]
    %v308 = vld [vmem:[#allocation2 + $0x858] sm:$0xff]
    %v309 = vld [vmem:[#allocation2 + $0x860] sm:$0xff]
    %v310 = vld [vmem:[#allocation2 + $0x868] sm:$0xff]
    %v311 = vld [vmem:[#allocation2 + $0x870] sm:$0xff]
    %v312 = vld [vmem:[#allocation2 + $0x878] sm:$0xff]
    %v313 = vld [vmem:[#allocation2 + $0x880] sm:$0xff]
    %v314 = vld [vmem:[#allocation2 + $0x888] sm:$0xff]
    %v315 = vld [vmem:[#allocation2 + $0x890] sm:$0xff]
    %v316 = vld [vmem:[#allocation2 + $0x898] sm:$0xff]
    %v317 = vld [vmem:[#allocation2 + $0x8a0] sm:$0xff]
    %v318 = vld [vmem:[#allocation2 + $0x8a8] sm:$0xff]
    %v319 = vld [vmem:[#allocation2 + $0x8b0] sm:$0xff]
    %v320 = vld [vmem:[#allocation2 + $0x8b8] sm:$0xff]
    %v321 = vld [vmem:[#allocation2 + $0x8c0] sm:$0xff]
    %v322 = vld [vmem:[#allocation2 + $0x8c8] sm:$0xff]
    %v323 = vld [vmem:[#allocation2 + $0x8d0] sm:$0xff]
    %v324 = vld [vmem:[#allocation2 + $0x8d8] sm:$0xff]
    %v325 = vld [vmem:[#allocation2 + $0x8e0] sm:$0xff]
    %v326 = vld [vmem:[#allocation2 + $0x8e8] sm:$0xff]
    %v327 = vld [vmem:[#allocation2 + $0x8f0] sm:$0xff]
    %v328 = vld [vmem:[#allocation2 + $0x8f8] sm:$0xff]
    %v329 = vld [vmem:[#allocation2 + $0x900] sm:$0xff]
    %v330 = vld [vmem:[#allocation2 + $0x908] sm:$0xff]
    %v331 = vld [vmem:[#allocation2 + $0x910] sm:$0xff]
    %v332 = vld [vmem:[#allocation2 + $0x918] sm:$0xff]
    %v333 = vld [vmem:[#allocation2 + $0x920] sm:$0xff]
    %v334 = vld [vmem:[#allocation2 + $0x928] sm:$0xff]
    %v335 = vld [vmem:[#allocation2 + $0x930] sm:$0xff]
    %v336 = vld [vmem:[#allocation2 + $0x938] sm:$0xff]
    %v337 = vld [vmem:[#allocation2 + $0x940] sm:$0xff]
    %v338 = vld [vmem:[#allocation2 + $0x948] sm:$0xff]
    %v339 = vld [vmem:[#allocation2 + $0x950] sm:$0xff]
    %v340 = vld [vmem:[#allocation2 + $0x958] sm:$0xff]
    %v341 = vld [vmem:[#allocation2 + $0x960] sm:$0xff]
    %v342 = vld [vmem:[#allocation2 + $0x968] sm:$0xff]
    %v343 = vld [vmem:[#allocation2 + $0x970] sm:$0xff]
    %v344 = vld [vmem:[#allocation2 + $0x978] sm:$0xff]
    %v345 = vld [vmem:[#allocation2 + $0x980] sm:$0xff]
    %v346 = vld [vmem:[#allocation2 + $0x988] sm:$0xff]
    %v347 = vld [vmem:[#allocation2 + $0x990] sm:$0xff]
    %v348 = vld [vmem:[#allocation2 + $0x998] sm:$0xff]
    %v349 = vld [vmem:[#allocation2 + $0x9a0] sm:$0xff]
    %v350 = vld [vmem:[#allocation2 + $0x9a8] sm:$0xff]
    %v351 = vld [vmem:[#allocation2 + $0x9b0] sm:$0xff]
    %v352 = vld [vmem:[#allocation2 + $0x9b8] sm:$0xff]
    %v353 = vld [vmem:[#allocation2 + $0x9c0] sm:$0xff]
    %v354 = vld [vmem:[#allocation2 + $0x9c8] sm:$0xff]
    %v355 = vld [vmem:[#allocation2 + $0x9d0] sm:$0xff]
    %v356 = vld [vmem:[#allocation2 + $0x9d8] sm:$0xff]
    %v357 = vld [vmem:[#allocation2 + $0x9e0] sm:$0xff]
    %v358 = vld [vmem:[#allocation2 + $0x9e8] sm:$0xff]
    %v359 = vld [vmem:[#allocation2 + $0x9f0] sm:$0xff]
    %v360 = vld [vmem:[#allocation2 + $0x9f8] sm:$0xff]
    %v361 = vld [vmem:[#allocation2 + $0xa00] sm:$0xff]
    %v362 = vld [vmem:[#allocation2 + $0xa08] sm:$0xff]
    %v363 = vld [vmem:[#allocation2 + $0xa10] sm:$0xff]
    %v364 = vld [vmem:[#allocation2 + $0xa18] sm:$0xff]
    %v365 = vld [vmem:[#allocation2 + $0xa20] sm:$0xff]
    %v366 = vld [vmem:[#allocation2 + $0xa28] sm:$0xff]
    %v367 = vld [vmem:[#allocation2 + $0xa30] sm:$0xff]
    %v368 = vld [vmem:[#allocation2 + $0xa38] sm:$0xff]
    %v369 = vld [vmem:[#allocation2 + $0xa40] sm:$0xff]
    %v370 = vld [vmem:[#allocation2 + $0xa48] sm:$0xff]
    %v371 = vld [vmem:[#allocation2 + $0xa50] sm:$0xff]
    %v372 = vld [vmem:[#allocation2 + $0xa58] sm:$0xff]
    %v373 = vld [vmem:[#allocation2 + $0xa60] sm:$0xff]
    %v374 = vld [vmem:[#allocation2 + $0xa68] sm:$0xff]
    %v375 = vld [vmem:[#allocation2 + $0xa70] sm:$0xff]
    %v376 = vld [vmem:[#allocation2 + $0xa78] sm:$0xff]
    %v377 = vld [vmem:[#allocation2 + $0xa80] sm:$0xff]
    %v378 = vld [vmem:[#allocation2 + $0xa88] sm:$0xff]
    %v379 = vld [vmem:[#allocation2 + $0xa90] sm:$0xff]
    %v380 = vld [vmem:[#allocation2 + $0xa98] sm:$0xff]
    %v381 = vld [vmem:[#allocation2 + $0xaa0] sm:$0xff]
    %v382 = vld [vmem:[#allocation2 + $0xaa8] sm:$0xff]
    %v383 = vld [vmem:[#allocation2 + $0xab0] sm:$0xff]
    %v384 = vld [vmem:[#allocation2 + $0xab8] sm:$0xff]
    %v385 = vld [vmem:[#allocation2 + $0xac0] sm:$0xff]
    %v386 = vld [vmem:[#allocation2 + $0xac8] sm:$0xff]
    %v387 = vld [vmem:[#allocation2 + $0xad0] sm:$0xff]
    %v388 = vld [vmem:[#allocation2 + $0xad8] sm:$0xff]
    %v389 = vld [vmem:[#allocation2 + $0xae0] sm:$0xff]
    %v390 = vld [vmem:[#allocation2 + $0xae8] sm:$0xff]
    %v391 = vld [vmem:[#allocation2 + $0xaf0] sm:$0xff]
    %v392 = vld [vmem:[#allocation2 + $0xaf8] sm:$0xff]
    %v393 = vld [vmem:[#allocation2 + $0xb00] sm:$0xff]
    %v394 = vld [vmem:[#allocation2 + $0xb08] sm:$0xff]
    %v395 = vld [vmem:[#allocation2 + $0xb10] sm:$0xff]
    %v396 = vld [vmem:[#allocation2 + $0xb18] sm:$0xff]
    %v397 = vld [vmem:[#allocation2 + $0xb20] sm:$0xff]
    %v398 = vld [vmem:[#allocation2 + $0xb28] sm:$0xff]
    %v399 = vld [vmem:[#allocation2 + $0xb30] sm:$0xff]
    %v400 = vld [vmem:[#allocation2 + $0xb38] sm:$0xff]
    %v401 = vld [vmem:[#allocation2 + $0xb40] sm:$0xff]
    %v402 = vld [vmem:[#allocation2 + $0xb48] sm:$0xff]
    %v403 = vld [vmem:[#allocation2 + $0xb50] sm:$0xff]
    %v404 = vld [vmem:[#allocation2 + $0xb58] sm:$0xff]
    %v405 = vld [vmem:[#allocation2 + $0xb60] sm:$0xff]
    %v406 = vld [vmem:[#allocation2 + $0xb68] sm:$0xff]
    %v407 = vld [vmem:[#allocation2 + $0xb70] sm:$0xff]
    %v408 = vld [vmem:[#allocation2 + $0xb78] sm:$0xff]
    %v409 = vld [vmem:[#allocation2 + $0xb80] sm:$0xff]
    %v410 = vld [vmem:[#allocation2 + $0xb88] sm:$0xff]
    %v411 = vld [vmem:[#allocation2 + $0xb90] sm:$0xff]
    %v412 = vld [vmem:[#allocation2 + $0xb98] sm:$0xff]
    %v413 = vld [vmem:[#allocation2 + $0xba0] sm:$0xff]
    %v414 = vld [vmem:[#allocation2 + $0xba8] sm:$0xff]
    %v415 = vld [vmem:[#allocation2 + $0xbb0] sm:$0xff]
    %v416 = vld [vmem:[#allocation2 + $0xbb8] sm:$0xff]
    %v417 = vld [vmem:[#allocation2 + $0xbc0] sm:$0xff]
    %v418 = vld [vmem:[#allocation2 + $0xbc8] sm:$0xff]
    %v419 = vld [vmem:[#allocation2 + $0xbd0] sm:$0xff]
    %v420 = vld [vmem:[#allocation2 + $0xbd8] sm:$0xff]
    %v421 = vld [vmem:[#allocation2 + $0xbe0] sm:$0xff]
    %v422 = vld [vmem:[#allocation2 + $0xbe8] sm:$0xff]
    %v423 = vld [vmem:[#allocation2 + $0xbf0] sm:$0xff]
    %v424 = vld [vmem:[#allocation2 + $0xbf8] sm:$0xff]
    %v425 = vld [vmem:[#allocation2 + $0xc00] sm:$0xff]
    %v426 = vld [vmem:[#allocation2 + $0xc08] sm:$0xff]
    %v427 = vld [vmem:[#allocation2 + $0xc10] sm:$0xff]
    %v428 = vld [vmem:[#allocation2 + $0xc18] sm:$0xff]
    %v429 = vld [vmem:[#allocation2 + $0xc20] sm:$0xff]
    %v430 = vld [vmem:[#allocation2 + $0xc28] sm:$0xff]
    %v431 = vld [vmem:[#allocation2 + $0xc30] sm:$0xff]
    %v432 = vld [vmem:[#allocation2 + $0xc38] sm:$0xff]
    %v433 = vld [vmem:[#allocation2 + $0xc40] sm:$0xff]
    %v434 = vld [vmem:[#allocation2 + $0xc48] sm:$0xff]
    %v435 = vld [vmem:[#allocation2 + $0xc50] sm:$0xff]
    %v436 = vld [vmem:[#allocation2 + $0xc58] sm:$0xff]
    %v437 = vld [vmem:[#allocation2 + $0xc60] sm:$0xff]
    %v438 = vld [vmem:[#allocation2 + $0xc68] sm:$0xff]
    %v439 = vld [vmem:[#allocation2 + $0xc70] sm:$0xff]
    %v440 = vld [vmem:[#allocation2 + $0xc78] sm:$0xff]
    %v441 = vld [vmem:[#allocation2 + $0xc80] sm:$0xff]
    %v442 = vld [vmem:[#allocation2 + $0xc88] sm:$0xff]
    %v443 = vld [vmem:[#allocation2 + $0xc90] sm:$0xff]
    %v444 = vld [vmem:[#allocation2 + $0xc98] sm:$0xff]
    %v445 = vld [vmem:[#allocation2 + $0xca0] sm:$0xff]
    %v446 = vld [vmem:[#allocation2 + $0xca8] sm:$0xff]
    %v447 = vld [vmem:[#allocation2 + $0xcb0] sm:$0xff]
    %v448 = vld [vmem:[#allocation2 + $0xcb8] sm:$0xff]
    %v449 = vld [vmem:[#allocation2 + $0xcc0] sm:$0xff]
    %v450 = vld [vmem:[#allocation2 + $0xcc8] sm:$0xff]
    %v451 = vld [vmem:[#allocation2 + $0xcd0] sm:$0xff]
    %v452 = vld [vmem:[#allocation2 + $0xcd8] sm:$0xff]
    %v453 = vld [vmem:[#allocation2 + $0xce0] sm:$0xff]
    %v454 = vld [vmem:[#allocation2 + $0xce8] sm:$0xff]
    %v455 = vld [vmem:[#allocation2 + $0xcf0] sm:$0xff]
    %v456 = vld [vmem:[#allocation2 + $0xcf8] sm:$0xff]
    %v457 = vld [vmem:[#allocation2 + $0xd00] sm:$0xff]
    %v458 = vld [vmem:[#allocation2 + $0xd08] sm:$0xff]
    %v459 = vld [vmem:[#allocation2 + $0xd10] sm:$0xff]
    %v460 = vld [vmem:[#allocation2 + $0xd18] sm:$0xff]
    %v461 = vld [vmem:[#allocation2 + $0xd20] sm:$0xff]
    %v462 = vld [vmem:[#allocation2 + $0xd28] sm:$0xff]
    %v463 = vld [vmem:[#allocation2 + $0xd30] sm:$0xff]
    %v464 = vld [vmem:[#allocation2 + $0xd38] sm:$0xff]
    %v465 = vld [vmem:[#allocation2 + $0xd40] sm:$0xff]
    %v466 = vld [vmem:[#allocation2 + $0xd48] sm:$0xff]
    %v467 = vld [vmem:[#allocation2 + $0xd50] sm:$0xff]
    %v468 = vld [vmem:[#allocation2 + $0xd58] sm:$0xff]
    %v469 = vld [vmem:[#allocation2 + $0xd60] sm:$0xff]
    %v470 = vld [vmem:[#allocation2 + $0xd68] sm:$0xff]
    %v471 = vld [vmem:[#allocation2 + $0xd70] sm:$0xff]
    %v472 = vld [vmem:[#allocation2 + $0xd78] sm:$0xff]
    %v473 = vld [vmem:[#allocation2 + $0xd80] sm:$0xff]
    %v474 = vld [vmem:[#allocation2 + $0xd88] sm:$0xff]
    %v475 = vld [vmem:[#allocation2 + $0xd90] sm:$0xff]
    %v476 = vld [vmem:[#allocation2 + $0xd98] sm:$0xff]
    %v477 = vld [vmem:[#allocation2 + $0xda0] sm:$0xff]
    %v478 = vld [vmem:[#allocation2 + $0xda8] sm:$0xff]
    %v479 = vld [vmem:[#allocation2 + $0xdb0] sm:$0xff]
    %v480 = vld [vmem:[#allocation2 + $0xdb8] sm:$0xff]
    %v481 = vld [vmem:[#allocation2 + $0xdc0] sm:$0xff]
    %v482 = vld [vmem:[#allocation2 + $0xdc8] sm:$0xff]
    %v483 = vld [vmem:[#allocation2 + $0xdd0] sm:$0xff]
    %v484 = vld [vmem:[#allocation2 + $0xdd8] sm:$0xff]
    %v485 = vld [vmem:[#allocation2 + $0xde0] sm:$0xff]
    %v486 = vld [vmem:[#allocation2 + $0xde8] sm:$0xff]
    %v487 = vld [vmem:[#allocation2 + $0xdf0] sm:$0xff]
    %v488 = vld [vmem:[#allocation2 + $0xdf8] sm:$0xff]
    %v489 = vld [vmem:[#allocation2 + $0xe00] sm:$0xff]
    %v490 = vld [vmem:[#allocation2 + $0xe08] sm:$0xff]
    %v491 = vld [vmem:[#allocation2 + $0xe10] sm:$0xff]
    %v492 = vld [vmem:[#allocation2 + $0xe18] sm:$0xff]
    %v493 = vld [vmem:[#allocation2 + $0xe20] sm:$0xff]
    %v494 = vld [vmem:[#allocation2 + $0xe28] sm:$0xff]
    %v495 = vld [vmem:[#allocation2 + $0xe30] sm:$0xff]
    %v496 = vld [vmem:[#allocation2 + $0xe38] sm:$0xff]
    %v497 = vld [vmem:[#allocation2 + $0xe40] sm:$0xff]
    %v498 = vld [vmem:[#allocation2 + $0xe48] sm:$0xff]
    %v499 = vld [vmem:[#allocation2 + $0xe50] sm:$0xff]
    %v500 = vld [vmem:[#allocation2 + $0xe58] sm:$0xff]
    %v501 = vld [vmem:[#allocation2 + $0xe60] sm:$0xff]
    %v502 = vld [vmem:[#allocation2 + $0xe68] sm:$0xff]
    %v503 = vld [vmem:[#allocation2 + $0xe70] sm:$0xff]
    %v504 = vld [vmem:[#allocation2 + $0xe78] sm:$0xff]
    %v505 = vld [vmem:[#allocation2 + $0xe80] sm:$0xff]
    %v506 = vld [vmem:[#allocation2 + $0xe88] sm:$0xff]
    %v507 = vld [vmem:[#allocation2 + $0xe90] sm:$0xff]
    %v508 = vld [vmem:[#allocation2 + $0xe98] sm:$0xff]
    %v509 = vld [vmem:[#allocation2 + $0xea0] sm:$0xff]
    %v510 = vld [vmem:[#allocation2 + $0xea8] sm:$0xff]
    %v511 = vld [vmem:[#allocation2 + $0xeb0] sm:$0xff]
    %v512 = vld [vmem:[#allocation2 + $0xeb8] sm:$0xff]
    %v513 = vld [vmem:[#allocation2 + $0xec0] sm:$0xff]
    %v514 = vld [vmem:[#allocation2 + $0xec8] sm:$0xff]
    %v515 = vld [vmem:[#allocation2 + $0xed0] sm:$0xff]
    %v516 = vld [vmem:[#allocation2 + $0xed8] sm:$0xff]
    %v517 = vld [vmem:[#allocation2 + $0xee0] sm:$0xff]
    %v518 = vld [vmem:[#allocation2 + $0xee8] sm:$0xff]
    %v519 = vld [vmem:[#allocation2 + $0xef0] sm:$0xff]
    %v520 = vld [vmem:[#allocation2 + $0xef8] sm:$0xff]
    %v521 = vld [vmem:[#allocation2 + $0xf00] sm:$0xff]
    %v522 = vld [vmem:[#allocation2 + $0xf08] sm:$0xff]
    %v523 = vld [vmem:[#allocation2 + $0xf10] sm:$0xff]
    %v524 = vld [vmem:[#allocation2 + $0xf18] sm:$0xff]
    %v525 = vld [vmem:[#allocation2 + $0xf20] sm:$0xff]
    %v526 = vld [vmem:[#allocation2 + $0xf28] sm:$0xff]
    %v527 = vld [vmem:[#allocation2 + $0xf30] sm:$0xff]
    %v528 = vld [vmem:[#allocation2 + $0xf38] sm:$0xff]
    %v529 = vld [vmem:[#allocation2 + $0xf40] sm:$0xff]
    %v530 = vld [vmem:[#allocation2 + $0xf48] sm:$0xff]
    %v531 = vld [vmem:[#allocation2 + $0xf50] sm:$0xff]
    %v532 = vld [vmem:[#allocation2 + $0xf58] sm:$0xff]
    %v533 = vld [vmem:[#allocation2 + $0xf60] sm:$0xff]
    %v534 = vld [vmem:[#allocation2 + $0xf68] sm:$0xff]
    %v535 = vld [vmem:[#allocation2 + $0xf70] sm:$0xff]
    %v536 = vld [vmem:[#allocation2 + $0xf78] sm:$0xff]
    %v537 = vld [vmem:[#allocation2 + $0xf80] sm:$0xff]
    %v538 = vld [vmem:[#allocation2 + $0xf88] sm:$0xff]
    %v539 = vld [vmem:[#allocation2 + $0xf90] sm:$0xff]
    %v540 = vld [vmem:[#allocation2 + $0xf98] sm:$0xff]
    %v541 = vld [vmem:[#allocation2 + $0xfa0] sm:$0xff]
    %v542 = vld [vmem:[#allocation2 + $0xfa8] sm:$0xff]
    %v543 = vld [vmem:[#allocation2 + $0xfb0] sm:$0xff]
    %v544 = vld [vmem:[#allocation2 + $0xfb8] sm:$0xff]
    %v545 = vld [vmem:[#allocation2 + $0xfc0] sm:$0xff]
    %v546 = vld [vmem:[#allocation2 + $0xfc8] sm:$0xff]
    %v547 = vld [vmem:[#allocation2 + $0xfd0] sm:$0xff]
    %v548 = vld [vmem:[#allocation2 + $0xfd8] sm:$0xff]
    %v549 = vld [vmem:[#allocation2 + $0xfe0] sm:$0xff]
    %v550 = vld [vmem:[#allocation2 + $0xfe8] sm:$0xff]
    %v551 = vld [vmem:[#allocation2 + $0xff0] sm:$0xff]
    %v552 = vld [vmem:[#allocation2 + $0xff8] sm:$0xff]
    %v553 = vld [vmem:[#allocation2 + $0x1000] sm:$0xff]
    %v554 = vld [vmem:[#allocation2 + $0x1008] sm:$0xff]
    %v555 = vld [vmem:[#allocation2 + $0x1010] sm:$0xff]
    %v556 = vld [vmem:[#allocation2 + $0x1018] sm:$0xff]
    %v557 = vld [vmem:[#allocation2 + $0x1020] sm:$0xff]
    %v558 = vld [vmem:[#allocation2 + $0x1028] sm:$0xff]
    %v559 = vld [vmem:[#allocation2 + $0x1030] sm:$0xff]
    %v560 = vld [vmem:[#allocation2 + $0x1038] sm:$0xff]
    %v561 = vld [vmem:[#allocation2 + $0x1040] sm:$0xff]
    %v562 = vld [vmem:[#allocation2 + $0x1048] sm:$0xff]
    %v563 = vld [vmem:[#allocation2 + $0x1050] sm:$0xff]
    %v564 = vld [vmem:[#allocation2 + $0x1058] sm:$0xff]
    %v565 = vld [vmem:[#allocation2 + $0x1060] sm:$0xff]
    %v566 = vld [vmem:[#allocation2 + $0x1068] sm:$0xff]
    %v567 = vld [vmem:[#allocation2 + $0x1070] sm:$0xff]
    %v568 = vld [vmem:[#allocation2 + $0x1078] sm:$0xff]
    %v569 = vld [vmem:[#allocation2 + $0x1080] sm:$0xff]
    %v570 = vld [vmem:[#allocation2 + $0x1088] sm:$0xff]
    %v571 = vld [vmem:[#allocation2 + $0x1090] sm:$0xff]
    %v572 = vld [vmem:[#allocation2 + $0x1098] sm:$0xff]
    %v573 = vld [vmem:[#allocation2 + $0x10a0] sm:$0xff]
    %v574 = vld [vmem:[#allocation2 + $0x10a8] sm:$0xff]
    %v575 = vld [vmem:[#allocation2 + $0x10b0] sm:$0xff]
    %v576 = vld [vmem:[#allocation2 + $0x10b8] sm:$0xff]
    %v577 = vld [vmem:[#allocation2 + $0x10c0] sm:$0xff]
    %v578 = vld [vmem:[#allocation2 + $0x10c8] sm:$0xff]
    %v579 = vld [vmem:[#allocation2 + $0x10d0] sm:$0xff]
    %v580 = vld [vmem:[#allocation2 + $0x10d8] sm:$0xff]
    %v581 = vld [vmem:[#allocation2 + $0x10e0] sm:$0xff]
    %v582 = vld [vmem:[#allocation2 + $0x10e8] sm:$0xff]
    %v583 = vld [vmem:[#allocation2 + $0x10f0] sm:$0xff]
    %v584 = vld [vmem:[#allocation2 + $0x10f8] sm:$0xff]
    %v585 = vld [vmem:[#allocation2 + $0x1100] sm:$0xff]
    %v586 = vld [vmem:[#allocation2 + $0x1108] sm:$0xff]
    %v587 = vld [vmem:[#allocation2 + $0x1110] sm:$0xff]
    %v588 = vld [vmem:[#allocation2 + $0x1118] sm:$0xff]
    %v589 = vld [vmem:[#allocation2 + $0x1120] sm:$0xff]
    %v590 = vld [vmem:[#allocation2 + $0x1128] sm:$0xff]
    %v591 = vld [vmem:[#allocation2 + $0x1130] sm:$0xff]
    %v592 = vld [vmem:[#allocation2 + $0x1138] sm:$0xff]
    %v593 = vld [vmem:[#allocation2 + $0x1140] sm:$0xff]
    %v594 = vld [vmem:[#allocation2 + $0x1148] sm:$0xff]
    %v595 = vld [vmem:[#allocation2 + $0x1150] sm:$0xff]
    %v596 = vld [vmem:[#allocation2 + $0x1158] sm:$0xff]
    %v597 = vld [vmem:[#allocation2 + $0x1160] sm:$0xff]
    %v598 = vld [vmem:[#allocation2 + $0x1168] sm:$0xff]
    %v599 = vld [vmem:[#allocation2 + $0x1170] sm:$0xff]
    %v600 = vld [vmem:[#allocation2 + $0x1178] sm:$0xff]
    %v601 = vld [vmem:[#allocation2 + $0x1180] sm:$0xff]
    %v602 = vld [vmem:[#allocation2 + $0x1188] sm:$0xff]
    %v603 = vld [vmem:[#allocation2 + $0x1190] sm:$0xff]
    %v604 = vld [vmem:[#allocation2 + $0x1198] sm:$0xff]
    %v605 = vld [vmem:[#allocation2 + $0x11a0] sm:$0xff]
    %v606 = vld [vmem:[#allocation2 + $0x11a8] sm:$0xff]
    %v607 = vld [vmem:[#allocation2 + $0x11b0] sm:$0xff]
    %v608 = vld [vmem:[#allocation2 + $0x11b8] sm:$0xff]
    %v609 = vld [vmem:[#allocation2 + $0x11c0] sm:$0xff]
    %v610 = vld [vmem:[#allocation2 + $0x11c8] sm:$0xff]
    %v611 = vld [vmem:[#allocation2 + $0x11d0] sm:$0xff]
    %v612 = vld [vmem:[#allocation2 + $0x11d8] sm:$0xff]
    %v613 = vld [vmem:[#allocation2 + $0x11e0] sm:$0xff]
    %v614 = vld [vmem:[#allocation2 + $0x11e8] sm:$0xff]
    %v615 = vld [vmem:[#allocation2 + $0x11f0] sm:$0xff]
    %v616 = vld [vmem:[#allocation2 + $0x11f8] sm:$0xff]
    %v617 = vld [vmem:[#allocation2 + $0x1200] sm:$0xff]
    %v618 = vld [vmem:[#allocation2 + $0x1208] sm:$0xff]
    %v619 = vld [vmem:[#allocation2 + $0x1210] sm:$0xff]
    %v620 = vld [vmem:[#allocation2 + $0x1218] sm:$0xff]
    %v621 = vld [vmem:[#allocation2 + $0x1220] sm:$0xff]
    %v622 = vld [vmem:[#allocation2 + $0x1228] sm:$0xff]
    %v623 = vld [vmem:[#allocation2 + $0x1230] sm:$0xff]
    %v624 = vld [vmem:[#allocation2 + $0x1238] sm:$0xff]
    %v625 = vld [vmem:[#allocation2 + $0x1240] sm:$0xff]
    %v626 = vld [vmem:[#allocation2 + $0x1248] sm:$0xff]
    %v627 = vld [vmem:[#allocation2 + $0x1250] sm:$0xff]
    %v628 = vld [vmem:[#allocation2 + $0x1258] sm:$0xff]
    %v629 = vld [vmem:[#allocation2 + $0x1260] sm:$0xff]
    %v630 = vld [vmem:[#allocation2 + $0x1268] sm:$0xff]
    %v631 = vld [vmem:[#allocation2 + $0x1270] sm:$0xff]
    %v632 = vld [vmem:[#allocation2 + $0x1278] sm:$0xff]
    %v633 = vld [vmem:[#allocation2 + $0x1280] sm:$0xff]
    %v634 = vld [vmem:[#allocation2 + $0x1288] sm:$0xff]
    %v635 = vld [vmem:[#allocation2 + $0x1290] sm:$0xff]
    %v636 = vld [vmem:[#allocation2 + $0x1298] sm:$0xff]
    %v637 = vld [vmem:[#allocation2 + $0x12a0] sm:$0xff]
    %v638 = vld [vmem:[#allocation2 + $0x12a8] sm:$0xff]
    %v639 = vld [vmem:[#allocation2 + $0x12b0] sm:$0xff]
    %v640 = vld [vmem:[#allocation2 + $0x12b8] sm:$0xff]
    %v641 = vld [vmem:[#allocation2 + $0x12c0] sm:$0xff]
    %v642 = vld [vmem:[#allocation2 + $0x12c8] sm:$0xff]
    %v643 = vld [vmem:[#allocation2 + $0x12d0] sm:$0xff]
    %v644 = vld [vmem:[#allocation2 + $0x12d8] sm:$0xff]
    %v645 = vld [vmem:[#allocation2 + $0x12e0] sm:$0xff]
    %v646 = vld [vmem:[#allocation2 + $0x12e8] sm:$0xff]
    %v647 = vld [vmem:[#allocation2 + $0x12f0] sm:$0xff]
    %v648 = vld [vmem:[#allocation2 + $0x12f8] sm:$0xff]
    %v649 = vld [vmem:[#allocation2 + $0x1300] sm:$0xff]
    %v650 = vld [vmem:[#allocation2 + $0x1308] sm:$0xff]
    %v651 = vld [vmem:[#allocation2 + $0x1310] sm:$0xff]
    %v652 = vld [vmem:[#allocation2 + $0x1318] sm:$0xff]
    %v653 = vld [vmem:[#allocation2 + $0x1320] sm:$0xff]
    %v654 = vld [vmem:[#allocation2 + $0x1328] sm:$0xff]
    %v655 = vld [vmem:[#allocation2 + $0x1330] sm:$0xff]
    %v656 = vld [vmem:[#allocation2 + $0x1338] sm:$0xff]
    %v657 = vld [vmem:[#allocation2 + $0x1340] sm:$0xff]
    %v658 = vld [vmem:[#allocation2 + $0x1348] sm:$0xff]
    %v659 = vld [vmem:[#allocation2 + $0x1350] sm:$0xff]
    %v660 = vld [vmem:[#allocation2 + $0x1358] sm:$0xff]
    %v661 = vld [vmem:[#allocation2 + $0x1360] sm:$0xff]
    %v662 = vld [vmem:[#allocation2 + $0x1368] sm:$0xff]
    %v663 = vld [vmem:[#allocation2 + $0x1370] sm:$0xff]
    %v664 = vld [vmem:[#allocation2 + $0x1378] sm:$0xff]
    %v665 = vld [vmem:[#allocation2 + $0x1380] sm:$0xff]
    %v666 = vld [vmem:[#allocation2 + $0x1388] sm:$0xff]
    %v667 = vld [vmem:[#allocation2 + $0x1390] sm:$0xff]
    %v668 = vld [vmem:[#allocation2 + $0x1398] sm:$0xff]
    %v669 = vld [vmem:[#allocation2 + $0x13a0] sm:$0xff]
    %v670 = vld [vmem:[#allocation2 + $0x13a8] sm:$0xff]
    %v671 = vld [vmem:[#allocation2 + $0x13b0] sm:$0xff]
    %v672 = vld [vmem:[#allocation2 + $0x13b8] sm:$0xff]
    %v673 = vld [vmem:[#allocation2 + $0x13c0] sm:$0xff]
    %v674 = vld [vmem:[#allocation2 + $0x13c8] sm:$0xff]
    %v675 = vld [vmem:[#allocation2 + $0x13d0] sm:$0xff]
    %v676 = vld [vmem:[#allocation2 + $0x13d8] sm:$0xff]
    %v677 = vld [vmem:[#allocation2 + $0x13e0] sm:$0xff]
    %v678 = vld [vmem:[#allocation2 + $0x13e8] sm:$0xff]
    %v679 = vld [vmem:[#allocation2 + $0x13f0] sm:$0xff]
    %v680 = vld [vmem:[#allocation2 + $0x13f8] sm:$0xff]
    %v681 = vld [vmem:[#allocation2 + $0x1400] sm:$0xff]
    %v682 = vld [vmem:[#allocation2 + $0x1408] sm:$0xff]
    %v683 = vld [vmem:[#allocation2 + $0x1410] sm:$0xff]
    %v684 = vld [vmem:[#allocation2 + $0x1418] sm:$0xff]
    %v685 = vld [vmem:[#allocation2 + $0x1420] sm:$0xff]
    %v686 = vld [vmem:[#allocation2 + $0x1428] sm:$0xff]
    %v687 = vld [vmem:[#allocation2 + $0x1430] sm:$0xff]
    %v688 = vld [vmem:[#allocation2 + $0x1438] sm:$0xff]
    %v689 = vld [vmem:[#allocation2 + $0x1440] sm:$0xff]
    %v690 = vld [vmem:[#allocation2 + $0x1448] sm:$0xff]
    %v691 = vld [vmem:[#allocation2 + $0x1450] sm:$0xff]
    %v692 = vld [vmem:[#allocation2 + $0x1458] sm:$0xff]
    %v693 = vld [vmem:[#allocation2 + $0x1460] sm:$0xff]
    %v694 = vld [vmem:[#allocation2 + $0x1468] sm:$0xff]
    %v695 = vld [vmem:[#allocation2 + $0x1470] sm:$0xff]
    %v696 = vld [vmem:[#allocation2 + $0x1478] sm:$0xff]
    %v697 = vld [vmem:[#allocation2 + $0x1480] sm:$0xff]
    %v698 = vld [vmem:[#allocation2 + $0x1488] sm:$0xff]
    %v699 = vld [vmem:[#allocation2 + $0x1490] sm:$0xff]
    %v700 = vld [vmem:[#allocation2 + $0x1498] sm:$0xff]
    %v701 = vld [vmem:[#allocation2 + $0x14a0] sm:$0xff]
    %v702 = vld [vmem:[#allocation2 + $0x14a8] sm:$0xff]
    %v703 = vld [vmem:[#allocation2 + $0x14b0] sm:$0xff]
    %v704 = vld [vmem:[#allocation2 + $0x14b8] sm:$0xff]
    %v705 = vld [vmem:[#allocation2 + $0x14c0] sm:$0xff]
    %v706 = vld [vmem:[#allocation2 + $0x14c8] sm:$0xff]
    %v707 = vld [vmem:[#allocation2 + $0x14d0] sm:$0xff]
    %v708 = vld [vmem:[#allocation2 + $0x14d8] sm:$0xff]
    %v709 = vld [vmem:[#allocation2 + $0x14e0] sm:$0xff]
    %v710 = vld [vmem:[#allocation2 + $0x14e8] sm:$0xff]
    %v711 = vld [vmem:[#allocation2 + $0x14f0] sm:$0xff]
    %v712 = vld [vmem:[#allocation2 + $0x14f8] sm:$0xff]
    %v713 = vld [vmem:[#allocation2 + $0x1500] sm:$0xff]
    %v714 = vld [vmem:[#allocation2 + $0x1508] sm:$0xff]
    %v715 = vld [vmem:[#allocation2 + $0x1510] sm:$0xff]
    %v716 = vld [vmem:[#allocation2 + $0x1518] sm:$0xff]
    %v717 = vld [vmem:[#allocation2 + $0x1520] sm:$0xff]
    %v718 = vld [vmem:[#allocation2 + $0x1528] sm:$0xff]
    %v719 = vld [vmem:[#allocation2 + $0x1530] sm:$0xff]
    %v720 = vld [vmem:[#allocation2 + $0x1538] sm:$0xff]
    %v721 = vld [vmem:[#allocation2 + $0x1540] sm:$0xff]
    %v722 = vld [vmem:[#allocation2 + $0x1548] sm:$0xff]
    %v723 = vld [vmem:[#allocation2 + $0x1550] sm:$0xff]
    %v724 = vld [vmem:[#allocation2 + $0x1558] sm:$0xff]
    %v725 = vld [vmem:[#allocation2 + $0x1560] sm:$0xff]
    %v726 = vld [vmem:[#allocation2 + $0x1568] sm:$0xff]
    %v727 = vld [vmem:[#allocation2 + $0x1570] sm:$0xff]
    %v728 = vld [vmem:[#allocation2 + $0x1578] sm:$0xff]
    %v729 = vld [vmem:[#allocation2 + $0x1580] sm:$0xff]
    %v730 = vld [vmem:[#allocation2 + $0x1588] sm:$0xff]
    %v731 = vld [vmem:[#allocation2 + $0x1590] sm:$0xff]
    %v732 = vld [vmem:[#allocation2 + $0x1598] sm:$0xff]
    %v733 = vld [vmem:[#allocation2 + $0x15a0] sm:$0xff]
    %v734 = vld [vmem:[#allocation2 + $0x15a8] sm:$0xff]
    %v735 = vld [vmem:[#allocation2 + $0x15b0] sm:$0xff]
    %v736 = vld [vmem:[#allocation2 + $0x15b8] sm:$0xff]
    %v737 = vld [vmem:[#allocation2 + $0x15c0] sm:$0xff]
    %v738 = vld [vmem:[#allocation2 + $0x15c8] sm:$0xff]
    %v739 = vld [vmem:[#allocation2 + $0x15d0] sm:$0xff]
    %v740 = vld [vmem:[#allocation2 + $0x15d8] sm:$0xff]
    %v741 = vld [vmem:[#allocation2 + $0x15e0] sm:$0xff]
    %v742 = vld [vmem:[#allocation2 + $0x15e8] sm:$0xff]
    %v743 = vld [vmem:[#allocation2 + $0x15f0] sm:$0xff]
    %v744 = vld [vmem:[#allocation2 + $0x15f8] sm:$0xff]
    %v745 = vld [vmem:[#allocation2 + $0x1600] sm:$0xff]
    %v746 = vld [vmem:[#allocation2 + $0x1608] sm:$0xff]
    %v747 = vld [vmem:[#allocation2 + $0x1610] sm:$0xff]
    %v748 = vld [vmem:[#allocation2 + $0x1618] sm:$0xff]
    %v749 = vld [vmem:[#allocation2 + $0x1620] sm:$0xff]
    %v750 = vld [vmem:[#allocation2 + $0x1628] sm:$0xff]
    %v751 = vld [vmem:[#allocation2 + $0x1630] sm:$0xff]
    %v752 = vld [vmem:[#allocation2 + $0x1638] sm:$0xff]
    %v753 = vld [vmem:[#allocation2 + $0x1640] sm:$0xff]
    %v754 = vld [vmem:[#allocation2 + $0x1648] sm:$0xff]
    %v755 = vld [vmem:[#allocation2 + $0x1650] sm:$0xff]
    %v756 = vld [vmem:[#allocation2 + $0x1658] sm:$0xff]
    %v757 = vld [vmem:[#allocation2 + $0x1660] sm:$0xff]
    %v758 = vld [vmem:[#allocation2 + $0x1668] sm:$0xff]
    %v759 = vld [vmem:[#allocation2 + $0x1670] sm:$0xff]
    %v760 = vld [vmem:[#allocation2 + $0x1678] sm:$0xff]
    %v761 = vld [vmem:[#allocation2 + $0x1680] sm:$0xff]
    %v762 = vld [vmem:[#allocation2 + $0x1688] sm:$0xff]
    %v763 = vld [vmem:[#allocation2 + $0x1690] sm:$0xff]
    %v764 = vld [vmem:[#allocation2 + $0x1698] sm:$0xff]
    %v765 = vld [vmem:[#allocation2 + $0x16a0] sm:$0xff]
    %v766 = vld [vmem:[#allocation2 + $0x16a8] sm:$0xff]
    %v767 = vld [vmem:[#allocation2 + $0x16b0] sm:$0xff]
    %v768 = vld [vmem:[#allocation2 + $0x16b8] sm:$0xff]
    %v769 = vld [vmem:[#allocation2 + $0x16c0] sm:$0xff]
    %v770 = vld [vmem:[#allocation2 + $0x16c8] sm:$0xff]
    %v771 = vld [vmem:[#allocation2 + $0x16d0] sm:$0xff]
    %v772 = vld [vmem:[#allocation2 + $0x16d8] sm:$0xff]
    %v773 = vld [vmem:[#allocation2 + $0x16e0] sm:$0xff]
    %v774 = vld [vmem:[#allocation2 + $0x16e8] sm:$0xff]
    %v775 = vld [vmem:[#allocation2 + $0x16f0] sm:$0xff]
    %v776 = vld [vmem:[#allocation2 + $0x16f8] sm:$0xff]
    %v777 = vld [vmem:[#allocation2 + $0x1700] sm:$0xff]
    %v778 = vld [vmem:[#allocation2 + $0x1708] sm:$0xff]
    %v779 = vld [vmem:[#allocation2 + $0x1710] sm:$0xff]
    %v780 = vld [vmem:[#allocation2 + $0x1718] sm:$0xff]
    %v781 = vld [vmem:[#allocation2 + $0x1720] sm:$0xff]
    %v782 = vld [vmem:[#allocation2 + $0x1728] sm:$0xff]
    %v783 = vld [vmem:[#allocation2 + $0x1730] sm:$0xff]
    %v784 = vld [vmem:[#allocation2 + $0x1738] sm:$0xff]
    %v785 = vld [vmem:[#allocation2 + $0x1740] sm:$0xff]
    %v786 = vld [vmem:[#allocation2 + $0x1748] sm:$0xff]
    %v787 = vld [vmem:[#allocation2 + $0x1750] sm:$0xff]
    %v788 = vld [vmem:[#allocation2 + $0x1758] sm:$0xff]
    %v789 = vld [vmem:[#allocation2 + $0x1760] sm:$0xff]
    %v790 = vld [vmem:[#allocation2 + $0x1768] sm:$0xff]
    %v791 = vld [vmem:[#allocation2 + $0x1770] sm:$0xff]
    %v792 = vld [vmem:[#allocation2 + $0x1778] sm:$0xff]
    %v793 = vld [vmem:[#allocation2 + $0x1780] sm:$0xff]
    %v794 = vld [vmem:[#allocation2 + $0x1788] sm:$0xff]
    %v795 = vld [vmem:[#allocation2 + $0x1790] sm:$0xff]
    %v796 = vld [vmem:[#allocation2 + $0x1798] sm:$0xff]
    %v797 = vld [vmem:[#allocation2 + $0x17a0] sm:$0xff]
    %v798 = vld [vmem:[#allocation2 + $0x17a8] sm:$0xff]
    %v799 = vld [vmem:[#allocation2 + $0x17b0] sm:$0xff]
    %v800 = vld [vmem:[#allocation2 + $0x17b8] sm:$0xff]
    %v801 = vld [vmem:[#allocation2 + $0x17c0] sm:$0xff]
    %v802 = vld [vmem:[#allocation2 + $0x17c8] sm:$0xff]
    %v803 = vld [vmem:[#allocation2 + $0x17d0] sm:$0xff]
    %v804 = vld [vmem:[#allocation2 + $0x17d8] sm:$0xff]
    %v805 = vld [vmem:[#allocation2 + $0x17e0] sm:$0xff]
    %v806 = vld [vmem:[#allocation2 + $0x17e8] sm:$0xff]
    %v807 = vld [vmem:[#allocation2 + $0x17f0] sm:$0xff]
    %v808 = vld [vmem:[#allocation2 + $0x17f8] sm:$0xff]
    %v809 = vld [vmem:[#allocation2 + $0x1800] sm:$0xff]
    %v810 = vld [vmem:[#allocation2 + $0x1808] sm:$0xff]
    %v811 = vld [vmem:[#allocation2 + $0x1810] sm:$0xff]
    %v812 = vld [vmem:[#allocation2 + $0x1818] sm:$0xff]
    %v813 = vld [vmem:[#allocation2 + $0x1820] sm:$0xff]
    %v814 = vld [vmem:[#allocation2 + $0x1828] sm:$0xff]
    %v815 = vld [vmem:[#allocation2 + $0x1830] sm:$0xff]
    %v816 = vld [vmem:[#allocation2 + $0x1838] sm:$0xff]
    %v817 = vld [vmem:[#allocation2 + $0x1840] sm:$0xff]
    %v818 = vld [vmem:[#allocation2 + $0x1848] sm:$0xff]
    %v819 = vld [vmem:[#allocation2 + $0x1850] sm:$0xff]
    %v820 = vld [vmem:[#allocation2 + $0x1858] sm:$0xff]
    %v821 = vld [vmem:[#allocation2 + $0x1860] sm:$0xff]
    %v822 = vld [vmem:[#allocation2 + $0x1868] sm:$0xff]
    %v823 = vld [vmem:[#allocation2 + $0x1870] sm:$0xff]
    %v824 = vld [vmem:[#allocation2 + $0x1878] sm:$0xff]
    %v825 = vld [vmem:[#allocation2 + $0x1880] sm:$0xff]
    %v826 = vld [vmem:[#allocation2 + $0x1888] sm:$0xff]
    %v827 = vld [vmem:[#allocation2 + $0x1890] sm:$0xff]
    %v828 = vld [vmem:[#allocation2 + $0x1898] sm:$0xff]
    %v829 = vld [vmem:[#allocation2 + $0x18a0] sm:$0xff]
    %v830 = vld [vmem:[#allocation2 + $0x18a8] sm:$0xff]
    %v831 = vld [vmem:[#allocation2 + $0x18b0] sm:$0xff]
    %v832 = vld [vmem:[#allocation2 + $0x18b8] sm:$0xff]
    %v833 = vld [vmem:[#allocation2 + $0x18c0] sm:$0xff]
    %v834 = vld [vmem:[#allocation2 + $0x18c8] sm:$0xff]
    %v835 = vld [vmem:[#allocation2 + $0x18d0] sm:$0xff]
    %v836 = vld [vmem:[#allocation2 + $0x18d8] sm:$0xff]
    %v837 = vld [vmem:[#allocation2 + $0x18e0] sm:$0xff]
    %v838 = vld [vmem:[#allocation2 + $0x18e8] sm:$0xff]
    %v839 = vld [vmem:[#allocation2 + $0x18f0] sm:$0xff]
    %v840 = vld [vmem:[#allocation2 + $0x18f8] sm:$0xff]
    %v841 = vld [vmem:[#allocation2 + $0x1900] sm:$0xff]
    %v842 = vld [vmem:[#allocation2 + $0x1908] sm:$0xff]
    %v843 = vld [vmem:[#allocation2 + $0x1910] sm:$0xff]
    %v844 = vld [vmem:[#allocation2 + $0x1918] sm:$0xff]
    %v845 = vld [vmem:[#allocation2 + $0x1920] sm:$0xff]
    %v846 = vld [vmem:[#allocation2 + $0x1928] sm:$0xff]
    %v847 = vld [vmem:[#allocation2 + $0x1930] sm:$0xff]
    %v848 = vld [vmem:[#allocation2 + $0x1938] sm:$0xff]
    %v849 = vld [vmem:[#allocation2 + $0x1940] sm:$0xff]
    %v850 = vld [vmem:[#allocation2 + $0x1948] sm:$0xff]
    %v851 = vld [vmem:[#allocation2 + $0x1950] sm:$0xff]
    %v852 = vld [vmem:[#allocation2 + $0x1958] sm:$0xff]
    %v853 = vld [vmem:[#allocation2 + $0x1960] sm:$0xff]
    %v854 = vld [vmem:[#allocation2 + $0x1968] sm:$0xff]
    %v855 = vld [vmem:[#allocation2 + $0x1970] sm:$0xff]
    %v856 = vld [vmem:[#allocation2 + $0x1978] sm:$0xff]
    %v857 = vld [vmem:[#allocation2 + $0x1980] sm:$0xff]
    %v858 = vld [vmem:[#allocation2 + $0x1988] sm:$0xff]
    %v859 = vld [vmem:[#allocation2 + $0x1990] sm:$0xff]
    %v860 = vld [vmem:[#allocation2 + $0x1998] sm:$0xff]
    %v861 = vld [vmem:[#allocation2 + $0x19a0] sm:$0xff]
    %v862 = vld [vmem:[#allocation2 + $0x19a8] sm:$0xff]
    %v863 = vld [vmem:[#allocation2 + $0x19b0] sm:$0xff]
    %v864 = vld [vmem:[#allocation2 + $0x19b8] sm:$0xff]
    %v865 = vld [vmem:[#allocation2 + $0x19c0] sm:$0xff]
    %v866 = vld [vmem:[#allocation2 + $0x19c8] sm:$0xff]
    %v867 = vld [vmem:[#allocation2 + $0x19d0] sm:$0xff]
    %v868 = vld [vmem:[#allocation2 + $0x19d8] sm:$0xff]
    %v869 = vld [vmem:[#allocation2 + $0x19e0] sm:$0xff]
    %v870 = vld [vmem:[#allocation2 + $0x19e8] sm:$0xff]
    %v871 = vld [vmem:[#allocation2 + $0x19f0] sm:$0xff]
    %v872 = vld [vmem:[#allocation2 + $0x19f8] sm:$0xff]
    %v873 = vld [vmem:[#allocation2 + $0x1a00] sm:$0xff]
    %v874 = vld [vmem:[#allocation2 + $0x1a08] sm:$0xff]
    %v875 = vld [vmem:[#allocation2 + $0x1a10] sm:$0xff]
    %v876 = vld [vmem:[#allocation2 + $0x1a18] sm:$0xff]
    %v877 = vld [vmem:[#allocation2 + $0x1a20] sm:$0xff]
    %v878 = vld [vmem:[#allocation2 + $0x1a28] sm:$0xff]
    %v879 = vld [vmem:[#allocation2 + $0x1a30] sm:$0xff]
    %v880 = vld [vmem:[#allocation2 + $0x1a38] sm:$0xff]
    %v881 = vld [vmem:[#allocation2 + $0x1a40] sm:$0xff]
    %v882 = vld [vmem:[#allocation2 + $0x1a48] sm:$0xff]
    %v883 = vld [vmem:[#allocation2 + $0x1a50] sm:$0xff]
    %v884 = vld [vmem:[#allocation2 + $0x1a58] sm:$0xff]
    %v885 = vld [vmem:[#allocation2 + $0x1a60] sm:$0xff]
    %v886 = vld [vmem:[#allocation2 + $0x1a68] sm:$0xff]
    %v887 = vld [vmem:[#allocation2 + $0x1a70] sm:$0xff]
    %v888 = vld [vmem:[#allocation2 + $0x1a78] sm:$0xff]
    %v889 = vld [vmem:[#allocation2 + $0x1a80] sm:$0xff]
    %v890 = vld [vmem:[#allocation2 + $0x1a88] sm:$0xff]
    %v891 = vld [vmem:[#allocation2 + $0x1a90] sm:$0xff]
    %v892 = vld [vmem:[#allocation2 + $0x1a98] sm:$0xff]
    %v893 = vld [vmem:[#allocation2 + $0x1aa0] sm:$0xff]
    %v894 = vld [vmem:[#allocation2 + $0x1aa8] sm:$0xff]
    %v895 = vld [vmem:[#allocation2 + $0x1ab0] sm:$0xff]
    %v896 = vld [vmem:[#allocation2 + $0x1ab8] sm:$0xff]
    %v897 = vld [vmem:[#allocation2 + $0x1ac0] sm:$0xff]
    %v898 = vld [vmem:[#allocation2 + $0x1ac8] sm:$0xff]
    %v899 = vld [vmem:[#allocation2 + $0x1ad0] sm:$0xff]
    %v900 = vld [vmem:[#allocation2 + $0x1ad8] sm:$0xff]
    %v901 = vld [vmem:[#allocation2 + $0x1ae0] sm:$0xff]
    %v902 = vld [vmem:[#allocation2 + $0x1ae8] sm:$0xff]
    %v903 = vld [vmem:[#allocation2 + $0x1af0] sm:$0xff]
    %v904 = vld [vmem:[#allocation2 + $0x1af8] sm:$0xff]
    %v905 = vld [vmem:[#allocation4] sm:$0xff]
    %v906 = vld [vmem:[#allocation4 + $0x8] sm:$0xff]
    %v907 = vld [vmem:[#allocation4 + $0x10] sm:$0xff]
    %v908 = vld [vmem:[#allocation4 + $0x18] sm:$0xff]
    %v909 = vld [vmem:[#allocation4 + $0x20] sm:$0xff]
    %v910 = vld [vmem:[#allocation4 + $0x28] sm:$0xff]
    %v911 = vld [vmem:[#allocation4 + $0x30] sm:$0x3f]
    %v919 = vlaneseq
    %v920 = vshrl.u32 %v919, 7
    %v921 = vsub.s32 0, %v920
    %v922 = vrot.slane %v905, %v921
    %v923 = vlaneseq
    %v924 = vshrl.u32 %v923, 7
    %v925 = vsub.s32 1, %v924
    %v926 = vrot.slane %v905, %v925
    %v927 = vlaneseq
    %v928 = vshrl.u32 %v927, 7
    %v929 = vsub.s32 2, %v928
    %v930 = vrot.slane %v905, %v929
    %v931 = vlaneseq
    %v932 = vshrl.u32 %v931, 7
    %v933 = vsub.s32 3, %v932
    %v934 = vrot.slane %v905, %v933
    %v935 = vlaneseq
    %v936 = vshrl.u32 %v935, 7
    %v937 = vsub.s32 4, %v936
    %v938 = vrot.slane %v905, %v937
    %v939 = vlaneseq
    %v940 = vshrl.u32 %v939, 7
    %v941 = vsub.s32 5, %v940
    %v942 = vrot.slane %v905, %v941
    %v943 = vlaneseq
    %v944 = vshrl.u32 %v943, 7
    %v945 = vsub.s32 6, %v944
    %v946 = vrot.slane %v905, %v945
    %v947 = vlaneseq
    %v948 = vshrl.u32 %v947, 7
    %v949 = vsub.s32 7, %v948
    %v950 = vrot.slane %v905, %v949
    %v951 = vlaneseq
    %v952 = vshrl.u32 %v951, 7
    %v953 = vsub.s32 0, %v952
    %v954 = vrot.slane %v906, %v953
    %v955 = vlaneseq
    %v956 = vshrl.u32 %v955, 7
    %v957 = vsub.s32 1, %v956
    %v958 = vrot.slane %v906, %v957
    %v959 = vlaneseq
    %v960 = vshrl.u32 %v959, 7
    %v961 = vsub.s32 2, %v960
    %v962 = vrot.slane %v906, %v961
    %v963 = vlaneseq
    %v964 = vshrl.u32 %v963, 7
    %v965 = vsub.s32 3, %v964
    %v966 = vrot.slane %v906, %v965
    %v967 = vlaneseq
    %v968 = vshrl.u32 %v967, 7
    %v969 = vsub.s32 4, %v968
    %v970 = vrot.slane %v906, %v969
    %v971 = vlaneseq
    %v972 = vshrl.u32 %v971, 7
    %v973 = vsub.s32 5, %v972
    %v974 = vrot.slane %v906, %v973
    %v975 = vlaneseq
    %v976 = vshrl.u32 %v975, 7
    %v977 = vsub.s32 6, %v976
    %v978 = vrot.slane %v906, %v977
    %v979 = vlaneseq
    %v980 = vshrl.u32 %v979, 7
    %v981 = vsub.s32 7, %v980
    %v982 = vrot.slane %v906, %v981
    %v983 = vlaneseq
    %v984 = vshrl.u32 %v983, 7
    %v985 = vsub.s32 0, %v984
    %v986 = vrot.slane %v907, %v985
    %v987 = vlaneseq
    %v988 = vshrl.u32 %v987, 7
    %v989 = vsub.s32 1, %v988
    %v990 = vrot.slane %v907, %v989
    %v991 = vlaneseq
    %v992 = vshrl.u32 %v991, 7
    %v993 = vsub.s32 2, %v992
    %v994 = vrot.slane %v907, %v993
    %v995 = vlaneseq
    %v996 = vshrl.u32 %v995, 7
    %v997 = vsub.s32 3, %v996
    %v998 = vrot.slane %v907, %v997
    %v999 = vlaneseq
    %v1000 = vshrl.u32 %v999, 7
    %v1001 = vsub.s32 4, %v1000
    %v1002 = vrot.slane %v907, %v1001
    %v1003 = vlaneseq
    %v1004 = vshrl.u32 %v1003, 7
    %v1005 = vsub.s32 5, %v1004
    %v1006 = vrot.slane %v907, %v1005
    %v1007 = vlaneseq
    %v1008 = vshrl.u32 %v1007, 7
    %v1009 = vsub.s32 6, %v1008
    %v1010 = vrot.slane %v907, %v1009
    %v1011 = vlaneseq
    %v1012 = vshrl.u32 %v1011, 7
    %v1013 = vsub.s32 7, %v1012
    %v1014 = vrot.slane %v907, %v1013
    %v1015 = vlaneseq
    %v1016 = vshrl.u32 %v1015, 7
    %v1017 = vsub.s32 0, %v1016
    %v1018 = vrot.slane %v908, %v1017
    %v1019 = vlaneseq
    %v1020 = vshrl.u32 %v1019, 7
    %v1021 = vsub.s32 1, %v1020
    %v1022 = vrot.slane %v908, %v1021
    %v1023 = vlaneseq
    %v1024 = vshrl.u32 %v1023, 7
    %v1025 = vsub.s32 2, %v1024
    %v1026 = vrot.slane %v908, %v1025
    %v1027 = vlaneseq
    %v1028 = vshrl.u32 %v1027, 7
    %v1029 = vsub.s32 3, %v1028
    %v1030 = vrot.slane %v908, %v1029
    %v1031 = vlaneseq
    %v1032 = vshrl.u32 %v1031, 7
    %v1033 = vsub.s32 4, %v1032
    %v1034 = vrot.slane %v908, %v1033
    %v1035 = vlaneseq
    %v1036 = vshrl.u32 %v1035, 7
    %v1037 = vsub.s32 5, %v1036
    %v1038 = vrot.slane %v908, %v1037
    %v1039 = vlaneseq
    %v1040 = vshrl.u32 %v1039, 7
    %v1041 = vsub.s32 6, %v1040
    %v1042 = vrot.slane %v908, %v1041
    %v1043 = vlaneseq
    %v1044 = vshrl.u32 %v1043, 7
    %v1045 = vsub.s32 7, %v1044
    %v1046 = vrot.slane %v908, %v1045
    %v1047 = vlaneseq
    %v1048 = vshrl.u32 %v1047, 7
    %v1049 = vsub.s32 0, %v1048
    %v1050 = vrot.slane %v909, %v1049
    %v1051 = vlaneseq
    %v1052 = vshrl.u32 %v1051, 7
    %v1053 = vsub.s32 1, %v1052
    %v1054 = vrot.slane %v909, %v1053
    %v1055 = vlaneseq
    %v1056 = vshrl.u32 %v1055, 7
    %v1057 = vsub.s32 2, %v1056
    %v1058 = vrot.slane %v909, %v1057
    %v1059 = vlaneseq
    %v1060 = vshrl.u32 %v1059, 7
    %v1061 = vsub.s32 3, %v1060
    %v1062 = vrot.slane %v909, %v1061
    %v1063 = vlaneseq
    %v1064 = vshrl.u32 %v1063, 7
    %v1065 = vsub.s32 4, %v1064
    %v1066 = vrot.slane %v909, %v1065
    %v1067 = vlaneseq
    %v1068 = vshrl.u32 %v1067, 7
    %v1069 = vsub.s32 5, %v1068
    %v1070 = vrot.slane %v909, %v1069
    %v1071 = vlaneseq
    %v1072 = vshrl.u32 %v1071, 7
    %v1073 = vsub.s32 6, %v1072
    %v1074 = vrot.slane %v909, %v1073
    %v1075 = vlaneseq
    %v1076 = vshrl.u32 %v1075, 7
    %v1077 = vsub.s32 7, %v1076
    %v1078 = vrot.slane %v909, %v1077
    %v1079 = vlaneseq
    %v1080 = vshrl.u32 %v1079, 7
    %v1081 = vsub.s32 0, %v1080
    %v1082 = vrot.slane %v910, %v1081
    %v1083 = vlaneseq
    %v1084 = vshrl.u32 %v1083, 7
    %v1085 = vsub.s32 1, %v1084
    %v1086 = vrot.slane %v910, %v1085
    %v1087 = vlaneseq
    %v1088 = vshrl.u32 %v1087, 7
    %v1089 = vsub.s32 2, %v1088
    %v1090 = vrot.slane %v910, %v1089
    %v1091 = vlaneseq
    %v1092 = vshrl.u32 %v1091, 7
    %v1093 = vsub.s32 3, %v1092
    %v1094 = vrot.slane %v910, %v1093
    %v1095 = vlaneseq
    %v1096 = vshrl.u32 %v1095, 7
    %v1097 = vsub.s32 4, %v1096
    %v1098 = vrot.slane %v910, %v1097
    %v1099 = vlaneseq
    %v1100 = vshrl.u32 %v1099, 7
    %v1101 = vsub.s32 5, %v1100
    %v1102 = vrot.slane %v910, %v1101
    %v1103 = vlaneseq
    %v1104 = vshrl.u32 %v1103, 7
    %v1105 = vsub.s32 6, %v1104
    %v1106 = vrot.slane %v910, %v1105
    %v1107 = vlaneseq
    %v1108 = vshrl.u32 %v1107, 7
    %v1109 = vsub.s32 7, %v1108
    %v1110 = vrot.slane %v910, %v1109
    %v1111 = vlaneseq
    %v1112 = vshrl.u32 %v1111, 7
    %v1113 = vsub.s32 0, %v1112
    %v1114 = vrot.slane %v911, %v1113
    %v1115 = vlaneseq
    %v1116 = vshrl.u32 %v1115, 7
    %v1117 = vsub.s32 1, %v1116
    %v1118 = vrot.slane %v911, %v1117
    %v1119 = vlaneseq
    %v1120 = vshrl.u32 %v1119, 7
    %v1121 = vsub.s32 2, %v1120
    %v1122 = vrot.slane %v911, %v1121
    %v1123 = vlaneseq
    %v1124 = vshrl.u32 %v1123, 7
    %v1125 = vsub.s32 3, %v1124
    %v1126 = vrot.slane %v911, %v1125
    %v1127 = vlaneseq
    %v1128 = vshrl.u32 %v1127, 7
    %v1129 = vsub.s32 4, %v1128
    %v1130 = vrot.slane %v911, %v1129
    %v1131 = vlaneseq
    %v1132 = vshrl.u32 %v1131, 7
    %v1133 = vsub.s32 5, %v1132
    %v1134 = vrot.slane %v911, %v1133
    %1189 = vmatprep.subr.mxu0 %v42
    %1190 = vmatpush1.msra.mxu0 %v41
    %1191 = vmatprep.subr.mxu0 %v96
    %1192 = vmatpush1.msra.mxu0 %v95
    %1193 = vmatprep.subr.mxu0 %v150
    %1194 = vmatpush1.msra.mxu0 %v149
    %1195 = vmatprep.subr.mxu0 %v204
    %1196 = vmatpush1.msra.mxu0 %v203
    %1197 = vmatprep.subr.mxu0 %v258
    %1198 = vmatpush1.msra.mxu0 %v257
    %1199 = vmatprep.subr.mxu0 %v312
    %1200 = vmatpush1.msra.mxu0 %v311
    %1201 = vmatprep.subr.mxu0 %v366
    %1202 = vmatpush1.msra.mxu0 %v365
    %1203 = vmatprep.subr.mxu0 %v420
    %1204 = vmatpush1.msra.mxu0 %v419
    %1205 = vmatprep.subr.mxu0 %v474
    %1206 = vmatpush1.msra.mxu0 %v473
    %1207 = vmatprep.subr.mxu0 %v528
    %1208 = vmatpush1.msra.mxu0 %v527
    %1209 = vmatprep.subr.mxu0 %v582
    %1210 = vmatpush1.msra.mxu0 %v581
    %1211 = vmatprep.subr.mxu0 %v636
    %1212 = vmatpush1.msra.mxu0 %v635
    %1213 = vmatprep.subr.mxu0 %v690
    %1214 = vmatpush1.msra.mxu0 %v689
    %1215 = vmatprep.subr.mxu0 %v744
    %1216 = vmatpush1.msra.mxu0 %v743
    %1217 = vmatprep.subr.mxu0 %v798
    %1218 = vmatpush1.msra.mxu0 %v797
    %1219 = vmatprep.subr.mxu0 %v852
    %1220 = vmatpush1.msra.mxu0 %v851
    %1221 = vmatprep.subr.mxu0 0.0
    %1222 = vmatpush1.msra.mxu0 0.0
    %1223 = vmatprep.subr.mxu0 0.0
    %1224 = vmatpush1.msra.mxu0 0.0
    %1225 = vmatprep.subr.mxu0 0.0
    %1226 = vmatpush1.msra.mxu0 0.0
    %1227 = vmatprep.subr.mxu0 0.0
    %1228 = vmatpush1.msra.mxu0 0.0
    %1229 = vmatprep.subr.mxu0 0.0
    %1230 = vmatpush1.msra.mxu0 0.0
    %1231 = vmatprep.subr.mxu0 0.0
    %1232 = vmatpush1.msra.mxu0 0.0
    %1233 = vmatprep.subr.mxu0 0.0
    %1234 = vmatpush1.msra.mxu0 0.0
    %1235 = vmatprep.subr.mxu0 0.0
    %1236 = vmatpush1.msra.mxu0 0.0
    %1237 = vmatprep.subr.mxu0 0.0
    %1238 = vmatpush1.msra.mxu0 0.0
    %1239 = vmatprep.subr.mxu0 0.0
    %1240 = vmatpush1.msra.mxu0 0.0
    %1241 = vmatprep.subr.mxu0 0.0
    %1242 = vmatpush1.msra.mxu0 0.0
    %1243 = vmatprep.subr.mxu0 0.0
    %1244 = vmatpush1.msra.mxu0 0.0
    %1245 = vmatprep.subr.mxu0 0.0
    %1246 = vmatpush1.msra.mxu0 0.0
    %1247 = vmatprep.subr.mxu0 0.0
    %1248 = vmatpush1.msra.mxu0 0.0
    %1249 = vmatprep.subr.mxu0 0.0
    %1250 = vmatpush1.msra.mxu0 0.0
    %1251 = vmatprep.subr.mxu0 0.0
    %1252 = vmatpush1.msra.mxu0 0.0
    %1253 = vmatprep.mubr.f32.mxu0 0.0
    %1254 = vmatmul.mubr.f32.gmra.mrb[0].mxu0 %v40
    %v1255 = vpop.f32.mrb[0].mxu0
    %v1256 = vadd.f32 %v922, %v1255
    %v1257 = vpop.f32.mrb[0].mxu0
    %v1258 = vadd.f32 %v926, %v1257
    %1259 = vdwg.mxu0
    %1260 = vmatprep.subr.mxu0 %v44
    %1261 = vmatpush1.msra.mxu0 %v43
    %1262 = vmatprep.subr.mxu0 %v98
    %1263 = vmatpush1.msra.mxu0 %v97
    %1264 = vmatprep.subr.mxu0 %v152
    %1265 = vmatpush1.msra.mxu0 %v151
    %1266 = vmatprep.subr.mxu0 %v206
    %1267 = vmatpush1.msra.mxu0 %v205
    %1268 = vmatprep.subr.mxu0 %v260
    %1269 = vmatpush1.msra.mxu0 %v259
    %1270 = vmatprep.subr.mxu0 %v314
    %1271 = vmatpush1.msra.mxu0 %v313
    %1272 = vmatprep.subr.mxu0 %v368
    %1273 = vmatpush1.msra.mxu0 %v367
    %1274 = vmatprep.subr.mxu0 %v422
    %1275 = vmatpush1.msra.mxu0 %v421
    %1276 = vmatprep.subr.mxu0 %v476
    %1277 = vmatpush1.msra.mxu0 %v475
    %1278 = vmatprep.subr.mxu0 %v530
    %1279 = vmatpush1.msra.mxu0 %v529
    %1280 = vmatprep.subr.mxu0 %v584
    %1281 = vmatpush1.msra.mxu0 %v583
    %1282 = vmatprep.subr.mxu0 %v638
    %1283 = vmatpush1.msra.mxu0 %v637
    %1284 = vmatprep.subr.mxu0 %v692
    %1285 = vmatpush1.msra.mxu0 %v691
    %1286 = vmatprep.subr.mxu0 %v746
    %1287 = vmatpush1.msra.mxu0 %v745
    %1288 = vmatprep.subr.mxu0 %v800
    %1289 = vmatpush1.msra.mxu0 %v799
    %1290 = vmatprep.subr.mxu0 %v854
    %1291 = vmatpush1.msra.mxu0 %v853
    %1292 = vmatprep.subr.mxu0 0.0
    %1293 = vmatpush1.msra.mxu0 0.0
    %1294 = vmatprep.subr.mxu0 0.0
    %1295 = vmatpush1.msra.mxu0 0.0
    %1296 = vmatprep.subr.mxu0 0.0
    %1297 = vmatpush1.msra.mxu0 0.0
    %1298 = vmatprep.subr.mxu0 0.0
    %1299 = vmatpush1.msra.mxu0 0.0
    %1300 = vmatprep.subr.mxu0 0.0
    %1301 = vmatpush1.msra.mxu0 0.0
    %1302 = vmatprep.subr.mxu0 0.0
    %1303 = vmatpush1.msra.mxu0 0.0
    %1304 = vmatprep.subr.mxu0 0.0
    %1305 = vmatpush1.msra.mxu0 0.0
    %1306 = vmatprep.subr.mxu0 0.0
    %1307 = vmatpush1.msra.mxu0 0.0
    %1308 = vmatprep.subr.mxu0 0.0
    %1309 = vmatpush1.msra.mxu0 0.0
    %1310 = vmatprep.subr.mxu0 0.0
    %1311 = vmatpush1.msra.mxu0 0.0
    %1312 = vmatprep.subr.mxu0 0.0
    %1313 = vmatpush1.msra.mxu0 0.0
    %1314 = vmatprep.subr.mxu0 0.0
    %1315 = vmatpush1.msra.mxu0 0.0
    %1316 = vmatprep.subr.mxu0 0.0
    %1317 = vmatpush1.msra.mxu0 0.0
    %1318 = vmatprep.subr.mxu0 0.0
    %1319 = vmatpush1.msra.mxu0 0.0
    %1320 = vmatprep.subr.mxu0 0.0
    %1321 = vmatpush1.msra.mxu0 0.0
    %1322 = vmatprep.subr.mxu0 0.0
    %1323 = vmatpush1.msra.mxu0 0.0
    %1324 = vmatprep.mubr.f32.mxu0 0.0
    %1325 = vmatmul.mubr.f32.gmra.mrb[0].mxu0 %v40
    %v1326 = vpop.f32.mrb[0].mxu0
    %v1327 = vadd.f32 %v930, %v1326
    %v1328 = vpop.f32.mrb[0].mxu0
    %v1329 = vadd.f32 %v934, %v1328
    %1330 = vdwg.mxu0
    %1331 = vmatprep.subr.mxu0 %v46
    %1332 = vmatpush1.msra.mxu0 %v45
    %1333 = vmatprep.subr.mxu0 %v100
    %1334 = vmatpush1.msra.mxu0 %v99
    %1335 = vmatprep.subr.mxu0 %v154
    %1336 = vmatpush1.msra.mxu0 %v153
    %1337 = vmatprep.subr.mxu0 %v208
    %1338 = vmatpush1.msra.mxu0 %v207
    %1339 = vmatprep.subr.mxu0 %v262
    %1340 = vmatpush1.msra.mxu0 %v261
    %1341 = vmatprep.subr.mxu0 %v316
    %1342 = vmatpush1.msra.mxu0 %v315
    %1343 = vmatprep.subr.mxu0 %v370
    %1344 = vmatpush1.msra.mxu0 %v369
    %1345 = vmatprep.subr.mxu0 %v424
    %1346 = vmatpush1.msra.mxu0 %v423
    %1347 = vmatprep.subr.mxu0 %v478
    %1348 = vmatpush1.msra.mxu0 %v477
    %1349 = vmatprep.subr.mxu0 %v532
    %1350 = vmatpush1.msra.mxu0 %v531
    %1351 = vmatprep.subr.mxu0 %v586
    %1352 = vmatpush1.msra.mxu0 %v585
    %1353 = vmatprep.subr.mxu0 %v640
    %1354 = vmatpush1.msra.mxu0 %v639
    %1355 = vmatprep.subr.mxu0 %v694
    %1356 = vmatpush1.msra.mxu0 %v693
    %1357 = vmatprep.subr.mxu0 %v748
    %1358 = vmatpush1.msra.mxu0 %v747
    %1359 = vmatprep.subr.mxu0 %v802
    %1360 = vmatpush1.msra.mxu0 %v801
    %1361 = vmatprep.subr.mxu0 %v856
    %1362 = vmatpush1.msra.mxu0 %v855
    %1363 = vmatprep.subr.mxu0 0.0
    %1364 = vmatpush1.msra.mxu0 0.0
    %1365 = vmatprep.subr.mxu0 0.0
    %1366 = vmatpush1.msra.mxu0 0.0
    %1367 = vmatprep.subr.mxu0 0.0
    %1368 = vmatpush1.msra.mxu0 0.0
    %1369 = vmatprep.subr.mxu0 0.0
    %1370 = vmatpush1.msra.mxu0 0.0
    %1371 = vmatprep.subr.mxu0 0.0
    %1372 = vmatpush1.msra.mxu0 0.0
    %1373 = vmatprep.subr.mxu0 0.0
    %1374 = vmatpush1.msra.mxu0 0.0
    %1375 = vmatprep.subr.mxu0 0.0
    %1376 = vmatpush1.msra.mxu0 0.0
    %1377 = vmatprep.subr.mxu0 0.0
    %1378 = vmatpush1.msra.mxu0 0.0
    %1379 = vmatprep.subr.mxu0 0.0
    %1380 = vmatpush1.msra.mxu0 0.0
    %1381 = vmatprep.subr.mxu0 0.0
    %1382 = vmatpush1.msra.mxu0 0.0
    %1383 = vmatprep.subr.mxu0 0.0
    %1384 = vmatpush1.msra.mxu0 0.0
    %1385 = vmatprep.subr.mxu0 0.0
    %1386 = vmatpush1.msra.mxu0 0.0
    %1387 = vmatprep.subr.mxu0 0.0
    %1388 = vmatpush1.msra.mxu0 0.0
    %1389 = vmatprep.subr.mxu0 0.0
    %1390 = vmatpush1.msra.mxu0 0.0
    %1391 = vmatprep.subr.mxu0 0.0
    %1392 = vmatpush1.msra.mxu0 0.0
    %1393 = vmatprep.subr.mxu0 0.0
    %1394 = vmatpush1.msra.mxu0 0.0
    %1395 = vmatprep.mubr.f32.mxu0 0.0
    %1396 = vmatmul.mubr.f32.gmra.mrb[0].mxu0 %v40
    %v1397 = vpop.f32.mrb[0].mxu0
    %v1398 = vadd.f32 %v938, %v1397
    %v1399 = vpop.f32.mrb[0].mxu0
    %v1400 = vadd.f32 %v942, %v1399
    %1401 = vdwg.mxu0
    %1402 = vmatprep.subr.mxu0 %v48
    %1403 = vmatpush1.msra.mxu0 %v47
    %1404 = vmatprep.subr.mxu0 %v102
    %1405 = vmatpush1.msra.mxu0 %v101
    %1406 = vmatprep.subr.mxu0 %v156
    %1407 = vmatpush1.msra.mxu0 %v155
    %1408 = vmatprep.subr.mxu0 %v210
    %1409 = vmatpush1.msra.mxu0 %v209
    %1410 = vmatprep.subr.mxu0 %v264
    %1411 = vmatpush1.msra.mxu0 %v263
    %1412 = vmatprep.subr.mxu0 %v318
    %1413 = vmatpush1.msra.mxu0 %v317
    %1414 = vmatprep.subr.mxu0 %v372
    %1415 = vmatpush1.msra.mxu0 %v371
    %1416 = vmatprep.subr.mxu0 %v426
    %1417 = vmatpush1.msra.mxu0 %v425
    %1418 = vmatprep.subr.mxu0 %v480
    %1419 = vmatpush1.msra.mxu0 %v479
    %1420 = vmatprep.subr.mxu0 %v534
    %1421 = vmatpush1.msra.mxu0 %v533
    %1422 = vmatprep.subr.mxu0 %v588
    %1423 = vmatpush1.msra.mxu0 %v587
    %1424 = vmatprep.subr.mxu0 %v642
    %1425 = vmatpush1.msra.mxu0 %v641
    %1426 = vmatprep.subr.mxu0 %v696
    %1427 = vmatpush1.msra.mxu0 %v695
    %1428 = vmatprep.subr.mxu0 %v750
    %1429 = vmatpush1.msra.mxu0 %v749
    %1430 = vmatprep.subr.mxu0 %v804
    %1431 = vmatpush1.msra.mxu0 %v803
    %1432 = vmatprep.subr.mxu0 %v858
    %1433 = vmatpush1.msra.mxu0 %v857
    %1434 = vmatprep.subr.mxu0 0.0
    %1435 = vmatpush1.msra.mxu0 0.0
    %1436 = vmatprep.subr.mxu0 0.0
    %1437 = vmatpush1.msra.mxu0 0.0
    %1438 = vmatprep.subr.mxu0 0.0
    %1439 = vmatpush1.msra.mxu0 0.0
    %1440 = vmatprep.subr.mxu0 0.0
    %1441 = vmatpush1.msra.mxu0 0.0
    %1442 = vmatprep.subr.mxu0 0.0
    %1443 = vmatpush1.msra.mxu0 0.0
    %1444 = vmatprep.subr.mxu0 0.0
    %1445 = vmatpush1.msra.mxu0 0.0
    %1446 = vmatprep.subr.mxu0 0.0
    %1447 = vmatpush1.msra.mxu0 0.0
    %1448 = vmatprep.subr.mxu0 0.0
    %1449 = vmatpush1.msra.mxu0 0.0
    %1450 = vmatprep.subr.mxu0 0.0
    %1451 = vmatpush1.msra.mxu0 0.0
    %1452 = vmatprep.subr.mxu0 0.0
    %1453 = vmatpush1.msra.mxu0 0.0
    %1454 = vmatprep.subr.mxu0 0.0
    %1455 = vmatpush1.msra.mxu0 0.0
    %1456 = vmatprep.subr.mxu0 0.0
    %1457 = vmatpush1.msra.mxu0 0.0
    %1458 = vmatprep.subr.mxu0 0.0
    %1459 = vmatpush1.msra.mxu0 0.0
    %1460 = vmatprep.subr.mxu0 0.0
    %1461 = vmatpush1.msra.mxu0 0.0
    %1462 = vmatprep.subr.mxu0 0.0
    %1463 = vmatpush1.msra.mxu0 0.0
    %1464 = vmatprep.subr.mxu0 0.0
    %1465 = vmatpush1.msra.mxu0 0.0
    %1466 = vmatprep.mubr.f32.mxu0 0.0
    %1467 = vmatmul.mubr.f32.gmra.mrb[0].mxu0 %v40
    %v1468 = vpop.f32.mrb[0].mxu0
    %v1469 = vadd.f32 %v946, %v1468
    %v1470 = vpop.f32.mrb[0].mxu0
    %v1471 = vadd.f32 %v950, %v1470
    %1472 = vdwg.mxu0
    %1473 = vmatprep.subr.mxu0 %v50
    %1474 = vmatpush1.msra.mxu0 %v49
    %1475 = vmatprep.subr.mxu0 %v104
    %1476 = vmatpush1.msra.mxu0 %v103
    %1477 = vmatprep.subr.mxu0 %v158
    %1478 = vmatpush1.msra.mxu0 %v157
    %1479 = vmatprep.subr.mxu0 %v212
    %1480 = vmatpush1.msra.mxu0 %v211
    %1481 = vmatprep.subr.mxu0 %v266
    %1482 = vmatpush1.msra.mxu0 %v265
    %1483 = vmatprep.subr.mxu0 %v320
    %1484 = vmatpush1.msra.mxu0 %v319
    %1485 = vmatprep.subr.mxu0 %v374
    %1486 = vmatpush1.msra.mxu0 %v373
    %1487 = vmatprep.subr.mxu0 %v428
    %1488 = vmatpush1.msra.mxu0 %v427
    %1489 = vmatprep.subr.mxu0 %v482
    %1490 = vmatpush1.msra.mxu0 %v481
    %1491 = vmatprep.subr.mxu0 %v536
    %1492 = vmatpush1.msra.mxu0 %v535
    %1493 = vmatprep.subr.mxu0 %v590
    %1494 = vmatpush1.msra.mxu0 %v589
    %1495 = vmatprep.subr.mxu0 %v644
    %1496 = vmatpush1.msra.mxu0 %v643
    %1497 = vmatprep.subr.mxu0 %v698
    %1498 = vmatpush1.msra.mxu0 %v697
    %1499 = vmatprep.subr.mxu0 %v752
    %1500 = vmatpush1.msra.mxu0 %v751
    %1501 = vmatprep.subr.mxu0 %v806
    %1502 = vmatpush1.msra.mxu0 %v805
    %1503 = vmatprep.subr.mxu0 %v860
    %1504 = vmatpush1.msra.mxu0 %v859
    %1505 = vmatprep.subr.mxu0 0.0
    %1506 = vmatpush1.msra.mxu0 0.0
    %1507 = vmatprep.subr.mxu0 0.0
    %1508 = vmatpush1.msra.mxu0 0.0
    %1509 = vmatprep.subr.mxu0 0.0
    %1510 = vmatpush1.msra.mxu0 0.0
    %1511 = vmatprep.subr.mxu0 0.0
    %1512 = vmatpush1.msra.mxu0 0.0
    %1513 = vmatprep.subr.mxu0 0.0
    %1514 = vmatpush1.msra.mxu0 0.0
    %1515 = vmatprep.subr.mxu0 0.0
    %1516 = vmatpush1.msra.mxu0 0.0
    %1517 = vmatprep.subr.mxu0 0.0
    %1518 = vmatpush1.msra.mxu0 0.0
    %1519 = vmatprep.subr.mxu0 0.0
    %1520 = vmatpush1.msra.mxu0 0.0
    %1521 = vmatprep.subr.mxu0 0.0
    %1522 = vmatpush1.msra.mxu0 0.0
    %1523 = vmatprep.subr.mxu0 0.0
    %1524 = vmatpush1.msra.mxu0 0.0
    %1525 = vmatprep.subr.mxu0 0.0
    %1526 = vmatpush1.msra.mxu0 0.0
    %1527 = vmatprep.subr.mxu0 0.0
    %1528 = vmatpush1.msra.mxu0 0.0
    %1529 = vmatprep.subr.mxu0 0.0
    %1530 = vmatpush1.msra.mxu0 0.0
    %1531 = vmatprep.subr.mxu0 0.0
    %1532 = vmatpush1.msra.mxu0 0.0
    %1533 = vmatprep.subr.mxu0 0.0
    %1534 = vmatpush1.msra.mxu0 0.0
    %1535 = vmatprep.subr.mxu0 0.0
    %1536 = vmatpush1.msra.mxu0 0.0
    %1537 = vmatprep.mubr.f32.mxu0 0.0
    %1538 = vmatmul.mubr.f32.gmra.mrb[0].mxu0 %v40
    %v1539 = vpop.f32.mrb[0].mxu0
    %v1540 = vadd.f32 %v954, %v1539
    %v1541 = vpop.f32.mrb[0].mxu0
    %v1542 = vadd.f32 %v958, %v1541
    %1543 = vdwg.mxu0
    %1544 = vmatprep.subr.mxu0 %v52
    %1545 = vmatpush1.msra.mxu0 %v51
    %1546 = vmatprep.subr.mxu0 %v106
    %1547 = vmatpush1.msra.mxu0 %v105
    %1548 = vmatprep.subr.mxu0 %v160
    %1549 = vmatpush1.msra.mxu0 %v159
    %1550 = vmatprep.subr.mxu0 %v214
    %1551 = vmatpush1.msra.mxu0 %v213
    %1552 = vmatprep.subr.mxu0 %v268
    %1553 = vmatpush1.msra.mxu0 %v267
    %1554 = vmatprep.subr.mxu0 %v322
    %1555 = vmatpush1.msra.mxu0 %v321
    %1556 = vmatprep.subr.mxu0 %v376
    %1557 = vmatpush1.msra.mxu0 %v375
    %1558 = vmatprep.subr.mxu0 %v430
    %1559 = vmatpush1.msra.mxu0 %v429
    %1560 = vmatprep.subr.mxu0 %v484
    %1561 = vmatpush1.msra.mxu0 %v483
    %1562 = vmatprep.subr.mxu0 %v538
    %1563 = vmatpush1.msra.mxu0 %v537
    %1564 = vmatprep.subr.mxu0 %v592
    %1565 = vmatpush1.msra.mxu0 %v591
    %1566 = vmatprep.subr.mxu0 %v646
    %1567 = vmatpush1.msra.mxu0 %v645
    %1568 = vmatprep.subr.mxu0 %v700
    %1569 = vmatpush1.msra.mxu0 %v699
    %1570 = vmatprep.subr.mxu0 %v754
    %1571 = vmatpush1.msra.mxu0 %v753
    %1572 = vmatprep.subr.mxu0 %v808
    %1573 = vmatpush1.msra.mxu0 %v807
    %1574 = vmatprep.subr.mxu0 %v862
    %1575 = vmatpush1.msra.mxu0 %v861
    %1576 = vmatprep.subr.mxu0 0.0
    %1577 = vmatpush1.msra.mxu0 0.0
    %1578 = vmatprep.subr.mxu0 0.0
    %1579 = vmatpush1.msra.mxu0 0.0
    %1580 = vmatprep.subr.mxu0 0.0
    %1581 = vmatpush1.msra.mxu0 0.0
    %1582 = vmatprep.subr.mxu0 0.0
    %1583 = vmatpush1.msra.mxu0 0.0
    %1584 = vmatprep.subr.mxu0 0.0
    %1585 = vmatpush1.msra.mxu0 0.0
    %1586 = vmatprep.subr.mxu0 0.0
    %1587 = vmatpush1.msra.mxu0 0.0
    %1588 = vmatprep.subr.mxu0 0.0
    %1589 = vmatpush1.msra.mxu0 0.0
    %1590 = vmatprep.subr.mxu0 0.0
    %1591 = vmatpush1.msra.mxu0 0.0
    %1592 = vmatprep.subr.mxu0 0.0
    %1593 = vmatpush1.msra.mxu0 0.0
    %1594 = vmatprep.subr.mxu0 0.0
    %1595 = vmatpush1.msra.mxu0 0.0
    %1596 = vmatprep.subr.mxu0 0.0
    %1597 = vmatpush1.msra.mxu0 0.0
    %1598 = vmatprep.subr.mxu0 0.0
    %1599 = vmatpush1.msra.mxu0 0.0
    %1600 = vmatprep.subr.mxu0 0.0
    %1601 = vmatpush1.msra.mxu0 0.0
    %1602 = vmatprep.subr.mxu0 0.0
    %1603 = vmatpush1.msra.mxu0 0.0
    %1604 = vmatprep.subr.mxu0 0.0
    %1605 = vmatpush1.msra.mxu0 0.0
    %1606 = vmatprep.subr.mxu0 0.0
    %1607 = vmatpush1.msra.mxu0 0.0
    %1608 = vmatprep.mubr.f32.mxu0 0.0
    %1609 = vmatmul.mubr.f32.gmra.mrb[0].mxu0 %v40
    %v1610 = vpop.f32.mrb[0].mxu0
    %v1611 = vadd.f32 %v962, %v1610
    %v1612 = vpop.f32.mrb[0].mxu0
    %v1613 = vadd.f32 %v966, %v1612
    %1614 = vdwg.mxu0
    %1615 = vmatprep.subr.mxu0 %v54
    %1616 = vmatpush1.msra.mxu0 %v53
    %1617 = vmatprep.subr.mxu0 %v108
    %1618 = vmatpush1.msra.mxu0 %v107
    %1619 = vmatprep.subr.mxu0 %v162
    %1620 = vmatpush1.msra.mxu0 %v161
    %1621 = vmatprep.subr.mxu0 %v216
    %1622 = vmatpush1.msra.mxu0 %v215
    %1623 = vmatprep.subr.mxu0 %v270
    %1624 = vmatpush1.msra.mxu0 %v269
    %1625 = vmatprep.subr.mxu0 %v324
    %1626 = vmatpush1.msra.mxu0 %v323
    %1627 = vmatprep.subr.mxu0 %v378
    %1628 = vmatpush1.msra.mxu0 %v377
    %1629 = vmatprep.subr.mxu0 %v432
    %1630 = vmatpush1.msra.mxu0 %v431
    %1631 = vmatprep.subr.mxu0 %v486
    %1632 = vmatpush1.msra.mxu0 %v485
    %1633 = vmatprep.subr.mxu0 %v540
    %1634 = vmatpush1.msra.mxu0 %v539
    %1635 = vmatprep.subr.mxu0 %v594
    %1636 = vmatpush1.msra.mxu0 %v593
    %1637 = vmatprep.subr.mxu0 %v648
    %1638 = vmatpush1.msra.mxu0 %v647
    %1639 = vmatprep.subr.mxu0 %v702
    %1640 = vmatpush1.msra.mxu0 %v701
    %1641 = vmatprep.subr.mxu0 %v756
    %1642 = vmatpush1.msra.mxu0 %v755
    %1643 = vmatprep.subr.mxu0 %v810
    %1644 = vmatpush1.msra.mxu0 %v809
    %1645 = vmatprep.subr.mxu0 %v864
    %1646 = vmatpush1.msra.mxu0 %v863
    %1647 = vmatprep.subr.mxu0 0.0
    %1648 = vmatpush1.msra.mxu0 0.0
    %1649 = vmatprep.subr.mxu0 0.0
    %1650 = vmatpush1.msra.mxu0 0.0
    %1651 = vmatprep.subr.mxu0 0.0
    %1652 = vmatpush1.msra.mxu0 0.0
    %1653 = vmatprep.subr.mxu0 0.0
    %1654 = vmatpush1.msra.mxu0 0.0
    %1655 = vmatprep.subr.mxu0 0.0
    %1656 = vmatpush1.msra.mxu0 0.0
    %1657 = vmatprep.subr.mxu0 0.0
    %1658 = vmatpush1.msra.mxu0 0.0
    %1659 = vmatprep.subr.mxu0 0.0
    %1660 = vmatpush1.msra.mxu0 0.0
    %1661 = vmatprep.subr.mxu0 0.0
    %1662 = vmatpush1.msra.mxu0 0.0
    %1663 = vmatprep.subr.mxu0 0.0
    %1664 = vmatpush1.msra.mxu0 0.0
    %1665 = vmatprep.subr.mxu0 0.0
    %1666 = vmatpush1.msra.mxu0 0.0
    %1667 = vmatprep.subr.mxu0 0.0
    %1668 = vmatpush1.msra.mxu0 0.0
    %1669 = vmatprep.subr.mxu0 0.0
    %1670 = vmatpush1.msra.mxu0 0.0
    %1671 = vmatprep.subr.mxu0 0.0
    %1672 = vmatpush1.msra.mxu0 0.0
    %1673 = vmatprep.subr.mxu0 0.0
    %1674 = vmatpush1.msra.mxu0 0.0
    %1675 = vmatprep.subr.mxu0 0.0
    %1676 = vmatpush1.msra.mxu0 0.0
    %1677 = vmatprep.subr.mxu0 0.0
    %1678 = vmatpush1.msra.mxu0 0.0
    %1679 = vmatprep.mubr.f32.mxu0 0.0
    %1680 = vmatmul.mubr.f32.gmra.mrb[0].mxu0 %v40
    %v1681 = vpop.f32.mrb[0].mxu0
    %v1682 = vadd.f32 %v970, %v1681
    %v1683 = vpop.f32.mrb[0].mxu0
    %v1684 = vadd.f32 %v974, %v1683
    %1685 = vdwg.mxu0
    %1686 = vmatprep.subr.mxu0 %v56
    %1687 = vmatpush1.msra.mxu0 %v55
    %1688 = vmatprep.subr.mxu0 %v110
    %1689 = vmatpush1.msra.mxu0 %v109
    %1690 = vmatprep.subr.mxu0 %v164
    %1691 = vmatpush1.msra.mxu0 %v163
    %1692 = vmatprep.subr.mxu0 %v218
    %1693 = vmatpush1.msra.mxu0 %v217
    %1694 = vmatprep.subr.mxu0 %v272
    %1695 = vmatpush1.msra.mxu0 %v271
    %1696 = vmatprep.subr.mxu0 %v326
    %1697 = vmatpush1.msra.mxu0 %v325
    %1698 = vmatprep.subr.mxu0 %v380
    %1699 = vmatpush1.msra.mxu0 %v379
    %1700 = vmatprep.subr.mxu0 %v434
    %1701 = vmatpush1.msra.mxu0 %v433
    %1702 = vmatprep.subr.mxu0 %v488
    %1703 = vmatpush1.msra.mxu0 %v487
    %1704 = vmatprep.subr.mxu0 %v542
    %1705 = vmatpush1.msra.mxu0 %v541
    %1706 = vmatprep.subr.mxu0 %v596
    %1707 = vmatpush1.msra.mxu0 %v595
    %1708 = vmatprep.subr.mxu0 %v650
    %1709 = vmatpush1.msra.mxu0 %v649
    %1710 = vmatprep.subr.mxu0 %v704
    %1711 = vmatpush1.msra.mxu0 %v703
    %1712 = vmatprep.subr.mxu0 %v758
    %1713 = vmatpush1.msra.mxu0 %v757
    %1714 = vmatprep.subr.mxu0 %v812
    %1715 = vmatpush1.msra.mxu0 %v811
    %1716 = vmatprep.subr.mxu0 %v866
    %1717 = vmatpush1.msra.mxu0 %v865
    %1718 = vmatprep.subr.mxu0 0.0
    %1719 = vmatpush1.msra.mxu0 0.0
    %1720 = vmatprep.subr.mxu0 0.0
    %1721 = vmatpush1.msra.mxu0 0.0
    %1722 = vmatprep.subr.mxu0 0.0
    %1723 = vmatpush1.msra.mxu0 0.0
    %1724 = vmatprep.subr.mxu0 0.0
    %1725 = vmatpush1.msra.mxu0 0.0
    %1726 = vmatprep.subr.mxu0 0.0
    %1727 = vmatpush1.msra.mxu0 0.0
    %1728 = vmatprep.subr.mxu0 0.0
    %1729 = vmatpush1.msra.mxu0 0.0
    %1730 = vmatprep.subr.mxu0 0.0
    %1731 = vmatpush1.msra.mxu0 0.0
    %1732 = vmatprep.subr.mxu0 0.0
    %1733 = vmatpush1.msra.mxu0 0.0
    %1734 = vmatprep.subr.mxu0 0.0
    %1735 = vmatpush1.msra.mxu0 0.0
    %1736 = vmatprep.subr.mxu0 0.0
    %1737 = vmatpush1.msra.mxu0 0.0
    %1738 = vmatprep.subr.mxu0 0.0
    %1739 = vmatpush1.msra.mxu0 0.0
    %1740 = vmatprep.subr.mxu0 0.0
    %1741 = vmatpush1.msra.mxu0 0.0
    %1742 = vmatprep.subr.mxu0 0.0
    %1743 = vmatpush1.msra.mxu0 0.0
    %1744 = vmatprep.subr.mxu0 0.0
    %1745 = vmatpush1.msra.mxu0 0.0
    %1746 = vmatprep.subr.mxu0 0.0
    %1747 = vmatpush1.msra.mxu0 0.0
    %1748 = vmatprep.subr.mxu0 0.0
    %1749 = vmatpush1.msra.mxu0 0.0
    %1750 = vmatprep.mubr.f32.mxu0 0.0
    %1751 = vmatmul.mubr.f32.gmra.mrb[0].mxu0 %v40
    %v1752 = vpop.f32.mrb[0].mxu0
    %v1753 = vadd.f32 %v978, %v1752
    %v1754 = vpop.f32.mrb[0].mxu0
    %v1755 = vadd.f32 %v982, %v1754
    %1756 = vdwg.mxu0
    %1757 = vmatprep.subr.mxu0 %v58
    %1758 = vmatpush1.msra.mxu0 %v57
    %1759 = vmatprep.subr.mxu0 %v112
    %1760 = vmatpush1.msra.mxu0 %v111
    %1761 = vmatprep.subr.mxu0 %v166
    %1762 = vmatpush1.msra.mxu0 %v165
    %1763 = vmatprep.subr.mxu0 %v220
    %1764 = vmatpush1.msra.mxu0 %v219
    %1765 = vmatprep.subr.mxu0 %v274
    %1766 = vmatpush1.msra.mxu0 %v273
    %1767 = vmatprep.subr.mxu0 %v328
    %1768 = vmatpush1.msra.mxu0 %v327
    %1769 = vmatprep.subr.mxu0 %v382
    %1770 = vmatpush1.msra.mxu0 %v381
    %1771 = vmatprep.subr.mxu0 %v436
    %1772 = vmatpush1.msra.mxu0 %v435
    %1773 = vmatprep.subr.mxu0 %v490
    %1774 = vmatpush1.msra.mxu0 %v489
    %1775 = vmatprep.subr.mxu0 %v544
    %1776 = vmatpush1.msra.mxu0 %v543
    %1777 = vmatprep.subr.mxu0 %v598
    %1778 = vmatpush1.msra.mxu0 %v597
    %1779 = vmatprep.subr.mxu0 %v652
    %1780 = vmatpush1.msra.mxu0 %v651
    %1781 = vmatprep.subr.mxu0 %v706
    %1782 = vmatpush1.msra.mxu0 %v705
    %1783 = vmatprep.subr.mxu0 %v760
    %1784 = vmatpush1.msra.mxu0 %v759
    %1785 = vmatprep.subr.mxu0 %v814
    %1786 = vmatpush1.msra.mxu0 %v813
    %1787 = vmatprep.subr.mxu0 %v868
    %1788 = vmatpush1.msra.mxu0 %v867
    %1789 = vmatprep.subr.mxu0 0.0
    %1790 = vmatpush1.msra.mxu0 0.0
    %1791 = vmatprep.subr.mxu0 0.0
    %1792 = vmatpush1.msra.mxu0 0.0
    %1793 = vmatprep.subr.mxu0 0.0
    %1794 = vmatpush1.msra.mxu0 0.0
    %1795 = vmatprep.subr.mxu0 0.0
    %1796 = vmatpush1.msra.mxu0 0.0
    %1797 = vmatprep.subr.mxu0 0.0
    %1798 = vmatpush1.msra.mxu0 0.0
    %1799 = vmatprep.subr.mxu0 0.0
    %1800 = vmatpush1.msra.mxu0 0.0
    %1801 = vmatprep.subr.mxu0 0.0
    %1802 = vmatpush1.msra.mxu0 0.0
    %1803 = vmatprep.subr.mxu0 0.0
    %1804 = vmatpush1.msra.mxu0 0.0
    %1805 = vmatprep.subr.mxu0 0.0
    %1806 = vmatpush1.msra.mxu0 0.0
    %1807 = vmatprep.subr.mxu0 0.0
    %1808 = vmatpush1.msra.mxu0 0.0
    %1809 = vmatprep.subr.mxu0 0.0
    %1810 = vmatpush1.msra.mxu0 0.0
    %1811 = vmatprep.subr.mxu0 0.0
    %1812 = vmatpush1.msra.mxu0 0.0
    %1813 = vmatprep.subr.mxu0 0.0
    %1814 = vmatpush1.msra.mxu0 0.0
    %1815 = vmatprep.subr.mxu0 0.0
    %1816 = vmatpush1.msra.mxu0 0.0
    %1817 = vmatprep.subr.mxu0 0.0
    %1818 = vmatpush1.msra.mxu0 0.0
    %1819 = vmatprep.subr.mxu0 0.0
    %1820 = vmatpush1.msra.mxu0 0.0
    %1821 = vmatprep.mubr.f32.mxu0 0.0
    %1822 = vmatmul.mubr.f32.gmra.mrb[0].mxu0 %v40
    %v1823 = vpop.f32.mrb[0].mxu0
    %v1824 = vadd.f32 %v986, %v1823
    %v1825 = vpop.f32.mrb[0].mxu0
    %v1826 = vadd.f32 %v990, %v1825
    %1827 = vdwg.mxu0
    %1828 = vmatprep.subr.mxu0 %v60
    %1829 = vmatpush1.msra.mxu0 %v59
    %1830 = vmatprep.subr.mxu0 %v114
    %1831 = vmatpush1.msra.mxu0 %v113
    %1832 = vmatprep.subr.mxu0 %v168
    %1833 = vmatpush1.msra.mxu0 %v167
    %1834 = vmatprep.subr.mxu0 %v222
    %1835 = vmatpush1.msra.mxu0 %v221
    %1836 = vmatprep.subr.mxu0 %v276
    %1837 = vmatpush1.msra.mxu0 %v275
    %1838 = vmatprep.subr.mxu0 %v330
    %1839 = vmatpush1.msra.mxu0 %v329
    %1840 = vmatprep.subr.mxu0 %v384
    %1841 = vmatpush1.msra.mxu0 %v383
    %1842 = vmatprep.subr.mxu0 %v438
    %1843 = vmatpush1.msra.mxu0 %v437
    %1844 = vmatprep.subr.mxu0 %v492
    %1845 = vmatpush1.msra.mxu0 %v491
    %1846 = vmatprep.subr.mxu0 %v546
    %1847 = vmatpush1.msra.mxu0 %v545
    %1848 = vmatprep.subr.mxu0 %v600
    %1849 = vmatpush1.msra.mxu0 %v599
    %1850 = vmatprep.subr.mxu0 %v654
    %1851 = vmatpush1.msra.mxu0 %v653
    %1852 = vmatprep.subr.mxu0 %v708
    %1853 = vmatpush1.msra.mxu0 %v707
    %1854 = vmatprep.subr.mxu0 %v762
    %1855 = vmatpush1.msra.mxu0 %v761
    %1856 = vmatprep.subr.mxu0 %v816
    %1857 = vmatpush1.msra.mxu0 %v815
    %1858 = vmatprep.subr.mxu0 %v870
    %1859 = vmatpush1.msra.mxu0 %v869
    %1860 = vmatprep.subr.mxu0 0.0
    %1861 = vmatpush1.msra.mxu0 0.0
    %1862 = vmatprep.subr.mxu0 0.0
    %1863 = vmatpush1.msra.mxu0 0.0
    %1864 = vmatprep.subr.mxu0 0.0
    %1865 = vmatpush1.msra.mxu0 0.0
    %1866 = vmatprep.subr.mxu0 0.0
    %1867 = vmatpush1.msra.mxu0 0.0
    %1868 = vmatprep.subr.mxu0 0.0
    %1869 = vmatpush1.msra.mxu0 0.0
    %1870 = vmatprep.subr.mxu0 0.0
    %1871 = vmatpush1.msra.mxu0 0.0
    %1872 = vmatprep.subr.mxu0 0.0
    %1873 = vmatpush1.msra.mxu0 0.0
    %1874 = vmatprep.subr.mxu0 0.0
    %1875 = vmatpush1.msra.mxu0 0.0
    %1876 = vmatprep.subr.mxu0 0.0
    %1877 = vmatpush1.msra.mxu0 0.0
    %1878 = vmatprep.subr.mxu0 0.0
    %1879 = vmatpush1.msra.mxu0 0.0
    %1880 = vmatprep.subr.mxu0 0.0
    %1881 = vmatpush1.msra.mxu0 0.0
    %1882 = vmatprep.subr.mxu0 0.0
    %1883 = vmatpush1.msra.mxu0 0.0
    %1884 = vmatprep.subr.mxu0 0.0
    %1885 = vmatpush1.msra.mxu0 0.0
    %1886 = vmatprep.subr.mxu0 0.0
    %1887 = vmatpush1.msra.mxu0 0.0
    %1888 = vmatprep.subr.mxu0 0.0
    %1889 = vmatpush1.msra.mxu0 0.0
    %1890 = vmatprep.subr.mxu0 0.0
    %1891 = vmatpush1.msra.mxu0 0.0
    %1892 = vmatprep.mubr.f32.mxu0 0.0
    %1893 = vmatmul.mubr.f32.gmra.mrb[0].mxu0 %v40
    %v1894 = vpop.f32.mrb[0].mxu0
    %v1895 = vadd.f32 %v994, %v1894
    %v1896 = vpop.f32.mrb[0].mxu0
    %v1897 = vadd.f32 %v998, %v1896
    %1898 = vdwg.mxu0
    %1899 = vmatprep.subr.mxu0 %v62
    %1900 = vmatpush1.msra.mxu0 %v61
    %1901 = vmatprep.subr.mxu0 %v116
    %1902 = vmatpush1.msra.mxu0 %v115
    %1903 = vmatprep.subr.mxu0 %v170
    %1904 = vmatpush1.msra.mxu0 %v169
    %1905 = vmatprep.subr.mxu0 %v224
    %1906 = vmatpush1.msra.mxu0 %v223
    %1907 = vmatprep.subr.mxu0 %v278
    %1908 = vmatpush1.msra.mxu0 %v277
    %1909 = vmatprep.subr.mxu0 %v332
    %1910 = vmatpush1.msra.mxu0 %v331
    %1911 = vmatprep.subr.mxu0 %v386
    %1912 = vmatpush1.msra.mxu0 %v385
    %1913 = vmatprep.subr.mxu0 %v440
    %1914 = vmatpush1.msra.mxu0 %v439
    %1915 = vmatprep.subr.mxu0 %v494
    %1916 = vmatpush1.msra.mxu0 %v493
    %1917 = vmatprep.subr.mxu0 %v548
    %1918 = vmatpush1.msra.mxu0 %v547
    %1919 = vmatprep.subr.mxu0 %v602
    %1920 = vmatpush1.msra.mxu0 %v601
    %1921 = vmatprep.subr.mxu0 %v656
    %1922 = vmatpush1.msra.mxu0 %v655
    %1923 = vmatprep.subr.mxu0 %v710
    %1924 = vmatpush1.msra.mxu0 %v709
    %1925 = vmatprep.subr.mxu0 %v764
    %1926 = vmatpush1.msra.mxu0 %v763
    %1927 = vmatprep.subr.mxu0 %v818
    %1928 = vmatpush1.msra.mxu0 %v817
    %1929 = vmatprep.subr.mxu0 %v872
    %1930 = vmatpush1.msra.mxu0 %v871
    %1931 = vmatprep.subr.mxu0 0.0
    %1932 = vmatpush1.msra.mxu0 0.0
    %1933 = vmatprep.subr.mxu0 0.0
    %1934 = vmatpush1.msra.mxu0 0.0
    %1935 = vmatprep.subr.mxu0 0.0
    %1936 = vmatpush1.msra.mxu0 0.0
    %1937 = vmatprep.subr.mxu0 0.0
    %1938 = vmatpush1.msra.mxu0 0.0
    %1939 = vmatprep.subr.mxu0 0.0
    %1940 = vmatpush1.msra.mxu0 0.0
    %1941 = vmatprep.subr.mxu0 0.0
    %1942 = vmatpush1.msra.mxu0 0.0
    %1943 = vmatprep.subr.mxu0 0.0
    %1944 = vmatpush1.msra.mxu0 0.0
    %1945 = vmatprep.subr.mxu0 0.0
    %1946 = vmatpush1.msra.mxu0 0.0
    %1947 = vmatprep.subr.mxu0 0.0
    %1948 = vmatpush1.msra.mxu0 0.0
    %1949 = vmatprep.subr.mxu0 0.0
    %1950 = vmatpush1.msra.mxu0 0.0
    %1951 = vmatprep.subr.mxu0 0.0
    %1952 = vmatpush1.msra.mxu0 0.0
    %1953 = vmatprep.subr.mxu0 0.0
    %1954 = vmatpush1.msra.mxu0 0.0
    %1955 = vmatprep.subr.mxu0 0.0
    %1956 = vmatpush1.msra.mxu0 0.0
    %1957 = vmatprep.subr.mxu0 0.0
    %1958 = vmatpush1.msra.mxu0 0.0
    %1959 = vmatprep.subr.mxu0 0.0
    %1960 = vmatpush1.msra.mxu0 0.0
    %1961 = vmatprep.subr.mxu0 0.0
    %1962 = vmatpush1.msra.mxu0 0.0
    %1963 = vmatprep.mubr.f32.mxu0 0.0
    %1964 = vmatmul.mubr.f32.gmra.mrb[0].mxu0 %v40
    %v1965 = vpop.f32.mrb[0].mxu0
    %v1966 = vadd.f32 %v1002, %v1965
    %v1967 = vpop.f32.mrb[0].mxu0
    %v1968 = vadd.f32 %v1006, %v1967
    %1969 = vdwg.mxu0
    %1970 = vmatprep.subr.mxu0 %v64
    %1971 = vmatpush1.msra.mxu0 %v63
    %1972 = vmatprep.subr.mxu0 %v118
    %1973 = vmatpush1.msra.mxu0 %v117
    %1974 = vmatprep.subr.mxu0 %v172
    %1975 = vmatpush1.msra.mxu0 %v171
    %1976 = vmatprep.subr.mxu0 %v226
    %1977 = vmatpush1.msra.mxu0 %v225
    %1978 = vmatprep.subr.mxu0 %v280
    %1979 = vmatpush1.msra.mxu0 %v279
    %1980 = vmatprep.subr.mxu0 %v334
    %1981 = vmatpush1.msra.mxu0 %v333
    %1982 = vmatprep.subr.mxu0 %v388
    %1983 = vmatpush1.msra.mxu0 %v387
    %1984 = vmatprep.subr.mxu0 %v442
    %1985 = vmatpush1.msra.mxu0 %v441
    %1986 = vmatprep.subr.mxu0 %v496
    %1987 = vmatpush1.msra.mxu0 %v495
    %1988 = vmatprep.subr.mxu0 %v550
    %1989 = vmatpush1.msra.mxu0 %v549
    %1990 = vmatprep.subr.mxu0 %v604
    %1991 = vmatpush1.msra.mxu0 %v603
    %1992 = vmatprep.subr.mxu0 %v658
    %1993 = vmatpush1.msra.mxu0 %v657
    %1994 = vmatprep.subr.mxu0 %v712
    %1995 = vmatpush1.msra.mxu0 %v711
    %1996 = vmatprep.subr.mxu0 %v766
    %1997 = vmatpush1.msra.mxu0 %v765
    %1998 = vmatprep.subr.mxu0 %v820
    %1999 = vmatpush1.msra.mxu0 %v819
    %2000 = vmatprep.subr.mxu0 %v874
    %2001 = vmatpush1.msra.mxu0 %v873
    %2002 = vmatprep.subr.mxu0 0.0
    %2003 = vmatpush1.msra.mxu0 0.0
    %2004 = vmatprep.subr.mxu0 0.0
    %2005 = vmatpush1.msra.mxu0 0.0
    %2006 = vmatprep.subr.mxu0 0.0
    %2007 = vmatpush1.msra.mxu0 0.0
    %2008 = vmatprep.subr.mxu0 0.0
    %2009 = vmatpush1.msra.mxu0 0.0
    %2010 = vmatprep.subr.mxu0 0.0
    %2011 = vmatpush1.msra.mxu0 0.0
    %2012 = vmatprep.subr.mxu0 0.0
    %2013 = vmatpush1.msra.mxu0 0.0
    %2014 = vmatprep.subr.mxu0 0.0
    %2015 = vmatpush1.msra.mxu0 0.0
    %2016 = vmatprep.subr.mxu0 0.0
    %2017 = vmatpush1.msra.mxu0 0.0
    %2018 = vmatprep.subr.mxu0 0.0
    %2019 = vmatpush1.msra.mxu0 0.0
    %2020 = vmatprep.subr.mxu0 0.0
    %2021 = vmatpush1.msra.mxu0 0.0
    %2022 = vmatprep.subr.mxu0 0.0
    %2023 = vmatpush1.msra.mxu0 0.0
    %2024 = vmatprep.subr.mxu0 0.0
    %2025 = vmatpush1.msra.mxu0 0.0
    %2026 = vmatprep.subr.mxu0 0.0
    %2027 = vmatpush1.msra.mxu0 0.0
    %2028 = vmatprep.subr.mxu0 0.0
    %2029 = vmatpush1.msra.mxu0 0.0
    %2030 = vmatprep.subr.mxu0 0.0
    %2031 = vmatpush1.msra.mxu0 0.0
    %2032 = vmatprep.subr.mxu0 0.0
    %2033 = vmatpush1.msra.mxu0 0.0
    %2034 = vmatprep.mubr.f32.mxu0 0.0
    %2035 = vmatmul.mubr.f32.gmra.mrb[0].mxu0 %v40
    %v2036 = vpop.f32.mrb[0].mxu0
    %v2037 = vadd.f32 %v1010, %v2036
    %v2038 = vpop.f32.mrb[0].mxu0
    %v2039 = vadd.f32 %v1014, %v2038
    %2040 = vdwg.mxu0
    %2041 = vmatprep.subr.mxu0 %v66
    %2042 = vmatpush1.msra.mxu0 %v65
    %2043 = vmatprep.subr.mxu0 %v120
    %2044 = vmatpush1.msra.mxu0 %v119
    %2045 = vmatprep.subr.mxu0 %v174
    %2046 = vmatpush1.msra.mxu0 %v173
    %2047 = vmatprep.subr.mxu0 %v228
    %2048 = vmatpush1.msra.mxu0 %v227
    %2049 = vmatprep.subr.mxu0 %v282
    %2050 = vmatpush1.msra.mxu0 %v281
    %2051 = vmatprep.subr.mxu0 %v336
    %2052 = vmatpush1.msra.mxu0 %v335
    %2053 = vmatprep.subr.mxu0 %v390
    %2054 = vmatpush1.msra.mxu0 %v389
    %2055 = vmatprep.subr.mxu0 %v444
    %2056 = vmatpush1.msra.mxu0 %v443
    %2057 = vmatprep.subr.mxu0 %v498
    %2058 = vmatpush1.msra.mxu0 %v497
    %2059 = vmatprep.subr.mxu0 %v552
    %2060 = vmatpush1.msra.mxu0 %v551
    %2061 = vmatprep.subr.mxu0 %v606
    %2062 = vmatpush1.msra.mxu0 %v605
    %2063 = vmatprep.subr.mxu0 %v660
    %2064 = vmatpush1.msra.mxu0 %v659
    %2065 = vmatprep.subr.mxu0 %v714
    %2066 = vmatpush1.msra.mxu0 %v713
    %2067 = vmatprep.subr.mxu0 %v768
    %2068 = vmatpush1.msra.mxu0 %v767
    %2069 = vmatprep.subr.mxu0 %v822
    %2070 = vmatpush1.msra.mxu0 %v821
    %2071 = vmatprep.subr.mxu0 %v876
    %2072 = vmatpush1.msra.mxu0 %v875
    %2073 = vmatprep.subr.mxu0 0.0
    %2074 = vmatpush1.msra.mxu0 0.0
    %2075 = vmatprep.subr.mxu0 0.0
    %2076 = vmatpush1.msra.mxu0 0.0
    %2077 = vmatprep.subr.mxu0 0.0
    %2078 = vmatpush1.msra.mxu0 0.0
    %2079 = vmatprep.subr.mxu0 0.0
    %2080 = vmatpush1.msra.mxu0 0.0
    %2081 = vmatprep.subr.mxu0 0.0
    %2082 = vmatpush1.msra.mxu0 0.0
    %2083 = vmatprep.subr.mxu0 0.0
    %2084 = vmatpush1.msra.mxu0 0.0
    %2085 = vmatprep.subr.mxu0 0.0
    %2086 = vmatpush1.msra.mxu0 0.0
    %2087 = vmatprep.subr.mxu0 0.0
    %2088 = vmatpush1.msra.mxu0 0.0
    %2089 = vmatprep.subr.mxu0 0.0
    %2090 = vmatpush1.msra.mxu0 0.0
    %2091 = vmatprep.subr.mxu0 0.0
    %2092 = vmatpush1.msra.mxu0 0.0
    %2093 = vmatprep.subr.mxu0 0.0
    %2094 = vmatpush1.msra.mxu0 0.0
    %2095 = vmatprep.subr.mxu0 0.0
    %2096 = vmatpush1.msra.mxu0 0.0
    %2097 = vmatprep.subr.mxu0 0.0
    %2098 = vmatpush1.msra.mxu0 0.0
    %2099 = vmatprep.subr.mxu0 0.0
    %2100 = vmatpush1.msra.mxu0 0.0
    %2101 = vmatprep.subr.mxu0 0.0
    %2102 = vmatpush1.msra.mxu0 0.0
    %2103 = vmatprep.subr.mxu0 0.0
    %2104 = vmatpush1.msra.mxu0 0.0
    %2105 = vmatprep.mubr.f32.mxu0 0.0
    %2106 = vmatmul.mubr.f32.gmra.mrb[0].mxu0 %v40
    %v2107 = vpop.f32.mrb[0].mxu0
    %v2108 = vadd.f32 %v1018, %v2107
    %v2109 = vpop.f32.mrb[0].mxu0
    %v2110 = vadd.f32 %v1022, %v2109
    %2111 = vdwg.mxu0
    %2112 = vmatprep.subr.mxu0 %v68
    %2113 = vmatpush1.msra.mxu0 %v67
    %2114 = vmatprep.subr.mxu0 %v122
    %2115 = vmatpush1.msra.mxu0 %v121
    %2116 = vmatprep.subr.mxu0 %v176
    %2117 = vmatpush1.msra.mxu0 %v175
    %2118 = vmatprep.subr.mxu0 %v230
    %2119 = vmatpush1.msra.mxu0 %v229
    %2120 = vmatprep.subr.mxu0 %v284
    %2121 = vmatpush1.msra.mxu0 %v283
    %2122 = vmatprep.subr.mxu0 %v338
    %2123 = vmatpush1.msra.mxu0 %v337
    %2124 = vmatprep.subr.mxu0 %v392
    %2125 = vmatpush1.msra.mxu0 %v391
    %2126 = vmatprep.subr.mxu0 %v446
    %2127 = vmatpush1.msra.mxu0 %v445
    %2128 = vmatprep.subr.mxu0 %v500
    %2129 = vmatpush1.msra.mxu0 %v499
    %2130 = vmatprep.subr.mxu0 %v554
    %2131 = vmatpush1.msra.mxu0 %v553
    %2132 = vmatprep.subr.mxu0 %v608
    %2133 = vmatpush1.msra.mxu0 %v607
    %2134 = vmatprep.subr.mxu0 %v662
    %2135 = vmatpush1.msra.mxu0 %v661
    %2136 = vmatprep.subr.mxu0 %v716
    %2137 = vmatpush1.msra.mxu0 %v715
    %2138 = vmatprep.subr.mxu0 %v770
    %2139 = vmatpush1.msra.mxu0 %v769
    %2140 = vmatprep.subr.mxu0 %v824
    %2141 = vmatpush1.msra.mxu0 %v823
    %2142 = vmatprep.subr.mxu0 %v878
    %2143 = vmatpush1.msra.mxu0 %v877
    %2144 = vmatprep.subr.mxu0 0.0
    %2145 = vmatpush1.msra.mxu0 0.0
    %2146 = vmatprep.subr.mxu0 0.0
    %2147 = vmatpush1.msra.mxu0 0.0
    %2148 = vmatprep.subr.mxu0 0.0
    %2149 = vmatpush1.msra.mxu0 0.0
    %2150 = vmatprep.subr.mxu0 0.0
    %2151 = vmatpush1.msra.mxu0 0.0
    %2152 = vmatprep.subr.mxu0 0.0
    %2153 = vmatpush1.msra.mxu0 0.0
    %2154 = vmatprep.subr.mxu0 0.0
    %2155 = vmatpush1.msra.mxu0 0.0
    %2156 = vmatprep.subr.mxu0 0.0
    %2157 = vmatpush1.msra.mxu0 0.0
    %2158 = vmatprep.subr.mxu0 0.0
    %2159 = vmatpush1.msra.mxu0 0.0
    %2160 = vmatprep.subr.mxu0 0.0
    %2161 = vmatpush1.msra.mxu0 0.0
    %2162 = vmatprep.subr.mxu0 0.0
    %2163 = vmatpush1.msra.mxu0 0.0
    %2164 = vmatprep.subr.mxu0 0.0
    %2165 = vmatpush1.msra.mxu0 0.0
    %2166 = vmatprep.subr.mxu0 0.0
    %2167 = vmatpush1.msra.mxu0 0.0
    %2168 = vmatprep.subr.mxu0 0.0
    %2169 = vmatpush1.msra.mxu0 0.0
    %2170 = vmatprep.subr.mxu0 0.0
    %2171 = vmatpush1.msra.mxu0 0.0
    %2172 = vmatprep.subr.mxu0 0.0
    %2173 = vmatpush1.msra.mxu0 0.0
    %2174 = vmatprep.subr.mxu0 0.0
    %2175 = vmatpush1.msra.mxu0 0.0
    %2176 = vmatprep.mubr.f32.mxu0 0.0
    %2177 = vmatmul.mubr.f32.gmra.mrb[0].mxu0 %v40
    %v2178 = vpop.f32.mrb[0].mxu0
    %v2179 = vadd.f32 %v1026, %v2178
    %v2180 = vpop.f32.mrb[0].mxu0
    %v2181 = vadd.f32 %v1030, %v2180
    %2182 = vdwg.mxu0
    %2183 = vmatprep.subr.mxu0 %v70
    %2184 = vmatpush1.msra.mxu0 %v69
    %2185 = vmatprep.subr.mxu0 %v124
    %2186 = vmatpush1.msra.mxu0 %v123
    %2187 = vmatprep.subr.mxu0 %v178
    %2188 = vmatpush1.msra.mxu0 %v177
    %2189 = vmatprep.subr.mxu0 %v232
    %2190 = vmatpush1.msra.mxu0 %v231
    %2191 = vmatprep.subr.mxu0 %v286
    %2192 = vmatpush1.msra.mxu0 %v285
    %2193 = vmatprep.subr.mxu0 %v340
    %2194 = vmatpush1.msra.mxu0 %v339
    %2195 = vmatprep.subr.mxu0 %v394
    %2196 = vmatpush1.msra.mxu0 %v393
    %2197 = vmatprep.subr.mxu0 %v448
    %2198 = vmatpush1.msra.mxu0 %v447
    %2199 = vmatprep.subr.mxu0 %v502
    %2200 = vmatpush1.msra.mxu0 %v501
    %2201 = vmatprep.subr.mxu0 %v556
    %2202 = vmatpush1.msra.mxu0 %v555
    %2203 = vmatprep.subr.mxu0 %v610
    %2204 = vmatpush1.msra.mxu0 %v609
    %2205 = vmatprep.subr.mxu0 %v664
    %2206 = vmatpush1.msra.mxu0 %v663
    %2207 = vmatprep.subr.mxu0 %v718
    %2208 = vmatpush1.msra.mxu0 %v717
    %2209 = vmatprep.subr.mxu0 %v772
    %2210 = vmatpush1.msra.mxu0 %v771
    %2211 = vmatprep.subr.mxu0 %v826
    %2212 = vmatpush1.msra.mxu0 %v825
    %2213 = vmatprep.subr.mxu0 %v880
    %2214 = vmatpush1.msra.mxu0 %v879
    %2215 = vmatprep.subr.mxu0 0.0
    %2216 = vmatpush1.msra.mxu0 0.0
    %2217 = vmatprep.subr.mxu0 0.0
    %2218 = vmatpush1.msra.mxu0 0.0
    %2219 = vmatprep.subr.mxu0 0.0
    %2220 = vmatpush1.msra.mxu0 0.0
    %2221 = vmatprep.subr.mxu0 0.0
    %2222 = vmatpush1.msra.mxu0 0.0
    %2223 = vmatprep.subr.mxu0 0.0
    %2224 = vmatpush1.msra.mxu0 0.0
    %2225 = vmatprep.subr.mxu0 0.0
    %2226 = vmatpush1.msra.mxu0 0.0
    %2227 = vmatprep.subr.mxu0 0.0
    %2228 = vmatpush1.msra.mxu0 0.0
    %2229 = vmatprep.subr.mxu0 0.0
    %2230 = vmatpush1.msra.mxu0 0.0
    %2231 = vmatprep.subr.mxu0 0.0
    %2232 = vmatpush1.msra.mxu0 0.0
    %2233 = vmatprep.subr.mxu0 0.0
    %2234 = vmatpush1.msra.mxu0 0.0
    %2235 = vmatprep.subr.mxu0 0.0
    %2236 = vmatpush1.msra.mxu0 0.0
    %2237 = vmatprep.subr.mxu0 0.0
    %2238 = vmatpush1.msra.mxu0 0.0
    %2239 = vmatprep.subr.mxu0 0.0
    %2240 = vmatpush1.msra.mxu0 0.0
    %2241 = vmatprep.subr.mxu0 0.0
    %2242 = vmatpush1.msra.mxu0 0.0
    %2243 = vmatprep.subr.mxu0 0.0
    %2244 = vmatpush1.msra.mxu0 0.0
    %2245 = vmatprep.subr.mxu0 0.0
    %2246 = vmatpush1.msra.mxu0 0.0
    %2247 = vmatprep.mubr.f32.mxu0 0.0
    %2248 = vmatmul.mubr.f32.gmra.mrb[0].mxu0 %v40
    %v2249 = vpop.f32.mrb[0].mxu0
    %v2250 = vadd.f32 %v1034, %v2249
    %v2251 = vpop.f32.mrb[0].mxu0
    %v2252 = vadd.f32 %v1038, %v2251
    %2253 = vdwg.mxu0
    %2254 = vmatprep.subr.mxu0 %v72
    %2255 = vmatpush1.msra.mxu0 %v71
    %2256 = vmatprep.subr.mxu0 %v126
    %2257 = vmatpush1.msra.mxu0 %v125
    %2258 = vmatprep.subr.mxu0 %v180
    %2259 = vmatpush1.msra.mxu0 %v179
    %2260 = vmatprep.subr.mxu0 %v234
    %2261 = vmatpush1.msra.mxu0 %v233
    %2262 = vmatprep.subr.mxu0 %v288
    %2263 = vmatpush1.msra.mxu0 %v287
    %2264 = vmatprep.subr.mxu0 %v342
    %2265 = vmatpush1.msra.mxu0 %v341
    %2266 = vmatprep.subr.mxu0 %v396
    %2267 = vmatpush1.msra.mxu0 %v395
    %2268 = vmatprep.subr.mxu0 %v450
    %2269 = vmatpush1.msra.mxu0 %v449
    %2270 = vmatprep.subr.mxu0 %v504
    %2271 = vmatpush1.msra.mxu0 %v503
    %2272 = vmatprep.subr.mxu0 %v558
    %2273 = vmatpush1.msra.mxu0 %v557
    %2274 = vmatprep.subr.mxu0 %v612
    %2275 = vmatpush1.msra.mxu0 %v611
    %2276 = vmatprep.subr.mxu0 %v666
    %2277 = vmatpush1.msra.mxu0 %v665
    %2278 = vmatprep.subr.mxu0 %v720
    %2279 = vmatpush1.msra.mxu0 %v719
    %2280 = vmatprep.subr.mxu0 %v774
    %2281 = vmatpush1.msra.mxu0 %v773
    %2282 = vmatprep.subr.mxu0 %v828
    %2283 = vmatpush1.msra.mxu0 %v827
    %2284 = vmatprep.subr.mxu0 %v882
    %2285 = vmatpush1.msra.mxu0 %v881
    %2286 = vmatprep.subr.mxu0 0.0
    %2287 = vmatpush1.msra.mxu0 0.0
    %2288 = vmatprep.subr.mxu0 0.0
    %2289 = vmatpush1.msra.mxu0 0.0
    %2290 = vmatprep.subr.mxu0 0.0
    %2291 = vmatpush1.msra.mxu0 0.0
    %2292 = vmatprep.subr.mxu0 0.0
    %2293 = vmatpush1.msra.mxu0 0.0
    %2294 = vmatprep.subr.mxu0 0.0
    %2295 = vmatpush1.msra.mxu0 0.0
    %2296 = vmatprep.subr.mxu0 0.0
    %2297 = vmatpush1.msra.mxu0 0.0
    %2298 = vmatprep.subr.mxu0 0.0
    %2299 = vmatpush1.msra.mxu0 0.0
    %2300 = vmatprep.subr.mxu0 0.0
    %2301 = vmatpush1.msra.mxu0 0.0
    %2302 = vmatprep.subr.mxu0 0.0
    %2303 = vmatpush1.msra.mxu0 0.0
    %2304 = vmatprep.subr.mxu0 0.0
    %2305 = vmatpush1.msra.mxu0 0.0
    %2306 = vmatprep.subr.mxu0 0.0
    %2307 = vmatpush1.msra.mxu0 0.0
    %2308 = vmatprep.subr.mxu0 0.0
    %2309 = vmatpush1.msra.mxu0 0.0
    %2310 = vmatprep.subr.mxu0 0.0
    %2311 = vmatpush1.msra.mxu0 0.0
    %2312 = vmatprep.subr.mxu0 0.0
    %2313 = vmatpush1.msra.mxu0 0.0
    %2314 = vmatprep.subr.mxu0 0.0
    %2315 = vmatpush1.msra.mxu0 0.0
    %2316 = vmatprep.subr.mxu0 0.0
    %2317 = vmatpush1.msra.mxu0 0.0
    %2318 = vmatprep.mubr.f32.mxu0 0.0
    %2319 = vmatmul.mubr.f32.gmra.mrb[0].mxu0 %v40
    %v2320 = vpop.f32.mrb[0].mxu0
    %v2321 = vadd.f32 %v1042, %v2320
    %v2322 = vpop.f32.mrb[0].mxu0
    %v2323 = vadd.f32 %v1046, %v2322
    %2324 = vdwg.mxu0
    %2325 = vmatprep.subr.mxu0 %v74
    %2326 = vmatpush1.msra.mxu0 %v73
    %2327 = vmatprep.subr.mxu0 %v128
    %2328 = vmatpush1.msra.mxu0 %v127
    %2329 = vmatprep.subr.mxu0 %v182
    %2330 = vmatpush1.msra.mxu0 %v181
    %2331 = vmatprep.subr.mxu0 %v236
    %2332 = vmatpush1.msra.mxu0 %v235
    %2333 = vmatprep.subr.mxu0 %v290
    %2334 = vmatpush1.msra.mxu0 %v289
    %2335 = vmatprep.subr.mxu0 %v344
    %2336 = vmatpush1.msra.mxu0 %v343
    %2337 = vmatprep.subr.mxu0 %v398
    %2338 = vmatpush1.msra.mxu0 %v397
    %2339 = vmatprep.subr.mxu0 %v452
    %2340 = vmatpush1.msra.mxu0 %v451
    %2341 = vmatprep.subr.mxu0 %v506
    %2342 = vmatpush1.msra.mxu0 %v505
    %2343 = vmatprep.subr.mxu0 %v560
    %2344 = vmatpush1.msra.mxu0 %v559
    %2345 = vmatprep.subr.mxu0 %v614
    %2346 = vmatpush1.msra.mxu0 %v613
    %2347 = vmatprep.subr.mxu0 %v668
    %2348 = vmatpush1.msra.mxu0 %v667
    %2349 = vmatprep.subr.mxu0 %v722
    %2350 = vmatpush1.msra.mxu0 %v721
    %2351 = vmatprep.subr.mxu0 %v776
    %2352 = vmatpush1.msra.mxu0 %v775
    %2353 = vmatprep.subr.mxu0 %v830
    %2354 = vmatpush1.msra.mxu0 %v829
    %2355 = vmatprep.subr.mxu0 %v884
    %2356 = vmatpush1.msra.mxu0 %v883
    %2357 = vmatprep.subr.mxu0 0.0
    %2358 = vmatpush1.msra.mxu0 0.0
    %2359 = vmatprep.subr.mxu0 0.0
    %2360 = vmatpush1.msra.mxu0 0.0
    %2361 = vmatprep.subr.mxu0 0.0
    %2362 = vmatpush1.msra.mxu0 0.0
    %2363 = vmatprep.subr.mxu0 0.0
    %2364 = vmatpush1.msra.mxu0 0.0
    %2365 = vmatprep.subr.mxu0 0.0
    %2366 = vmatpush1.msra.mxu0 0.0
    %2367 = vmatprep.subr.mxu0 0.0
    %2368 = vmatpush1.msra.mxu0 0.0
    %2369 = vmatprep.subr.mxu0 0.0
    %2370 = vmatpush1.msra.mxu0 0.0
    %2371 = vmatprep.subr.mxu0 0.0
    %2372 = vmatpush1.msra.mxu0 0.0
    %2373 = vmatprep.subr.mxu0 0.0
    %2374 = vmatpush1.msra.mxu0 0.0
    %2375 = vmatprep.subr.mxu0 0.0
    %2376 = vmatpush1.msra.mxu0 0.0
    %2377 = vmatprep.subr.mxu0 0.0
    %2378 = vmatpush1.msra.mxu0 0.0
    %2379 = vmatprep.subr.mxu0 0.0
    %2380 = vmatpush1.msra.mxu0 0.0
    %2381 = vmatprep.subr.mxu0 0.0
    %2382 = vmatpush1.msra.mxu0 0.0
    %2383 = vmatprep.subr.mxu0 0.0
    %2384 = vmatpush1.msra.mxu0 0.0
    %2385 = vmatprep.subr.mxu0 0.0
    %2386 = vmatpush1.msra.mxu0 0.0
    %2387 = vmatprep.subr.mxu0 0.0
    %2388 = vmatpush1.msra.mxu0 0.0
    %2389 = vmatprep.mubr.f32.mxu0 0.0
    %2390 = vmatmul.mubr.f32.gmra.mrb[0].mxu0 %v40
    %v2391 = vpop.f32.mrb[0].mxu0
    %v2392 = vadd.f32 %v1050, %v2391
    %v2393 = vpop.f32.mrb[0].mxu0
    %v2394 = vadd.f32 %v1054, %v2393
    %2395 = vdwg.mxu0
    %2396 = vmatprep.subr.mxu0 %v76
    %2397 = vmatpush1.msra.mxu0 %v75
    %2398 = vmatprep.subr.mxu0 %v130
    %2399 = vmatpush1.msra.mxu0 %v129
    %2400 = vmatprep.subr.mxu0 %v184
    %2401 = vmatpush1.msra.mxu0 %v183
    %2402 = vmatprep.subr.mxu0 %v238
    %2403 = vmatpush1.msra.mxu0 %v237
    %2404 = vmatprep.subr.mxu0 %v292
    %2405 = vmatpush1.msra.mxu0 %v291
    %2406 = vmatprep.subr.mxu0 %v346
    %2407 = vmatpush1.msra.mxu0 %v345
    %2408 = vmatprep.subr.mxu0 %v400
    %2409 = vmatpush1.msra.mxu0 %v399
    %2410 = vmatprep.subr.mxu0 %v454
    %2411 = vmatpush1.msra.mxu0 %v453
    %2412 = vmatprep.subr.mxu0 %v508
    %2413 = vmatpush1.msra.mxu0 %v507
    %2414 = vmatprep.subr.mxu0 %v562
    %2415 = vmatpush1.msra.mxu0 %v561
    %2416 = vmatprep.subr.mxu0 %v616
    %2417 = vmatpush1.msra.mxu0 %v615
    %2418 = vmatprep.subr.mxu0 %v670
    %2419 = vmatpush1.msra.mxu0 %v669
    %2420 = vmatprep.subr.mxu0 %v724
    %2421 = vmatpush1.msra.mxu0 %v723
    %2422 = vmatprep.subr.mxu0 %v778
    %2423 = vmatpush1.msra.mxu0 %v777
    %2424 = vmatprep.subr.mxu0 %v832
    %2425 = vmatpush1.msra.mxu0 %v831
    %2426 = vmatprep.subr.mxu0 %v886
    %2427 = vmatpush1.msra.mxu0 %v885
    %2428 = vmatprep.subr.mxu0 0.0
    %2429 = vmatpush1.msra.mxu0 0.0
    %2430 = vmatprep.subr.mxu0 0.0
    %2431 = vmatpush1.msra.mxu0 0.0
    %2432 = vmatprep.subr.mxu0 0.0
    %2433 = vmatpush1.msra.mxu0 0.0
    %2434 = vmatprep.subr.mxu0 0.0
    %2435 = vmatpush1.msra.mxu0 0.0
    %2436 = vmatprep.subr.mxu0 0.0
    %2437 = vmatpush1.msra.mxu0 0.0
    %2438 = vmatprep.subr.mxu0 0.0
    %2439 = vmatpush1.msra.mxu0 0.0
    %2440 = vmatprep.subr.mxu0 0.0
    %2441 = vmatpush1.msra.mxu0 0.0
    %2442 = vmatprep.subr.mxu0 0.0
    %2443 = vmatpush1.msra.mxu0 0.0
    %2444 = vmatprep.subr.mxu0 0.0
    %2445 = vmatpush1.msra.mxu0 0.0
    %2446 = vmatprep.subr.mxu0 0.0
    %2447 = vmatpush1.msra.mxu0 0.0
    %2448 = vmatprep.subr.mxu0 0.0
    %2449 = vmatpush1.msra.mxu0 0.0
    %2450 = vmatprep.subr.mxu0 0.0
    %2451 = vmatpush1.msra.mxu0 0.0
    %2452 = vmatprep.subr.mxu0 0.0
    %2453 = vmatpush1.msra.mxu0 0.0
    %2454 = vmatprep.subr.mxu0 0.0
    %2455 = vmatpush1.msra.mxu0 0.0
    %2456 = vmatprep.subr.mxu0 0.0
    %2457 = vmatpush1.msra.mxu0 0.0
    %2458 = vmatprep.subr.mxu0 0.0
    %2459 = vmatpush1.msra.mxu0 0.0
    %2460 = vmatprep.mubr.f32.mxu0 0.0
    %2461 = vmatmul.mubr.f32.gmra.mrb[0].mxu0 %v40
    %v2462 = vpop.f32.mrb[0].mxu0
    %v2463 = vadd.f32 %v1058, %v2462
    %v2464 = vpop.f32.mrb[0].mxu0
    %v2465 = vadd.f32 %v1062, %v2464
    %2466 = vdwg.mxu0
    %2467 = vmatprep.subr.mxu0 %v78
    %2468 = vmatpush1.msra.mxu0 %v77
    %2469 = vmatprep.subr.mxu0 %v132
    %2470 = vmatpush1.msra.mxu0 %v131
    %2471 = vmatprep.subr.mxu0 %v186
    %2472 = vmatpush1.msra.mxu0 %v185
    %2473 = vmatprep.subr.mxu0 %v240
    %2474 = vmatpush1.msra.mxu0 %v239
    %2475 = vmatprep.subr.mxu0 %v294
    %2476 = vmatpush1.msra.mxu0 %v293
    %2477 = vmatprep.subr.mxu0 %v348
    %2478 = vmatpush1.msra.mxu0 %v347
    %2479 = vmatprep.subr.mxu0 %v402
    %2480 = vmatpush1.msra.mxu0 %v401
    %2481 = vmatprep.subr.mxu0 %v456
    %2482 = vmatpush1.msra.mxu0 %v455
    %2483 = vmatprep.subr.mxu0 %v510
    %2484 = vmatpush1.msra.mxu0 %v509
    %2485 = vmatprep.subr.mxu0 %v564
    %2486 = vmatpush1.msra.mxu0 %v563
    %2487 = vmatprep.subr.mxu0 %v618
    %2488 = vmatpush1.msra.mxu0 %v617
    %2489 = vmatprep.subr.mxu0 %v672
    %2490 = vmatpush1.msra.mxu0 %v671
    %2491 = vmatprep.subr.mxu0 %v726
    %2492 = vmatpush1.msra.mxu0 %v725
    %2493 = vmatprep.subr.mxu0 %v780
    %2494 = vmatpush1.msra.mxu0 %v779
    %2495 = vmatprep.subr.mxu0 %v834
    %2496 = vmatpush1.msra.mxu0 %v833
    %2497 = vmatprep.subr.mxu0 %v888
    %2498 = vmatpush1.msra.mxu0 %v887
    %2499 = vmatprep.subr.mxu0 0.0
    %2500 = vmatpush1.msra.mxu0 0.0
    %2501 = vmatprep.subr.mxu0 0.0
    %2502 = vmatpush1.msra.mxu0 0.0
    %2503 = vmatprep.subr.mxu0 0.0
    %2504 = vmatpush1.msra.mxu0 0.0
    %2505 = vmatprep.subr.mxu0 0.0
    %2506 = vmatpush1.msra.mxu0 0.0
    %2507 = vmatprep.subr.mxu0 0.0
    %2508 = vmatpush1.msra.mxu0 0.0
    %2509 = vmatprep.subr.mxu0 0.0
    %2510 = vmatpush1.msra.mxu0 0.0
    %2511 = vmatprep.subr.mxu0 0.0
    %2512 = vmatpush1.msra.mxu0 0.0
    %2513 = vmatprep.subr.mxu0 0.0
    %2514 = vmatpush1.msra.mxu0 0.0
    %2515 = vmatprep.subr.mxu0 0.0
    %2516 = vmatpush1.msra.mxu0 0.0
    %2517 = vmatprep.subr.mxu0 0.0
    %2518 = vmatpush1.msra.mxu0 0.0
    %2519 = vmatprep.subr.mxu0 0.0
    %2520 = vmatpush1.msra.mxu0 0.0
    %2521 = vmatprep.subr.mxu0 0.0
    %2522 = vmatpush1.msra.mxu0 0.0
    %2523 = vmatprep.subr.mxu0 0.0
    %2524 = vmatpush1.msra.mxu0 0.0
    %2525 = vmatprep.subr.mxu0 0.0
    %2526 = vmatpush1.msra.mxu0 0.0
    %2527 = vmatprep.subr.mxu0 0.0
    %2528 = vmatpush1.msra.mxu0 0.0
    %2529 = vmatprep.subr.mxu0 0.0
    %2530 = vmatpush1.msra.mxu0 0.0
    %2531 = vmatprep.mubr.f32.mxu0 0.0
    %2532 = vmatmul.mubr.f32.gmra.mrb[0].mxu0 %v40
    %v2533 = vpop.f32.mrb[0].mxu0
    %v2534 = vadd.f32 %v1066, %v2533
    %v2535 = vpop.f32.mrb[0].mxu0
    %v2536 = vadd.f32 %v1070, %v2535
    %2537 = vdwg.mxu0
    %2538 = vmatprep.subr.mxu0 %v80
    %2539 = vmatpush1.msra.mxu0 %v79
    %2540 = vmatprep.subr.mxu0 %v134
    %2541 = vmatpush1.msra.mxu0 %v133
    %2542 = vmatprep.subr.mxu0 %v188
    %2543 = vmatpush1.msra.mxu0 %v187
    %2544 = vmatprep.subr.mxu0 %v242
    %2545 = vmatpush1.msra.mxu0 %v241
    %2546 = vmatprep.subr.mxu0 %v296
    %2547 = vmatpush1.msra.mxu0 %v295
    %2548 = vmatprep.subr.mxu0 %v350
    %2549 = vmatpush1.msra.mxu0 %v349
    %2550 = vmatprep.subr.mxu0 %v404
    %2551 = vmatpush1.msra.mxu0 %v403
    %2552 = vmatprep.subr.mxu0 %v458
    %2553 = vmatpush1.msra.mxu0 %v457
    %2554 = vmatprep.subr.mxu0 %v512
    %2555 = vmatpush1.msra.mxu0 %v511
    %2556 = vmatprep.subr.mxu0 %v566
    %2557 = vmatpush1.msra.mxu0 %v565
    %2558 = vmatprep.subr.mxu0 %v620
    %2559 = vmatpush1.msra.mxu0 %v619
    %2560 = vmatprep.subr.mxu0 %v674
    %2561 = vmatpush1.msra.mxu0 %v673
    %2562 = vmatprep.subr.mxu0 %v728
    %2563 = vmatpush1.msra.mxu0 %v727
    %2564 = vmatprep.subr.mxu0 %v782
    %2565 = vmatpush1.msra.mxu0 %v781
    %2566 = vmatprep.subr.mxu0 %v836
    %2567 = vmatpush1.msra.mxu0 %v835
    %2568 = vmatprep.subr.mxu0 %v890
    %2569 = vmatpush1.msra.mxu0 %v889
    %2570 = vmatprep.subr.mxu0 0.0
    %2571 = vmatpush1.msra.mxu0 0.0
    %2572 = vmatprep.subr.mxu0 0.0
    %2573 = vmatpush1.msra.mxu0 0.0
    %2574 = vmatprep.subr.mxu0 0.0
    %2575 = vmatpush1.msra.mxu0 0.0
    %2576 = vmatprep.subr.mxu0 0.0
    %2577 = vmatpush1.msra.mxu0 0.0
    %2578 = vmatprep.subr.mxu0 0.0
    %2579 = vmatpush1.msra.mxu0 0.0
    %2580 = vmatprep.subr.mxu0 0.0
    %2581 = vmatpush1.msra.mxu0 0.0
    %2582 = vmatprep.subr.mxu0 0.0
    %2583 = vmatpush1.msra.mxu0 0.0
    %2584 = vmatprep.subr.mxu0 0.0
    %2585 = vmatpush1.msra.mxu0 0.0
    %2586 = vmatprep.subr.mxu0 0.0
    %2587 = vmatpush1.msra.mxu0 0.0
    %2588 = vmatprep.subr.mxu0 0.0
    %2589 = vmatpush1.msra.mxu0 0.0
    %2590 = vmatprep.subr.mxu0 0.0
    %2591 = vmatpush1.msra.mxu0 0.0
    %2592 = vmatprep.subr.mxu0 0.0
    %2593 = vmatpush1.msra.mxu0 0.0
    %2594 = vmatprep.subr.mxu0 0.0
    %2595 = vmatpush1.msra.mxu0 0.0
    %2596 = vmatprep.subr.mxu0 0.0
    %2597 = vmatpush1.msra.mxu0 0.0
    %2598 = vmatprep.subr.mxu0 0.0
    %2599 = vmatpush1.msra.mxu0 0.0
    %2600 = vmatprep.subr.mxu0 0.0
    %2601 = vmatpush1.msra.mxu0 0.0
    %2602 = vmatprep.mubr.f32.mxu0 0.0
    %2603 = vmatmul.mubr.f32.gmra.mrb[0].mxu0 %v40
    %v2604 = vpop.f32.mrb[0].mxu0
    %v2605 = vadd.f32 %v1074, %v2604
    %v2606 = vpop.f32.mrb[0].mxu0
    %v2607 = vadd.f32 %v1078, %v2606
    %2608 = vdwg.mxu0
    %2609 = vmatprep.subr.mxu0 %v82
    %2610 = vmatpush1.msra.mxu0 %v81
    %2611 = vmatprep.subr.mxu0 %v136
    %2612 = vmatpush1.msra.mxu0 %v135
    %2613 = vmatprep.subr.mxu0 %v190
    %2614 = vmatpush1.msra.mxu0 %v189
    %2615 = vmatprep.subr.mxu0 %v244
    %2616 = vmatpush1.msra.mxu0 %v243
    %2617 = vmatprep.subr.mxu0 %v298
    %2618 = vmatpush1.msra.mxu0 %v297
    %2619 = vmatprep.subr.mxu0 %v352
    %2620 = vmatpush1.msra.mxu0 %v351
    %2621 = vmatprep.subr.mxu0 %v406
    %2622 = vmatpush1.msra.mxu0 %v405
    %2623 = vmatprep.subr.mxu0 %v460
    %2624 = vmatpush1.msra.mxu0 %v459
    %2625 = vmatprep.subr.mxu0 %v514
    %2626 = vmatpush1.msra.mxu0 %v513
    %2627 = vmatprep.subr.mxu0 %v568
    %2628 = vmatpush1.msra.mxu0 %v567
    %2629 = vmatprep.subr.mxu0 %v622
    %2630 = vmatpush1.msra.mxu0 %v621
    %2631 = vmatprep.subr.mxu0 %v676
    %2632 = vmatpush1.msra.mxu0 %v675
    %2633 = vmatprep.subr.mxu0 %v730
    %2634 = vmatpush1.msra.mxu0 %v729
    %2635 = vmatprep.subr.mxu0 %v784
    %2636 = vmatpush1.msra.mxu0 %v783
    %2637 = vmatprep.subr.mxu0 %v838
    %2638 = vmatpush1.msra.mxu0 %v837
    %2639 = vmatprep.subr.mxu0 %v892
    %2640 = vmatpush1.msra.mxu0 %v891
    %2641 = vmatprep.subr.mxu0 0.0
    %2642 = vmatpush1.msra.mxu0 0.0
    %2643 = vmatprep.subr.mxu0 0.0
    %2644 = vmatpush1.msra.mxu0 0.0
    %2645 = vmatprep.subr.mxu0 0.0
    %2646 = vmatpush1.msra.mxu0 0.0
    %2647 = vmatprep.subr.mxu0 0.0
    %2648 = vmatpush1.msra.mxu0 0.0
    %2649 = vmatprep.subr.mxu0 0.0
    %2650 = vmatpush1.msra.mxu0 0.0
    %2651 = vmatprep.subr.mxu0 0.0
    %2652 = vmatpush1.msra.mxu0 0.0
    %2653 = vmatprep.subr.mxu0 0.0
    %2654 = vmatpush1.msra.mxu0 0.0
    %2655 = vmatprep.subr.mxu0 0.0
    %2656 = vmatpush1.msra.mxu0 0.0
    %2657 = vmatprep.subr.mxu0 0.0
    %2658 = vmatpush1.msra.mxu0 0.0
    %2659 = vmatprep.subr.mxu0 0.0
    %2660 = vmatpush1.msra.mxu0 0.0
    %2661 = vmatprep.subr.mxu0 0.0
    %2662 = vmatpush1.msra.mxu0 0.0
    %2663 = vmatprep.subr.mxu0 0.0
    %2664 = vmatpush1.msra.mxu0 0.0
    %2665 = vmatprep.subr.mxu0 0.0
    %2666 = vmatpush1.msra.mxu0 0.0
    %2667 = vmatprep.subr.mxu0 0.0
    %2668 = vmatpush1.msra.mxu0 0.0
    %2669 = vmatprep.subr.mxu0 0.0
    %2670 = vmatpush1.msra.mxu0 0.0
    %2671 = vmatprep.subr.mxu0 0.0
    %2672 = vmatpush1.msra.mxu0 0.0
    %2673 = vmatprep.mubr.f32.mxu0 0.0
    %2674 = vmatmul.mubr.f32.gmra.mrb[0].mxu0 %v40
    %v2675 = vpop.f32.mrb[0].mxu0
    %v2676 = vadd.f32 %v1082, %v2675
    %v2677 = vpop.f32.mrb[0].mxu0
    %v2678 = vadd.f32 %v1086, %v2677
    %2679 = vdwg.mxu0
    %2680 = vmatprep.subr.mxu0 %v84
    %2681 = vmatpush1.msra.mxu0 %v83
    %2682 = vmatprep.subr.mxu0 %v138
    %2683 = vmatpush1.msra.mxu0 %v137
    %2684 = vmatprep.subr.mxu0 %v192
    %2685 = vmatpush1.msra.mxu0 %v191
    %2686 = vmatprep.subr.mxu0 %v246
    %2687 = vmatpush1.msra.mxu0 %v245
    %2688 = vmatprep.subr.mxu0 %v300
    %2689 = vmatpush1.msra.mxu0 %v299
    %2690 = vmatprep.subr.mxu0 %v354
    %2691 = vmatpush1.msra.mxu0 %v353
    %2692 = vmatprep.subr.mxu0 %v408
    %2693 = vmatpush1.msra.mxu0 %v407
    %2694 = vmatprep.subr.mxu0 %v462
    %2695 = vmatpush1.msra.mxu0 %v461
    %2696 = vmatprep.subr.mxu0 %v516
    %2697 = vmatpush1.msra.mxu0 %v515
    %2698 = vmatprep.subr.mxu0 %v570
    %2699 = vmatpush1.msra.mxu0 %v569
    %2700 = vmatprep.subr.mxu0 %v624
    %2701 = vmatpush1.msra.mxu0 %v623
    %2702 = vmatprep.subr.mxu0 %v678
    %2703 = vmatpush1.msra.mxu0 %v677
    %2704 = vmatprep.subr.mxu0 %v732
    %2705 = vmatpush1.msra.mxu0 %v731
    %2706 = vmatprep.subr.mxu0 %v786
    %2707 = vmatpush1.msra.mxu0 %v785
    %2708 = vmatprep.subr.mxu0 %v840
    %2709 = vmatpush1.msra.mxu0 %v839
    %2710 = vmatprep.subr.mxu0 %v894
    %2711 = vmatpush1.msra.mxu0 %v893
    %2712 = vmatprep.subr.mxu0 0.0
    %2713 = vmatpush1.msra.mxu0 0.0
    %2714 = vmatprep.subr.mxu0 0.0
    %2715 = vmatpush1.msra.mxu0 0.0
    %2716 = vmatprep.subr.mxu0 0.0
    %2717 = vmatpush1.msra.mxu0 0.0
    %2718 = vmatprep.subr.mxu0 0.0
    %2719 = vmatpush1.msra.mxu0 0.0
    %2720 = vmatprep.subr.mxu0 0.0
    %2721 = vmatpush1.msra.mxu0 0.0
    %2722 = vmatprep.subr.mxu0 0.0
    %2723 = vmatpush1.msra.mxu0 0.0
    %2724 = vmatprep.subr.mxu0 0.0
    %2725 = vmatpush1.msra.mxu0 0.0
    %2726 = vmatprep.subr.mxu0 0.0
    %2727 = vmatpush1.msra.mxu0 0.0
    %2728 = vmatprep.subr.mxu0 0.0
    %2729 = vmatpush1.msra.mxu0 0.0
    %2730 = vmatprep.subr.mxu0 0.0
    %2731 = vmatpush1.msra.mxu0 0.0
    %2732 = vmatprep.subr.mxu0 0.0
    %2733 = vmatpush1.msra.mxu0 0.0
    %2734 = vmatprep.subr.mxu0 0.0
    %2735 = vmatpush1.msra.mxu0 0.0
    %2736 = vmatprep.subr.mxu0 0.0
    %2737 = vmatpush1.msra.mxu0 0.0
    %2738 = vmatprep.subr.mxu0 0.0
    %2739 = vmatpush1.msra.mxu0 0.0
    %2740 = vmatprep.subr.mxu0 0.0
    %2741 = vmatpush1.msra.mxu0 0.0
    %2742 = vmatprep.subr.mxu0 0.0
    %2743 = vmatpush1.msra.mxu0 0.0
    %2744 = vmatprep.mubr.f32.mxu0 0.0
    %2745 = vmatmul.mubr.f32.gmra.mrb[0].mxu0 %v40
    %v2746 = vpop.f32.mrb[0].mxu0
    %v2747 = vadd.f32 %v1090, %v2746
    %v2748 = vpop.f32.mrb[0].mxu0
    %v2749 = vadd.f32 %v1094, %v2748
    %2750 = vdwg.mxu0
    %2751 = vmatprep.subr.mxu0 %v86
    %2752 = vmatpush1.msra.mxu0 %v85
    %2753 = vmatprep.subr.mxu0 %v140
    %2754 = vmatpush1.msra.mxu0 %v139
    %2755 = vmatprep.subr.mxu0 %v194
    %2756 = vmatpush1.msra.mxu0 %v193
    %2757 = vmatprep.subr.mxu0 %v248
    %2758 = vmatpush1.msra.mxu0 %v247
    %2759 = vmatprep.subr.mxu0 %v302
    %2760 = vmatpush1.msra.mxu0 %v301
    %2761 = vmatprep.subr.mxu0 %v356
    %2762 = vmatpush1.msra.mxu0 %v355
    %2763 = vmatprep.subr.mxu0 %v410
    %2764 = vmatpush1.msra.mxu0 %v409
    %2765 = vmatprep.subr.mxu0 %v464
    %2766 = vmatpush1.msra.mxu0 %v463
    %2767 = vmatprep.subr.mxu0 %v518
    %2768 = vmatpush1.msra.mxu0 %v517
    %2769 = vmatprep.subr.mxu0 %v572
    %2770 = vmatpush1.msra.mxu0 %v571
    %2771 = vmatprep.subr.mxu0 %v626
    %2772 = vmatpush1.msra.mxu0 %v625
    %2773 = vmatprep.subr.mxu0 %v680
    %2774 = vmatpush1.msra.mxu0 %v679
    %2775 = vmatprep.subr.mxu0 %v734
    %2776 = vmatpush1.msra.mxu0 %v733
    %2777 = vmatprep.subr.mxu0 %v788
    %2778 = vmatpush1.msra.mxu0 %v787
    %2779 = vmatprep.subr.mxu0 %v842
    %2780 = vmatpush1.msra.mxu0 %v841
    %2781 = vmatprep.subr.mxu0 %v896
    %2782 = vmatpush1.msra.mxu0 %v895
    %2783 = vmatprep.subr.mxu0 0.0
    %2784 = vmatpush1.msra.mxu0 0.0
    %2785 = vmatprep.subr.mxu0 0.0
    %2786 = vmatpush1.msra.mxu0 0.0
    %2787 = vmatprep.subr.mxu0 0.0
    %2788 = vmatpush1.msra.mxu0 0.0
    %2789 = vmatprep.subr.mxu0 0.0
    %2790 = vmatpush1.msra.mxu0 0.0
    %2791 = vmatprep.subr.mxu0 0.0
    %2792 = vmatpush1.msra.mxu0 0.0
    %2793 = vmatprep.subr.mxu0 0.0
    %2794 = vmatpush1.msra.mxu0 0.0
    %2795 = vmatprep.subr.mxu0 0.0
    %2796 = vmatpush1.msra.mxu0 0.0
    %2797 = vmatprep.subr.mxu0 0.0
    %2798 = vmatpush1.msra.mxu0 0.0
    %2799 = vmatprep.subr.mxu0 0.0
    %2800 = vmatpush1.msra.mxu0 0.0
    %2801 = vmatprep.subr.mxu0 0.0
    %2802 = vmatpush1.msra.mxu0 0.0
    %2803 = vmatprep.subr.mxu0 0.0
    %2804 = vmatpush1.msra.mxu0 0.0
    %2805 = vmatprep.subr.mxu0 0.0
    %2806 = vmatpush1.msra.mxu0 0.0
    %2807 = vmatprep.subr.mxu0 0.0
    %2808 = vmatpush1.msra.mxu0 0.0
    %2809 = vmatprep.subr.mxu0 0.0
    %2810 = vmatpush1.msra.mxu0 0.0
    %2811 = vmatprep.subr.mxu0 0.0
    %2812 = vmatpush1.msra.mxu0 0.0
    %2813 = vmatprep.subr.mxu0 0.0
    %2814 = vmatpush1.msra.mxu0 0.0
    %2815 = vmatprep.mubr.f32.mxu0 0.0
    %2816 = vmatmul.mubr.f32.gmra.mrb[0].mxu0 %v40
    %v2817 = vpop.f32.mrb[0].mxu0
    %v2818 = vadd.f32 %v1098, %v2817
    %v2819 = vpop.f32.mrb[0].mxu0
    %v2820 = vadd.f32 %v1102, %v2819
    %2821 = vdwg.mxu0
    %2822 = vmatprep.subr.mxu0 %v88
    %2823 = vmatpush1.msra.mxu0 %v87
    %2824 = vmatprep.subr.mxu0 %v142
    %2825 = vmatpush1.msra.mxu0 %v141
    %2826 = vmatprep.subr.mxu0 %v196
    %2827 = vmatpush1.msra.mxu0 %v195
    %2828 = vmatprep.subr.mxu0 %v250
    %2829 = vmatpush1.msra.mxu0 %v249
    %2830 = vmatprep.subr.mxu0 %v304
    %2831 = vmatpush1.msra.mxu0 %v303
    %2832 = vmatprep.subr.mxu0 %v358
    %2833 = vmatpush1.msra.mxu0 %v357
    %2834 = vmatprep.subr.mxu0 %v412
    %2835 = vmatpush1.msra.mxu0 %v411
    %2836 = vmatprep.subr.mxu0 %v466
    %2837 = vmatpush1.msra.mxu0 %v465
    %2838 = vmatprep.subr.mxu0 %v520
    %2839 = vmatpush1.msra.mxu0 %v519
    %2840 = vmatprep.subr.mxu0 %v574
    %2841 = vmatpush1.msra.mxu0 %v573
    %2842 = vmatprep.subr.mxu0 %v628
    %2843 = vmatpush1.msra.mxu0 %v627
    %2844 = vmatprep.subr.mxu0 %v682
    %2845 = vmatpush1.msra.mxu0 %v681
    %2846 = vmatprep.subr.mxu0 %v736
    %2847 = vmatpush1.msra.mxu0 %v735
    %2848 = vmatprep.subr.mxu0 %v790
    %2849 = vmatpush1.msra.mxu0 %v789
    %2850 = vmatprep.subr.mxu0 %v844
    %2851 = vmatpush1.msra.mxu0 %v843
    %2852 = vmatprep.subr.mxu0 %v898
    %2853 = vmatpush1.msra.mxu0 %v897
    %2854 = vmatprep.subr.mxu0 0.0
    %2855 = vmatpush1.msra.mxu0 0.0
    %2856 = vmatprep.subr.mxu0 0.0
    %2857 = vmatpush1.msra.mxu0 0.0
    %2858 = vmatprep.subr.mxu0 0.0
    %2859 = vmatpush1.msra.mxu0 0.0
    %2860 = vmatprep.subr.mxu0 0.0
    %2861 = vmatpush1.msra.mxu0 0.0
    %2862 = vmatprep.subr.mxu0 0.0
    %2863 = vmatpush1.msra.mxu0 0.0
    %2864 = vmatprep.subr.mxu0 0.0
    %2865 = vmatpush1.msra.mxu0 0.0
    %2866 = vmatprep.subr.mxu0 0.0
    %2867 = vmatpush1.msra.mxu0 0.0
    %2868 = vmatprep.subr.mxu0 0.0
    %2869 = vmatpush1.msra.mxu0 0.0
    %2870 = vmatprep.subr.mxu0 0.0
    %2871 = vmatpush1.msra.mxu0 0.0
    %2872 = vmatprep.subr.mxu0 0.0
    %2873 = vmatpush1.msra.mxu0 0.0
    %2874 = vmatprep.subr.mxu0 0.0
    %2875 = vmatpush1.msra.mxu0 0.0
    %2876 = vmatprep.subr.mxu0 0.0
    %2877 = vmatpush1.msra.mxu0 0.0
    %2878 = vmatprep.subr.mxu0 0.0
    %2879 = vmatpush1.msra.mxu0 0.0
    %2880 = vmatprep.subr.mxu0 0.0
    %2881 = vmatpush1.msra.mxu0 0.0
    %2882 = vmatprep.subr.mxu0 0.0
    %2883 = vmatpush1.msra.mxu0 0.0
    %2884 = vmatprep.subr.mxu0 0.0
    %2885 = vmatpush1.msra.mxu0 0.0
    %2886 = vmatprep.mubr.f32.mxu0 0.0
    %2887 = vmatmul.mubr.f32.gmra.mrb[0].mxu0 %v40
    %v2888 = vpop.f32.mrb[0].mxu0
    %v2889 = vadd.f32 %v1106, %v2888
    %v2890 = vpop.f32.mrb[0].mxu0
    %v2891 = vadd.f32 %v1110, %v2890
    %2892 = vdwg.mxu0
    %2893 = vmatprep.subr.mxu0 %v90
    %2894 = vmatpush1.msra.mxu0 %v89
    %2895 = vmatprep.subr.mxu0 %v144
    %2896 = vmatpush1.msra.mxu0 %v143
    %2897 = vmatprep.subr.mxu0 %v198
    %2898 = vmatpush1.msra.mxu0 %v197
    %2899 = vmatprep.subr.mxu0 %v252
    %2900 = vmatpush1.msra.mxu0 %v251
    %2901 = vmatprep.subr.mxu0 %v306
    %2902 = vmatpush1.msra.mxu0 %v305
    %2903 = vmatprep.subr.mxu0 %v360
    %2904 = vmatpush1.msra.mxu0 %v359
    %2905 = vmatprep.subr.mxu0 %v414
    %2906 = vmatpush1.msra.mxu0 %v413
    %2907 = vmatprep.subr.mxu0 %v468
    %2908 = vmatpush1.msra.mxu0 %v467
    %2909 = vmatprep.subr.mxu0 %v522
    %2910 = vmatpush1.msra.mxu0 %v521
    %2911 = vmatprep.subr.mxu0 %v576
    %2912 = vmatpush1.msra.mxu0 %v575
    %2913 = vmatprep.subr.mxu0 %v630
    %2914 = vmatpush1.msra.mxu0 %v629
    %2915 = vmatprep.subr.mxu0 %v684
    %2916 = vmatpush1.msra.mxu0 %v683
    %2917 = vmatprep.subr.mxu0 %v738
    %2918 = vmatpush1.msra.mxu0 %v737
    %2919 = vmatprep.subr.mxu0 %v792
    %2920 = vmatpush1.msra.mxu0 %v791
    %2921 = vmatprep.subr.mxu0 %v846
    %2922 = vmatpush1.msra.mxu0 %v845
    %2923 = vmatprep.subr.mxu0 %v900
    %2924 = vmatpush1.msra.mxu0 %v899
    %2925 = vmatprep.subr.mxu0 0.0
    %2926 = vmatpush1.msra.mxu0 0.0
    %2927 = vmatprep.subr.mxu0 0.0
    %2928 = vmatpush1.msra.mxu0 0.0
    %2929 = vmatprep.subr.mxu0 0.0
    %2930 = vmatpush1.msra.mxu0 0.0
    %2931 = vmatprep.subr.mxu0 0.0
    %2932 = vmatpush1.msra.mxu0 0.0
    %2933 = vmatprep.subr.mxu0 0.0
    %2934 = vmatpush1.msra.mxu0 0.0
    %2935 = vmatprep.subr.mxu0 0.0
    %2936 = vmatpush1.msra.mxu0 0.0
    %2937 = vmatprep.subr.mxu0 0.0
    %2938 = vmatpush1.msra.mxu0 0.0
    %2939 = vmatprep.subr.mxu0 0.0
    %2940 = vmatpush1.msra.mxu0 0.0
    %2941 = vmatprep.subr.mxu0 0.0
    %2942 = vmatpush1.msra.mxu0 0.0
    %2943 = vmatprep.subr.mxu0 0.0
    %2944 = vmatpush1.msra.mxu0 0.0
    %2945 = vmatprep.subr.mxu0 0.0
    %2946 = vmatpush1.msra.mxu0 0.0
    %2947 = vmatprep.subr.mxu0 0.0
    %2948 = vmatpush1.msra.mxu0 0.0
    %2949 = vmatprep.subr.mxu0 0.0
    %2950 = vmatpush1.msra.mxu0 0.0
    %2951 = vmatprep.subr.mxu0 0.0
    %2952 = vmatpush1.msra.mxu0 0.0
    %2953 = vmatprep.subr.mxu0 0.0
    %2954 = vmatpush1.msra.mxu0 0.0
    %2955 = vmatprep.subr.mxu0 0.0
    %2956 = vmatpush1.msra.mxu0 0.0
    %2957 = vmatprep.mubr.f32.mxu0 0.0
    %2958 = vmatmul.mubr.f32.gmra.mrb[0].mxu0 %v40
    %v2959 = vpop.f32.mrb[0].mxu0
    %v2960 = vadd.f32 %v1114, %v2959
    %v2961 = vpop.f32.mrb[0].mxu0
    %v2962 = vadd.f32 %v1118, %v2961
    %2963 = vdwg.mxu0
    %2964 = vmatprep.subr.mxu0 %v92
    %2965 = vmatpush1.msra.mxu0 %v91
    %2966 = vmatprep.subr.mxu0 %v146
    %2967 = vmatpush1.msra.mxu0 %v145
    %2968 = vmatprep.subr.mxu0 %v200
    %2969 = vmatpush1.msra.mxu0 %v199
    %2970 = vmatprep.subr.mxu0 %v254
    %2971 = vmatpush1.msra.mxu0 %v253
    %2972 = vmatprep.subr.mxu0 %v308
    %2973 = vmatpush1.msra.mxu0 %v307
    %2974 = vmatprep.subr.mxu0 %v362
    %2975 = vmatpush1.msra.mxu0 %v361
    %2976 = vmatprep.subr.mxu0 %v416
    %2977 = vmatpush1.msra.mxu0 %v415
    %2978 = vmatprep.subr.mxu0 %v470
    %2979 = vmatpush1.msra.mxu0 %v469
    %2980 = vmatprep.subr.mxu0 %v524
    %2981 = vmatpush1.msra.mxu0 %v523
    %2982 = vmatprep.subr.mxu0 %v578
    %2983 = vmatpush1.msra.mxu0 %v577
    %2984 = vmatprep.subr.mxu0 %v632
    %2985 = vmatpush1.msra.mxu0 %v631
    %2986 = vmatprep.subr.mxu0 %v686
    %2987 = vmatpush1.msra.mxu0 %v685
    %2988 = vmatprep.subr.mxu0 %v740
    %2989 = vmatpush1.msra.mxu0 %v739
    %2990 = vmatprep.subr.mxu0 %v794
    %2991 = vmatpush1.msra.mxu0 %v793
    %2992 = vmatprep.subr.mxu0 %v848
    %2993 = vmatpush1.msra.mxu0 %v847
    %2994 = vmatprep.subr.mxu0 %v902
    %2995 = vmatpush1.msra.mxu0 %v901
    %2996 = vmatprep.subr.mxu0 0.0
    %2997 = vmatpush1.msra.mxu0 0.0
    %2998 = vmatprep.subr.mxu0 0.0
    %2999 = vmatpush1.msra.mxu0 0.0
    %3000 = vmatprep.subr.mxu0 0.0
    %3001 = vmatpush1.msra.mxu0 0.0
    %3002 = vmatprep.subr.mxu0 0.0
    %3003 = vmatpush1.msra.mxu0 0.0
    %3004 = vmatprep.subr.mxu0 0.0
    %3005 = vmatpush1.msra.mxu0 0.0
    %3006 = vmatprep.subr.mxu0 0.0
    %3007 = vmatpush1.msra.mxu0 0.0
    %3008 = vmatprep.subr.mxu0 0.0
    %3009 = vmatpush1.msra.mxu0 0.0
    %3010 = vmatprep.subr.mxu0 0.0
    %3011 = vmatpush1.msra.mxu0 0.0
    %3012 = vmatprep.subr.mxu0 0.0
    %3013 = vmatpush1.msra.mxu0 0.0
    %3014 = vmatprep.subr.mxu0 0.0
    %3015 = vmatpush1.msra.mxu0 0.0
    %3016 = vmatprep.subr.mxu0 0.0
    %3017 = vmatpush1.msra.mxu0 0.0
    %3018 = vmatprep.subr.mxu0 0.0
    %3019 = vmatpush1.msra.mxu0 0.0
    %3020 = vmatprep.subr.mxu0 0.0
    %3021 = vmatpush1.msra.mxu0 0.0
    %3022 = vmatprep.subr.mxu0 0.0
    %3023 = vmatpush1.msra.mxu0 0.0
    %3024 = vmatprep.subr.mxu0 0.0
    %3025 = vmatpush1.msra.mxu0 0.0
    %3026 = vmatprep.subr.mxu0 0.0
    %3027 = vmatpush1.msra.mxu0 0.0
    %3028 = vmatprep.mubr.f32.mxu0 0.0
    %3029 = vmatmul.mubr.f32.gmra.mrb[0].mxu0 %v40
    %v3030 = vpop.f32.mrb[0].mxu0
    %v3031 = vadd.f32 %v1122, %v3030
    %v3032 = vpop.f32.mrb[0].mxu0
    %v3033 = vadd.f32 %v1126, %v3032
    %3034 = vdwg.mxu0
    %3035 = vmatprep.subr.mxu0 %v94
    %3036 = vmatpush1.msra.mxu0 %v93
    %3037 = vmatprep.subr.mxu0 %v148
    %3038 = vmatpush1.msra.mxu0 %v147
    %3039 = vmatprep.subr.mxu0 %v202
    %3040 = vmatpush1.msra.mxu0 %v201
    %3041 = vmatprep.subr.mxu0 %v256
    %3042 = vmatpush1.msra.mxu0 %v255
    %3043 = vmatprep.subr.mxu0 %v310
    %3044 = vmatpush1.msra.mxu0 %v309
    %3045 = vmatprep.subr.mxu0 %v364
    %3046 = vmatpush1.msra.mxu0 %v363
    %3047 = vmatprep.subr.mxu0 %v418
    %3048 = vmatpush1.msra.mxu0 %v417
    %3049 = vmatprep.subr.mxu0 %v472
    %3050 = vmatpush1.msra.mxu0 %v471
    %3051 = vmatprep.subr.mxu0 %v526
    %3052 = vmatpush1.msra.mxu0 %v525
    %3053 = vmatprep.subr.mxu0 %v580
    %3054 = vmatpush1.msra.mxu0 %v579
    %3055 = vmatprep.subr.mxu0 %v634
    %3056 = vmatpush1.msra.mxu0 %v633
    %3057 = vmatprep.subr.mxu0 %v688
    %3058 = vmatpush1.msra.mxu0 %v687
    %3059 = vmatprep.subr.mxu0 %v742
    %3060 = vmatpush1.msra.mxu0 %v741
    %3061 = vmatprep.subr.mxu0 %v796
    %3062 = vmatpush1.msra.mxu0 %v795
    %3063 = vmatprep.subr.mxu0 %v850
    %3064 = vmatpush1.msra.mxu0 %v849
    %3065 = vmatprep.subr.mxu0 %v904
    %3066 = vmatpush1.msra.mxu0 %v903
    %3067 = vmatprep.subr.mxu0 0.0
    %3068 = vmatpush1.msra.mxu0 0.0
    %3069 = vmatprep.subr.mxu0 0.0
    %3070 = vmatpush1.msra.mxu0 0.0
    %3071 = vmatprep.subr.mxu0 0.0
    %3072 = vmatpush1.msra.mxu0 0.0
    %3073 = vmatprep.subr.mxu0 0.0
    %3074 = vmatpush1.msra.mxu0 0.0
    %3075 = vmatprep.subr.mxu0 0.0
    %3076 = vmatpush1.msra.mxu0 0.0
    %3077 = vmatprep.subr.mxu0 0.0
    %3078 = vmatpush1.msra.mxu0 0.0
    %3079 = vmatprep.subr.mxu0 0.0
    %3080 = vmatpush1.msra.mxu0 0.0
    %3081 = vmatprep.subr.mxu0 0.0
    %3082 = vmatpush1.msra.mxu0 0.0
    %3083 = vmatprep.subr.mxu0 0.0
    %3084 = vmatpush1.msra.mxu0 0.0
    %3085 = vmatprep.subr.mxu0 0.0
    %3086 = vmatpush1.msra.mxu0 0.0
    %3087 = vmatprep.subr.mxu0 0.0
    %3088 = vmatpush1.msra.mxu0 0.0
    %3089 = vmatprep.subr.mxu0 0.0
    %3090 = vmatpush1.msra.mxu0 0.0
    %3091 = vmatprep.subr.mxu0 0.0
    %3092 = vmatpush1.msra.mxu0 0.0
    %3093 = vmatprep.subr.mxu0 0.0
    %3094 = vmatpush1.msra.mxu0 0.0
    %3095 = vmatprep.subr.mxu0 0.0
    %3096 = vmatpush1.msra.mxu0 0.0
    %3097 = vmatprep.subr.mxu0 0.0
    %3098 = vmatpush1.msra.mxu0 0.0
    %3099 = vmatprep.mubr.f32.mxu0 0.0
    %3100 = vmatmul.mubr.f32.gmra.mrb[0].mxu0 %v40
    %v3101 = vpop.f32.mrb[0].mxu0
    %v3102 = vadd.f32 %v1130, %v3101
    %v3103 = vpop.f32.mrb[0].mxu0
    %v3104 = vadd.f32 %v1134, %v3103
    %3105 = vdwg.mxu0
    %v3160 = vcombine.low %v1256, %v1258
    %v3161 = vcombine.low %v1327, %v1329
    %v3163 = vunpack.c.l.s4 1983009808
    %v3164 = vunpack.c.0.s8 %v3163
    %v3165 = vlaneseq
    %v3166 = vshrl.u32 %v3165, 7
    %v3167 = vsub.s32 %v3164, %v3166
    %v3168 = vrot.slane %v3160, %v3167
    %v3170 = vunpack.c.l.s4 1983009808
    %v3171 = vunpack.c.0.s8 %v3170
    %v3172 = vlaneseq
    %v3173 = vshrl.u32 %v3172, 7
    %v3174 = vsub.s32 %v3171, %v3173
    %v3175 = vrot.slane %v3161, %v3174
    %v3176 = vcombine.low %v3168, %v3175
    %v3177 = vcombine.low %v1398, %v1400
    %v3178 = vcombine.low %v1469, %v1471
    %v3180 = vunpack.c.l.s4 1983009808
    %v3181 = vunpack.c.0.s8 %v3180
    %v3182 = vlaneseq
    %v3183 = vshrl.u32 %v3182, 7
    %v3184 = vsub.s32 %v3181, %v3183
    %v3185 = vrot.slane %v3177, %v3184
    %v3187 = vunpack.c.l.s4 1983009808
    %v3188 = vunpack.c.0.s8 %v3187
    %v3189 = vlaneseq
    %v3190 = vshrl.u32 %v3189, 7
    %v3191 = vsub.s32 %v3188, %v3190
    %v3192 = vrot.slane %v3178, %v3191
    %v3193 = vcombine.low %v3185, %v3192
    %v3194 = vcombine.low %v1540, %v1542
    %v3195 = vcombine.low %v1611, %v1613
    %v3197 = vunpack.c.l.s4 1983009808
    %v3198 = vunpack.c.0.s8 %v3197
    %v3199 = vlaneseq
    %v3200 = vshrl.u32 %v3199, 7
    %v3201 = vsub.s32 %v3198, %v3200
    %v3202 = vrot.slane %v3194, %v3201
    %v3204 = vunpack.c.l.s4 1983009808
    %v3205 = vunpack.c.0.s8 %v3204
    %v3206 = vlaneseq
    %v3207 = vshrl.u32 %v3206, 7
    %v3208 = vsub.s32 %v3205, %v3207
    %v3209 = vrot.slane %v3195, %v3208
    %v3210 = vcombine.low %v3202, %v3209
    %v3211 = vcombine.low %v1682, %v1684
    %v3212 = vcombine.low %v1753, %v1755
    %v3214 = vunpack.c.l.s4 1983009808
    %v3215 = vunpack.c.0.s8 %v3214
    %v3216 = vlaneseq
    %v3217 = vshrl.u32 %v3216, 7
    %v3218 = vsub.s32 %v3215, %v3217
    %v3219 = vrot.slane %v3211, %v3218
    %v3221 = vunpack.c.l.s4 1983009808
    %v3222 = vunpack.c.0.s8 %v3221
    %v3223 = vlaneseq
    %v3224 = vshrl.u32 %v3223, 7
    %v3225 = vsub.s32 %v3222, %v3224
    %v3226 = vrot.slane %v3212, %v3225
    %v3227 = vcombine.low %v3219, %v3226
    %v3228 = vcombine.low %v1824, %v1826
    %v3229 = vcombine.low %v1895, %v1897
    %v3231 = vunpack.c.l.s4 1983009808
    %v3232 = vunpack.c.0.s8 %v3231
    %v3233 = vlaneseq
    %v3234 = vshrl.u32 %v3233, 7
    %v3235 = vsub.s32 %v3232, %v3234
    %v3236 = vrot.slane %v3228, %v3235
    %v3238 = vunpack.c.l.s4 1983009808
    %v3239 = vunpack.c.0.s8 %v3238
    %v3240 = vlaneseq
    %v3241 = vshrl.u32 %v3240, 7
    %v3242 = vsub.s32 %v3239, %v3241
    %v3243 = vrot.slane %v3229, %v3242
    %v3244 = vcombine.low %v3236, %v3243
    %v3245 = vcombine.low %v1966, %v1968
    %v3246 = vcombine.low %v2037, %v2039
    %v3248 = vunpack.c.l.s4 1983009808
    %v3249 = vunpack.c.0.s8 %v3248
    %v3250 = vlaneseq
    %v3251 = vshrl.u32 %v3250, 7
    %v3252 = vsub.s32 %v3249, %v3251
    %v3253 = vrot.slane %v3245, %v3252
    %v3255 = vunpack.c.l.s4 1983009808
    %v3256 = vunpack.c.0.s8 %v3255
    %v3257 = vlaneseq
    %v3258 = vshrl.u32 %v3257, 7
    %v3259 = vsub.s32 %v3256, %v3258
    %v3260 = vrot.slane %v3246, %v3259
    %v3261 = vcombine.low %v3253, %v3260
    %v3262 = vcombine.low %v2108, %v2110
    %v3263 = vcombine.low %v2179, %v2181
    %v3265 = vunpack.c.l.s4 1983009808
    %v3266 = vunpack.c.0.s8 %v3265
    %v3267 = vlaneseq
    %v3268 = vshrl.u32 %v3267, 7
    %v3269 = vsub.s32 %v3266, %v3268
    %v3270 = vrot.slane %v3262, %v3269
    %v3272 = vunpack.c.l.s4 1983009808
    %v3273 = vunpack.c.0.s8 %v3272
    %v3274 = vlaneseq
    %v3275 = vshrl.u32 %v3274, 7
    %v3276 = vsub.s32 %v3273, %v3275
    %v3277 = vrot.slane %v3263, %v3276
    %v3278 = vcombine.low %v3270, %v3277
    %v3279 = vcombine.low %v2250, %v2252
    %v3280 = vcombine.low %v2321, %v2323
    %v3282 = vunpack.c.l.s4 1983009808
    %v3283 = vunpack.c.0.s8 %v3282
    %v3284 = vlaneseq
    %v3285 = vshrl.u32 %v3284, 7
    %v3286 = vsub.s32 %v3283, %v3285
    %v3287 = vrot.slane %v3279, %v3286
    %v3289 = vunpack.c.l.s4 1983009808
    %v3290 = vunpack.c.0.s8 %v3289
    %v3291 = vlaneseq
    %v3292 = vshrl.u32 %v3291, 7
    %v3293 = vsub.s32 %v3290, %v3292
    %v3294 = vrot.slane %v3280, %v3293
    %v3295 = vcombine.low %v3287, %v3294
    %v3296 = vcombine.low %v2392, %v2394
    %v3297 = vcombine.low %v2463, %v2465
    %v3299 = vunpack.c.l.s4 1983009808
    %v3300 = vunpack.c.0.s8 %v3299
    %v3301 = vlaneseq
    %v3302 = vshrl.u32 %v3301, 7
    %v3303 = vsub.s32 %v3300, %v3302
    %v3304 = vrot.slane %v3296, %v3303
    %v3306 = vunpack.c.l.s4 1983009808
    %v3307 = vunpack.c.0.s8 %v3306
    %v3308 = vlaneseq
    %v3309 = vshrl.u32 %v3308, 7
    %v3310 = vsub.s32 %v3307, %v3309
    %v3311 = vrot.slane %v3297, %v3310
    %v3312 = vcombine.low %v3304, %v3311
    %v3313 = vcombine.low %v2534, %v2536
    %v3314 = vcombine.low %v2605, %v2607
    %v3316 = vunpack.c.l.s4 1983009808
    %v3317 = vunpack.c.0.s8 %v3316
    %v3318 = vlaneseq
    %v3319 = vshrl.u32 %v3318, 7
    %v3320 = vsub.s32 %v3317, %v3319
    %v3321 = vrot.slane %v3313, %v3320
    %v3323 = vunpack.c.l.s4 1983009808
    %v3324 = vunpack.c.0.s8 %v3323
    %v3325 = vlaneseq
    %v3326 = vshrl.u32 %v3325, 7
    %v3327 = vsub.s32 %v3324, %v3326
    %v3328 = vrot.slane %v3314, %v3327
    %v3329 = vcombine.low %v3321, %v3328
    %v3330 = vcombine.low %v2676, %v2678
    %v3331 = vcombine.low %v2747, %v2749
    %v3333 = vunpack.c.l.s4 1983009808
    %v3334 = vunpack.c.0.s8 %v3333
    %v3335 = vlaneseq
    %v3336 = vshrl.u32 %v3335, 7
    %v3337 = vsub.s32 %v3334, %v3336
    %v3338 = vrot.slane %v3330, %v3337
    %v3340 = vunpack.c.l.s4 1983009808
    %v3341 = vunpack.c.0.s8 %v3340
    %v3342 = vlaneseq
    %v3343 = vshrl.u32 %v3342, 7
    %v3344 = vsub.s32 %v3341, %v3343
    %v3345 = vrot.slane %v3331, %v3344
    %v3346 = vcombine.low %v3338, %v3345
    %v3347 = vcombine.low %v2818, %v2820
    %v3348 = vcombine.low %v2889, %v2891
    %v3350 = vunpack.c.l.s4 1983009808
    %v3351 = vunpack.c.0.s8 %v3350
    %v3352 = vlaneseq
    %v3353 = vshrl.u32 %v3352, 7
    %v3354 = vsub.s32 %v3351, %v3353
    %v3355 = vrot.slane %v3347, %v3354
    %v3357 = vunpack.c.l.s4 1983009808
    %v3358 = vunpack.c.0.s8 %v3357
    %v3359 = vlaneseq
    %v3360 = vshrl.u32 %v3359, 7
    %v3361 = vsub.s32 %v3358, %v3360
    %v3362 = vrot.slane %v3348, %v3361
    %v3363 = vcombine.low %v3355, %v3362
    %v3364 = vcombine.low %v2960, %v2962
    %v3365 = vcombine.low %v3031, %v3033
    %v3367 = vunpack.c.l.s4 1983009808
    %v3368 = vunpack.c.0.s8 %v3367
    %v3369 = vlaneseq
    %v3370 = vshrl.u32 %v3369, 7
    %v3371 = vsub.s32 %v3368, %v3370
    %v3372 = vrot.slane %v3364, %v3371
    %v3374 = vunpack.c.l.s4 1983009808
    %v3375 = vunpack.c.0.s8 %v3374
    %v3376 = vlaneseq
    %v3377 = vshrl.u32 %v3376, 7
    %v3378 = vsub.s32 %v3375, %v3377
    %v3379 = vrot.slane %v3365, %v3378
    %v3380 = vcombine.low %v3372, %v3379
    %v3381 = vcombine.low %v3102, %v3104
    %v3383 = vunpack.c.l.s4 1983009808
    %v3384 = vunpack.c.0.s8 %v3383
    %v3385 = vlaneseq
    %v3386 = vshrl.u32 %v3385, 7
    %v3387 = vsub.s32 %v3384, %v3386
    %v3388 = vrot.slane %v3381, %v3387
    %3403 = vst [vmem:[%s3] sm:$0xff] %v3176
    %3404 = vst [vmem:[%s3 + $0x8] sm:$0xff] %v3193
    %3405 = vst [vmem:[%s3 + $0x10] sm:$0xff] %v3210
    %3406 = vst [vmem:[%s3 + $0x18] sm:$0xff] %v3227
    %3407 = vst [vmem:[%s3 + $0x20] sm:$0xff] %v3244
    %3408 = vst [vmem:[%s3 + $0x28] sm:$0xff] %v3261
    %3409 = vst [vmem:[%s3 + $0x30] sm:$0xff] %v3278
    %3410 = vst [vmem:[%s3 + $0x38] sm:$0xff] %v3295
    %3411 = vst [vmem:[%s3 + $0x40] sm:$0xff] %v3312
    %3412 = vst [vmem:[%s3 + $0x48] sm:$0xff] %v3329
    %3413 = vst [vmem:[%s3 + $0x50] sm:$0xff] %v3346
    %3414 = vst [vmem:[%s3 + $0x58] sm:$0xff] %v3363
    %3415 = vst [vmem:[%s3 + $0x60] sm:$0xff] %v3380
    %3416 = vst [vmem:[%s3 + $0x68] sm:$0xf] %v3388
    // Predicated region
    $region22: #{wgan_g_forward.8} parent=1 // pred_check
      _
    $region23: #{wgan_g_forward.8} parent=1 // pred_check_branch
      %3418 = sbr.rel (0) target = $region25
    $region24: #{wgan_g_forward.8} parent=1 // pred_region
      _
    $region25: #{wgan_g_forward.8} parent=1 // pred_fallthru
      _
    // Predicated region
    $region26: #{wgan_g_forward.8} parent=1 // pred_check
      _
    $region27: #{wgan_g_forward.8} parent=1 // pred_check_branch
      %3420 = sbr.rel (0) target = $region29
    $region28: #{wgan_g_forward.8} parent=1 // pred_region
      _
    $region29: #{wgan_g_forward.8} parent=1 // pred_fallthru
      _
    %3421 = vsyncpa [#allocation3], 1
    %3422 = vsyncpa [#allocation5], 1

// kernel: wgan_g_forward.11
$region0: #{wgan_g_forward.11}
  #allocation0 [shape = 'u32[]', space=smem, size = 0x4, offset = 0x4, fixed_abs, tag = 'smem constant byte address 0x4 - core index']
  #allocation1 [shape = 'u32[144,128]{1,0:T(1,128)}', space=vmem, size = 0x12000, scoped, tag = 'internal scratch']
  %s0 = inlined_call_operand.vmem [shape: bf16[4,54,1024], index: 0, kind: input, shape index: {}]
  %s1 = inlined_call_operand.vmem [shape: bf16[4,1024,128], index: 1, kind: input, shape index: {}]
  %s2 = inlined_call_operand.vmem [shape: f32[1,128], index: 2, kind: input, shape index: {}]
  %s3 = inlined_call_operand.vmem [shape: f32[4,54,128], index: 3, kind: output, shape index: {0}]
  %s4 = inlined_call_operand.vmem [shape: f32[1,128], index: 4, kind: output, shape index: {1}]
  %s5 = inlined_call_operand.vmem [shape: f32[1,128], index: 5, kind: output, shape index: {2}]
  %6 = xla_tuple %s3, %s4, %s5
  %s7 = sld [smem:[#allocation0]]
  $region65: #{wgan_g_forward.11} parent=0
    _
  %s9 = ssub.s32 1, %s7
  %s10 = scalar_select 0, %s9, %s7
  loop: start=0, step=1, limit=6
  $region2: #{wgan_g_forward.11} parent=0 // loop_pre_header
    _
  $region3: #{wgan_g_forward.11} parent=0 // loop_header
    %s12 = sphi 0, %s16
    %p13 = scmp.ge.s32.totalorder %s12, 6
    %s19 = sphi 0, %s31
    %s20 = sphi 0, %s27
    %s21 = sphi 0, %s19
    %s22 = sphi 0, %s20
    %s23 = sphi 0, %s21
    %s24 = sphi 0, %s22
    %s36 = sphi 0, %s38
    %s39 = sphi 0, %s36
    %s40 = sphi 0, %s39
    %s56 = sphi 0, %s40
    %s62 = sphi 0, %s64
    %s65 = sphi 0, %s62
    %s66 = sphi 0, %s65
    %s82 = sphi 0, %s66
    %s86 = sphi 0, %s86
    %s88 = sphi 0, %s86
    %s89 = sphi 0, %s88
    %s103 = sphi 0, %s89
    %s111 = sphi 0, %s113
    %s114 = sphi 0, %s111
    %s115 = sphi 0, %s114
    %s131 = sphi 0, %s115
    %s135 = sphi 0, %s135
    %s137 = sphi 0, %s135
    %s138 = sphi 0, %s137
    %s152 = sphi 0, %s138
    %s156 = sphi 0, %s156
    %s158 = sphi 0, %s156
    %s159 = sphi 0, %s158
    %s173 = sphi 0, %s159
  $region4: #{wgan_g_forward.11} parent=0 // loop_header_branch
    %15 = sbr.rel (%p13) target = $region8
  $region5: #{wgan_g_forward.11} parent=0 // loop_body
    %s17 = ssub.s32 %s12, 1
    %s18 = ssub.s32 %s12, 2
    %s25 = sadd.s32 1, %s20
    %p26 = scmp.ge.s32.totalorder %s25, 1
    %s27 = scalar_select %p26, 0, %s25
    %s28 = sadd.s32 1, %s19
    %s29 = scalar_select %p26, %s28, %s19
    %p30 = scmp.ge.s32.totalorder %s29, 4
    %s31 = scalar_select %p30, 0, %s29
    %s32 = ssub.s32 %s19, %s31
    %s33 = ssub.s32 %s20, %s27
    %s34 = sor.u32 %s32, %s33
    %p35 = scmp.eq.s32.totalorder %s34, 0
    %s37 = sadd.s32 %s36, 1
    %s38 = scalar_select %p35, %s36, %s37
    %p41 = pneg %p35
    %p42 = scmp.eq.s32.totalorder %s12, 3
    %p43 = por %p41, %p42
    %p44 = scmp.ne.s32.totalorder %s36, %s39
    %p45 = scmp.eq.s32.totalorder %s12, 0
    %p46 = por %p44, %p45
    %p47 = scmp.ne.s32.totalorder %s36, %s39
    %p48 = scmp.eq.s32.totalorder %s17, 3
    %p49 = por %p47, %p48
    %p50 = scmp.ne.s32.totalorder %s39, %s40
    %p51 = scmp.eq.s32.totalorder %s17, 0
    %p52 = por %p50, %p51
    %p53 = scmp.ne.s32.totalorder %s39, %s40
    %p54 = scmp.eq.s32.totalorder %s18, 3
    %p55 = por %p53, %p54
    %p57 = scmp.ne.s32.totalorder %s40, %s56
    %p58 = scmp.eq.s32.totalorder %s18, 0
    %p59 = por %p57, %p58
    %s60 = ssub.s32 %s19, %s31
    %p61 = scmp.eq.s32.totalorder %s60, 0
    %s63 = sadd.s32 %s62, 1
    %s64 = scalar_select %p61, %s62, %s63
    %p67 = pneg %p61
    %p68 = scmp.eq.s32.totalorder %s12, 3
    %p69 = por %p67, %p68
    %p70 = scmp.ne.s32.totalorder %s62, %s65
    %p71 = scmp.eq.s32.totalorder %s12, 0
    %p72 = por %p70, %p71
    %p73 = scmp.ne.s32.totalorder %s62, %s65
    %p74 = scmp.eq.s32.totalorder %s17, 3
    %p75 = por %p73, %p74
    %p76 = scmp.ne.s32.totalorder %s65, %s66
    %p77 = scmp.eq.s32.totalorder %s17, 0
    %p78 = por %p76, %p77
    %p79 = scmp.ne.s32.totalorder %s65, %s66
    %p80 = scmp.eq.s32.totalorder %s18, 3
    %p81 = por %p79, %p80
    %p83 = scmp.ne.s32.totalorder %s66, %s82
    %p84 = scmp.eq.s32.totalorder %s18, 0
    %p85 = por %p83, %p84
    %s87 = sadd.s32 %s86, 1
    %p90 = scmp.eq.s32.totalorder %s12, 3
    %p91 = scmp.ne.s32.totalorder %s86, %s88
    %p92 = scmp.eq.s32.totalorder %s12, 0
    %p93 = por %p91, %p92
    %p94 = scmp.ne.s32.totalorder %s86, %s88
    %p95 = scmp.eq.s32.totalorder %s17, 3
    %p96 = por %p94, %p95
    %p97 = scmp.ne.s32.totalorder %s88, %s89
    %p98 = scmp.eq.s32.totalorder %s17, 0
    %p99 = por %p97, %p98
    %p100 = scmp.ne.s32.totalorder %s88, %s89
    %p101 = scmp.eq.s32.totalorder %s18, 3
    %p102 = por %p100, %p101
    %p104 = scmp.ne.s32.totalorder %s89, %s103
    %p105 = scmp.eq.s32.totalorder %s18, 0
    %p106 = por %p104, %p105
    %s107 = ssub.s32 %s19, %s31
    %s108 = ssub.s32 %s20, %s27
    %s109 = sor.u32 %s107, %s108
    %p110 = scmp.eq.s32.totalorder %s109, 0
    %s112 = sadd.s32 %s111, 1
    %s113 = scalar_select %p110, %s111, %s112
    %p116 = pneg %p110
    %p117 = scmp.eq.s32.totalorder %s12, 3
    %p118 = por %p116, %p117
    %p119 = scmp.ne.s32.totalorder %s111, %s114
    %p120 = scmp.eq.s32.totalorder %s12, 0
    %p121 = por %p119, %p120
    %p122 = scmp.ne.s32.totalorder %s111, %s114
    %p123 = scmp.eq.s32.totalorder %s17, 3
    %p124 = por %p122, %p123
    %p125 = scmp.ne.s32.totalorder %s114, %s115
    %p126 = scmp.eq.s32.totalorder %s17, 0
    %p127 = por %p125, %p126
    %p128 = scmp.ne.s32.totalorder %s114, %s115
    %p129 = scmp.eq.s32.totalorder %s18, 3
    %p130 = por %p128, %p129
    %p132 = scmp.ne.s32.totalorder %s115, %s131
    %p133 = scmp.eq.s32.totalorder %s18, 0
    %p134 = por %p132, %p133
    %s136 = sadd.s32 %s135, 1
    %p139 = scmp.eq.s32.totalorder %s12, 3
    %p140 = scmp.ne.s32.totalorder %s135, %s137
    %p141 = scmp.eq.s32.totalorder %s12, 0
    %p142 = por %p140, %p141
    %p143 = scmp.ne.s32.totalorder %s135, %s137
    %p144 = scmp.eq.s32.totalorder %s17, 3
    %p145 = por %p143, %p144
    %p146 = scmp.ne.s32.totalorder %s137, %s138
    %p147 = scmp.eq.s32.totalorder %s17, 0
    %p148 = por %p146, %p147
    %p149 = scmp.ne.s32.totalorder %s137, %s138
    %p150 = scmp.eq.s32.totalorder %s18, 3
    %p151 = por %p149, %p150
    %p153 = scmp.ne.s32.totalorder %s138, %s152
    %p154 = scmp.eq.s32.totalorder %s18, 0
    %p155 = por %p153, %p154
    %s157 = sadd.s32 %s156, 1
    %p160 = scmp.eq.s32.totalorder %s12, 3
    %p161 = scmp.ne.s32.totalorder %s156, %s158
    %p162 = scmp.eq.s32.totalorder %s12, 0
    %p163 = por %p161, %p162
    %p164 = scmp.ne.s32.totalorder %s156, %s158
    %p165 = scmp.eq.s32.totalorder %s17, 3
    %p166 = por %p164, %p165
    %p167 = scmp.ne.s32.totalorder %s158, %s159
    %p168 = scmp.eq.s32.totalorder %s17, 0
    %p169 = por %p167, %p168
    %p170 = scmp.ne.s32.totalorder %s158, %s159
    %p171 = scmp.eq.s32.totalorder %s18, 3
    %p172 = por %p170, %p171
    %p174 = scmp.ne.s32.totalorder %s159, %s173
    %p175 = scmp.eq.s32.totalorder %s18, 0
    %p176 = por %p174, %p175
    %p177 = scmp.le.s32.totalorder 1, %s12
    %p178 = scmp.lt.s32.totalorder %s12, 5
    %p179 = pnand %p177, %p178
    %p180 = pneg %p179
    // Predicated region
    $region9: #{wgan_g_forward.11} parent=5 // pred_check
      _
    $region10: #{wgan_g_forward.11} parent=5 // pred_check_branch
      %182 = sbr.rel (%p179) target = $region12
    $region11: #{wgan_g_forward.11} parent=5 // pred_region
      %s183 = ssub.s32 %s12, 1
      // Predicated region
      $region13: #{wgan_g_forward.11} parent=11 // pred_check
        %p184 = pneg %p99
      $region14: #{wgan_g_forward.11} parent=11 // pred_check_branch
        %186 = sbr.rel (%p184) target = $region16
      $region15: #{wgan_g_forward.11} parent=11 // pred_region
        _
      $region16: #{wgan_g_forward.11} parent=11 // pred_fallthru
        _
    $region12: #{wgan_g_forward.11} parent=5 // pred_fallthru
      _
    %p187 = scmp.lt.s32.totalorder %s12, 4
    // Predicated region
    $region17: #{wgan_g_forward.11} parent=5 // pred_check
      %p188 = pneg %p187
    $region18: #{wgan_g_forward.11} parent=5 // pred_check_branch
      %190 = sbr.rel (%p188) target = $region20
    $region19: #{wgan_g_forward.11} parent=5 // pred_region
      // Predicated region
      $region21: #{wgan_g_forward.11} parent=19 // pred_check
        %p191 = pneg %p46
      $region22: #{wgan_g_forward.11} parent=19 // pred_check_branch
        %193 = sbr.rel (%p191) target = $region24
      $region23: #{wgan_g_forward.11} parent=19 // pred_region
        %s194 = smul.u32 7, %s20
        %p195 = scmp.lt.s32.totalorder %s19, 3
        %s196 = scalar_select %p195, %s19, 3
        %p197 = scmp.lt.s32.totalorder %s194, 6
        %s198 = scalar_select %p197, %s194, 6
        %s199 = smul.addr %s198, 8
        %s200 = smul.addr %s196, 56
        %s201 = sadd.s32 %s199, %s200
        %s202 = smul.addr %s201, 4
        %s203 = scalar_lea.vmem %s0, %s202
        %s204 = smul.u32 7, %s20
      $region24: #{wgan_g_forward.11} parent=19 // pred_fallthru
        _
      // Predicated region
      $region25: #{wgan_g_forward.11} parent=19 // pred_check
        %p205 = pneg %p72
      $region26: #{wgan_g_forward.11} parent=19 // pred_check_branch
        %207 = sbr.rel (%p205) target = $region28
      $region27: #{wgan_g_forward.11} parent=19 // pred_region
        %p208 = scmp.lt.s32.totalorder %s19, 3
        %s209 = scalar_select %p208, %s19, 3
        %s210 = smul.addr %s209, 128
        %s211 = smul.addr %s210, 4
        %s212 = scalar_lea.vmem %s1, %s211
      $region28: #{wgan_g_forward.11} parent=19 // pred_fallthru
        _
    $region20: #{wgan_g_forward.11} parent=5 // pred_fallthru
      _
    %p213 = scmp.le.s32.totalorder 1, %s12
    %p214 = scmp.lt.s32.totalorder %s12, 5
    %p215 = pnand %p213, %p214
    %p216 = pneg %p215
    // Predicated region
    $region29: #{wgan_g_forward.11} parent=5 // pred_check
      _
    $region30: #{wgan_g_forward.11} parent=5 // pred_check_branch
      %218 = sbr.rel (%p215) target = $region32
    $region31: #{wgan_g_forward.11} parent=5 // pred_region
      %s219 = ssub.s32 %s12, 1
      %s220 = smul.u32 7, %s22
      %p221 = scmp.lt.s32.totalorder %s21, 3
      %s222 = scalar_select %p221, %s21, 3
      %p223 = scmp.lt.s32.totalorder %s220, 6
      %s224 = scalar_select %p223, %s220, 6
      %s225 = smul.addr %s224, 8
      %s226 = smul.addr %s222, 56
      %s227 = sadd.s32 %s225, %s226
      %s228 = smul.addr %s227, 4
      %s229 = scalar_lea.vmem %s0, %s228
      %p230 = pneg %p52
      %p231 = pneg %p49
      %p232 = scmp.lt.s32.totalorder %s21, 3
      %s233 = scalar_select %p232, %s21, 3
      %s234 = smul.addr %s233, 128
      %s235 = smul.addr %s234, 4
      %s236 = scalar_lea.vmem %s1, %s235
      %p237 = pneg %p78
      %p238 = pneg %p75
      %p239 = pneg %p99
      %p240 = pneg %p96
      %p241 = pneg %p127
      %p242 = pneg %p124
      %s243 = smul.u32 7, %s22
      %p244 = scmp.lt.s32.totalorder %s21, 3
      %s245 = scalar_select %p244, %s21, 3
      %p246 = scmp.lt.s32.totalorder %s243, 6
      %s247 = scalar_select %p246, %s243, 6
      %s248 = smul.addr %s245, 7
      %s249 = sadd.s32 %s247, %s248
      %s250 = smul.addr %s249, 8
      %s251 = scalar_lea.vmem %s3, %s250
      %p252 = pneg %p148
      %p253 = pneg %p145
      %p254 = pneg %p169
      %p255 = pneg %p166
      %s256 = smul.u32 7, %s22
      %p257 = scmp.lt.s32.totalorder %s21, 3
      %s258 = scalar_select %p257, %s21, 3
      %p259 = scmp.lt.s32.totalorder %s256, 6
      %s260 = scalar_select %p259, %s256, 6
      %s261 = smul.addr %s260, 8
      %s262 = smul.addr %s258, 56
      %s263 = sadd.s32 %s261, %s262
      %s264 = smul.addr %s263, 4
      %s265 = scalar_lea.vmem %s0, %s264
      %s266 = smul.u32 7, %s22
      %p267 = scmp.lt.s32.totalorder %s21, 3
      %s268 = scalar_select %p267, %s21, 3
      %s269 = smul.addr %s268, 128
      %s270 = smul.addr %s269, 4
      %s271 = scalar_lea.vmem %s1, %s270
      %s272 = smul.u32 7, %s22
      %p273 = scmp.lt.s32.totalorder %s21, 3
      %s274 = scalar_select %p273, %s21, 3
      %p275 = scmp.lt.s32.totalorder %s272, 6
      %s276 = scalar_select %p275, %s272, 6
      %s277 = smul.addr %s274, 7
      %s278 = sadd.s32 %s276, %s277
      %s279 = smul.addr %s278, 8
      %s280 = scalar_lea.vmem %s3, %s279
      %s281 = smul.u32 7, %s22
      %p283 = scmp.eq.s32.totalorder %s21, 0
      %p284 = scmp.eq.s32.totalorder %s22, 0
      %p285 = pnand %p283, %p284
      %p286 = pneg %p285
      // Predicated region
      $region33: #{wgan_g_forward.11} parent=31 // pred_check
        _
      $region34: #{wgan_g_forward.11} parent=31 // pred_check_branch
        %288 = sbr.rel (%p285) target = $region36
      $region35: #{wgan_g_forward.11} parent=31 // pred_region
        %289 = vst [vmem:[%s4] sm:$0x1] 0.0
        %290 = vst [vmem:[%s5] sm:$0x1] 0.0
      $region36: #{wgan_g_forward.11} parent=31 // pred_fallthru
        _
      %v291 = vld [vmem:[%s265] sm:$0xff]
      %v292 = vld [vmem:[%s265 + $0x8] sm:$0xff]
      %v293 = vld [vmem:[%s265 + $0x10] sm:$0xff]
      %v294 = vld [vmem:[%s265 + $0x18] sm:$0xff]
      %v295 = vld [vmem:[%s265 + $0x20] sm:$0xff]
      %v296 = vld [vmem:[%s265 + $0x28] sm:$0xff]
      %v297 = vld [vmem:[%s265 + $0x30] sm:$0xff]
      %v298 = vld [vmem:[%s265 + $0x38] sm:$0xff]
      %v299 = vld [vmem:[%s265 + $0x40] sm:$0xff]
      %v300 = vld [vmem:[%s265 + $0x48] sm:$0xff]
      %v301 = vld [vmem:[%s265 + $0x50] sm:$0xff]
      %v302 = vld [vmem:[%s265 + $0x58] sm:$0xff]
      %v303 = vld [vmem:[%s265 + $0x60] sm:$0xff]
      %v304 = vld [vmem:[%s265 + $0x68] sm:$0xff]
      %v305 = vld [vmem:[%s265 + $0x70] sm:$0xff]
      %v306 = vld [vmem:[%s265 + $0x78] sm:$0xff]
      %v307 = vld [vmem:[%s265 + $0x80] sm:$0xff]
      %v308 = vld [vmem:[%s265 + $0x88] sm:$0xff]
      %v309 = vld [vmem:[%s265 + $0x90] sm:$0xff]
      %v310 = vld [vmem:[%s265 + $0x98] sm:$0xff]
      %v311 = vld [vmem:[%s265 + $0xa0] sm:$0xff]
      %v312 = vld [vmem:[%s265 + $0xa8] sm:$0xff]
      %v313 = vld [vmem:[%s265 + $0xb0] sm:$0xff]
      %v314 = vld [vmem:[%s265 + $0xb8] sm:$0xff]
      %v315 = vld [vmem:[%s265 + $0xc0] sm:$0x77]
      %v316 = vld [vmem:[%s265 + $0xc8] sm:$0x77]
      %v317 = vld [vmem:[%s265 + $0xd0] sm:$0x77]
      %v318 = vld [vmem:[%s265 + $0xd8] sm:$0x77]
      %v319 = vld [vmem:[%s271] sm:$0xf]
      %v320 = vld [vmem:[%s271 + $0x4] sm:$0xf]
      %v321 = vld [vmem:[%s271 + $0x8] sm:$0xf]
      %v322 = vld [vmem:[%s271 + $0xc] sm:$0xf]
      %v323 = vld [vmem:[%s271 + $0x10] sm:$0xf]
      %v324 = vld [vmem:[%s271 + $0x14] sm:$0xf]
      %v325 = vld [vmem:[%s271 + $0x18] sm:$0xf]
      %v326 = vld [vmem:[%s271 + $0x1c] sm:$0xf]
      %v327 = vld [vmem:[%s271 + $0x20] sm:$0xf]
      %v328 = vld [vmem:[%s271 + $0x24] sm:$0xf]
      %v329 = vld [vmem:[%s271 + $0x28] sm:$0xf]
      %v330 = vld [vmem:[%s271 + $0x2c] sm:$0xf]
      %v331 = vld [vmem:[%s271 + $0x30] sm:$0xf]
      %v332 = vld [vmem:[%s271 + $0x34] sm:$0xf]
      %v333 = vld [vmem:[%s271 + $0x38] sm:$0xf]
      %v334 = vld [vmem:[%s271 + $0x3c] sm:$0xf]
      %v335 = vld [vmem:[%s271 + $0x40] sm:$0xf]
      %v336 = vld [vmem:[%s271 + $0x44] sm:$0xf]
      %v337 = vld [vmem:[%s271 + $0x48] sm:$0xf]
      %v338 = vld [vmem:[%s271 + $0x4c] sm:$0xf]
      %v339 = vld [vmem:[%s271 + $0x50] sm:$0xf]
      %v340 = vld [vmem:[%s271 + $0x54] sm:$0xf]
      %v341 = vld [vmem:[%s271 + $0x58] sm:$0xf]
      %v342 = vld [vmem:[%s271 + $0x5c] sm:$0xf]
      %v343 = vld [vmem:[%s271 + $0x60] sm:$0xf]
      %v344 = vld [vmem:[%s271 + $0x64] sm:$0xf]
      %v345 = vld [vmem:[%s271 + $0x68] sm:$0xf]
      %v346 = vld [vmem:[%s271 + $0x6c] sm:$0xf]
      %v347 = vld [vmem:[%s271 + $0x70] sm:$0xf]
      %v348 = vld [vmem:[%s271 + $0x74] sm:$0xf]
      %v349 = vld [vmem:[%s271 + $0x78] sm:$0xf]
      %v350 = vld [vmem:[%s271 + $0x7c] sm:$0xf]
      %v351 = vld [vmem:[%s271 + $0x80] sm:$0xf]
      %v352 = vld [vmem:[%s271 + $0x84] sm:$0xf]
      %v353 = vld [vmem:[%s271 + $0x88] sm:$0xf]
      %v354 = vld [vmem:[%s271 + $0x8c] sm:$0xf]
      %v355 = vld [vmem:[%s271 + $0x90] sm:$0xf]
      %v356 = vld [vmem:[%s271 + $0x94] sm:$0xf]
      %v357 = vld [vmem:[%s271 + $0x98] sm:$0xf]
      %v358 = vld [vmem:[%s271 + $0x9c] sm:$0xf]
      %v359 = vld [vmem:[%s271 + $0xa0] sm:$0xf]
      %v360 = vld [vmem:[%s271 + $0xa4] sm:$0xf]
      %v361 = vld [vmem:[%s271 + $0xa8] sm:$0xf]
      %v362 = vld [vmem:[%s271 + $0xac] sm:$0xf]
      %v363 = vld [vmem:[%s271 + $0xb0] sm:$0xf]
      %v364 = vld [vmem:[%s271 + $0xb4] sm:$0xf]
      %v365 = vld [vmem:[%s271 + $0xb8] sm:$0xf]
      %v366 = vld [vmem:[%s271 + $0xbc] sm:$0xf]
      %v367 = vld [vmem:[%s271 + $0xc0] sm:$0xf]
      %v368 = vld [vmem:[%s271 + $0xc4] sm:$0xf]
      %v369 = vld [vmem:[%s271 + $0xc8] sm:$0xf]
      %v370 = vld [vmem:[%s271 + $0xcc] sm:$0xf]
      %v371 = vld [vmem:[%s271 + $0xd0] sm:$0xf]
      %v372 = vld [vmem:[%s271 + $0xd4] sm:$0xf]
      %v373 = vld [vmem:[%s271 + $0xd8] sm:$0xf]
      %v374 = vld [vmem:[%s271 + $0xdc] sm:$0xf]
      %v375 = vld [vmem:[%s271 + $0xe0] sm:$0xf]
      %v376 = vld [vmem:[%s271 + $0xe4] sm:$0xf]
      %v377 = vld [vmem:[%s271 + $0xe8] sm:$0xf]
      %v378 = vld [vmem:[%s271 + $0xec] sm:$0xf]
      %v379 = vld [vmem:[%s271 + $0xf0] sm:$0xf]
      %v380 = vld [vmem:[%s271 + $0xf4] sm:$0xf]
      %v381 = vld [vmem:[%s271 + $0xf8] sm:$0xf]
      %v382 = vld [vmem:[%s271 + $0xfc] sm:$0xf]
      %v383 = vld [vmem:[%s271 + $0x100] sm:$0xf]
      %v384 = vld [vmem:[%s271 + $0x104] sm:$0xf]
      %v385 = vld [vmem:[%s271 + $0x108] sm:$0xf]
      %v386 = vld [vmem:[%s271 + $0x10c] sm:$0xf]
      %v387 = vld [vmem:[%s271 + $0x110] sm:$0xf]
      %v388 = vld [vmem:[%s271 + $0x114] sm:$0xf]
      %v389 = vld [vmem:[%s271 + $0x118] sm:$0xf]
      %v390 = vld [vmem:[%s271 + $0x11c] sm:$0xf]
      %v391 = vld [vmem:[%s271 + $0x120] sm:$0xf]
      %v392 = vld [vmem:[%s271 + $0x124] sm:$0xf]
      %v393 = vld [vmem:[%s271 + $0x128] sm:$0xf]
      %v394 = vld [vmem:[%s271 + $0x12c] sm:$0xf]
      %v395 = vld [vmem:[%s271 + $0x130] sm:$0xf]
      %v396 = vld [vmem:[%s271 + $0x134] sm:$0xf]
      %v397 = vld [vmem:[%s271 + $0x138] sm:$0xf]
      %v398 = vld [vmem:[%s271 + $0x13c] sm:$0xf]
      %v399 = vld [vmem:[%s271 + $0x140] sm:$0xf]
      %v400 = vld [vmem:[%s271 + $0x144] sm:$0xf]
      %v401 = vld [vmem:[%s271 + $0x148] sm:$0xf]
      %v402 = vld [vmem:[%s271 + $0x14c] sm:$0xf]
      %v403 = vld [vmem:[%s271 + $0x150] sm:$0xf]
      %v404 = vld [vmem:[%s271 + $0x154] sm:$0xf]
      %v405 = vld [vmem:[%s271 + $0x158] sm:$0xf]
      %v406 = vld [vmem:[%s271 + $0x15c] sm:$0xf]
      %v407 = vld [vmem:[%s271 + $0x160] sm:$0xf]
      %v408 = vld [vmem:[%s271 + $0x164] sm:$0xf]
      %v409 = vld [vmem:[%s271 + $0x168] sm:$0xf]
      %v410 = vld [vmem:[%s271 + $0x16c] sm:$0xf]
      %v411 = vld [vmem:[%s271 + $0x170] sm:$0xf]
      %v412 = vld [vmem:[%s271 + $0x174] sm:$0xf]
      %v413 = vld [vmem:[%s271 + $0x178] sm:$0xf]
      %v414 = vld [vmem:[%s271 + $0x17c] sm:$0xf]
      %v415 = vld [vmem:[%s271 + $0x180] sm:$0xf]
      %v416 = vld [vmem:[%s271 + $0x184] sm:$0xf]
      %v417 = vld [vmem:[%s271 + $0x188] sm:$0xf]
      %v418 = vld [vmem:[%s271 + $0x18c] sm:$0xf]
      %v419 = vld [vmem:[%s271 + $0x190] sm:$0xf]
      %v420 = vld [vmem:[%s271 + $0x194] sm:$0xf]
      %v421 = vld [vmem:[%s271 + $0x198] sm:$0xf]
      %v422 = vld [vmem:[%s271 + $0x19c] sm:$0xf]
      %v423 = vld [vmem:[%s271 + $0x1a0] sm:$0xf]
      %v424 = vld [vmem:[%s271 + $0x1a4] sm:$0xf]
      %v425 = vld [vmem:[%s271 + $0x1a8] sm:$0xf]
      %v426 = vld [vmem:[%s271 + $0x1ac] sm:$0xf]
      %v427 = vld [vmem:[%s271 + $0x1b0] sm:$0xf]
      %v428 = vld [vmem:[%s271 + $0x1b4] sm:$0xf]
      %v429 = vld [vmem:[%s271 + $0x1b8] sm:$0xf]
      %v430 = vld [vmem:[%s271 + $0x1bc] sm:$0xf]
      %v431 = vld [vmem:[%s271 + $0x1c0] sm:$0xf]
      %v432 = vld [vmem:[%s271 + $0x1c4] sm:$0xf]
      %v433 = vld [vmem:[%s271 + $0x1c8] sm:$0xf]
      %v434 = vld [vmem:[%s271 + $0x1cc] sm:$0xf]
      %v435 = vld [vmem:[%s271 + $0x1d0] sm:$0xf]
      %v436 = vld [vmem:[%s271 + $0x1d4] sm:$0xf]
      %v437 = vld [vmem:[%s271 + $0x1d8] sm:$0xf]
      %v438 = vld [vmem:[%s271 + $0x1dc] sm:$0xf]
      %v439 = vld [vmem:[%s271 + $0x1e0] sm:$0xf]
      %v440 = vld [vmem:[%s271 + $0x1e4] sm:$0xf]
      %v441 = vld [vmem:[%s271 + $0x1e8] sm:$0xf]
      %v442 = vld [vmem:[%s271 + $0x1ec] sm:$0xf]
      %v443 = vld [vmem:[%s271 + $0x1f0] sm:$0xf]
      %v444 = vld [vmem:[%s271 + $0x1f4] sm:$0xf]
      %v445 = vld [vmem:[%s271 + $0x1f8] sm:$0xf]
      %v446 = vld [vmem:[%s271 + $0x1fc] sm:$0xf]
      %v447 = vld [vmem:[%s2] sm:$0x1]
      %v449 = vlaneseq
      %v450 = vshrl.u32 %v449, 7
      %v451 = vsub.s32 0, %v450
      %v452 = vrot.slane %v447, %v451
      %v482 = vunpack.c.l.b16 %v291
      %v483 = vunpack.c.h.b16 %v291
      %v484 = vunpack.c.l.b16 %v292
      %v485 = vunpack.c.h.b16 %v292
      %v486 = vunpack.c.l.b16 %v293
      %v487 = vunpack.c.h.b16 %v293
      %v488 = vunpack.c.l.b16 %v294
      %v489 = vunpack.c.h.b16 %v294
      %v490 = vunpack.c.l.b16 %v295
      %v491 = vunpack.c.h.b16 %v295
      %v492 = vunpack.c.l.b16 %v296
      %v493 = vunpack.c.h.b16 %v296
      %v494 = vunpack.c.l.b16 %v297
      %v495 = vunpack.c.h.b16 %v297
      %v496 = vunpack.c.l.b16 %v298
      %v497 = vunpack.c.h.b16 %v298
      %v498 = vunpack.c.l.b16 %v299
      %v499 = vunpack.c.h.b16 %v299
      %v500 = vunpack.c.l.b16 %v300
      %v501 = vunpack.c.h.b16 %v300
      %v502 = vunpack.c.l.b16 %v301
      %v503 = vunpack.c.h.b16 %v301
      %v504 = vunpack.c.l.b16 %v302
      %v505 = vunpack.c.h.b16 %v302
      %v506 = vunpack.c.l.b16 %v303
      %v507 = vunpack.c.h.b16 %v303
      %v508 = vunpack.c.l.b16 %v304
      %v509 = vunpack.c.h.b16 %v304
      %v510 = vunpack.c.l.b16 %v305
      %v511 = vunpack.c.h.b16 %v305
      %v512 = vunpack.c.l.b16 %v306
      %v513 = vunpack.c.h.b16 %v306
      %v514 = vunpack.c.l.b16 %v307
      %v515 = vunpack.c.h.b16 %v307
      %v516 = vunpack.c.l.b16 %v308
      %v517 = vunpack.c.h.b16 %v308
      %v518 = vunpack.c.l.b16 %v309
      %v519 = vunpack.c.h.b16 %v309
      %v520 = vunpack.c.l.b16 %v310
      %v521 = vunpack.c.h.b16 %v310
      %v522 = vunpack.c.l.b16 %v311
      %v523 = vunpack.c.h.b16 %v311
      %v524 = vunpack.c.l.b16 %v312
      %v525 = vunpack.c.h.b16 %v312
      %v526 = vunpack.c.l.b16 %v313
      %v527 = vunpack.c.h.b16 %v313
      %v528 = vunpack.c.l.b16 %v314
      %v529 = vunpack.c.h.b16 %v314
      %v530 = vunpack.c.l.b16 %v315
      %v531 = vunpack.c.h.b16 %v315
      %v532 = vunpack.c.l.b16 %v316
      %v533 = vunpack.c.h.b16 %v316
      %v534 = vunpack.c.l.b16 %v317
      %v535 = vunpack.c.h.b16 %v317
      %v536 = vunpack.c.l.b16 %v318
      %v537 = vunpack.c.h.b16 %v318
      %v538 = vpack.c.b16 %v490, %v482
      %v539 = vpack.c.b16 %v491, %v483
      %v540 = vpack.c.b16 %v492, %v484
      %v541 = vpack.c.b16 %v493, %v485
      %v542 = vpack.c.b16 %v494, %v486
      %v543 = vpack.c.b16 %v495, %v487
      %v544 = vpack.c.b16 %v496, %v488
      %v545 = vpack.c.b16 %v497, %v489
      %v546 = vpack.c.b16 %v506, %v498
      %v547 = vpack.c.b16 %v507, %v499
      %v548 = vpack.c.b16 %v508, %v500
      %v549 = vpack.c.b16 %v509, %v501
      %v550 = vpack.c.b16 %v510, %v502
      %v551 = vpack.c.b16 %v511, %v503
      %v552 = vpack.c.b16 %v512, %v504
      %v553 = vpack.c.b16 %v513, %v505
      %v554 = vpack.c.b16 %v522, %v514
      %v555 = vpack.c.b16 %v523, %v515
      %v556 = vpack.c.b16 %v524, %v516
      %v557 = vpack.c.b16 %v525, %v517
      %v558 = vpack.c.b16 %v526, %v518
      %v559 = vpack.c.b16 %v527, %v519
      %v560 = vpack.c.b16 %v528, %v520
      %v561 = vpack.c.b16 %v529, %v521
      %v562 = vpack.c.b16 %v530, %v530
      %v563 = vpack.c.b16 %v531, %v531
      %v564 = vpack.c.b16 %v532, %v532
      %v565 = vpack.c.b16 %v533, %v533
      %v566 = vpack.c.b16 %v534, %v534
      %v567 = vpack.c.b16 %v535, %v535
      %v568 = vpack.c.b16 %v536, %v536
      %v569 = vpack.c.b16 %v537, %v537
      %v730 = vunpack.c.l.b16 %v319
      %v731 = vunpack.c.l.b16 %v320
      %v732 = vunpack.c.l.b16 %v321
      %v733 = vunpack.c.l.b16 %v322
      %v734 = vunpack.c.l.b16 %v323
      %v735 = vunpack.c.l.b16 %v324
      %v736 = vunpack.c.l.b16 %v325
      %v737 = vunpack.c.l.b16 %v326
      %v738 = vunpack.c.l.b16 %v327
      %v739 = vunpack.c.l.b16 %v328
      %v740 = vunpack.c.l.b16 %v329
      %v741 = vunpack.c.l.b16 %v330
      %v742 = vunpack.c.l.b16 %v331
      %v743 = vunpack.c.l.b16 %v332
      %v744 = vunpack.c.l.b16 %v333
      %v745 = vunpack.c.l.b16 %v334
      %v746 = vunpack.c.l.b16 %v335
      %v747 = vunpack.c.l.b16 %v336
      %v748 = vunpack.c.l.b16 %v337
      %v749 = vunpack.c.l.b16 %v338
      %v750 = vunpack.c.l.b16 %v339
      %v751 = vunpack.c.l.b16 %v340
      %v752 = vunpack.c.l.b16 %v341
      %v753 = vunpack.c.l.b16 %v342
      %v754 = vunpack.c.l.b16 %v343
      %v755 = vunpack.c.l.b16 %v344
      %v756 = vunpack.c.l.b16 %v345
      %v757 = vunpack.c.l.b16 %v346
      %v758 = vunpack.c.l.b16 %v347
      %v759 = vunpack.c.l.b16 %v348
      %v760 = vunpack.c.l.b16 %v349
      %v761 = vunpack.c.l.b16 %v350
      %v762 = vunpack.c.l.b16 %v351
      %v763 = vunpack.c.l.b16 %v352
      %v764 = vunpack.c.l.b16 %v353
      %v765 = vunpack.c.l.b16 %v354
      %v766 = vunpack.c.l.b16 %v355
      %v767 = vunpack.c.l.b16 %v356
      %v768 = vunpack.c.l.b16 %v357
      %v769 = vunpack.c.l.b16 %v358
      %v770 = vunpack.c.l.b16 %v359
      %v771 = vunpack.c.l.b16 %v360
      %v772 = vunpack.c.l.b16 %v361
      %v773 = vunpack.c.l.b16 %v362
      %v774 = vunpack.c.l.b16 %v363
      %v775 = vunpack.c.l.b16 %v364
      %v776 = vunpack.c.l.b16 %v365
      %v777 = vunpack.c.l.b16 %v366
      %v778 = vunpack.c.l.b16 %v367
      %v779 = vunpack.c.l.b16 %v368
      %v780 = vunpack.c.l.b16 %v369
      %v781 = vunpack.c.l.b16 %v370
      %v782 = vunpack.c.l.b16 %v371
      %v783 = vunpack.c.l.b16 %v372
      %v784 = vunpack.c.l.b16 %v373
      %v785 = vunpack.c.l.b16 %v374
      %v786 = vunpack.c.l.b16 %v375
      %v787 = vunpack.c.l.b16 %v376
      %v788 = vunpack.c.l.b16 %v377
      %v789 = vunpack.c.l.b16 %v378
      %v790 = vunpack.c.l.b16 %v379
      %v791 = vunpack.c.l.b16 %v380
      %v792 = vunpack.c.l.b16 %v381
      %v793 = vunpack.c.l.b16 %v382
      %v794 = vunpack.c.l.b16 %v383
      %v795 = vunpack.c.l.b16 %v384
      %v796 = vunpack.c.l.b16 %v385
      %v797 = vunpack.c.l.b16 %v386
      %v798 = vunpack.c.l.b16 %v387
      %v799 = vunpack.c.l.b16 %v388
      %v800 = vunpack.c.l.b16 %v389
      %v801 = vunpack.c.l.b16 %v390
      %v802 = vunpack.c.l.b16 %v391
      %v803 = vunpack.c.l.b16 %v392
      %v804 = vunpack.c.l.b16 %v393
      %v805 = vunpack.c.l.b16 %v394
      %v806 = vunpack.c.l.b16 %v395
      %v807 = vunpack.c.l.b16 %v396
      %v808 = vunpack.c.l.b16 %v397
      %v809 = vunpack.c.l.b16 %v398
      %v810 = vunpack.c.l.b16 %v399
      %v811 = vunpack.c.l.b16 %v400
      %v812 = vunpack.c.l.b16 %v401
      %v813 = vunpack.c.l.b16 %v402
      %v814 = vunpack.c.l.b16 %v403
      %v815 = vunpack.c.l.b16 %v404
      %v816 = vunpack.c.l.b16 %v405
      %v817 = vunpack.c.l.b16 %v406
      %v818 = vunpack.c.l.b16 %v407
      %v819 = vunpack.c.l.b16 %v408
      %v820 = vunpack.c.l.b16 %v409
      %v821 = vunpack.c.l.b16 %v410
      %v822 = vunpack.c.l.b16 %v411
      %v823 = vunpack.c.l.b16 %v412
      %v824 = vunpack.c.l.b16 %v413
      %v825 = vunpack.c.l.b16 %v414
      %v826 = vunpack.c.l.b16 %v415
      %v827 = vunpack.c.l.b16 %v416
      %v828 = vunpack.c.l.b16 %v417
      %v829 = vunpack.c.l.b16 %v418
      %v830 = vunpack.c.l.b16 %v419
      %v831 = vunpack.c.l.b16 %v420
      %v832 = vunpack.c.l.b16 %v421
      %v833 = vunpack.c.l.b16 %v422
      %v834 = vunpack.c.l.b16 %v423
      %v835 = vunpack.c.l.b16 %v424
      %v836 = vunpack.c.l.b16 %v425
      %v837 = vunpack.c.l.b16 %v426
      %v838 = vunpack.c.l.b16 %v427
      %v839 = vunpack.c.l.b16 %v428
      %v840 = vunpack.c.l.b16 %v429
      %v841 = vunpack.c.l.b16 %v430
      %v842 = vunpack.c.l.b16 %v431
      %v843 = vunpack.c.l.b16 %v432
      %v844 = vunpack.c.l.b16 %v433
      %v845 = vunpack.c.l.b16 %v434
      %v846 = vunpack.c.l.b16 %v435
      %v847 = vunpack.c.l.b16 %v436
      %v848 = vunpack.c.l.b16 %v437
      %v849 = vunpack.c.l.b16 %v438
      %v850 = vunpack.c.l.b16 %v439
      %v851 = vunpack.c.l.b16 %v440
      %v852 = vunpack.c.l.b16 %v441
      %v853 = vunpack.c.l.b16 %v442
      %v854 = vunpack.c.l.b16 %v443
      %v855 = vunpack.c.l.b16 %v444
      %v856 = vunpack.c.l.b16 %v445
      %v857 = vunpack.c.l.b16 %v446
      %v858 = vpack.c.b16 %v731, %v730
      %v859 = vpack.c.b16 %v733, %v732
      %v860 = vpack.c.b16 %v735, %v734
      %v861 = vpack.c.b16 %v737, %v736
      %v862 = vpack.c.b16 %v739, %v738
      %v863 = vpack.c.b16 %v741, %v740
      %v864 = vpack.c.b16 %v743, %v742
      %v865 = vpack.c.b16 %v745, %v744
      %v866 = vpack.c.b16 %v747, %v746
      %v867 = vpack.c.b16 %v749, %v748
      %v868 = vpack.c.b16 %v751, %v750
      %v869 = vpack.c.b16 %v753, %v752
      %v870 = vpack.c.b16 %v755, %v754
      %v871 = vpack.c.b16 %v757, %v756
      %v872 = vpack.c.b16 %v759, %v758
      %v873 = vpack.c.b16 %v761, %v760
      %v874 = vpack.c.b16 %v763, %v762
      %v875 = vpack.c.b16 %v765, %v764
      %v876 = vpack.c.b16 %v767, %v766
      %v877 = vpack.c.b16 %v769, %v768
      %v878 = vpack.c.b16 %v771, %v770
      %v879 = vpack.c.b16 %v773, %v772
      %v880 = vpack.c.b16 %v775, %v774
      %v881 = vpack.c.b16 %v777, %v776
      %v882 = vpack.c.b16 %v779, %v778
      %v883 = vpack.c.b16 %v781, %v780
      %v884 = vpack.c.b16 %v783, %v782
      %v885 = vpack.c.b16 %v785, %v784
      %v886 = vpack.c.b16 %v787, %v786
      %v887 = vpack.c.b16 %v789, %v788
      %v888 = vpack.c.b16 %v791, %v790
      %v889 = vpack.c.b16 %v793, %v792
      %v890 = vpack.c.b16 %v795, %v794
      %v891 = vpack.c.b16 %v797, %v796
      %v892 = vpack.c.b16 %v799, %v798
      %v893 = vpack.c.b16 %v801, %v800
      %v894 = vpack.c.b16 %v803, %v802
      %v895 = vpack.c.b16 %v805, %v804
      %v896 = vpack.c.b16 %v807, %v806
      %v897 = vpack.c.b16 %v809, %v808
      %v898 = vpack.c.b16 %v811, %v810
      %v899 = vpack.c.b16 %v813, %v812
      %v900 = vpack.c.b16 %v815, %v814
      %v901 = vpack.c.b16 %v817, %v816
      %v902 = vpack.c.b16 %v819, %v818
      %v903 = vpack.c.b16 %v821, %v820
      %v904 = vpack.c.b16 %v823, %v822
      %v905 = vpack.c.b16 %v825, %v824
      %v906 = vpack.c.b16 %v827, %v826
      %v907 = vpack.c.b16 %v829, %v828
      %v908 = vpack.c.b16 %v831, %v830
      %v909 = vpack.c.b16 %v833, %v832
      %v910 = vpack.c.b16 %v835, %v834
      %v911 = vpack.c.b16 %v837, %v836
      %v912 = vpack.c.b16 %v839, %v838
      %v913 = vpack.c.b16 %v841, %v840
      %v914 = vpack.c.b16 %v843, %v842
      %v915 = vpack.c.b16 %v845, %v844
      %v916 = vpack.c.b16 %v847, %v846
      %v917 = vpack.c.b16 %v849, %v848
      %v918 = vpack.c.b16 %v851, %v850
      %v919 = vpack.c.b16 %v853, %v852
      %v920 = vpack.c.b16 %v855, %v854
      %v921 = vpack.c.b16 %v857, %v856
      %986 = vmatprep.subr.bf16.mxu0 0
      %987 = vmatpush1.bf16.msra.mxu0 %v858
      %988 = vmatprep.subr.bf16.mxu0 0
      %989 = vmatpush1.bf16.msra.mxu0 %v859
      %990 = vmatprep.subr.bf16.mxu0 0
      %991 = vmatpush1.bf16.msra.mxu0 %v860
      %992 = vmatprep.subr.bf16.mxu0 0
      %993 = vmatpush1.bf16.msra.mxu0 %v861
      %994 = vmatprep.subr.bf16.mxu0 0
      %995 = vmatpush1.bf16.msra.mxu0 %v862
      %996 = vmatprep.subr.bf16.mxu0 0
      %997 = vmatpush1.bf16.msra.mxu0 %v863
      %998 = vmatprep.subr.bf16.mxu0 0
      %999 = vmatpush1.bf16.msra.mxu0 %v864
      %1000 = vmatprep.subr.bf16.mxu0 0
      %1001 = vmatpush1.bf16.msra.mxu0 %v865
      %1002 = vmatprep.subr.bf16.mxu0 0
      %1003 = vmatpush1.bf16.msra.mxu0 %v866
      %1004 = vmatprep.subr.bf16.mxu0 0
      %1005 = vmatpush1.bf16.msra.mxu0 %v867
      %1006 = vmatprep.subr.bf16.mxu0 0
      %1007 = vmatpush1.bf16.msra.mxu0 %v868
      %1008 = vmatprep.subr.bf16.mxu0 0
      %1009 = vmatpush1.bf16.msra.mxu0 %v869
      %1010 = vmatprep.subr.bf16.mxu0 0
      %1011 = vmatpush1.bf16.msra.mxu0 %v870
      %1012 = vmatprep.subr.bf16.mxu0 0
      %1013 = vmatpush1.bf16.msra.mxu0 %v871
      %1014 = vmatprep.subr.bf16.mxu0 0
      %1015 = vmatpush1.bf16.msra.mxu0 %v872
      %1016 = vmatprep.subr.bf16.mxu0 0
      %1017 = vmatpush1.bf16.msra.mxu0 %v873
      %1018 = vmatprep.mubr.bf16.mxu0 %v539
      %1019 = vmatmul.mubr.bf16.gmra.mrb[0].mxu0 %v538
      %v1020 = vpop.f32.mrb[0].mxu0
      %v1021 = vadd.f32 %v452, %v1020
      %v1022 = vpop.f32.mrb[0].mxu0
      %v1023 = vpop.f32.mrb[0].mxu0
      %v1024 = vadd.f32 %v452, %v1023
      %v1025 = vpop.f32.mrb[0].mxu0
      %1026 = vmatprep.mubr.bf16.mxu0 %v547
      %1027 = vmatmul.mubr.bf16.gmra.mrb[0].mxu0 %v546
      %v1028 = vpop.f32.mrb[0].mxu0
      %v1029 = vadd.f32 %v452, %v1028
      %v1030 = vpop.f32.mrb[0].mxu0
      %v1031 = vpop.f32.mrb[0].mxu0
      %v1032 = vadd.f32 %v452, %v1031
      %v1033 = vpop.f32.mrb[0].mxu0
      %1034 = vmatprep.mubr.bf16.mxu0 %v555
      %1035 = vmatmul.mubr.bf16.gmra.mrb[0].mxu0 %v554
      %v1036 = vpop.f32.mrb[0].mxu0
      %v1037 = vadd.f32 %v452, %v1036
      %v1038 = vpop.f32.mrb[0].mxu0
      %v1039 = vpop.f32.mrb[0].mxu0
      %v1040 = vadd.f32 %v452, %v1039
      %v1041 = vpop.f32.mrb[0].mxu0
      %1042 = vmatprep.mubr.bf16.mxu0 %v563
      %1043 = vmatmul.mubr.bf16.gmra.mrb[0].mxu0 %v562
      %v1044 = vpop.f32.mrb[0].mxu0
      %v1045 = vadd.f32 %v452, %v1044
      %v1046 = vpop.f32.mrb[0].mxu0
      %v1047 = vpop.f32.mrb[0].mxu0
      %v1048 = vpop.f32.mrb[0].mxu0
      %1049 = vdwg.mxu0
      %1050 = vmatprep.subr.bf16.mxu0 0
      %1051 = vmatpush1.bf16.msra.mxu0 %v874
      %1052 = vmatprep.subr.bf16.mxu0 0
      %1053 = vmatpush1.bf16.msra.mxu0 %v875
      %1054 = vmatprep.subr.bf16.mxu0 0
      %1055 = vmatpush1.bf16.msra.mxu0 %v876
      %1056 = vmatprep.subr.bf16.mxu0 0
      %1057 = vmatpush1.bf16.msra.mxu0 %v877
      %1058 = vmatprep.subr.bf16.mxu0 0
      %1059 = vmatpush1.bf16.msra.mxu0 %v878
      %1060 = vmatprep.subr.bf16.mxu0 0
      %1061 = vmatpush1.bf16.msra.mxu0 %v879
      %1062 = vmatprep.subr.bf16.mxu0 0
      %1063 = vmatpush1.bf16.msra.mxu0 %v880
      %1064 = vmatprep.subr.bf16.mxu0 0
      %1065 = vmatpush1.bf16.msra.mxu0 %v881
      %1066 = vmatprep.subr.bf16.mxu0 0
      %1067 = vmatpush1.bf16.msra.mxu0 %v882
      %1068 = vmatprep.subr.bf16.mxu0 0
      %1069 = vmatpush1.bf16.msra.mxu0 %v883
      %1070 = vmatprep.subr.bf16.mxu0 0
      %1071 = vmatpush1.bf16.msra.mxu0 %v884
      %1072 = vmatprep.subr.bf16.mxu0 0
      %1073 = vmatpush1.bf16.msra.mxu0 %v885
      %1074 = vmatprep.subr.bf16.mxu0 0
      %1075 = vmatpush1.bf16.msra.mxu0 %v886
      %1076 = vmatprep.subr.bf16.mxu0 0
      %1077 = vmatpush1.bf16.msra.mxu0 %v887
      %1078 = vmatprep.subr.bf16.mxu0 0
      %1079 = vmatpush1.bf16.msra.mxu0 %v888
      %1080 = vmatprep.subr.bf16.mxu0 0
      %1081 = vmatpush1.bf16.msra.mxu0 %v889
      %1082 = vmatprep.mubr.bf16.mxu0 %v541
      %1083 = vmatmul.mubr.bf16.gmra.mrb[0].mxu0 %v540
      %v1084 = vpop.f32.mrb[0].mxu0
      %v1085 = vadd.f32 %v1021, %v1084
      %v1086 = vpop.f32.mrb[0].mxu0
      %v1087 = vpop.f32.mrb[0].mxu0
      %v1088 = vadd.f32 %v1024, %v1087
      %v1089 = vpop.f32.mrb[0].mxu0
      %1090 = vmatprep.mubr.bf16.mxu0 %v549
      %1091 = vmatmul.mubr.bf16.gmra.mrb[0].mxu0 %v548
      %v1092 = vpop.f32.mrb[0].mxu0
      %v1093 = vadd.f32 %v1029, %v1092
      %v1094 = vpop.f32.mrb[0].mxu0
      %v1095 = vpop.f32.mrb[0].mxu0
      %v1096 = vadd.f32 %v1032, %v1095
      %v1097 = vpop.f32.mrb[0].mxu0
      %1098 = vmatprep.mubr.bf16.mxu0 %v557
      %1099 = vmatmul.mubr.bf16.gmra.mrb[0].mxu0 %v556
      %v1100 = vpop.f32.mrb[0].mxu0
      %v1101 = vadd.f32 %v1037, %v1100
      %v1102 = vpop.f32.mrb[0].mxu0
      %v1103 = vpop.f32.mrb[0].mxu0
      %v1104 = vadd.f32 %v1040, %v1103
      %v1105 = vpop.f32.mrb[0].mxu0
      %1106 = vmatprep.mubr.bf16.mxu0 %v565
      %1107 = vmatmul.mubr.bf16.gmra.mrb[0].mxu0 %v564
      %v1108 = vpop.f32.mrb[0].mxu0
      %v1109 = vadd.f32 %v1045, %v1108
      %v1110 = vpop.f32.mrb[0].mxu0
      %v1111 = vpop.f32.mrb[0].mxu0
      %v1112 = vpop.f32.mrb[0].mxu0
      %1113 = vdwg.mxu0
      %1114 = vmatprep.subr.bf16.mxu0 0
      %1115 = vmatpush1.bf16.msra.mxu0 %v890
      %1116 = vmatprep.subr.bf16.mxu0 0
      %1117 = vmatpush1.bf16.msra.mxu0 %v891
      %1118 = vmatprep.subr.bf16.mxu0 0
      %1119 = vmatpush1.bf16.msra.mxu0 %v892
      %1120 = vmatprep.subr.bf16.mxu0 0
      %1121 = vmatpush1.bf16.msra.mxu0 %v893
      %1122 = vmatprep.subr.bf16.mxu0 0
      %1123 = vmatpush1.bf16.msra.mxu0 %v894
      %1124 = vmatprep.subr.bf16.mxu0 0
      %1125 = vmatpush1.bf16.msra.mxu0 %v895
      %1126 = vmatprep.subr.bf16.mxu0 0
      %1127 = vmatpush1.bf16.msra.mxu0 %v896
      %1128 = vmatprep.subr.bf16.mxu0 0
      %1129 = vmatpush1.bf16.msra.mxu0 %v897
      %1130 = vmatprep.subr.bf16.mxu0 0
      %1131 = vmatpush1.bf16.msra.mxu0 %v898
      %1132 = vmatprep.subr.bf16.mxu0 0
      %1133 = vmatpush1.bf16.msra.mxu0 %v899
      %1134 = vmatprep.subr.bf16.mxu0 0
      %1135 = vmatpush1.bf16.msra.mxu0 %v900
      %1136 = vmatprep.subr.bf16.mxu0 0
      %1137 = vmatpush1.bf16.msra.mxu0 %v901
      %1138 = vmatprep.subr.bf16.mxu0 0
      %1139 = vmatpush1.bf16.msra.mxu0 %v902
      %1140 = vmatprep.subr.bf16.mxu0 0
      %1141 = vmatpush1.bf16.msra.mxu0 %v903
      %1142 = vmatprep.subr.bf16.mxu0 0
      %1143 = vmatpush1.bf16.msra.mxu0 %v904
      %1144 = vmatprep.subr.bf16.mxu0 0
      %1145 = vmatpush1.bf16.msra.mxu0 %v905
      %1146 = vmatprep.mubr.bf16.mxu0 %v543
      %1147 = vmatmul.mubr.bf16.gmra.mrb[0].mxu0 %v542
      %v1148 = vpop.f32.mrb[0].mxu0
      %v1149 = vadd.f32 %v1085, %v1148
      %v1150 = vpop.f32.mrb[0].mxu0
      %v1151 = vpop.f32.mrb[0].mxu0
      %v1152 = vadd.f32 %v1088, %v1151
      %v1153 = vpop.f32.mrb[0].mxu0
      %1154 = vmatprep.mubr.bf16.mxu0 %v551
      %1155 = vmatmul.mubr.bf16.gmra.mrb[0].mxu0 %v550
      %v1156 = vpop.f32.mrb[0].mxu0
      %v1157 = vadd.f32 %v1093, %v1156
      %v1158 = vpop.f32.mrb[0].mxu0
      %v1159 = vpop.f32.mrb[0].mxu0
      %v1160 = vadd.f32 %v1096, %v1159
      %v1161 = vpop.f32.mrb[0].mxu0
      %1162 = vmatprep.mubr.bf16.mxu0 %v559
      %1163 = vmatmul.mubr.bf16.gmra.mrb[0].mxu0 %v558
      %v1164 = vpop.f32.mrb[0].mxu0
      %v1165 = vadd.f32 %v1101, %v1164
      %v1166 = vpop.f32.mrb[0].mxu0
      %v1167 = vpop.f32.mrb[0].mxu0
      %v1168 = vadd.f32 %v1104, %v1167
      %v1169 = vpop.f32.mrb[0].mxu0
      %1170 = vmatprep.mubr.bf16.mxu0 %v567
      %1171 = vmatmul.mubr.bf16.gmra.mrb[0].mxu0 %v566
      %v1172 = vpop.f32.mrb[0].mxu0
      %v1173 = vadd.f32 %v1109, %v1172
      %v1174 = vpop.f32.mrb[0].mxu0
      %v1175 = vpop.f32.mrb[0].mxu0
      %v1176 = vpop.f32.mrb[0].mxu0
      %1177 = vdwg.mxu0
      %1178 = vmatprep.subr.bf16.mxu0 0
      %1179 = vmatpush1.bf16.msra.mxu0 %v906
      %1180 = vmatprep.subr.bf16.mxu0 0
      %1181 = vmatpush1.bf16.msra.mxu0 %v907
      %1182 = vmatprep.subr.bf16.mxu0 0
      %1183 = vmatpush1.bf16.msra.mxu0 %v908
      %1184 = vmatprep.subr.bf16.mxu0 0
      %1185 = vmatpush1.bf16.msra.mxu0 %v909
      %1186 = vmatprep.subr.bf16.mxu0 0
      %1187 = vmatpush1.bf16.msra.mxu0 %v910
      %1188 = vmatprep.subr.bf16.mxu0 0
      %1189 = vmatpush1.bf16.msra.mxu0 %v911
      %1190 = vmatprep.subr.bf16.mxu0 0
      %1191 = vmatpush1.bf16.msra.mxu0 %v912
      %1192 = vmatprep.subr.bf16.mxu0 0
      %1193 = vmatpush1.bf16.msra.mxu0 %v913
      %1194 = vmatprep.subr.bf16.mxu0 0
      %1195 = vmatpush1.bf16.msra.mxu0 %v914
      %1196 = vmatprep.subr.bf16.mxu0 0
      %1197 = vmatpush1.bf16.msra.mxu0 %v915
      %1198 = vmatprep.subr.bf16.mxu0 0
      %1199 = vmatpush1.bf16.msra.mxu0 %v916
      %1200 = vmatprep.subr.bf16.mxu0 0
      %1201 = vmatpush1.bf16.msra.mxu0 %v917
      %1202 = vmatprep.subr.bf16.mxu0 0
      %1203 = vmatpush1.bf16.msra.mxu0 %v918
      %1204 = vmatprep.subr.bf16.mxu0 0
      %1205 = vmatpush1.bf16.msra.mxu0 %v919
      %1206 = vmatprep.subr.bf16.mxu0 0
      %1207 = vmatpush1.bf16.msra.mxu0 %v920
      %1208 = vmatprep.subr.bf16.mxu0 0
      %1209 = vmatpush1.bf16.msra.mxu0 %v921
      %1210 = vmatprep.mubr.bf16.mxu0 %v545
      %1211 = vmatmul.mubr.bf16.gmra.mrb[0].mxu0 %v544
      %v1212 = vpop.f32.mrb[0].mxu0
      %v1213 = vadd.f32 %v1149, %v1212
      %v1214 = vpop.f32.mrb[0].mxu0
      %v1215 = vpop.f32.mrb[0].mxu0
      %v1216 = vadd.f32 %v1152, %v1215
      %v1217 = vpop.f32.mrb[0].mxu0
      %1218 = vmatprep.mubr.bf16.mxu0 %v553
      %1219 = vmatmul.mubr.bf16.gmra.mrb[0].mxu0 %v552
      %v1220 = vpop.f32.mrb[0].mxu0
      %v1221 = vadd.f32 %v1157, %v1220
      %v1222 = vpop.f32.mrb[0].mxu0
      %v1223 = vpop.f32.mrb[0].mxu0
      %v1224 = vadd.f32 %v1160, %v1223
      %v1225 = vpop.f32.mrb[0].mxu0
      %1226 = vmatprep.mubr.bf16.mxu0 %v561
      %1227 = vmatmul.mubr.bf16.gmra.mrb[0].mxu0 %v560
      %v1228 = vpop.f32.mrb[0].mxu0
      %v1229 = vadd.f32 %v1165, %v1228
      %v1230 = vpop.f32.mrb[0].mxu0
      %v1231 = vpop.f32.mrb[0].mxu0
      %v1232 = vadd.f32 %v1168, %v1231
      %v1233 = vpop.f32.mrb[0].mxu0
      %1234 = vmatprep.mubr.bf16.mxu0 %v569
      %1235 = vmatmul.mubr.bf16.gmra.mrb[0].mxu0 %v568
      %v1236 = vpop.f32.mrb[0].mxu0
      %v1237 = vadd.f32 %v1173, %v1236
      %v1238 = vpop.f32.mrb[0].mxu0
      %v1239 = vpop.f32.mrb[0].mxu0
      %v1240 = vpop.f32.mrb[0].mxu0
      %1241 = vdwg.mxu0
      %1242 = vst [vmem:[%s280] sm:$0xff] %v1213
      %1243 = vst [vmem:[%s280 + $0x8] sm:$0xff] %v1216
      %1244 = vst [vmem:[%s280 + $0x10] sm:$0xff] %v1221
      %1245 = vst [vmem:[%s280 + $0x18] sm:$0xff] %v1224
      %1246 = vst [vmem:[%s280 + $0x20] sm:$0xff] %v1229
      %1247 = vst [vmem:[%s280 + $0x28] sm:$0xff] %v1232
      %1248 = vst [vmem:[%s280 + $0x30] sm:$0x3f] %v1237
      %v1249 = vld [vmem:[%s4] sm:$0x1]
      %v1250 = vadd.f32 %v1213, %v1216
      %v1251 = vadd.f32 %v1250, %v1221
      %v1252 = vadd.f32 %v1251, %v1224
      %v1253 = vadd.f32 %v1252, %v1229
      %v1254 = vadd.f32 %v1253, %v1232
      %vm1255 = vcmask 1045504
      %v1256 = vsel %vm1255, %v1237, 0.0
      %v1257 = vadd.f32 %v1254, %v1256
      %v1258 = vrot.slane %v1257, 4
      %v1259 = vadd.f32 %v1257, %v1258
      %v1260 = vrot.slane %v1259, 2
      %v1261 = vadd.f32 %v1259, %v1260
      %v1262 = vrot.slane %v1261, 1
      %v1263 = vadd.f32 %v1261, %v1262
      %v1264 = vadd.f32 %v1249, %v1263
      %1265 = vst [vmem:[%s4] sm:$0x1] %v1264
      %v1266 = vld [vmem:[%s5] sm:$0x1]
      %v1267 = vmul.f32 %v1213, %v1213
      %v1268 = vmul.f32 %v1216, %v1216
      %v1269 = vmul.f32 %v1221, %v1221
      %v1270 = vmul.f32 %v1224, %v1224
      %v1271 = vmul.f32 %v1229, %v1229
      %v1272 = vmul.f32 %v1232, %v1232
      %v1273 = vmul.f32 %v1237, %v1237
      %v1274 = vadd.f32 %v1267, %v1268
      %v1275 = vadd.f32 %v1274, %v1269
      %v1276 = vadd.f32 %v1275, %v1270
      %v1277 = vadd.f32 %v1276, %v1271
      %v1278 = vadd.f32 %v1277, %v1272
      %v1279 = vsel %vm1255, %v1273, 0.0
      %v1280 = vadd.f32 %v1278, %v1279
      %v1281 = vrot.slane %v1280, 4
      %v1282 = vadd.f32 %v1280, %v1281
      %v1283 = vrot.slane %v1282, 2
      %v1284 = vadd.f32 %v1282, %v1283
      %v1285 = vrot.slane %v1284, 1
      %v1286 = vadd.f32 %v1284, %v1285
      %v1287 = vadd.f32 %v1266, %v1286
      %1288 = vst [vmem:[%s5] sm:$0x1] %v1287
      %s1289 = smul.u32 7, %s22
      %p1290 = scmp.lt.s32.totalorder %s21, 3
      %s1291 = scalar_select %p1290, %s21, 3
      %p1292 = scmp.lt.s32.totalorder %s1289, 6
      %s1293 = scalar_select %p1292, %s1289, 6
      %s1294 = smul.addr %s1291, 7
      %s1295 = sadd.s32 %s1293, %s1294
      %s1296 = smul.addr %s1295, 8
      %s1297 = scalar_lea.vmem %s3, %s1296
      // Predicated region
      $region37: #{wgan_g_forward.11} parent=31 // pred_check
        %p1298 = pneg %p124
      $region38: #{wgan_g_forward.11} parent=31 // pred_check_branch
        %1300 = sbr.rel (%p1298) target = $region40
      $region39: #{wgan_g_forward.11} parent=31 // pred_region
        %s1301 = smul.u32 7, %s22
      $region40: #{wgan_g_forward.11} parent=31 // pred_fallthru
        _
      // Predicated region
      $region41: #{wgan_g_forward.11} parent=31 // pred_check
        %p1302 = pneg %p145
      $region42: #{wgan_g_forward.11} parent=31 // pred_check_branch
        %1304 = sbr.rel (%p1302) target = $region44
      $region43: #{wgan_g_forward.11} parent=31 // pred_region
        _
      $region44: #{wgan_g_forward.11} parent=31 // pred_fallthru
        _
      // Predicated region
      $region45: #{wgan_g_forward.11} parent=31 // pred_check
        %p1305 = pneg %p166
      $region46: #{wgan_g_forward.11} parent=31 // pred_check_branch
        %1307 = sbr.rel (%p1305) target = $region48
      $region47: #{wgan_g_forward.11} parent=31 // pred_region
        _
      $region48: #{wgan_g_forward.11} parent=31 // pred_fallthru
        _
      // Predicated region
      $region49: #{wgan_g_forward.11} parent=31 // pred_check
        %p1308 = pneg %p145
      $region50: #{wgan_g_forward.11} parent=31 // pred_check_branch
        %1310 = sbr.rel (%p1308) target = $region52
      $region51: #{wgan_g_forward.11} parent=31 // pred_region
        _
      $region52: #{wgan_g_forward.11} parent=31 // pred_fallthru
        _
      // Predicated region
      $region53: #{wgan_g_forward.11} parent=31 // pred_check
        %p1311 = pneg %p166
      $region54: #{wgan_g_forward.11} parent=31 // pred_check_branch
        %1313 = sbr.rel (%p1311) target = $region56
      $region55: #{wgan_g_forward.11} parent=31 // pred_region
        _
      $region56: #{wgan_g_forward.11} parent=31 // pred_fallthru
        _
    $region32: #{wgan_g_forward.11} parent=5 // pred_fallthru
      _
    %p1314 = scmp.le.s32.totalorder 2, %s12
    // Predicated region
    $region57: #{wgan_g_forward.11} parent=5 // pred_check
      %p1315 = pneg %p1314
    $region58: #{wgan_g_forward.11} parent=5 // pred_check_branch
      %1317 = sbr.rel (%p1315) target = $region60
    $region59: #{wgan_g_forward.11} parent=5 // pred_region
      %s1318 = ssub.s32 %s12, 2
      // Predicated region
      $region61: #{wgan_g_forward.11} parent=59 // pred_check
        %p1319 = pneg %p130
      $region62: #{wgan_g_forward.11} parent=59 // pred_check_branch
        %1321 = sbr.rel (%p1319) target = $region64
      $region63: #{wgan_g_forward.11} parent=59 // pred_region
        %s1322 = smul.u32 7, %s24
        %p1323 = scmp.lt.s32.totalorder %s23, 3
        %s1324 = scalar_select %p1323, %s23, 3
        %p1325 = scmp.lt.s32.totalorder %s1322, 6
        %s1326 = scalar_select %p1325, %s1322, 6
        %s1327 = smul.addr %s1324, 7
        %s1328 = sadd.s32 %s1326, %s1327
        %s1329 = smul.addr %s1328, 8
        %s1330 = scalar_lea.vmem %s3, %s1329
      $region64: #{wgan_g_forward.11} parent=59 // pred_fallthru
        _
    $region60: #{wgan_g_forward.11} parent=5 // pred_fallthru
      _
  $region6: #{wgan_g_forward.11} parent=0 // loop_footer
    %s16 = sadd.s32 1, %s12
  $region7: #{wgan_g_forward.11} parent=0 // loop_footer_branch
    %11 = sbr.rel target = $region3
  $region8: #{wgan_g_forward.11} parent=0 // loop_exit
    _

// kernel: wgan_g_forward.13
$region0: #{wgan_g_forward.13}
  #allocation0 [shape = 'u32[]', space=smem, size = 0x4, offset = 0x4, fixed_abs, tag = 'smem constant byte address 0x4 - core index']
  #allocation1 [shape = 'u32[144,128]{1,0:T(1,128)}', space=vmem, size = 0x12000, scoped, tag = 'internal scratch']
  %s0 = inlined_call_operand.vmem [shape: bf16[4,216,512], index: 0, kind: input, shape index: {}]
  %s1 = inlined_call_operand.vmem [shape: bf16[4,512,64], index: 1, kind: input, shape index: {}]
  %s2 = inlined_call_operand.vmem [shape: f32[1,64], index: 2, kind: input, shape index: {}]
  %s3 = inlined_call_operand.vmem [shape: f32[4,216,64], index: 3, kind: output, shape index: {0}]
  %s4 = inlined_call_operand.vmem [shape: f32[1,64], index: 4, kind: output, shape index: {1}]
  %s5 = inlined_call_operand.vmem [shape: f32[1,64], index: 5, kind: output, shape index: {2}]
  %6 = xla_tuple %s3, %s4, %s5
  %s7 = sld [smem:[#allocation0]]
  $region65: #{wgan_g_forward.13} parent=0
    _
  %s9 = ssub.s32 1, %s7
  %s10 = scalar_select 0, %s9, %s7
  loop: start=0, step=1, limit=6
  $region2: #{wgan_g_forward.13} parent=0 // loop_pre_header
    _
  $region3: #{wgan_g_forward.13} parent=0 // loop_header
    %s12 = sphi 0, %s16
    %p13 = scmp.ge.s32.totalorder %s12, 6
    %s19 = sphi 0, %s31
    %s20 = sphi 0, %s27
    %s21 = sphi 0, %s19
    %s22 = sphi 0, %s20
    %s23 = sphi 0, %s21
    %s24 = sphi 0, %s22
    %s36 = sphi 0, %s38
    %s39 = sphi 0, %s36
    %s40 = sphi 0, %s39
    %s56 = sphi 0, %s40
    %s62 = sphi 0, %s64
    %s65 = sphi 0, %s62
    %s66 = sphi 0, %s65
    %s82 = sphi 0, %s66
    %s86 = sphi 0, %s86
    %s88 = sphi 0, %s86
    %s89 = sphi 0, %s88
    %s103 = sphi 0, %s89
    %s111 = sphi 0, %s113
    %s114 = sphi 0, %s111
    %s115 = sphi 0, %s114
    %s131 = sphi 0, %s115
    %s135 = sphi 0, %s135
    %s137 = sphi 0, %s135
    %s138 = sphi 0, %s137
    %s152 = sphi 0, %s138
    %s156 = sphi 0, %s156
    %s158 = sphi 0, %s156
    %s159 = sphi 0, %s158
    %s173 = sphi 0, %s159
  $region4: #{wgan_g_forward.13} parent=0 // loop_header_branch
    %15 = sbr.rel (%p13) target = $region8
  $region5: #{wgan_g_forward.13} parent=0 // loop_body
    %s17 = ssub.s32 %s12, 1
    %s18 = ssub.s32 %s12, 2
    %s25 = sadd.s32 1, %s20
    %p26 = scmp.ge.s32.totalorder %s25, 1
    %s27 = scalar_select %p26, 0, %s25
    %s28 = sadd.s32 1, %s19
    %s29 = scalar_select %p26, %s28, %s19
    %p30 = scmp.ge.s32.totalorder %s29, 4
    %s31 = scalar_select %p30, 0, %s29
    %s32 = ssub.s32 %s19, %s31
    %s33 = ssub.s32 %s20, %s27
    %s34 = sor.u32 %s32, %s33
    %p35 = scmp.eq.s32.totalorder %s34, 0
    %s37 = sadd.s32 %s36, 1
    %s38 = scalar_select %p35, %s36, %s37
    %p41 = pneg %p35
    %p42 = scmp.eq.s32.totalorder %s12, 3
    %p43 = por %p41, %p42
    %p44 = scmp.ne.s32.totalorder %s36, %s39
    %p45 = scmp.eq.s32.totalorder %s12, 0
    %p46 = por %p44, %p45
    %p47 = scmp.ne.s32.totalorder %s36, %s39
    %p48 = scmp.eq.s32.totalorder %s17, 3
    %p49 = por %p47, %p48
    %p50 = scmp.ne.s32.totalorder %s39, %s40
    %p51 = scmp.eq.s32.totalorder %s17, 0
    %p52 = por %p50, %p51
    %p53 = scmp.ne.s32.totalorder %s39, %s40
    %p54 = scmp.eq.s32.totalorder %s18, 3
    %p55 = por %p53, %p54
    %p57 = scmp.ne.s32.totalorder %s40, %s56
    %p58 = scmp.eq.s32.totalorder %s18, 0
    %p59 = por %p57, %p58
    %s60 = ssub.s32 %s19, %s31
    %p61 = scmp.eq.s32.totalorder %s60, 0
    %s63 = sadd.s32 %s62, 1
    %s64 = scalar_select %p61, %s62, %s63
    %p67 = pneg %p61
    %p68 = scmp.eq.s32.totalorder %s12, 3
    %p69 = por %p67, %p68
    %p70 = scmp.ne.s32.totalorder %s62, %s65
    %p71 = scmp.eq.s32.totalorder %s12, 0
    %p72 = por %p70, %p71
    %p73 = scmp.ne.s32.totalorder %s62, %s65
    %p74 = scmp.eq.s32.totalorder %s17, 3
    %p75 = por %p73, %p74
    %p76 = scmp.ne.s32.totalorder %s65, %s66
    %p77 = scmp.eq.s32.totalorder %s17, 0
    %p78 = por %p76, %p77
    %p79 = scmp.ne.s32.totalorder %s65, %s66
    %p80 = scmp.eq.s32.totalorder %s18, 3
    %p81 = por %p79, %p80
    %p83 = scmp.ne.s32.totalorder %s66, %s82
    %p84 = scmp.eq.s32.totalorder %s18, 0
    %p85 = por %p83, %p84
    %s87 = sadd.s32 %s86, 1
    %p90 = scmp.eq.s32.totalorder %s12, 3
    %p91 = scmp.ne.s32.totalorder %s86, %s88
    %p92 = scmp.eq.s32.totalorder %s12, 0
    %p93 = por %p91, %p92
    %p94 = scmp.ne.s32.totalorder %s86, %s88
    %p95 = scmp.eq.s32.totalorder %s17, 3
    %p96 = por %p94, %p95
    %p97 = scmp.ne.s32.totalorder %s88, %s89
    %p98 = scmp.eq.s32.totalorder %s17, 0
    %p99 = por %p97, %p98
    %p100 = scmp.ne.s32.totalorder %s88, %s89
    %p101 = scmp.eq.s32.totalorder %s18, 3
    %p102 = por %p100, %p101
    %p104 = scmp.ne.s32.totalorder %s89, %s103
    %p105 = scmp.eq.s32.totalorder %s18, 0
    %p106 = por %p104, %p105
    %s107 = ssub.s32 %s19, %s31
    %s108 = ssub.s32 %s20, %s27
    %s109 = sor.u32 %s107, %s108
    %p110 = scmp.eq.s32.totalorder %s109, 0
    %s112 = sadd.s32 %s111, 1
    %s113 = scalar_select %p110, %s111, %s112
    %p116 = pneg %p110
    %p117 = scmp.eq.s32.totalorder %s12, 3
    %p118 = por %p116, %p117
    %p119 = scmp.ne.s32.totalorder %s111, %s114
    %p120 = scmp.eq.s32.totalorder %s12, 0
    %p121 = por %p119, %p120
    %p122 = scmp.ne.s32.totalorder %s111, %s114
    %p123 = scmp.eq.s32.totalorder %s17, 3
    %p124 = por %p122, %p123
    %p125 = scmp.ne.s32.totalorder %s114, %s115
    %p126 = scmp.eq.s32.totalorder %s17, 0
    %p127 = por %p125, %p126
    %p128 = scmp.ne.s32.totalorder %s114, %s115
    %p129 = scmp.eq.s32.totalorder %s18, 3
    %p130 = por %p128, %p129
    %p132 = scmp.ne.s32.totalorder %s115, %s131
    %p133 = scmp.eq.s32.totalorder %s18, 0
    %p134 = por %p132, %p133
    %s136 = sadd.s32 %s135, 1
    %p139 = scmp.eq.s32.totalorder %s12, 3
    %p140 = scmp.ne.s32.totalorder %s135, %s137
    %p141 = scmp.eq.s32.totalorder %s12, 0
    %p142 = por %p140, %p141
    %p143 = scmp.ne.s32.totalorder %s135, %s137
    %p144 = scmp.eq.s32.totalorder %s17, 3
    %p145 = por %p143, %p144
    %p146 = scmp.ne.s32.totalorder %s137, %s138
    %p147 = scmp.eq.s32.totalorder %s17, 0
    %p148 = por %p146, %p147
    %p149 = scmp.ne.s32.totalorder %s137, %s138
    %p150 = scmp.eq.s32.totalorder %s18, 3
    %p151 = por %p149, %p150
    %p153 = scmp.ne.s32.totalorder %s138, %s152
    %p154 = scmp.eq.s32.totalorder %s18, 0
    %p155 = por %p153, %p154
    %s157 = sadd.s32 %s156, 1
    %p160 = scmp.eq.s32.totalorder %s12, 3
    %p161 = scmp.ne.s32.totalorder %s156, %s158
    %p162 = scmp.eq.s32.totalorder %s12, 0
    %p163 = por %p161, %p162
    %p164 = scmp.ne.s32.totalorder %s156, %s158
    %p165 = scmp.eq.s32.totalorder %s17, 3
    %p166 = por %p164, %p165
    %p167 = scmp.ne.s32.totalorder %s158, %s159
    %p168 = scmp.eq.s32.totalorder %s17, 0
    %p169 = por %p167, %p168
    %p170 = scmp.ne.s32.totalorder %s158, %s159
    %p171 = scmp.eq.s32.totalorder %s18, 3
    %p172 = por %p170, %p171
    %p174 = scmp.ne.s32.totalorder %s159, %s173
    %p175 = scmp.eq.s32.totalorder %s18, 0
    %p176 = por %p174, %p175
    %p177 = scmp.le.s32.totalorder 1, %s12
    %p178 = scmp.lt.s32.totalorder %s12, 5
    %p179 = pnand %p177, %p178
    %p180 = pneg %p179
    // Predicated region
    $region9: #{wgan_g_forward.13} parent=5 // pred_check
      _
    $region10: #{wgan_g_forward.13} parent=5 // pred_check_branch
      %182 = sbr.rel (%p179) target = $region12
    $region11: #{wgan_g_forward.13} parent=5 // pred_region
      %s183 = ssub.s32 %s12, 1
      // Predicated region
      $region13: #{wgan_g_forward.13} parent=11 // pred_check
        %p184 = pneg %p99
      $region14: #{wgan_g_forward.13} parent=11 // pred_check_branch
        %186 = sbr.rel (%p184) target = $region16
      $region15: #{wgan_g_forward.13} parent=11 // pred_region
        _
      $region16: #{wgan_g_forward.13} parent=11 // pred_fallthru
        _
    $region12: #{wgan_g_forward.13} parent=5 // pred_fallthru
      _
    %p187 = scmp.lt.s32.totalorder %s12, 4
    // Predicated region
    $region17: #{wgan_g_forward.13} parent=5 // pred_check
      %p188 = pneg %p187
    $region18: #{wgan_g_forward.13} parent=5 // pred_check_branch
      %190 = sbr.rel (%p188) target = $region20
    $region19: #{wgan_g_forward.13} parent=5 // pred_region
      // Predicated region
      $region21: #{wgan_g_forward.13} parent=19 // pred_check
        %p191 = pneg %p46
      $region22: #{wgan_g_forward.13} parent=19 // pred_check_branch
        %193 = sbr.rel (%p191) target = $region24
      $region23: #{wgan_g_forward.13} parent=19 // pred_region
        %s194 = smul.u32 27, %s20
        %p195 = scmp.lt.s32.totalorder %s19, 3
        %s196 = scalar_select %p195, %s19, 3
        %p197 = scmp.lt.s32.totalorder %s194, 26
        %s198 = scalar_select %p197, %s194, 26
        %s199 = smul.addr %s198, 4
        %s200 = smul.addr %s196, 108
        %s201 = sadd.s32 %s199, %s200
        %s202 = smul.addr %s201, 4
        %s203 = scalar_lea.vmem %s0, %s202
        %s204 = smul.u32 27, %s20
      $region24: #{wgan_g_forward.13} parent=19 // pred_fallthru
        _
      // Predicated region
      $region25: #{wgan_g_forward.13} parent=19 // pred_check
        %p205 = pneg %p72
      $region26: #{wgan_g_forward.13} parent=19 // pred_check_branch
        %207 = sbr.rel (%p205) target = $region28
      $region27: #{wgan_g_forward.13} parent=19 // pred_region
        %p208 = scmp.lt.s32.totalorder %s19, 3
        %s209 = scalar_select %p208, %s19, 3
        %s210 = smul.addr %s209, 64
        %s211 = smul.addr %s210, 4
        %s212 = scalar_lea.vmem %s1, %s211
      $region28: #{wgan_g_forward.13} parent=19 // pred_fallthru
        _
    $region20: #{wgan_g_forward.13} parent=5 // pred_fallthru
      _
    %p213 = scmp.le.s32.totalorder 1, %s12
    %p214 = scmp.lt.s32.totalorder %s12, 5
    %p215 = pnand %p213, %p214
    %p216 = pneg %p215
    // Predicated region
    $region29: #{wgan_g_forward.13} parent=5 // pred_check
      _
    $region30: #{wgan_g_forward.13} parent=5 // pred_check_branch
      %218 = sbr.rel (%p215) target = $region32
    $region31: #{wgan_g_forward.13} parent=5 // pred_region
      %s219 = ssub.s32 %s12, 1
      %s220 = smul.u32 27, %s22
      %p221 = scmp.lt.s32.totalorder %s21, 3
      %s222 = scalar_select %p221, %s21, 3
      %p223 = scmp.lt.s32.totalorder %s220, 26
      %s224 = scalar_select %p223, %s220, 26
      %s225 = smul.addr %s224, 4
      %s226 = smul.addr %s222, 108
      %s227 = sadd.s32 %s225, %s226
      %s228 = smul.addr %s227, 4
      %s229 = scalar_lea.vmem %s0, %s228
      %p230 = pneg %p52
      %p231 = pneg %p49
      %p232 = scmp.lt.s32.totalorder %s21, 3
      %s233 = scalar_select %p232, %s21, 3
      %s234 = smul.addr %s233, 64
      %s235 = smul.addr %s234, 4
      %s236 = scalar_lea.vmem %s1, %s235
      %p237 = pneg %p78
      %p238 = pneg %p75
      %p239 = pneg %p99
      %p240 = pneg %p96
      %p241 = pneg %p127
      %p242 = pneg %p124
      %s243 = smul.u32 27, %s22
      %p244 = scmp.lt.s32.totalorder %s21, 3
      %s245 = scalar_select %p244, %s21, 3
      %p246 = scmp.lt.s32.totalorder %s243, 26
      %s247 = scalar_select %p246, %s243, 26
      %s248 = smul.addr %s245, 27
      %s249 = sadd.s32 %s247, %s248
      %s250 = smul.addr %s249, 8
      %s251 = scalar_lea.vmem %s3, %s250
      %p252 = pneg %p148
      %p253 = pneg %p145
      %p254 = pneg %p169
      %p255 = pneg %p166
      %s256 = smul.u32 27, %s22
      %p257 = scmp.lt.s32.totalorder %s21, 3
      %s258 = scalar_select %p257, %s21, 3
      %p259 = scmp.lt.s32.totalorder %s256, 26
      %s260 = scalar_select %p259, %s256, 26
      %s261 = smul.addr %s260, 4
      %s262 = smul.addr %s258, 108
      %s263 = sadd.s32 %s261, %s262
      %s264 = smul.addr %s263, 4
      %s265 = scalar_lea.vmem %s0, %s264
      %s266 = smul.u32 27, %s22
      %p267 = scmp.lt.s32.totalorder %s21, 3
      %s268 = scalar_select %p267, %s21, 3
      %s269 = smul.addr %s268, 64
      %s270 = smul.addr %s269, 4
      %s271 = scalar_lea.vmem %s1, %s270
      %s272 = smul.u32 27, %s22
      %p273 = scmp.lt.s32.totalorder %s21, 3
      %s274 = scalar_select %p273, %s21, 3
      %p275 = scmp.lt.s32.totalorder %s272, 26
      %s276 = scalar_select %p275, %s272, 26
      %s277 = smul.addr %s274, 27
      %s278 = sadd.s32 %s276, %s277
      %s279 = smul.addr %s278, 8
      %s280 = scalar_lea.vmem %s3, %s279
      %s281 = smul.u32 27, %s22
      %p283 = scmp.eq.s32.totalorder %s21, 0
      %p284 = scmp.eq.s32.totalorder %s22, 0
      %p285 = pnand %p283, %p284
      %p286 = pneg %p285
      // Predicated region
      $region33: #{wgan_g_forward.13} parent=31 // pred_check
        _
      $region34: #{wgan_g_forward.13} parent=31 // pred_check_branch
        %288 = sbr.rel (%p285) target = $region36
      $region35: #{wgan_g_forward.13} parent=31 // pred_region
        %vm289 = vcmask 516096
        %290 = vst.msk [vmem:[%s4] sm:$0x1] %vm289, 0.0
        %291 = vst.msk [vmem:[%s5] sm:$0x1] %vm289, 0.0
      $region36: #{wgan_g_forward.13} parent=31 // pred_fallthru
        _
      %v292 = vld [vmem:[%s265] sm:$0xff]
      %v293 = vld [vmem:[%s265 + $0x8] sm:$0xff]
      %v294 = vld [vmem:[%s265 + $0x10] sm:$0xff]
      %v295 = vld [vmem:[%s265 + $0x18] sm:$0xff]
      %v296 = vld [vmem:[%s265 + $0x20] sm:$0xff]
      %v297 = vld [vmem:[%s265 + $0x28] sm:$0xff]
      %v298 = vld [vmem:[%s265 + $0x30] sm:$0xff]
      %v299 = vld [vmem:[%s265 + $0x38] sm:$0xff]
      %v300 = vld [vmem:[%s265 + $0x40] sm:$0xff]
      %v301 = vld [vmem:[%s265 + $0x48] sm:$0xff]
      %v302 = vld [vmem:[%s265 + $0x50] sm:$0xff]
      %v303 = vld [vmem:[%s265 + $0x58] sm:$0xff]
      %v304 = vld [vmem:[%s265 + $0x60] sm:$0xff]
      %v305 = vld [vmem:[%s265 + $0x68] sm:$0xff]
      %v306 = vld [vmem:[%s265 + $0x70] sm:$0xff]
      %v307 = vld [vmem:[%s265 + $0x78] sm:$0xff]
      %v308 = vld [vmem:[%s265 + $0x80] sm:$0xff]
      %v309 = vld [vmem:[%s265 + $0x88] sm:$0xff]
      %v310 = vld [vmem:[%s265 + $0x90] sm:$0xff]
      %v311 = vld [vmem:[%s265 + $0x98] sm:$0xff]
      %v312 = vld [vmem:[%s265 + $0xa0] sm:$0xff]
      %v313 = vld [vmem:[%s265 + $0xa8] sm:$0xff]
      %v314 = vld [vmem:[%s265 + $0xb0] sm:$0xff]
      %v315 = vld [vmem:[%s265 + $0xb8] sm:$0xff]
      %v316 = vld [vmem:[%s265 + $0xc0] sm:$0xff]
      %v317 = vld [vmem:[%s265 + $0xc8] sm:$0xff]
      %v318 = vld [vmem:[%s265 + $0xd0] sm:$0xff]
      %v319 = vld [vmem:[%s265 + $0xd8] sm:$0xff]
      %v320 = vld [vmem:[%s265 + $0xe0] sm:$0xff]
      %v321 = vld [vmem:[%s265 + $0xe8] sm:$0xff]
      %v322 = vld [vmem:[%s265 + $0xf0] sm:$0xff]
      %v323 = vld [vmem:[%s265 + $0xf8] sm:$0xff]
      %v324 = vld [vmem:[%s265 + $0x100] sm:$0xff]
      %v325 = vld [vmem:[%s265 + $0x108] sm:$0xff]
      %v326 = vld [vmem:[%s265 + $0x110] sm:$0xff]
      %v327 = vld [vmem:[%s265 + $0x118] sm:$0xff]
      %v328 = vld [vmem:[%s265 + $0x120] sm:$0xff]
      %v329 = vld [vmem:[%s265 + $0x128] sm:$0xff]
      %v330 = vld [vmem:[%s265 + $0x130] sm:$0xff]
      %v331 = vld [vmem:[%s265 + $0x138] sm:$0xff]
      %v332 = vld [vmem:[%s265 + $0x140] sm:$0xff]
      %v333 = vld [vmem:[%s265 + $0x148] sm:$0xff]
      %v334 = vld [vmem:[%s265 + $0x150] sm:$0xff]
      %v335 = vld [vmem:[%s265 + $0x158] sm:$0xff]
      %v336 = vld [vmem:[%s265 + $0x160] sm:$0xff]
      %v337 = vld [vmem:[%s265 + $0x168] sm:$0xff]
      %v338 = vld [vmem:[%s265 + $0x170] sm:$0xff]
      %v339 = vld [vmem:[%s265 + $0x178] sm:$0xff]
      %v340 = vld [vmem:[%s265 + $0x180] sm:$0xff]
      %v341 = vld [vmem:[%s265 + $0x188] sm:$0xff]
      %v342 = vld [vmem:[%s265 + $0x190] sm:$0xff]
      %v343 = vld [vmem:[%s265 + $0x198] sm:$0xff]
      %v344 = vld [vmem:[%s265 + $0x1a0] sm:$0xff]
      %v345 = vld [vmem:[%s265 + $0x1a8] sm:$0xff]
      %v346 = vld [vmem:[%s271] sm:$0xf]
      %v347 = vld [vmem:[%s271 + $0x4] sm:$0xf]
      %v348 = vld [vmem:[%s271 + $0x8] sm:$0xf]
      %v349 = vld [vmem:[%s271 + $0xc] sm:$0xf]
      %v350 = vld [vmem:[%s271 + $0x10] sm:$0xf]
      %v351 = vld [vmem:[%s271 + $0x14] sm:$0xf]
      %v352 = vld [vmem:[%s271 + $0x18] sm:$0xf]
      %v353 = vld [vmem:[%s271 + $0x1c] sm:$0xf]
      %v354 = vld [vmem:[%s271 + $0x20] sm:$0xf]
      %v355 = vld [vmem:[%s271 + $0x24] sm:$0xf]
      %v356 = vld [vmem:[%s271 + $0x28] sm:$0xf]
      %v357 = vld [vmem:[%s271 + $0x2c] sm:$0xf]
      %v358 = vld [vmem:[%s271 + $0x30] sm:$0xf]
      %v359 = vld [vmem:[%s271 + $0x34] sm:$0xf]
      %v360 = vld [vmem:[%s271 + $0x38] sm:$0xf]
      %v361 = vld [vmem:[%s271 + $0x3c] sm:$0xf]
      %v362 = vld [vmem:[%s271 + $0x40] sm:$0xf]
      %v363 = vld [vmem:[%s271 + $0x44] sm:$0xf]
      %v364 = vld [vmem:[%s271 + $0x48] sm:$0xf]
      %v365 = vld [vmem:[%s271 + $0x4c] sm:$0xf]
      %v366 = vld [vmem:[%s271 + $0x50] sm:$0xf]
      %v367 = vld [vmem:[%s271 + $0x54] sm:$0xf]
      %v368 = vld [vmem:[%s271 + $0x58] sm:$0xf]
      %v369 = vld [vmem:[%s271 + $0x5c] sm:$0xf]
      %v370 = vld [vmem:[%s271 + $0x60] sm:$0xf]
      %v371 = vld [vmem:[%s271 + $0x64] sm:$0xf]
      %v372 = vld [vmem:[%s271 + $0x68] sm:$0xf]
      %v373 = vld [vmem:[%s271 + $0x6c] sm:$0xf]
      %v374 = vld [vmem:[%s271 + $0x70] sm:$0xf]
      %v375 = vld [vmem:[%s271 + $0x74] sm:$0xf]
      %v376 = vld [vmem:[%s271 + $0x78] sm:$0xf]
      %v377 = vld [vmem:[%s271 + $0x7c] sm:$0xf]
      %v378 = vld [vmem:[%s271 + $0x80] sm:$0xf]
      %v379 = vld [vmem:[%s271 + $0x84] sm:$0xf]
      %v380 = vld [vmem:[%s271 + $0x88] sm:$0xf]
      %v381 = vld [vmem:[%s271 + $0x8c] sm:$0xf]
      %v382 = vld [vmem:[%s271 + $0x90] sm:$0xf]
      %v383 = vld [vmem:[%s271 + $0x94] sm:$0xf]
      %v384 = vld [vmem:[%s271 + $0x98] sm:$0xf]
      %v385 = vld [vmem:[%s271 + $0x9c] sm:$0xf]
      %v386 = vld [vmem:[%s271 + $0xa0] sm:$0xf]
      %v387 = vld [vmem:[%s271 + $0xa4] sm:$0xf]
      %v388 = vld [vmem:[%s271 + $0xa8] sm:$0xf]
      %v389 = vld [vmem:[%s271 + $0xac] sm:$0xf]
      %v390 = vld [vmem:[%s271 + $0xb0] sm:$0xf]
      %v391 = vld [vmem:[%s271 + $0xb4] sm:$0xf]
      %v392 = vld [vmem:[%s271 + $0xb8] sm:$0xf]
      %v393 = vld [vmem:[%s271 + $0xbc] sm:$0xf]
      %v394 = vld [vmem:[%s271 + $0xc0] sm:$0xf]
      %v395 = vld [vmem:[%s271 + $0xc4] sm:$0xf]
      %v396 = vld [vmem:[%s271 + $0xc8] sm:$0xf]
      %v397 = vld [vmem:[%s271 + $0xcc] sm:$0xf]
      %v398 = vld [vmem:[%s271 + $0xd0] sm:$0xf]
      %v399 = vld [vmem:[%s271 + $0xd4] sm:$0xf]
      %v400 = vld [vmem:[%s271 + $0xd8] sm:$0xf]
      %v401 = vld [vmem:[%s271 + $0xdc] sm:$0xf]
      %v402 = vld [vmem:[%s271 + $0xe0] sm:$0xf]
      %v403 = vld [vmem:[%s271 + $0xe4] sm:$0xf]
      %v404 = vld [vmem:[%s271 + $0xe8] sm:$0xf]
      %v405 = vld [vmem:[%s271 + $0xec] sm:$0xf]
      %v406 = vld [vmem:[%s271 + $0xf0] sm:$0xf]
      %v407 = vld [vmem:[%s271 + $0xf4] sm:$0xf]
      %v408 = vld [vmem:[%s271 + $0xf8] sm:$0xf]
      %v409 = vld [vmem:[%s271 + $0xfc] sm:$0xf]
      %v410 = vld [vmem:[%s2] sm:$0x1]
      %v412 = vlaneseq
      %v413 = vshrl.u32 %v412, 7
      %v414 = vsub.s32 0, %v413
      %v415 = vrot.slane %v410, %v414
      %v471 = vunpack.c.l.b16 %v292
      %v472 = vunpack.c.h.b16 %v292
      %v473 = vunpack.c.l.b16 %v293
      %v474 = vunpack.c.h.b16 %v293
      %v475 = vunpack.c.l.b16 %v294
      %v476 = vunpack.c.h.b16 %v294
      %v477 = vunpack.c.l.b16 %v295
      %v478 = vunpack.c.h.b16 %v295
      %v479 = vunpack.c.l.b16 %v296
      %v480 = vunpack.c.h.b16 %v296
      %v481 = vunpack.c.l.b16 %v297
      %v482 = vunpack.c.h.b16 %v297
      %v483 = vunpack.c.l.b16 %v298
      %v484 = vunpack.c.h.b16 %v298
      %v485 = vunpack.c.l.b16 %v299
      %v486 = vunpack.c.h.b16 %v299
      %v487 = vunpack.c.l.b16 %v300
      %v488 = vunpack.c.h.b16 %v300
      %v489 = vunpack.c.l.b16 %v301
      %v490 = vunpack.c.h.b16 %v301
      %v491 = vunpack.c.l.b16 %v302
      %v492 = vunpack.c.h.b16 %v302
      %v493 = vunpack.c.l.b16 %v303
      %v494 = vunpack.c.h.b16 %v303
      %v495 = vunpack.c.l.b16 %v304
      %v496 = vunpack.c.h.b16 %v304
      %v497 = vunpack.c.l.b16 %v305
      %v498 = vunpack.c.h.b16 %v305
      %v499 = vunpack.c.l.b16 %v306
      %v500 = vunpack.c.h.b16 %v306
      %v501 = vunpack.c.l.b16 %v307
      %v502 = vunpack.c.h.b16 %v307
      %v503 = vunpack.c.l.b16 %v308
      %v504 = vunpack.c.h.b16 %v308
      %v505 = vunpack.c.l.b16 %v309
      %v506 = vunpack.c.h.b16 %v309
      %v507 = vunpack.c.l.b16 %v310
      %v508 = vunpack.c.h.b16 %v310
      %v509 = vunpack.c.l.b16 %v311
      %v510 = vunpack.c.h.b16 %v311
      %v511 = vunpack.c.l.b16 %v312
      %v512 = vunpack.c.h.b16 %v312
      %v513 = vunpack.c.l.b16 %v313
      %v514 = vunpack.c.h.b16 %v313
      %v515 = vunpack.c.l.b16 %v314
      %v516 = vunpack.c.h.b16 %v314
      %v517 = vunpack.c.l.b16 %v315
      %v518 = vunpack.c.h.b16 %v315
      %v519 = vunpack.c.l.b16 %v316
      %v520 = vunpack.c.h.b16 %v316
      %v521 = vunpack.c.l.b16 %v317
      %v522 = vunpack.c.h.b16 %v317
      %v523 = vunpack.c.l.b16 %v318
      %v524 = vunpack.c.h.b16 %v318
      %v525 = vunpack.c.l.b16 %v319
      %v526 = vunpack.c.h.b16 %v319
      %v527 = vunpack.c.l.b16 %v320
      %v528 = vunpack.c.h.b16 %v320
      %v529 = vunpack.c.l.b16 %v321
      %v530 = vunpack.c.h.b16 %v321
      %v531 = vunpack.c.l.b16 %v322
      %v532 = vunpack.c.h.b16 %v322
      %v533 = vunpack.c.l.b16 %v323
      %v534 = vunpack.c.h.b16 %v323
      %v535 = vunpack.c.l.b16 %v324
      %v536 = vunpack.c.h.b16 %v324
      %v537 = vunpack.c.l.b16 %v325
      %v538 = vunpack.c.h.b16 %v325
      %v539 = vunpack.c.l.b16 %v326
      %v540 = vunpack.c.h.b16 %v326
      %v541 = vunpack.c.l.b16 %v327
      %v542 = vunpack.c.h.b16 %v327
      %v543 = vunpack.c.l.b16 %v328
      %v544 = vunpack.c.h.b16 %v328
      %v545 = vunpack.c.l.b16 %v329
      %v546 = vunpack.c.h.b16 %v329
      %v547 = vunpack.c.l.b16 %v330
      %v548 = vunpack.c.h.b16 %v330
      %v549 = vunpack.c.l.b16 %v331
      %v550 = vunpack.c.h.b16 %v331
      %v551 = vunpack.c.l.b16 %v332
      %v552 = vunpack.c.h.b16 %v332
      %v553 = vunpack.c.l.b16 %v333
      %v554 = vunpack.c.h.b16 %v333
      %v555 = vunpack.c.l.b16 %v334
      %v556 = vunpack.c.h.b16 %v334
      %v557 = vunpack.c.l.b16 %v335
      %v558 = vunpack.c.h.b16 %v335
      %v559 = vunpack.c.l.b16 %v336
      %v560 = vunpack.c.h.b16 %v336
      %v561 = vunpack.c.l.b16 %v337
      %v562 = vunpack.c.h.b16 %v337
      %v563 = vunpack.c.l.b16 %v338
      %v564 = vunpack.c.h.b16 %v338
      %v565 = vunpack.c.l.b16 %v339
      %v566 = vunpack.c.h.b16 %v339
      %v567 = vunpack.c.l.b16 %v340
      %v568 = vunpack.c.h.b16 %v340
      %v569 = vunpack.c.l.b16 %v341
      %v570 = vunpack.c.h.b16 %v341
      %v571 = vunpack.c.l.b16 %v342
      %v572 = vunpack.c.h.b16 %v342
      %v573 = vunpack.c.l.b16 %v343
      %v574 = vunpack.c.h.b16 %v343
      %v575 = vunpack.c.l.b16 %v344
      %v576 = vunpack.c.h.b16 %v344
      %v577 = vunpack.c.l.b16 %v345
      %v578 = vunpack.c.h.b16 %v345
      %v579 = vpack.c.b16 %v475, %v471
      %v580 = vpack.c.b16 %v476, %v472
      %v581 = vpack.c.b16 %v477, %v473
      %v582 = vpack.c.b16 %v478, %v474
      %v583 = vpack.c.b16 %v483, %v479
      %v584 = vpack.c.b16 %v484, %v480
      %v585 = vpack.c.b16 %v485, %v481
      %v586 = vpack.c.b16 %v486, %v482
      %v587 = vpack.c.b16 %v491, %v487
      %v588 = vpack.c.b16 %v492, %v488
      %v589 = vpack.c.b16 %v493, %v489
      %v590 = vpack.c.b16 %v494, %v490
      %v591 = vpack.c.b16 %v499, %v495
      %v592 = vpack.c.b16 %v500, %v496
      %v593 = vpack.c.b16 %v501, %v497
      %v594 = vpack.c.b16 %v502, %v498
      %v595 = vpack.c.b16 %v507, %v503
      %v596 = vpack.c.b16 %v508, %v504
      %v597 = vpack.c.b16 %v509, %v505
      %v598 = vpack.c.b16 %v510, %v506
      %v599 = vpack.c.b16 %v515, %v511
      %v600 = vpack.c.b16 %v516, %v512
      %v601 = vpack.c.b16 %v517, %v513
      %v602 = vpack.c.b16 %v518, %v514
      %v603 = vpack.c.b16 %v523, %v519
      %v604 = vpack.c.b16 %v524, %v520
      %v605 = vpack.c.b16 %v525, %v521
      %v606 = vpack.c.b16 %v526, %v522
      %v607 = vpack.c.b16 %v531, %v527
      %v608 = vpack.c.b16 %v532, %v528
      %v609 = vpack.c.b16 %v533, %v529
      %v610 = vpack.c.b16 %v534, %v530
      %v611 = vpack.c.b16 %v539, %v535
      %v612 = vpack.c.b16 %v540, %v536
      %v613 = vpack.c.b16 %v541, %v537
      %v614 = vpack.c.b16 %v542, %v538
      %v615 = vpack.c.b16 %v547, %v543
      %v616 = vpack.c.b16 %v548, %v544
      %v617 = vpack.c.b16 %v549, %v545
      %v618 = vpack.c.b16 %v550, %v546
      %v619 = vpack.c.b16 %v555, %v551
      %v620 = vpack.c.b16 %v556, %v552
      %v621 = vpack.c.b16 %v557, %v553
      %v622 = vpack.c.b16 %v558, %v554
      %v623 = vpack.c.b16 %v563, %v559
      %v624 = vpack.c.b16 %v564, %v560
      %v625 = vpack.c.b16 %v565, %v561
      %v626 = vpack.c.b16 %v566, %v562
      %v627 = vpack.c.b16 %v571, %v567
      %v628 = vpack.c.b16 %v572, %v568
      %v629 = vpack.c.b16 %v573, %v569
      %v630 = vpack.c.b16 %v574, %v570
      %v631 = vpack.c.b16 %v575, %v575
      %v632 = vpack.c.b16 %v576, %v576
      %v633 = vpack.c.b16 %v577, %v577
      %v634 = vpack.c.b16 %v578, %v578
      %v755 = vunpack.c.l.b16 %v346
      %v756 = vunpack.c.l.b16 %v347
      %v757 = vunpack.c.l.b16 %v348
      %v758 = vunpack.c.l.b16 %v349
      %v759 = vunpack.c.l.b16 %v350
      %v760 = vunpack.c.l.b16 %v351
      %v761 = vunpack.c.l.b16 %v352
      %v762 = vunpack.c.l.b16 %v353
      %v763 = vunpack.c.l.b16 %v354
      %v764 = vunpack.c.l.b16 %v355
      %v765 = vunpack.c.l.b16 %v356
      %v766 = vunpack.c.l.b16 %v357
      %v767 = vunpack.c.l.b16 %v358
      %v768 = vunpack.c.l.b16 %v359
      %v769 = vunpack.c.l.b16 %v360
      %v770 = vunpack.c.l.b16 %v361
      %v771 = vunpack.c.l.b16 %v362
      %v772 = vunpack.c.l.b16 %v363
      %v773 = vunpack.c.l.b16 %v364
      %v774 = vunpack.c.l.b16 %v365
      %v775 = vunpack.c.l.b16 %v366
      %v776 = vunpack.c.l.b16 %v367
      %v777 = vunpack.c.l.b16 %v368
      %v778 = vunpack.c.l.b16 %v369
      %v779 = vunpack.c.l.b16 %v370
      %v780 = vunpack.c.l.b16 %v371
      %v781 = vunpack.c.l.b16 %v372
      %v782 = vunpack.c.l.b16 %v373
      %v783 = vunpack.c.l.b16 %v374
      %v784 = vunpack.c.l.b16 %v375
      %v785 = vunpack.c.l.b16 %v376
      %v786 = vunpack.c.l.b16 %v377
      %v787 = vunpack.c.l.b16 %v378
      %v788 = vunpack.c.l.b16 %v379
      %v789 = vunpack.c.l.b16 %v380
      %v790 = vunpack.c.l.b16 %v381
      %v791 = vunpack.c.l.b16 %v382
      %v792 = vunpack.c.l.b16 %v383
      %v793 = vunpack.c.l.b16 %v384
      %v794 = vunpack.c.l.b16 %v385
      %v795 = vunpack.c.l.b16 %v386
      %v796 = vunpack.c.l.b16 %v387
      %v797 = vunpack.c.l.b16 %v388
      %v798 = vunpack.c.l.b16 %v389
      %v799 = vunpack.c.l.b16 %v390
      %v800 = vunpack.c.l.b16 %v391
      %v801 = vunpack.c.l.b16 %v392
      %v802 = vunpack.c.l.b16 %v393
      %v803 = vunpack.c.l.b16 %v394
      %v804 = vunpack.c.l.b16 %v395
      %v805 = vunpack.c.l.b16 %v396
      %v806 = vunpack.c.l.b16 %v397
      %v807 = vunpack.c.l.b16 %v398
      %v808 = vunpack.c.l.b16 %v399
      %v809 = vunpack.c.l.b16 %v400
      %v810 = vunpack.c.l.b16 %v401
      %v811 = vunpack.c.l.b16 %v402
      %v812 = vunpack.c.l.b16 %v403
      %v813 = vunpack.c.l.b16 %v404
      %v814 = vunpack.c.l.b16 %v405
      %v815 = vunpack.c.l.b16 %v406
      %v816 = vunpack.c.l.b16 %v407
      %v817 = vunpack.c.l.b16 %v408
      %v818 = vunpack.c.l.b16 %v409
      %v819 = vpack.c.b16 %v756, %v755
      %v820 = vpack.c.b16 %v758, %v757
      %v821 = vpack.c.b16 %v760, %v759
      %v822 = vpack.c.b16 %v762, %v761
      %v823 = vpack.c.b16 %v764, %v763
      %v824 = vpack.c.b16 %v766, %v765
      %v825 = vpack.c.b16 %v768, %v767
      %v826 = vpack.c.b16 %v770, %v769
      %v827 = vpack.c.b16 %v772, %v771
      %v828 = vpack.c.b16 %v774, %v773
      %v829 = vpack.c.b16 %v776, %v775
      %v830 = vpack.c.b16 %v778, %v777
      %v831 = vpack.c.b16 %v780, %v779
      %v832 = vpack.c.b16 %v782, %v781
      %v833 = vpack.c.b16 %v784, %v783
      %v834 = vpack.c.b16 %v786, %v785
      %v835 = vpack.c.b16 %v788, %v787
      %v836 = vpack.c.b16 %v790, %v789
      %v837 = vpack.c.b16 %v792, %v791
      %v838 = vpack.c.b16 %v794, %v793
      %v839 = vpack.c.b16 %v796, %v795
      %v840 = vpack.c.b16 %v798, %v797
      %v841 = vpack.c.b16 %v800, %v799
      %v842 = vpack.c.b16 %v802, %v801
      %v843 = vpack.c.b16 %v804, %v803
      %v844 = vpack.c.b16 %v806, %v805
      %v845 = vpack.c.b16 %v808, %v807
      %v846 = vpack.c.b16 %v810, %v809
      %v847 = vpack.c.b16 %v812, %v811
      %v848 = vpack.c.b16 %v814, %v813
      %v849 = vpack.c.b16 %v816, %v815
      %v850 = vpack.c.b16 %v818, %v817
      %883 = vmatprep.subr.bf16.mxu0 0
      %884 = vmatpush1.bf16.msra.mxu0 %v819
      %885 = vmatprep.subr.bf16.mxu0 0
      %886 = vmatpush1.bf16.msra.mxu0 %v820
      %887 = vmatprep.subr.bf16.mxu0 0
      %888 = vmatpush1.bf16.msra.mxu0 %v821
      %889 = vmatprep.subr.bf16.mxu0 0
      %890 = vmatpush1.bf16.msra.mxu0 %v822
      %891 = vmatprep.subr.bf16.mxu0 0
      %892 = vmatpush1.bf16.msra.mxu0 %v823
      %893 = vmatprep.subr.bf16.mxu0 0
      %894 = vmatpush1.bf16.msra.mxu0 %v824
      %895 = vmatprep.subr.bf16.mxu0 0
      %896 = vmatpush1.bf16.msra.mxu0 %v825
      %897 = vmatprep.subr.bf16.mxu0 0
      %898 = vmatpush1.bf16.msra.mxu0 %v826
      %899 = vmatprep.subr.bf16.mxu0 0
      %900 = vmatpush1.bf16.msra.mxu0 %v827
      %901 = vmatprep.subr.bf16.mxu0 0
      %902 = vmatpush1.bf16.msra.mxu0 %v828
      %903 = vmatprep.subr.bf16.mxu0 0
      %904 = vmatpush1.bf16.msra.mxu0 %v829
      %905 = vmatprep.subr.bf16.mxu0 0
      %906 = vmatpush1.bf16.msra.mxu0 %v830
      %907 = vmatprep.subr.bf16.mxu0 0
      %908 = vmatpush1.bf16.msra.mxu0 %v831
      %909 = vmatprep.subr.bf16.mxu0 0
      %910 = vmatpush1.bf16.msra.mxu0 %v832
      %911 = vmatprep.subr.bf16.mxu0 0
      %912 = vmatpush1.bf16.msra.mxu0 %v833
      %913 = vmatprep.subr.bf16.mxu0 0
      %914 = vmatpush1.bf16.msra.mxu0 %v834
      %915 = vmatprep.mubr.bf16.mxu0 %v580
      %916 = vmatmul.mubr.bf16.gmra.mrb[0].mxu0 %v579
      %v917 = vpop.f32.mrb[0].mxu0
      %v918 = vadd.f32 %v415, %v917
      %v919 = vpop.f32.mrb[0].mxu0
      %v920 = vpop.f32.mrb[0].mxu0
      %v921 = vadd.f32 %v415, %v920
      %v922 = vpop.f32.mrb[0].mxu0
      %923 = vmatprep.mubr.bf16.mxu0 %v584
      %924 = vmatmul.mubr.bf16.gmra.mrb[0].mxu0 %v583
      %v925 = vpop.f32.mrb[0].mxu0
      %v926 = vadd.f32 %v415, %v925
      %v927 = vpop.f32.mrb[0].mxu0
      %v928 = vpop.f32.mrb[0].mxu0
      %v929 = vadd.f32 %v415, %v928
      %v930 = vpop.f32.mrb[0].mxu0
      %931 = vmatprep.mubr.bf16.mxu0 %v588
      %932 = vmatmul.mubr.bf16.gmra.mrb[0].mxu0 %v587
      %v933 = vpop.f32.mrb[0].mxu0
      %v934 = vadd.f32 %v415, %v933
      %v935 = vpop.f32.mrb[0].mxu0
      %v936 = vpop.f32.mrb[0].mxu0
      %v937 = vadd.f32 %v415, %v936
      %v938 = vpop.f32.mrb[0].mxu0
      %939 = vmatprep.mubr.bf16.mxu0 %v592
      %940 = vmatmul.mubr.bf16.gmra.mrb[0].mxu0 %v591
      %v941 = vpop.f32.mrb[0].mxu0
      %v942 = vadd.f32 %v415, %v941
      %v943 = vpop.f32.mrb[0].mxu0
      %v944 = vpop.f32.mrb[0].mxu0
      %v945 = vadd.f32 %v415, %v944
      %v946 = vpop.f32.mrb[0].mxu0
      %947 = vmatprep.mubr.bf16.mxu0 %v596
      %948 = vmatmul.mubr.bf16.gmra.mrb[0].mxu0 %v595
      %v949 = vpop.f32.mrb[0].mxu0
      %v950 = vadd.f32 %v415, %v949
      %v951 = vpop.f32.mrb[0].mxu0
      %v952 = vpop.f32.mrb[0].mxu0
      %v953 = vadd.f32 %v415, %v952
      %v954 = vpop.f32.mrb[0].mxu0
      %955 = vmatprep.mubr.bf16.mxu0 %v600
      %956 = vmatmul.mubr.bf16.gmra.mrb[0].mxu0 %v599
      %v957 = vpop.f32.mrb[0].mxu0
      %v958 = vadd.f32 %v415, %v957
      %v959 = vpop.f32.mrb[0].mxu0
      %v960 = vpop.f32.mrb[0].mxu0
      %v961 = vadd.f32 %v415, %v960
      %v962 = vpop.f32.mrb[0].mxu0
      %963 = vmatprep.mubr.bf16.mxu0 %v604
      %964 = vmatmul.mubr.bf16.gmra.mrb[0].mxu0 %v603
      %v965 = vpop.f32.mrb[0].mxu0
      %v966 = vadd.f32 %v415, %v965
      %v967 = vpop.f32.mrb[0].mxu0
      %v968 = vpop.f32.mrb[0].mxu0
      %v969 = vadd.f32 %v415, %v968
      %v970 = vpop.f32.mrb[0].mxu0
      %971 = vmatprep.mubr.bf16.mxu0 %v608
      %972 = vmatmul.mubr.bf16.gmra.mrb[0].mxu0 %v607
      %v973 = vpop.f32.mrb[0].mxu0
      %v974 = vadd.f32 %v415, %v973
      %v975 = vpop.f32.mrb[0].mxu0
      %v976 = vpop.f32.mrb[0].mxu0
      %v977 = vadd.f32 %v415, %v976
      %v978 = vpop.f32.mrb[0].mxu0
      %979 = vmatprep.mubr.bf16.mxu0 %v612
      %980 = vmatmul.mubr.bf16.gmra.mrb[0].mxu0 %v611
      %v981 = vpop.f32.mrb[0].mxu0
      %v982 = vadd.f32 %v415, %v981
      %v983 = vpop.f32.mrb[0].mxu0
      %v984 = vpop.f32.mrb[0].mxu0
      %v985 = vadd.f32 %v415, %v984
      %v986 = vpop.f32.mrb[0].mxu0
      %987 = vmatprep.mubr.bf16.mxu0 %v616
      %988 = vmatmul.mubr.bf16.gmra.mrb[0].mxu0 %v615
      %v989 = vpop.f32.mrb[0].mxu0
      %v990 = vadd.f32 %v415, %v989
      %v991 = vpop.f32.mrb[0].mxu0
      %v992 = vpop.f32.mrb[0].mxu0
      %v993 = vadd.f32 %v415, %v992
      %v994 = vpop.f32.mrb[0].mxu0
      %995 = vmatprep.mubr.bf16.mxu0 %v620
      %996 = vmatmul.mubr.bf16.gmra.mrb[0].mxu0 %v619
      %v997 = vpop.f32.mrb[0].mxu0
      %v998 = vadd.f32 %v415, %v997
      %v999 = vpop.f32.mrb[0].mxu0
      %v1000 = vpop.f32.mrb[0].mxu0
      %v1001 = vadd.f32 %v415, %v1000
      %v1002 = vpop.f32.mrb[0].mxu0
      %1003 = vmatprep.mubr.bf16.mxu0 %v624
      %1004 = vmatmul.mubr.bf16.gmra.mrb[0].mxu0 %v623
      %v1005 = vpop.f32.mrb[0].mxu0
      %v1006 = vadd.f32 %v415, %v1005
      %v1007 = vpop.f32.mrb[0].mxu0
      %v1008 = vpop.f32.mrb[0].mxu0
      %v1009 = vadd.f32 %v415, %v1008
      %v1010 = vpop.f32.mrb[0].mxu0
      %1011 = vmatprep.mubr.bf16.mxu0 %v628
      %1012 = vmatmul.mubr.bf16.gmra.mrb[0].mxu0 %v627
      %v1013 = vpop.f32.mrb[0].mxu0
      %v1014 = vadd.f32 %v415, %v1013
      %v1015 = vpop.f32.mrb[0].mxu0
      %v1016 = vpop.f32.mrb[0].mxu0
      %v1017 = vadd.f32 %v415, %v1016
      %v1018 = vpop.f32.mrb[0].mxu0
      %1019 = vmatprep.mubr.bf16.mxu0 %v632
      %1020 = vmatmul.mubr.bf16.gmra.mrb[0].mxu0 %v631
      %v1021 = vpop.f32.mrb[0].mxu0
      %v1022 = vadd.f32 %v415, %v1021
      %v1023 = vpop.f32.mrb[0].mxu0
      %v1024 = vpop.f32.mrb[0].mxu0
      %v1025 = vpop.f32.mrb[0].mxu0
      %1026 = vdwg.mxu0
      %1027 = vmatprep.subr.bf16.mxu0 0
      %1028 = vmatpush1.bf16.msra.mxu0 %v835
      %1029 = vmatprep.subr.bf16.mxu0 0
      %1030 = vmatpush1.bf16.msra.mxu0 %v836
      %1031 = vmatprep.subr.bf16.mxu0 0
      %1032 = vmatpush1.bf16.msra.mxu0 %v837
      %1033 = vmatprep.subr.bf16.mxu0 0
      %1034 = vmatpush1.bf16.msra.mxu0 %v838
      %1035 = vmatprep.subr.bf16.mxu0 0
      %1036 = vmatpush1.bf16.msra.mxu0 %v839
      %1037 = vmatprep.subr.bf16.mxu0 0
      %1038 = vmatpush1.bf16.msra.mxu0 %v840
      %1039 = vmatprep.subr.bf16.mxu0 0
      %1040 = vmatpush1.bf16.msra.mxu0 %v841
      %1041 = vmatprep.subr.bf16.mxu0 0
      %1042 = vmatpush1.bf16.msra.mxu0 %v842
      %1043 = vmatprep.subr.bf16.mxu0 0
      %1044 = vmatpush1.bf16.msra.mxu0 %v843
      %1045 = vmatprep.subr.bf16.mxu0 0
      %1046 = vmatpush1.bf16.msra.mxu0 %v844
      %1047 = vmatprep.subr.bf16.mxu0 0
      %1048 = vmatpush1.bf16.msra.mxu0 %v845
      %1049 = vmatprep.subr.bf16.mxu0 0
      %1050 = vmatpush1.bf16.msra.mxu0 %v846
      %1051 = vmatprep.subr.bf16.mxu0 0
      %1052 = vmatpush1.bf16.msra.mxu0 %v847
      %1053 = vmatprep.subr.bf16.mxu0 0
      %1054 = vmatpush1.bf16.msra.mxu0 %v848
      %1055 = vmatprep.subr.bf16.mxu0 0
      %1056 = vmatpush1.bf16.msra.mxu0 %v849
      %1057 = vmatprep.subr.bf16.mxu0 0
      %1058 = vmatpush1.bf16.msra.mxu0 %v850
      %1059 = vmatprep.mubr.bf16.mxu0 %v582
      %1060 = vmatmul.mubr.bf16.gmra.mrb[0].mxu0 %v581
      %v1061 = vpop.f32.mrb[0].mxu0
      %v1062 = vadd.f32 %v918, %v1061
      %v1063 = vpop.f32.mrb[0].mxu0
      %v1064 = vpop.f32.mrb[0].mxu0
      %v1065 = vadd.f32 %v921, %v1064
      %v1066 = vpop.f32.mrb[0].mxu0
      %1067 = vmatprep.mubr.bf16.mxu0 %v586
      %1068 = vmatmul.mubr.bf16.gmra.mrb[0].mxu0 %v585
      %v1069 = vpop.f32.mrb[0].mxu0
      %v1070 = vadd.f32 %v926, %v1069
      %v1071 = vpop.f32.mrb[0].mxu0
      %v1072 = vpop.f32.mrb[0].mxu0
      %v1073 = vadd.f32 %v929, %v1072
      %v1074 = vpop.f32.mrb[0].mxu0
      %1075 = vmatprep.mubr.bf16.mxu0 %v590
      %1076 = vmatmul.mubr.bf16.gmra.mrb[0].mxu0 %v589
      %v1077 = vpop.f32.mrb[0].mxu0
      %v1078 = vadd.f32 %v934, %v1077
      %v1079 = vpop.f32.mrb[0].mxu0
      %v1080 = vpop.f32.mrb[0].mxu0
      %v1081 = vadd.f32 %v937, %v1080
      %v1082 = vpop.f32.mrb[0].mxu0
      %1083 = vmatprep.mubr.bf16.mxu0 %v594
      %1084 = vmatmul.mubr.bf16.gmra.mrb[0].mxu0 %v593
      %v1085 = vpop.f32.mrb[0].mxu0
      %v1086 = vadd.f32 %v942, %v1085
      %v1087 = vpop.f32.mrb[0].mxu0
      %v1088 = vpop.f32.mrb[0].mxu0
      %v1089 = vadd.f32 %v945, %v1088
      %v1090 = vpop.f32.mrb[0].mxu0
      %1091 = vmatprep.mubr.bf16.mxu0 %v598
      %1092 = vmatmul.mubr.bf16.gmra.mrb[0].mxu0 %v597
      %v1093 = vpop.f32.mrb[0].mxu0
      %v1094 = vadd.f32 %v950, %v1093
      %v1095 = vpop.f32.mrb[0].mxu0
      %v1096 = vpop.f32.mrb[0].mxu0
      %v1097 = vadd.f32 %v953, %v1096
      %v1098 = vpop.f32.mrb[0].mxu0
      %1099 = vmatprep.mubr.bf16.mxu0 %v602
      %1100 = vmatmul.mubr.bf16.gmra.mrb[0].mxu0 %v601
      %v1101 = vpop.f32.mrb[0].mxu0
      %v1102 = vadd.f32 %v958, %v1101
      %v1103 = vpop.f32.mrb[0].mxu0
      %v1104 = vpop.f32.mrb[0].mxu0
      %v1105 = vadd.f32 %v961, %v1104
      %v1106 = vpop.f32.mrb[0].mxu0
      %1107 = vmatprep.mubr.bf16.mxu0 %v606
      %1108 = vmatmul.mubr.bf16.gmra.mrb[0].mxu0 %v605
      %v1109 = vpop.f32.mrb[0].mxu0
      %v1110 = vadd.f32 %v966, %v1109
      %v1111 = vpop.f32.mrb[0].mxu0
      %v1112 = vpop.f32.mrb[0].mxu0
      %v1113 = vadd.f32 %v969, %v1112
      %v1114 = vpop.f32.mrb[0].mxu0
      %1115 = vmatprep.mubr.bf16.mxu0 %v610
      %1116 = vmatmul.mubr.bf16.gmra.mrb[0].mxu0 %v609
      %v1117 = vpop.f32.mrb[0].mxu0
      %v1118 = vadd.f32 %v974, %v1117
      %v1119 = vpop.f32.mrb[0].mxu0
      %v1120 = vpop.f32.mrb[0].mxu0
      %v1121 = vadd.f32 %v977, %v1120
      %v1122 = vpop.f32.mrb[0].mxu0
      %1123 = vmatprep.mubr.bf16.mxu0 %v614
      %1124 = vmatmul.mubr.bf16.gmra.mrb[0].mxu0 %v613
      %v1125 = vpop.f32.mrb[0].mxu0
      %v1126 = vadd.f32 %v982, %v1125
      %v1127 = vpop.f32.mrb[0].mxu0
      %v1128 = vpop.f32.mrb[0].mxu0
      %v1129 = vadd.f32 %v985, %v1128
      %v1130 = vpop.f32.mrb[0].mxu0
      %1131 = vmatprep.mubr.bf16.mxu0 %v618
      %1132 = vmatmul.mubr.bf16.gmra.mrb[0].mxu0 %v617
      %v1133 = vpop.f32.mrb[0].mxu0
      %v1134 = vadd.f32 %v990, %v1133
      %v1135 = vpop.f32.mrb[0].mxu0
      %v1136 = vpop.f32.mrb[0].mxu0
      %v1137 = vadd.f32 %v993, %v1136
      %v1138 = vpop.f32.mrb[0].mxu0
      %1139 = vmatprep.mubr.bf16.mxu0 %v622
      %1140 = vmatmul.mubr.bf16.gmra.mrb[0].mxu0 %v621
      %v1141 = vpop.f32.mrb[0].mxu0
      %v1142 = vadd.f32 %v998, %v1141
      %v1143 = vpop.f32.mrb[0].mxu0
      %v1144 = vpop.f32.mrb[0].mxu0
      %v1145 = vadd.f32 %v1001, %v1144
      %v1146 = vpop.f32.mrb[0].mxu0
      %1147 = vmatprep.mubr.bf16.mxu0 %v626
      %1148 = vmatmul.mubr.bf16.gmra.mrb[0].mxu0 %v625
      %v1149 = vpop.f32.mrb[0].mxu0
      %v1150 = vadd.f32 %v1006, %v1149
      %v1151 = vpop.f32.mrb[0].mxu0
      %v1152 = vpop.f32.mrb[0].mxu0
      %v1153 = vadd.f32 %v1009, %v1152
      %v1154 = vpop.f32.mrb[0].mxu0
      %1155 = vmatprep.mubr.bf16.mxu0 %v630
      %1156 = vmatmul.mubr.bf16.gmra.mrb[0].mxu0 %v629
      %v1157 = vpop.f32.mrb[0].mxu0
      %v1158 = vadd.f32 %v1014, %v1157
      %v1159 = vpop.f32.mrb[0].mxu0
      %v1160 = vpop.f32.mrb[0].mxu0
      %v1161 = vadd.f32 %v1017, %v1160
      %v1162 = vpop.f32.mrb[0].mxu0
      %1163 = vmatprep.mubr.bf16.mxu0 %v634
      %1164 = vmatmul.mubr.bf16.gmra.mrb[0].mxu0 %v633
      %v1165 = vpop.f32.mrb[0].mxu0
      %v1166 = vadd.f32 %v1022, %v1165
      %v1167 = vpop.f32.mrb[0].mxu0
      %v1168 = vpop.f32.mrb[0].mxu0
      %v1169 = vpop.f32.mrb[0].mxu0
      %1170 = vdwg.mxu0
      %vm1171 = vcmask 523264
      %1172 = vst.msk [vmem:[%s280] sm:$0xff] %vm1171, %v1062
      %1173 = vst.msk [vmem:[%s280 + $0x8] sm:$0xff] %vm1171, %v1065
      %1174 = vst.msk [vmem:[%s280 + $0x10] sm:$0xff] %vm1171, %v1070
      %1175 = vst.msk [vmem:[%s280 + $0x18] sm:$0xff] %vm1171, %v1073
      %1176 = vst.msk [vmem:[%s280 + $0x20] sm:$0xff] %vm1171, %v1078
      %1177 = vst.msk [vmem:[%s280 + $0x28] sm:$0xff] %vm1171, %v1081
      %1178 = vst.msk [vmem:[%s280 + $0x30] sm:$0xff] %vm1171, %v1086
      %1179 = vst.msk [vmem:[%s280 + $0x38] sm:$0xff] %vm1171, %v1089
      %1180 = vst.msk [vmem:[%s280 + $0x40] sm:$0xff] %vm1171, %v1094
      %1181 = vst.msk [vmem:[%s280 + $0x48] sm:$0xff] %vm1171, %v1097
      %1182 = vst.msk [vmem:[%s280 + $0x50] sm:$0xff] %vm1171, %v1102
      %1183 = vst.msk [vmem:[%s280 + $0x58] sm:$0xff] %vm1171, %v1105
      %1184 = vst.msk [vmem:[%s280 + $0x60] sm:$0xff] %vm1171, %v1110
      %1185 = vst.msk [vmem:[%s280 + $0x68] sm:$0xff] %vm1171, %v1113
      %1186 = vst.msk [vmem:[%s280 + $0x70] sm:$0xff] %vm1171, %v1118
      %1187 = vst.msk [vmem:[%s280 + $0x78] sm:$0xff] %vm1171, %v1121
      %1188 = vst.msk [vmem:[%s280 + $0x80] sm:$0xff] %vm1171, %v1126
      %1189 = vst.msk [vmem:[%s280 + $0x88] sm:$0xff] %vm1171, %v1129
      %1190 = vst.msk [vmem:[%s280 + $0x90] sm:$0xff] %vm1171, %v1134
      %1191 = vst.msk [vmem:[%s280 + $0x98] sm:$0xff] %vm1171, %v1137
      %1192 = vst.msk [vmem:[%s280 + $0xa0] sm:$0xff] %vm1171, %v1142
      %1193 = vst.msk [vmem:[%s280 + $0xa8] sm:$0xff] %vm1171, %v1145
      %1194 = vst.msk [vmem:[%s280 + $0xb0] sm:$0xff] %vm1171, %v1150
      %1195 = vst.msk [vmem:[%s280 + $0xb8] sm:$0xff] %vm1171, %v1153
      %1196 = vst.msk [vmem:[%s280 + $0xc0] sm:$0xff] %vm1171, %v1158
      %1197 = vst.msk [vmem:[%s280 + $0xc8] sm:$0xff] %vm1171, %v1161
      %1198 = vst.msk [vmem:[%s280 + $0xd0] sm:$0xff] %vm1171, %v1166
      %v1199 = vld [vmem:[%s4] sm:$0x1]
      %v1200 = vsel %vm1171, %v1062, 0.0
      %v1201 = vsel %vm1171, %v1065, 0.0
      %v1202 = vadd.f32 %v1200, %v1201
      %v1203 = vsel %vm1171, %v1070, 0.0
      %v1204 = vadd.f32 %v1202, %v1203
      %v1205 = vsel %vm1171, %v1073, 0.0
      %v1206 = vadd.f32 %v1204, %v1205
      %v1207 = vsel %vm1171, %v1078, 0.0
      %v1208 = vadd.f32 %v1206, %v1207
      %v1209 = vsel %vm1171, %v1081, 0.0
      %v1210 = vadd.f32 %v1208, %v1209
      %v1211 = vsel %vm1171, %v1086, 0.0
      %v1212 = vadd.f32 %v1210, %v1211
      %v1213 = vsel %vm1171, %v1089, 0.0
      %v1214 = vadd.f32 %v1212, %v1213
      %v1215 = vsel %vm1171, %v1094, 0.0
      %v1216 = vadd.f32 %v1214, %v1215
      %v1217 = vsel %vm1171, %v1097, 0.0
      %v1218 = vadd.f32 %v1216, %v1217
      %v1219 = vsel %vm1171, %v1102, 0.0
      %v1220 = vadd.f32 %v1218, %v1219
      %v1221 = vsel %vm1171, %v1105, 0.0
      %v1222 = vadd.f32 %v1220, %v1221
      %v1223 = vsel %vm1171, %v1110, 0.0
      %v1224 = vadd.f32 %v1222, %v1223
      %v1225 = vsel %vm1171, %v1113, 0.0
      %v1226 = vadd.f32 %v1224, %v1225
      %v1227 = vsel %vm1171, %v1118, 0.0
      %v1228 = vadd.f32 %v1226, %v1227
      %v1229 = vsel %vm1171, %v1121, 0.0
      %v1230 = vadd.f32 %v1228, %v1229
      %v1231 = vsel %vm1171, %v1126, 0.0
      %v1232 = vadd.f32 %v1230, %v1231
      %v1233 = vsel %vm1171, %v1129, 0.0
      %v1234 = vadd.f32 %v1232, %v1233
      %v1235 = vsel %vm1171, %v1134, 0.0
      %v1236 = vadd.f32 %v1234, %v1235
      %v1237 = vsel %vm1171, %v1137, 0.0
      %v1238 = vadd.f32 %v1236, %v1237
      %v1239 = vsel %vm1171, %v1142, 0.0
      %v1240 = vadd.f32 %v1238, %v1239
      %v1241 = vsel %vm1171, %v1145, 0.0
      %v1242 = vadd.f32 %v1240, %v1241
      %v1243 = vsel %vm1171, %v1150, 0.0
      %v1244 = vadd.f32 %v1242, %v1243
      %v1245 = vsel %vm1171, %v1153, 0.0
      %v1246 = vadd.f32 %v1244, %v1245
      %v1247 = vsel %vm1171, %v1158, 0.0
      %v1248 = vadd.f32 %v1246, %v1247
      %v1249 = vsel %vm1171, %v1161, 0.0
      %v1250 = vadd.f32 %v1248, %v1249
      %v1251 = vsel %vm1171, %v1166, 0.0
      %v1252 = vadd.f32 %v1250, %v1251
      %v1253 = vrot.slane %v1252, 4
      %v1254 = vadd.f32 %v1252, %v1253
      %v1255 = vrot.slane %v1254, 2
      %v1256 = vadd.f32 %v1254, %v1255
      %v1257 = vrot.slane %v1256, 1
      %v1258 = vadd.f32 %v1256, %v1257
      %v1259 = vadd.f32 %v1199, %v1258
      %vm1260 = vcmask 516096
      %1261 = vst.msk [vmem:[%s4] sm:$0x1] %vm1260, %v1259
      %v1262 = vld [vmem:[%s5] sm:$0x1]
      %v1263 = vmul.f32 %v1062, %v1062
      %v1264 = vmul.f32 %v1065, %v1065
      %v1265 = vmul.f32 %v1070, %v1070
      %v1266 = vmul.f32 %v1073, %v1073
      %v1267 = vmul.f32 %v1078, %v1078
      %v1268 = vmul.f32 %v1081, %v1081
      %v1269 = vmul.f32 %v1086, %v1086
      %v1270 = vmul.f32 %v1089, %v1089
      %v1271 = vmul.f32 %v1094, %v1094
      %v1272 = vmul.f32 %v1097, %v1097
      %v1273 = vmul.f32 %v1102, %v1102
      %v1274 = vmul.f32 %v1105, %v1105
      %v1275 = vmul.f32 %v1110, %v1110
      %v1276 = vmul.f32 %v1113, %v1113
      %v1277 = vmul.f32 %v1118, %v1118
      %v1278 = vmul.f32 %v1121, %v1121
      %v1279 = vmul.f32 %v1126, %v1126
      %v1280 = vmul.f32 %v1129, %v1129
      %v1281 = vmul.f32 %v1134, %v1134
      %v1282 = vmul.f32 %v1137, %v1137
      %v1283 = vmul.f32 %v1142, %v1142
      %v1284 = vmul.f32 %v1145, %v1145
      %v1285 = vmul.f32 %v1150, %v1150
      %v1286 = vmul.f32 %v1153, %v1153
      %v1287 = vmul.f32 %v1158, %v1158
      %v1288 = vmul.f32 %v1161, %v1161
      %v1289 = vmul.f32 %v1166, %v1166
      %v1290 = vsel %vm1171, %v1263, 0.0
      %v1291 = vsel %vm1171, %v1264, 0.0
      %v1292 = vadd.f32 %v1290, %v1291
      %v1293 = vsel %vm1171, %v1265, 0.0
      %v1294 = vadd.f32 %v1292, %v1293
      %v1295 = vsel %vm1171, %v1266, 0.0
      %v1296 = vadd.f32 %v1294, %v1295
      %v1297 = vsel %vm1171, %v1267, 0.0
      %v1298 = vadd.f32 %v1296, %v1297
      %v1299 = vsel %vm1171, %v1268, 0.0
      %v1300 = vadd.f32 %v1298, %v1299
      %v1301 = vsel %vm1171, %v1269, 0.0
      %v1302 = vadd.f32 %v1300, %v1301
      %v1303 = vsel %vm1171, %v1270, 0.0
      %v1304 = vadd.f32 %v1302, %v1303
      %v1305 = vsel %vm1171, %v1271, 0.0
      %v1306 = vadd.f32 %v1304, %v1305
      %v1307 = vsel %vm1171, %v1272, 0.0
      %v1308 = vadd.f32 %v1306, %v1307
      %v1309 = vsel %vm1171, %v1273, 0.0
      %v1310 = vadd.f32 %v1308, %v1309
      %v1311 = vsel %vm1171, %v1274, 0.0
      %v1312 = vadd.f32 %v1310, %v1311
      %v1313 = vsel %vm1171, %v1275, 0.0
      %v1314 = vadd.f32 %v1312, %v1313
      %v1315 = vsel %vm1171, %v1276, 0.0
      %v1316 = vadd.f32 %v1314, %v1315
      %v1317 = vsel %vm1171, %v1277, 0.0
      %v1318 = vadd.f32 %v1316, %v1317
      %v1319 = vsel %vm1171, %v1278, 0.0
      %v1320 = vadd.f32 %v1318, %v1319
      %v1321 = vsel %vm1171, %v1279, 0.0
      %v1322 = vadd.f32 %v1320, %v1321
      %v1323 = vsel %vm1171, %v1280, 0.0
      %v1324 = vadd.f32 %v1322, %v1323
      %v1325 = vsel %vm1171, %v1281, 0.0
      %v1326 = vadd.f32 %v1324, %v1325
      %v1327 = vsel %vm1171, %v1282, 0.0
      %v1328 = vadd.f32 %v1326, %v1327
      %v1329 = vsel %vm1171, %v1283, 0.0
      %v1330 = vadd.f32 %v1328, %v1329
      %v1331 = vsel %vm1171, %v1284, 0.0
      %v1332 = vadd.f32 %v1330, %v1331
      %v1333 = vsel %vm1171, %v1285, 0.0
      %v1334 = vadd.f32 %v1332, %v1333
      %v1335 = vsel %vm1171, %v1286, 0.0
      %v1336 = vadd.f32 %v1334, %v1335
      %v1337 = vsel %vm1171, %v1287, 0.0
      %v1338 = vadd.f32 %v1336, %v1337
      %v1339 = vsel %vm1171, %v1288, 0.0
      %v1340 = vadd.f32 %v1338, %v1339
      %v1341 = vsel %vm1171, %v1289, 0.0
      %v1342 = vadd.f32 %v1340, %v1341
      %v1343 = vrot.slane %v1342, 4
      %v1344 = vadd.f32 %v1342, %v1343
      %v1345 = vrot.slane %v1344, 2
      %v1346 = vadd.f32 %v1344, %v1345
      %v1347 = vrot.slane %v1346, 1
      %v1348 = vadd.f32 %v1346, %v1347
      %v1349 = vadd.f32 %v1262, %v1348
      %1350 = vst.msk [vmem:[%s5] sm:$0x1] %vm1260, %v1349
      %s1351 = smul.u32 27, %s22
      %p1352 = scmp.lt.s32.totalorder %s21, 3
      %s1353 = scalar_select %p1352, %s21, 3
      %p1354 = scmp.lt.s32.totalorder %s1351, 26
      %s1355 = scalar_select %p1354, %s1351, 26
      %s1356 = smul.addr %s1353, 27
      %s1357 = sadd.s32 %s1355, %s1356
      %s1358 = smul.addr %s1357, 8
      %s1359 = scalar_lea.vmem %s3, %s1358
      // Predicated region
      $region37: #{wgan_g_forward.13} parent=31 // pred_check
        %p1360 = pneg %p124
      $region38: #{wgan_g_forward.13} parent=31 // pred_check_branch
        %1362 = sbr.rel (%p1360) target = $region40
      $region39: #{wgan_g_forward.13} parent=31 // pred_region
        %s1363 = smul.u32 27, %s22
      $region40: #{wgan_g_forward.13} parent=31 // pred_fallthru
        _
      // Predicated region
      $region41: #{wgan_g_forward.13} parent=31 // pred_check
        %p1364 = pneg %p145
      $region42: #{wgan_g_forward.13} parent=31 // pred_check_branch
        %1366 = sbr.rel (%p1364) target = $region44
      $region43: #{wgan_g_forward.13} parent=31 // pred_region
        _
      $region44: #{wgan_g_forward.13} parent=31 // pred_fallthru
        _
      // Predicated region
      $region45: #{wgan_g_forward.13} parent=31 // pred_check
        %p1367 = pneg %p166
      $region46: #{wgan_g_forward.13} parent=31 // pred_check_branch
        %1369 = sbr.rel (%p1367) target = $region48
      $region47: #{wgan_g_forward.13} parent=31 // pred_region
        _
      $region48: #{wgan_g_forward.13} parent=31 // pred_fallthru
        _
      // Predicated region
      $region49: #{wgan_g_forward.13} parent=31 // pred_check
        %p1370 = pneg %p145
      $region50: #{wgan_g_forward.13} parent=31 // pred_check_branch
        %1372 = sbr.rel (%p1370) target = $region52
      $region51: #{wgan_g_forward.13} parent=31 // pred_region
        _
      $region52: #{wgan_g_forward.13} parent=31 // pred_fallthru
        _
      // Predicated region
      $region53: #{wgan_g_forward.13} parent=31 // pred_check
        %p1373 = pneg %p166
      $region54: #{wgan_g_forward.13} parent=31 // pred_check_branch
        %1375 = sbr.rel (%p1373) target = $region56
      $region55: #{wgan_g_forward.13} parent=31 // pred_region
        _
      $region56: #{wgan_g_forward.13} parent=31 // pred_fallthru
        _
    $region32: #{wgan_g_forward.13} parent=5 // pred_fallthru
      _
    %p1376 = scmp.le.s32.totalorder 2, %s12
    // Predicated region
    $region57: #{wgan_g_forward.13} parent=5 // pred_check
      %p1377 = pneg %p1376
    $region58: #{wgan_g_forward.13} parent=5 // pred_check_branch
      %1379 = sbr.rel (%p1377) target = $region60
    $region59: #{wgan_g_forward.13} parent=5 // pred_region
      %s1380 = ssub.s32 %s12, 2
      // Predicated region
      $region61: #{wgan_g_forward.13} parent=59 // pred_check
        %p1381 = pneg %p130
      $region62: #{wgan_g_forward.13} parent=59 // pred_check_branch
        %1383 = sbr.rel (%p1381) target = $region64
      $region63: #{wgan_g_forward.13} parent=59 // pred_region
        %s1384 = smul.u32 27, %s24
        %p1385 = scmp.lt.s32.totalorder %s23, 3
        %s1386 = scalar_select %p1385, %s23, 3
        %p1387 = scmp.lt.s32.totalorder %s1384, 26
        %s1388 = scalar_select %p1387, %s1384, 26
        %s1389 = smul.addr %s1386, 27
        %s1390 = sadd.s32 %s1388, %s1389
        %s1391 = smul.addr %s1390, 8
        %s1392 = scalar_lea.vmem %s3, %s1391
      $region64: #{wgan_g_forward.13} parent=59 // pred_fallthru
        _
    $region60: #{wgan_g_forward.13} parent=5 // pred_fallthru
      _
  $region6: #{wgan_g_forward.13} parent=0 // loop_footer
    %s16 = sadd.s32 1, %s12
  $region7: #{wgan_g_forward.13} parent=0 // loop_footer_branch
    %11 = sbr.rel target = $region3
  $region8: #{wgan_g_forward.13} parent=0 // loop_exit
    _

// kernel: wgan_g_forward.14
$region0: #{wgan_g_forward.14}
  #allocation0 [shape = 'u32[]', space=smem, size = 0x4, offset = 0x4, fixed_abs, tag = 'smem constant byte address 0x4 - core index']
  #allocation1 [shape = 'u32[144,128]{1,0:T(1,128)}', space=vmem, size = 0x12000, scoped, tag = 'internal scratch']
  %s0 = inlined_call_operand.vmem [shape: f32[864,64], index: 0, kind: input, shape index: {}]
  %s1 = inlined_call_operand.vmem [shape: f32[1,64], index: 1, kind: input, shape index: {}]
  %s2 = inlined_call_operand.vmem [shape: f32[1,64], index: 2, kind: input, shape index: {}]
  %s3 = inlined_call_operand.vmem [shape: bf16[864,64], index: 3, kind: output, shape index: {}]
  %s4 = sld [smem:[#allocation0]]
  $region22: #{wgan_g_forward.14} parent=0
    _
  %s6 = ssub.s32 1, %s4
  %s7 = scalar_select 0, %s6, %s4
  // Predicated region
  $region2: #{wgan_g_forward.14} parent=0 // pred_check
    _
  $region3: #{wgan_g_forward.14} parent=0 // pred_check_branch
    %9 = sbr.rel (0) target = $region5
  $region4: #{wgan_g_forward.14} parent=0 // pred_region
    _
  $region5: #{wgan_g_forward.14} parent=0 // pred_fallthru
    _
  // Predicated region
  $region6: #{wgan_g_forward.14} parent=0 // pred_check
    _
  $region7: #{wgan_g_forward.14} parent=0 // pred_check_branch
    %11 = sbr.rel (0) target = $region9
  $region8: #{wgan_g_forward.14} parent=0 // pred_region
    _
  $region9: #{wgan_g_forward.14} parent=0 // pred_fallthru
    _
  // Predicated region
  $region10: #{wgan_g_forward.14} parent=0 // pred_check
    _
  $region11: #{wgan_g_forward.14} parent=0 // pred_check_branch
    %13 = sbr.rel (0) target = $region13
  $region12: #{wgan_g_forward.14} parent=0 // pred_region
    _
  $region13: #{wgan_g_forward.14} parent=0 // pred_fallthru
    _
  %v14 = vld [vmem:[%s0] sm:$0xff]
  %v15 = vld [vmem:[%s0 + $0x8] sm:$0xff]
  %v16 = vld [vmem:[%s0 + $0x10] sm:$0xff]
  %v17 = vld [vmem:[%s0 + $0x18] sm:$0xff]
  %v18 = vld [vmem:[%s0 + $0x20] sm:$0xff]
  %v19 = vld [vmem:[%s0 + $0x28] sm:$0xff]
  %v20 = vld [vmem:[%s0 + $0x30] sm:$0xff]
  %v21 = vld [vmem:[%s0 + $0x38] sm:$0xff]
  %v22 = vld [vmem:[%s0 + $0x40] sm:$0xff]
  %v23 = vld [vmem:[%s0 + $0x48] sm:$0xff]
  %v24 = vld [vmem:[%s0 + $0x50] sm:$0xff]
  %v25 = vld [vmem:[%s0 + $0x58] sm:$0xff]
  %v26 = vld [vmem:[%s0 + $0x60] sm:$0xff]
  %v27 = vld [vmem:[%s0 + $0x68] sm:$0xff]
  %v28 = vld [vmem:[%s0 + $0x70] sm:$0xff]
  %v29 = vld [vmem:[%s0 + $0x78] sm:$0xff]
  %v30 = vld [vmem:[%s0 + $0x80] sm:$0xff]
  %v31 = vld [vmem:[%s0 + $0x88] sm:$0xff]
  %v32 = vld [vmem:[%s0 + $0x90] sm:$0xff]
  %v33 = vld [vmem:[%s0 + $0x98] sm:$0xff]
  %v34 = vld [vmem:[%s0 + $0xa0] sm:$0xff]
  %v35 = vld [vmem:[%s0 + $0xa8] sm:$0xff]
  %v36 = vld [vmem:[%s0 + $0xb0] sm:$0xff]
  %v37 = vld [vmem:[%s0 + $0xb8] sm:$0xff]
  %v38 = vld [vmem:[%s0 + $0xc0] sm:$0xff]
  %v39 = vld [vmem:[%s0 + $0xc8] sm:$0xff]
  %v40 = vld [vmem:[%s0 + $0xd0] sm:$0xff]
  %v41 = vld [vmem:[%s0 + $0xd8] sm:$0xff]
  %v42 = vld [vmem:[%s0 + $0xe0] sm:$0xff]
  %v43 = vld [vmem:[%s0 + $0xe8] sm:$0xff]
  %v44 = vld [vmem:[%s0 + $0xf0] sm:$0xff]
  %v45 = vld [vmem:[%s0 + $0xf8] sm:$0xff]
  %v46 = vld [vmem:[%s0 + $0x100] sm:$0xff]
  %v47 = vld [vmem:[%s0 + $0x108] sm:$0xff]
  %v48 = vld [vmem:[%s0 + $0x110] sm:$0xff]
  %v49 = vld [vmem:[%s0 + $0x118] sm:$0xff]
  %v50 = vld [vmem:[%s0 + $0x120] sm:$0xff]
  %v51 = vld [vmem:[%s0 + $0x128] sm:$0xff]
  %v52 = vld [vmem:[%s0 + $0x130] sm:$0xff]
  %v53 = vld [vmem:[%s0 + $0x138] sm:$0xff]
  %v54 = vld [vmem:[%s0 + $0x140] sm:$0xff]
  %v55 = vld [vmem:[%s0 + $0x148] sm:$0xff]
  %v56 = vld [vmem:[%s0 + $0x150] sm:$0xff]
  %v57 = vld [vmem:[%s0 + $0x158] sm:$0xff]
  %v58 = vld [vmem:[%s0 + $0x160] sm:$0xff]
  %v59 = vld [vmem:[%s0 + $0x168] sm:$0xff]
  %v60 = vld [vmem:[%s0 + $0x170] sm:$0xff]
  %v61 = vld [vmem:[%s0 + $0x178] sm:$0xff]
  %v62 = vld [vmem:[%s0 + $0x180] sm:$0xff]
  %v63 = vld [vmem:[%s0 + $0x188] sm:$0xff]
  %v64 = vld [vmem:[%s0 + $0x190] sm:$0xff]
  %v65 = vld [vmem:[%s0 + $0x198] sm:$0xff]
  %v66 = vld [vmem:[%s0 + $0x1a0] sm:$0xff]
  %v67 = vld [vmem:[%s0 + $0x1a8] sm:$0xff]
  %v68 = vld [vmem:[%s0 + $0x1b0] sm:$0xff]
  %v69 = vld [vmem:[%s0 + $0x1b8] sm:$0xff]
  %v70 = vld [vmem:[%s0 + $0x1c0] sm:$0xff]
  %v71 = vld [vmem:[%s0 + $0x1c8] sm:$0xff]
  %v72 = vld [vmem:[%s0 + $0x1d0] sm:$0xff]
  %v73 = vld [vmem:[%s0 + $0x1d8] sm:$0xff]
  %v74 = vld [vmem:[%s0 + $0x1e0] sm:$0xff]
  %v75 = vld [vmem:[%s0 + $0x1e8] sm:$0xff]
  %v76 = vld [vmem:[%s0 + $0x1f0] sm:$0xff]
  %v77 = vld [vmem:[%s0 + $0x1f8] sm:$0xff]
  %v78 = vld [vmem:[%s0 + $0x200] sm:$0xff]
  %v79 = vld [vmem:[%s0 + $0x208] sm:$0xff]
  %v80 = vld [vmem:[%s0 + $0x210] sm:$0xff]
  %v81 = vld [vmem:[%s0 + $0x218] sm:$0xff]
  %v82 = vld [vmem:[%s0 + $0x220] sm:$0xff]
  %v83 = vld [vmem:[%s0 + $0x228] sm:$0xff]
  %v84 = vld [vmem:[%s0 + $0x230] sm:$0xff]
  %v85 = vld [vmem:[%s0 + $0x238] sm:$0xff]
  %v86 = vld [vmem:[%s0 + $0x240] sm:$0xff]
  %v87 = vld [vmem:[%s0 + $0x248] sm:$0xff]
  %v88 = vld [vmem:[%s0 + $0x250] sm:$0xff]
  %v89 = vld [vmem:[%s0 + $0x258] sm:$0xff]
  %v90 = vld [vmem:[%s0 + $0x260] sm:$0xff]
  %v91 = vld [vmem:[%s0 + $0x268] sm:$0xff]
  %v92 = vld [vmem:[%s0 + $0x270] sm:$0xff]
  %v93 = vld [vmem:[%s0 + $0x278] sm:$0xff]
  %v94 = vld [vmem:[%s0 + $0x280] sm:$0xff]
  %v95 = vld [vmem:[%s0 + $0x288] sm:$0xff]
  %v96 = vld [vmem:[%s0 + $0x290] sm:$0xff]
  %v97 = vld [vmem:[%s0 + $0x298] sm:$0xff]
  %v98 = vld [vmem:[%s0 + $0x2a0] sm:$0xff]
  %v99 = vld [vmem:[%s0 + $0x2a8] sm:$0xff]
  %v100 = vld [vmem:[%s0 + $0x2b0] sm:$0xff]
  %v101 = vld [vmem:[%s0 + $0x2b8] sm:$0xff]
  %v102 = vld [vmem:[%s0 + $0x2c0] sm:$0xff]
  %v103 = vld [vmem:[%s0 + $0x2c8] sm:$0xff]
  %v104 = vld [vmem:[%s0 + $0x2d0] sm:$0xff]
  %v105 = vld [vmem:[%s0 + $0x2d8] sm:$0xff]
  %v106 = vld [vmem:[%s0 + $0x2e0] sm:$0xff]
  %v107 = vld [vmem:[%s0 + $0x2e8] sm:$0xff]
  %v108 = vld [vmem:[%s0 + $0x2f0] sm:$0xff]
  %v109 = vld [vmem:[%s0 + $0x2f8] sm:$0xff]
  %v110 = vld [vmem:[%s0 + $0x300] sm:$0xff]
  %v111 = vld [vmem:[%s0 + $0x308] sm:$0xff]
  %v112 = vld [vmem:[%s0 + $0x310] sm:$0xff]
  %v113 = vld [vmem:[%s0 + $0x318] sm:$0xff]
  %v114 = vld [vmem:[%s0 + $0x320] sm:$0xff]
  %v115 = vld [vmem:[%s0 + $0x328] sm:$0xff]
  %v116 = vld [vmem:[%s0 + $0x330] sm:$0xff]
  %v117 = vld [vmem:[%s0 + $0x338] sm:$0xff]
  %v118 = vld [vmem:[%s0 + $0x340] sm:$0xff]
  %v119 = vld [vmem:[%s0 + $0x348] sm:$0xff]
  %v120 = vld [vmem:[%s0 + $0x350] sm:$0xff]
  %v121 = vld [vmem:[%s0 + $0x358] sm:$0xff]
  %v122 = vld [vmem:[%s1] sm:$0x1]
  %v124 = vlaneseq
  %v125 = vshrl.u32 %v124, 7
  %v126 = vsub.s32 0, %v125
  %v127 = vrot.slane %v122, %v126
  %v129 = vmul.f32 %v14, %v127
  %v130 = vmul.f32 %v15, %v127
  %v131 = vmul.f32 %v16, %v127
  %v132 = vmul.f32 %v17, %v127
  %v133 = vmul.f32 %v18, %v127
  %v134 = vmul.f32 %v19, %v127
  %v135 = vmul.f32 %v20, %v127
  %v136 = vmul.f32 %v21, %v127
  %v137 = vmul.f32 %v22, %v127
  %v138 = vmul.f32 %v23, %v127
  %v139 = vmul.f32 %v24, %v127
  %v140 = vmul.f32 %v25, %v127
  %v141 = vmul.f32 %v26, %v127
  %v142 = vmul.f32 %v27, %v127
  %v143 = vmul.f32 %v28, %v127
  %v144 = vmul.f32 %v29, %v127
  %v145 = vmul.f32 %v30, %v127
  %v146 = vmul.f32 %v31, %v127
  %v147 = vmul.f32 %v32, %v127
  %v148 = vmul.f32 %v33, %v127
  %v149 = vmul.f32 %v34, %v127
  %v150 = vmul.f32 %v35, %v127
  %v151 = vmul.f32 %v36, %v127
  %v152 = vmul.f32 %v37, %v127
  %v153 = vmul.f32 %v38, %v127
  %v154 = vmul.f32 %v39, %v127
  %v155 = vmul.f32 %v40, %v127
  %v156 = vmul.f32 %v41, %v127
  %v157 = vmul.f32 %v42, %v127
  %v158 = vmul.f32 %v43, %v127
  %v159 = vmul.f32 %v44, %v127
  %v160 = vmul.f32 %v45, %v127
  %v161 = vmul.f32 %v46, %v127
  %v162 = vmul.f32 %v47, %v127
  %v163 = vmul.f32 %v48, %v127
  %v164 = vmul.f32 %v49, %v127
  %v165 = vmul.f32 %v50, %v127
  %v166 = vmul.f32 %v51, %v127
  %v167 = vmul.f32 %v52, %v127
  %v168 = vmul.f32 %v53, %v127
  %v169 = vmul.f32 %v54, %v127
  %v170 = vmul.f32 %v55, %v127
  %v171 = vmul.f32 %v56, %v127
  %v172 = vmul.f32 %v57, %v127
  %v173 = vmul.f32 %v58, %v127
  %v174 = vmul.f32 %v59, %v127
  %v175 = vmul.f32 %v60, %v127
  %v176 = vmul.f32 %v61, %v127
  %v177 = vmul.f32 %v62, %v127
  %v178 = vmul.f32 %v63, %v127
  %v179 = vmul.f32 %v64, %v127
  %v180 = vmul.f32 %v65, %v127
  %v181 = vmul.f32 %v66, %v127
  %v182 = vmul.f32 %v67, %v127
  %v183 = vmul.f32 %v68, %v127
  %v184 = vmul.f32 %v69, %v127
  %v185 = vmul.f32 %v70, %v127
  %v186 = vmul.f32 %v71, %v127
  %v187 = vmul.f32 %v72, %v127
  %v188 = vmul.f32 %v73, %v127
  %v189 = vmul.f32 %v74, %v127
  %v190 = vmul.f32 %v75, %v127
  %v191 = vmul.f32 %v76, %v127
  %v192 = vmul.f32 %v77, %v127
  %v193 = vmul.f32 %v78, %v127
  %v194 = vmul.f32 %v79, %v127
  %v195 = vmul.f32 %v80, %v127
  %v196 = vmul.f32 %v81, %v127
  %v197 = vmul.f32 %v82, %v127
  %v198 = vmul.f32 %v83, %v127
  %v199 = vmul.f32 %v84, %v127
  %v200 = vmul.f32 %v85, %v127
  %v201 = vmul.f32 %v86, %v127
  %v202 = vmul.f32 %v87, %v127
  %v203 = vmul.f32 %v88, %v127
  %v204 = vmul.f32 %v89, %v127
  %v205 = vmul.f32 %v90, %v127
  %v206 = vmul.f32 %v91, %v127
  %v207 = vmul.f32 %v92, %v127
  %v208 = vmul.f32 %v93, %v127
  %v209 = vmul.f32 %v94, %v127
  %v210 = vmul.f32 %v95, %v127
  %v211 = vmul.f32 %v96, %v127
  %v212 = vmul.f32 %v97, %v127
  %v213 = vmul.f32 %v98, %v127
  %v214 = vmul.f32 %v99, %v127
  %v215 = vmul.f32 %v100, %v127
  %v216 = vmul.f32 %v101, %v127
  %v217 = vmul.f32 %v102, %v127
  %v218 = vmul.f32 %v103, %v127
  %v219 = vmul.f32 %v104, %v127
  %v220 = vmul.f32 %v105, %v127
  %v221 = vmul.f32 %v106, %v127
  %v222 = vmul.f32 %v107, %v127
  %v223 = vmul.f32 %v108, %v127
  %v224 = vmul.f32 %v109, %v127
  %v225 = vmul.f32 %v110, %v127
  %v226 = vmul.f32 %v111, %v127
  %v227 = vmul.f32 %v112, %v127
  %v228 = vmul.f32 %v113, %v127
  %v229 = vmul.f32 %v114, %v127
  %v230 = vmul.f32 %v115, %v127
  %v231 = vmul.f32 %v116, %v127
  %v232 = vmul.f32 %v117, %v127
  %v233 = vmul.f32 %v118, %v127
  %v234 = vmul.f32 %v119, %v127
  %v235 = vmul.f32 %v120, %v127
  %v236 = vmul.f32 %v121, %v127
  %v237 = vld [vmem:[%s2] sm:$0x1]
  %v239 = vlaneseq
  %v240 = vshrl.u32 %v239, 7
  %v241 = vsub.s32 0, %v240
  %v242 = vrot.slane %v237, %v241
  %v244 = vadd.f32 %v129, %v242
  %v245 = vadd.f32 %v130, %v242
  %v246 = vadd.f32 %v131, %v242
  %v247 = vadd.f32 %v132, %v242
  %v248 = vadd.f32 %v133, %v242
  %v249 = vadd.f32 %v134, %v242
  %v250 = vadd.f32 %v135, %v242
  %v251 = vadd.f32 %v136, %v242
  %v252 = vadd.f32 %v137, %v242
  %v253 = vadd.f32 %v138, %v242
  %v254 = vadd.f32 %v139, %v242
  %v255 = vadd.f32 %v140, %v242
  %v256 = vadd.f32 %v141, %v242
  %v257 = vadd.f32 %v142, %v242
  %v258 = vadd.f32 %v143, %v242
  %v259 = vadd.f32 %v144, %v242
  %v260 = vadd.f32 %v145, %v242
  %v261 = vadd.f32 %v146, %v242
  %v262 = vadd.f32 %v147, %v242
  %v263 = vadd.f32 %v148, %v242
  %v264 = vadd.f32 %v149, %v242
  %v265 = vadd.f32 %v150, %v242
  %v266 = vadd.f32 %v151, %v242
  %v267 = vadd.f32 %v152, %v242
  %v268 = vadd.f32 %v153, %v242
  %v269 = vadd.f32 %v154, %v242
  %v270 = vadd.f32 %v155, %v242
  %v271 = vadd.f32 %v156, %v242
  %v272 = vadd.f32 %v157, %v242
  %v273 = vadd.f32 %v158, %v242
  %v274 = vadd.f32 %v159, %v242
  %v275 = vadd.f32 %v160, %v242
  %v276 = vadd.f32 %v161, %v242
  %v277 = vadd.f32 %v162, %v242
  %v278 = vadd.f32 %v163, %v242
  %v279 = vadd.f32 %v164, %v242
  %v280 = vadd.f32 %v165, %v242
  %v281 = vadd.f32 %v166, %v242
  %v282 = vadd.f32 %v167, %v242
  %v283 = vadd.f32 %v168, %v242
  %v284 = vadd.f32 %v169, %v242
  %v285 = vadd.f32 %v170, %v242
  %v286 = vadd.f32 %v171, %v242
  %v287 = vadd.f32 %v172, %v242
  %v288 = vadd.f32 %v173, %v242
  %v289 = vadd.f32 %v174, %v242
  %v290 = vadd.f32 %v175, %v242
  %v291 = vadd.f32 %v176, %v242
  %v292 = vadd.f32 %v177, %v242
  %v293 = vadd.f32 %v178, %v242
  %v294 = vadd.f32 %v179, %v242
  %v295 = vadd.f32 %v180, %v242
  %v296 = vadd.f32 %v181, %v242
  %v297 = vadd.f32 %v182, %v242
  %v298 = vadd.f32 %v183, %v242
  %v299 = vadd.f32 %v184, %v242
  %v300 = vadd.f32 %v185, %v242
  %v301 = vadd.f32 %v186, %v242
  %v302 = vadd.f32 %v187, %v242
  %v303 = vadd.f32 %v188, %v242
  %v304 = vadd.f32 %v189, %v242
  %v305 = vadd.f32 %v190, %v242
  %v306 = vadd.f32 %v191, %v242
  %v307 = vadd.f32 %v192, %v242
  %v308 = vadd.f32 %v193, %v242
  %v309 = vadd.f32 %v194, %v242
  %v310 = vadd.f32 %v195, %v242
  %v311 = vadd.f32 %v196, %v242
  %v312 = vadd.f32 %v197, %v242
  %v313 = vadd.f32 %v198, %v242
  %v314 = vadd.f32 %v199, %v242
  %v315 = vadd.f32 %v200, %v242
  %v316 = vadd.f32 %v201, %v242
  %v317 = vadd.f32 %v202, %v242
  %v318 = vadd.f32 %v203, %v242
  %v319 = vadd.f32 %v204, %v242
  %v320 = vadd.f32 %v205, %v242
  %v321 = vadd.f32 %v206, %v242
  %v322 = vadd.f32 %v207, %v242
  %v323 = vadd.f32 %v208, %v242
  %v324 = vadd.f32 %v209, %v242
  %v325 = vadd.f32 %v210, %v242
  %v326 = vadd.f32 %v211, %v242
  %v327 = vadd.f32 %v212, %v242
  %v328 = vadd.f32 %v213, %v242
  %v329 = vadd.f32 %v214, %v242
  %v330 = vadd.f32 %v215, %v242
  %v331 = vadd.f32 %v216, %v242
  %v332 = vadd.f32 %v217, %v242
  %v333 = vadd.f32 %v218, %v242
  %v334 = vadd.f32 %v219, %v242
  %v335 = vadd.f32 %v220, %v242
  %v336 = vadd.f32 %v221, %v242
  %v337 = vadd.f32 %v222, %v242
  %v338 = vadd.f32 %v223, %v242
  %v339 = vadd.f32 %v224, %v242
  %v340 = vadd.f32 %v225, %v242
  %v341 = vadd.f32 %v226, %v242
  %v342 = vadd.f32 %v227, %v242
  %v343 = vadd.f32 %v228, %v242
  %v344 = vadd.f32 %v229, %v242
  %v345 = vadd.f32 %v230, %v242
  %v346 = vadd.f32 %v231, %v242
  %v347 = vadd.f32 %v232, %v242
  %v348 = vadd.f32 %v233, %v242
  %v349 = vadd.f32 %v234, %v242
  %v350 = vadd.f32 %v235, %v242
  %v351 = vadd.f32 %v236, %v242
  %v352 = vmax.f32 %v244, 0.0
  %v353 = vmax.f32 %v245, 0.0
  %v354 = vmax.f32 %v246, 0.0
  %v355 = vmax.f32 %v247, 0.0
  %v356 = vmax.f32 %v248, 0.0
  %v357 = vmax.f32 %v249, 0.0
  %v358 = vmax.f32 %v250, 0.0
  %v359 = vmax.f32 %v251, 0.0
  %v360 = vmax.f32 %v252, 0.0
  %v361 = vmax.f32 %v253, 0.0
  %v362 = vmax.f32 %v254, 0.0
  %v363 = vmax.f32 %v255, 0.0
  %v364 = vmax.f32 %v256, 0.0
  %v365 = vmax.f32 %v257, 0.0
  %v366 = vmax.f32 %v258, 0.0
  %v367 = vmax.f32 %v259, 0.0
  %v368 = vmax.f32 %v260, 0.0
  %v369 = vmax.f32 %v261, 0.0
  %v370 = vmax.f32 %v262, 0.0
  %v371 = vmax.f32 %v263, 0.0
  %v372 = vmax.f32 %v264, 0.0
  %v373 = vmax.f32 %v265, 0.0
  %v374 = vmax.f32 %v266, 0.0
  %v375 = vmax.f32 %v267, 0.0
  %v376 = vmax.f32 %v268, 0.0
  %v377 = vmax.f32 %v269, 0.0
  %v378 = vmax.f32 %v270, 0.0
  %v379 = vmax.f32 %v271, 0.0
  %v380 = vmax.f32 %v272, 0.0
  %v381 = vmax.f32 %v273, 0.0
  %v382 = vmax.f32 %v274, 0.0
  %v383 = vmax.f32 %v275, 0.0
  %v384 = vmax.f32 %v276, 0.0
  %v385 = vmax.f32 %v277, 0.0
  %v386 = vmax.f32 %v278, 0.0
  %v387 = vmax.f32 %v279, 0.0
  %v388 = vmax.f32 %v280, 0.0
  %v389 = vmax.f32 %v281, 0.0
  %v390 = vmax.f32 %v282, 0.0
  %v391 = vmax.f32 %v283, 0.0
  %v392 = vmax.f32 %v284, 0.0
  %v393 = vmax.f32 %v285, 0.0
  %v394 = vmax.f32 %v286, 0.0
  %v395 = vmax.f32 %v287, 0.0
  %v396 = vmax.f32 %v288, 0.0
  %v397 = vmax.f32 %v289, 0.0
  %v398 = vmax.f32 %v290, 0.0
  %v399 = vmax.f32 %v291, 0.0
  %v400 = vmax.f32 %v292, 0.0
  %v401 = vmax.f32 %v293, 0.0
  %v402 = vmax.f32 %v294, 0.0
  %v403 = vmax.f32 %v295, 0.0
  %v404 = vmax.f32 %v296, 0.0
  %v405 = vmax.f32 %v297, 0.0
  %v406 = vmax.f32 %v298, 0.0
  %v407 = vmax.f32 %v299, 0.0
  %v408 = vmax.f32 %v300, 0.0
  %v409 = vmax.f32 %v301, 0.0
  %v410 = vmax.f32 %v302, 0.0
  %v411 = vmax.f32 %v303, 0.0
  %v412 = vmax.f32 %v304, 0.0
  %v413 = vmax.f32 %v305, 0.0
  %v414 = vmax.f32 %v306, 0.0
  %v415 = vmax.f32 %v307, 0.0
  %v416 = vmax.f32 %v308, 0.0
  %v417 = vmax.f32 %v309, 0.0
  %v418 = vmax.f32 %v310, 0.0
  %v419 = vmax.f32 %v311, 0.0
  %v420 = vmax.f32 %v312, 0.0
  %v421 = vmax.f32 %v313, 0.0
  %v422 = vmax.f32 %v314, 0.0
  %v423 = vmax.f32 %v315, 0.0
  %v424 = vmax.f32 %v316, 0.0
  %v425 = vmax.f32 %v317, 0.0
  %v426 = vmax.f32 %v318, 0.0
  %v427 = vmax.f32 %v319, 0.0
  %v428 = vmax.f32 %v320, 0.0
  %v429 = vmax.f32 %v321, 0.0
  %v430 = vmax.f32 %v322, 0.0
  %v431 = vmax.f32 %v323, 0.0
  %v432 = vmax.f32 %v324, 0.0
  %v433 = vmax.f32 %v325, 0.0
  %v434 = vmax.f32 %v326, 0.0
  %v435 = vmax.f32 %v327, 0.0
  %v436 = vmax.f32 %v328, 0.0
  %v437 = vmax.f32 %v329, 0.0
  %v438 = vmax.f32 %v330, 0.0
  %v439 = vmax.f32 %v331, 0.0
  %v440 = vmax.f32 %v332, 0.0
  %v441 = vmax.f32 %v333, 0.0
  %v442 = vmax.f32 %v334, 0.0
  %v443 = vmax.f32 %v335, 0.0
  %v444 = vmax.f32 %v336, 0.0
  %v445 = vmax.f32 %v337, 0.0
  %v446 = vmax.f32 %v338, 0.0
  %v447 = vmax.f32 %v339, 0.0
  %v448 = vmax.f32 %v340, 0.0
  %v449 = vmax.f32 %v341, 0.0
  %v450 = vmax.f32 %v342, 0.0
  %v451 = vmax.f32 %v343, 0.0
  %v452 = vmax.f32 %v344, 0.0
  %v453 = vmax.f32 %v345, 0.0
  %v454 = vmax.f32 %v346, 0.0
  %v455 = vmax.f32 %v347, 0.0
  %v456 = vmax.f32 %v348, 0.0
  %v457 = vmax.f32 %v349, 0.0
  %v458 = vmax.f32 %v350, 0.0
  %v459 = vmax.f32 %v351, 0.0
  %v460 = vpack.c.bf16 %v353, %v352
  %v461 = vpack.c.bf16 %v355, %v354
  %v462 = vpack.c.bf16 %v357, %v356
  %v463 = vpack.c.bf16 %v359, %v358
  %v464 = vpack.c.bf16 %v361, %v360
  %v465 = vpack.c.bf16 %v363, %v362
  %v466 = vpack.c.bf16 %v365, %v364
  %v467 = vpack.c.bf16 %v367, %v366
  %v468 = vpack.c.bf16 %v369, %v368
  %v469 = vpack.c.bf16 %v371, %v370
  %v470 = vpack.c.bf16 %v373, %v372
  %v471 = vpack.c.bf16 %v375, %v374
  %v472 = vpack.c.bf16 %v377, %v376
  %v473 = vpack.c.bf16 %v379, %v378
  %v474 = vpack.c.bf16 %v381, %v380
  %v475 = vpack.c.bf16 %v383, %v382
  %v476 = vpack.c.bf16 %v385, %v384
  %v477 = vpack.c.bf16 %v387, %v386
  %v478 = vpack.c.bf16 %v389, %v388
  %v479 = vpack.c.bf16 %v391, %v390
  %v480 = vpack.c.bf16 %v393, %v392
  %v481 = vpack.c.bf16 %v395, %v394
  %v482 = vpack.c.bf16 %v397, %v396
  %v483 = vpack.c.bf16 %v399, %v398
  %v484 = vpack.c.bf16 %v401, %v400
  %v485 = vpack.c.bf16 %v403, %v402
  %v486 = vpack.c.bf16 %v405, %v404
  %v487 = vpack.c.bf16 %v407, %v406
  %v488 = vpack.c.bf16 %v409, %v408
  %v489 = vpack.c.bf16 %v411, %v410
  %v490 = vpack.c.bf16 %v413, %v412
  %v491 = vpack.c.bf16 %v415, %v414
  %v492 = vpack.c.bf16 %v417, %v416
  %v493 = vpack.c.bf16 %v419, %v418
  %v494 = vpack.c.bf16 %v421, %v420
  %v495 = vpack.c.bf16 %v423, %v422
  %v496 = vpack.c.bf16 %v425, %v424
  %v497 = vpack.c.bf16 %v427, %v426
  %v498 = vpack.c.bf16 %v429, %v428
  %v499 = vpack.c.bf16 %v431, %v430
  %v500 = vpack.c.bf16 %v433, %v432
  %v501 = vpack.c.bf16 %v435, %v434
  %v502 = vpack.c.bf16 %v437, %v436
  %v503 = vpack.c.bf16 %v439, %v438
  %v504 = vpack.c.bf16 %v441, %v440
  %v505 = vpack.c.bf16 %v443, %v442
  %v506 = vpack.c.bf16 %v445, %v444
  %v507 = vpack.c.bf16 %v447, %v446
  %v508 = vpack.c.bf16 %v449, %v448
  %v509 = vpack.c.bf16 %v451, %v450
  %v510 = vpack.c.bf16 %v453, %v452
  %v511 = vpack.c.bf16 %v455, %v454
  %v512 = vpack.c.bf16 %v457, %v456
  %v513 = vpack.c.bf16 %v459, %v458
  %v568 = vunpack.c.l.b16 %v460
  %v569 = vunpack.c.h.b16 %v460
  %v570 = vunpack.c.l.b16 %v461
  %v571 = vunpack.c.h.b16 %v461
  %v572 = vunpack.c.l.b16 %v462
  %v573 = vunpack.c.h.b16 %v462
  %v574 = vunpack.c.l.b16 %v463
  %v575 = vunpack.c.h.b16 %v463
  %v576 = vunpack.c.l.b16 %v464
  %v577 = vunpack.c.h.b16 %v464
  %v578 = vunpack.c.l.b16 %v465
  %v579 = vunpack.c.h.b16 %v465
  %v580 = vunpack.c.l.b16 %v466
  %v581 = vunpack.c.h.b16 %v466
  %v582 = vunpack.c.l.b16 %v467
  %v583 = vunpack.c.h.b16 %v467
  %v584 = vunpack.c.l.b16 %v468
  %v585 = vunpack.c.h.b16 %v468
  %v586 = vunpack.c.l.b16 %v469
  %v587 = vunpack.c.h.b16 %v469
  %v588 = vunpack.c.l.b16 %v470
  %v589 = vunpack.c.h.b16 %v470
  %v590 = vunpack.c.l.b16 %v471
  %v591 = vunpack.c.h.b16 %v471
  %v592 = vunpack.c.l.b16 %v472
  %v593 = vunpack.c.h.b16 %v472
  %v594 = vunpack.c.l.b16 %v473
  %v595 = vunpack.c.h.b16 %v473
  %v596 = vunpack.c.l.b16 %v474
  %v597 = vunpack.c.h.b16 %v474
  %v598 = vunpack.c.l.b16 %v475
  %v599 = vunpack.c.h.b16 %v475
  %v600 = vunpack.c.l.b16 %v476
  %v601 = vunpack.c.h.b16 %v476
  %v602 = vunpack.c.l.b16 %v477
  %v603 = vunpack.c.h.b16 %v477
  %v604 = vunpack.c.l.b16 %v478
  %v605 = vunpack.c.h.b16 %v478
  %v606 = vunpack.c.l.b16 %v479
  %v607 = vunpack.c.h.b16 %v479
  %v608 = vunpack.c.l.b16 %v480
  %v609 = vunpack.c.h.b16 %v480
  %v610 = vunpack.c.l.b16 %v481
  %v611 = vunpack.c.h.b16 %v481
  %v612 = vunpack.c.l.b16 %v482
  %v613 = vunpack.c.h.b16 %v482
  %v614 = vunpack.c.l.b16 %v483
  %v615 = vunpack.c.h.b16 %v483
  %v616 = vunpack.c.l.b16 %v484
  %v617 = vunpack.c.h.b16 %v484
  %v618 = vunpack.c.l.b16 %v485
  %v619 = vunpack.c.h.b16 %v485
  %v620 = vunpack.c.l.b16 %v486
  %v621 = vunpack.c.h.b16 %v486
  %v622 = vunpack.c.l.b16 %v487
  %v623 = vunpack.c.h.b16 %v487
  %v624 = vunpack.c.l.b16 %v488
  %v625 = vunpack.c.h.b16 %v488
  %v626 = vunpack.c.l.b16 %v489
  %v627 = vunpack.c.h.b16 %v489
  %v628 = vunpack.c.l.b16 %v490
  %v629 = vunpack.c.h.b16 %v490
  %v630 = vunpack.c.l.b16 %v491
  %v631 = vunpack.c.h.b16 %v491
  %v632 = vunpack.c.l.b16 %v492
  %v633 = vunpack.c.h.b16 %v492
  %v634 = vunpack.c.l.b16 %v493
  %v635 = vunpack.c.h.b16 %v493
  %v636 = vunpack.c.l.b16 %v494
  %v637 = vunpack.c.h.b16 %v494
  %v638 = vunpack.c.l.b16 %v495
  %v639 = vunpack.c.h.b16 %v495
  %v640 = vunpack.c.l.b16 %v496
  %v641 = vunpack.c.h.b16 %v496
  %v642 = vunpack.c.l.b16 %v497
  %v643 = vunpack.c.h.b16 %v497
  %v644 = vunpack.c.l.b16 %v498
  %v645 = vunpack.c.h.b16 %v498
  %v646 = vunpack.c.l.b16 %v499
  %v647 = vunpack.c.h.b16 %v499
  %v648 = vunpack.c.l.b16 %v500
  %v649 = vunpack.c.h.b16 %v500
  %v650 = vunpack.c.l.b16 %v501
  %v651 = vunpack.c.h.b16 %v501
  %v652 = vunpack.c.l.b16 %v502
  %v653 = vunpack.c.h.b16 %v502
  %v654 = vunpack.c.l.b16 %v503
  %v655 = vunpack.c.h.b16 %v503
  %v656 = vunpack.c.l.b16 %v504
  %v657 = vunpack.c.h.b16 %v504
  %v658 = vunpack.c.l.b16 %v505
  %v659 = vunpack.c.h.b16 %v505
  %v660 = vunpack.c.l.b16 %v506
  %v661 = vunpack.c.h.b16 %v506
  %v662 = vunpack.c.l.b16 %v507
  %v663 = vunpack.c.h.b16 %v507
  %v664 = vunpack.c.l.b16 %v508
  %v665 = vunpack.c.h.b16 %v508
  %v666 = vunpack.c.l.b16 %v509
  %v667 = vunpack.c.h.b16 %v509
  %v668 = vunpack.c.l.b16 %v510
  %v669 = vunpack.c.h.b16 %v510
  %v670 = vunpack.c.l.b16 %v511
  %v671 = vunpack.c.h.b16 %v511
  %v672 = vunpack.c.l.b16 %v512
  %v673 = vunpack.c.h.b16 %v512
  %v674 = vunpack.c.l.b16 %v513
  %v675 = vunpack.c.h.b16 %v513
  %v676 = vpack.c.b16 %v568, %v568
  %v677 = vpack.c.b16 %v569, %v569
  %v678 = vpack.c.b16 %v570, %v570
  %v679 = vpack.c.b16 %v571, %v571
  %v680 = vpack.c.b16 %v572, %v572
  %v681 = vpack.c.b16 %v573, %v573
  %v682 = vpack.c.b16 %v574, %v574
  %v683 = vpack.c.b16 %v575, %v575
  %v684 = vpack.c.b16 %v576, %v576
  %v685 = vpack.c.b16 %v577, %v577
  %v686 = vpack.c.b16 %v578, %v578
  %v687 = vpack.c.b16 %v579, %v579
  %v688 = vpack.c.b16 %v580, %v580
  %v689 = vpack.c.b16 %v581, %v581
  %v690 = vpack.c.b16 %v582, %v582
  %v691 = vpack.c.b16 %v583, %v583
  %v692 = vpack.c.b16 %v584, %v584
  %v693 = vpack.c.b16 %v585, %v585
  %v694 = vpack.c.b16 %v586, %v586
  %v695 = vpack.c.b16 %v587, %v587
  %v696 = vpack.c.b16 %v588, %v588
  %v697 = vpack.c.b16 %v589, %v589
  %v698 = vpack.c.b16 %v590, %v590
  %v699 = vpack.c.b16 %v591, %v591
  %v700 = vpack.c.b16 %v592, %v592
  %v701 = vpack.c.b16 %v593, %v593
  %v702 = vpack.c.b16 %v594, %v594
  %v703 = vpack.c.b16 %v595, %v595
  %v704 = vpack.c.b16 %v596, %v596
  %v705 = vpack.c.b16 %v597, %v597
  %v706 = vpack.c.b16 %v598, %v598
  %v707 = vpack.c.b16 %v599, %v599
  %v708 = vpack.c.b16 %v600, %v600
  %v709 = vpack.c.b16 %v601, %v601
  %v710 = vpack.c.b16 %v602, %v602
  %v711 = vpack.c.b16 %v603, %v603
  %v712 = vpack.c.b16 %v604, %v604
  %v713 = vpack.c.b16 %v605, %v605
  %v714 = vpack.c.b16 %v606, %v606
  %v715 = vpack.c.b16 %v607, %v607
  %v716 = vpack.c.b16 %v608, %v608
  %v717 = vpack.c.b16 %v609, %v609
  %v718 = vpack.c.b16 %v610, %v610
  %v719 = vpack.c.b16 %v611, %v611
  %v720 = vpack.c.b16 %v612, %v612
  %v721 = vpack.c.b16 %v613, %v613
  %v722 = vpack.c.b16 %v614, %v614
  %v723 = vpack.c.b16 %v615, %v615
  %v724 = vpack.c.b16 %v616, %v616
  %v725 = vpack.c.b16 %v617, %v617
  %v726 = vpack.c.b16 %v618, %v618
  %v727 = vpack.c.b16 %v619, %v619
  %v728 = vpack.c.b16 %v620, %v620
  %v729 = vpack.c.b16 %v621, %v621
  %v730 = vpack.c.b16 %v622, %v622
  %v731 = vpack.c.b16 %v623, %v623
  %v732 = vpack.c.b16 %v624, %v624
  %v733 = vpack.c.b16 %v625, %v625
  %v734 = vpack.c.b16 %v626, %v626
  %v735 = vpack.c.b16 %v627, %v627
  %v736 = vpack.c.b16 %v628, %v628
  %v737 = vpack.c.b16 %v629, %v629
  %v738 = vpack.c.b16 %v630, %v630
  %v739 = vpack.c.b16 %v631, %v631
  %v740 = vpack.c.b16 %v632, %v632
  %v741 = vpack.c.b16 %v633, %v633
  %v742 = vpack.c.b16 %v634, %v634
  %v743 = vpack.c.b16 %v635, %v635
  %v744 = vpack.c.b16 %v636, %v636
  %v745 = vpack.c.b16 %v637, %v637
  %v746 = vpack.c.b16 %v638, %v638
  %v747 = vpack.c.b16 %v639, %v639
  %v748 = vpack.c.b16 %v640, %v640
  %v749 = vpack.c.b16 %v641, %v641
  %v750 = vpack.c.b16 %v642, %v642
  %v751 = vpack.c.b16 %v643, %v643
  %v752 = vpack.c.b16 %v644, %v644
  %v753 = vpack.c.b16 %v645, %v645
  %v754 = vpack.c.b16 %v646, %v646
  %v755 = vpack.c.b16 %v647, %v647
  %v756 = vpack.c.b16 %v648, %v648
  %v757 = vpack.c.b16 %v649, %v649
  %v758 = vpack.c.b16 %v650, %v650
  %v759 = vpack.c.b16 %v651, %v651
  %v760 = vpack.c.b16 %v652, %v652
  %v761 = vpack.c.b16 %v653, %v653
  %v762 = vpack.c.b16 %v654, %v654
  %v763 = vpack.c.b16 %v655, %v655
  %v764 = vpack.c.b16 %v656, %v656
  %v765 = vpack.c.b16 %v657, %v657
  %v766 = vpack.c.b16 %v658, %v658
  %v767 = vpack.c.b16 %v659, %v659
  %v768 = vpack.c.b16 %v660, %v660
  %v769 = vpack.c.b16 %v661, %v661
  %v770 = vpack.c.b16 %v662, %v662
  %v771 = vpack.c.b16 %v663, %v663
  %v772 = vpack.c.b16 %v664, %v664
  %v773 = vpack.c.b16 %v665, %v665
  %v774 = vpack.c.b16 %v666, %v666
  %v775 = vpack.c.b16 %v667, %v667
  %v776 = vpack.c.b16 %v668, %v668
  %v777 = vpack.c.b16 %v669, %v669
  %v778 = vpack.c.b16 %v670, %v670
  %v779 = vpack.c.b16 %v671, %v671
  %v780 = vpack.c.b16 %v672, %v672
  %v781 = vpack.c.b16 %v673, %v673
  %v782 = vpack.c.b16 %v674, %v674
  %v783 = vpack.c.b16 %v675, %v675
  %vm892 = vcmask 519168
  %893 = vst.msk [vmem:[%s3] sm:$0xf] %vm892, %v676
  %894 = vst.msk [vmem:[%s3 + $0x4] sm:$0xf] %vm892, %v677
  %895 = vst.msk [vmem:[%s3 + $0x8] sm:$0xf] %vm892, %v678
  %896 = vst.msk [vmem:[%s3 + $0xc] sm:$0xf] %vm892, %v679
  %897 = vst.msk [vmem:[%s3 + $0x10] sm:$0xf] %vm892, %v680
  %898 = vst.msk [vmem:[%s3 + $0x14] sm:$0xf] %vm892, %v681
  %899 = vst.msk [vmem:[%s3 + $0x18] sm:$0xf] %vm892, %v682
  %900 = vst.msk [vmem:[%s3 + $0x1c] sm:$0xf] %vm892, %v683
  %901 = vst.msk [vmem:[%s3 + $0x20] sm:$0xf] %vm892, %v684
  %902 = vst.msk [vmem:[%s3 + $0x24] sm:$0xf] %vm892, %v685
  %903 = vst.msk [vmem:[%s3 + $0x28] sm:$0xf] %vm892, %v686
  %904 = vst.msk [vmem:[%s3 + $0x2c] sm:$0xf] %vm892, %v687
  %905 = vst.msk [vmem:[%s3 + $0x30] sm:$0xf] %vm892, %v688
  %906 = vst.msk [vmem:[%s3 + $0x34] sm:$0xf] %vm892, %v689
  %907 = vst.msk [vmem:[%s3 + $0x38] sm:$0xf] %vm892, %v690
  %908 = vst.msk [vmem:[%s3 + $0x3c] sm:$0xf] %vm892, %v691
  %909 = vst.msk [vmem:[%s3 + $0x40] sm:$0xf] %vm892, %v692
  %910 = vst.msk [vmem:[%s3 + $0x44] sm:$0xf] %vm892, %v693
  %911 = vst.msk [vmem:[%s3 + $0x48] sm:$0xf] %vm892, %v694
  %912 = vst.msk [vmem:[%s3 + $0x4c] sm:$0xf] %vm892, %v695
  %913 = vst.msk [vmem:[%s3 + $0x50] sm:$0xf] %vm892, %v696
  %914 = vst.msk [vmem:[%s3 + $0x54] sm:$0xf] %vm892, %v697
  %915 = vst.msk [vmem:[%s3 + $0x58] sm:$0xf] %vm892, %v698
  %916 = vst.msk [vmem:[%s3 + $0x5c] sm:$0xf] %vm892, %v699
  %917 = vst.msk [vmem:[%s3 + $0x60] sm:$0xf] %vm892, %v700
  %918 = vst.msk [vmem:[%s3 + $0x64] sm:$0xf] %vm892, %v701
  %919 = vst.msk [vmem:[%s3 + $0x68] sm:$0xf] %vm892, %v702
  %920 = vst.msk [vmem:[%s3 + $0x6c] sm:$0xf] %vm892, %v703
  %921 = vst.msk [vmem:[%s3 + $0x70] sm:$0xf] %vm892, %v704
  %922 = vst.msk [vmem:[%s3 + $0x74] sm:$0xf] %vm892, %v705
  %923 = vst.msk [vmem:[%s3 + $0x78] sm:$0xf] %vm892, %v706
  %924 = vst.msk [vmem:[%s3 + $0x7c] sm:$0xf] %vm892, %v707
  %925 = vst.msk [vmem:[%s3 + $0x80] sm:$0xf] %vm892, %v708
  %926 = vst.msk [vmem:[%s3 + $0x84] sm:$0xf] %vm892, %v709
  %927 = vst.msk [vmem:[%s3 + $0x88] sm:$0xf] %vm892, %v710
  %928 = vst.msk [vmem:[%s3 + $0x8c] sm:$0xf] %vm892, %v711
  %929 = vst.msk [vmem:[%s3 + $0x90] sm:$0xf] %vm892, %v712
  %930 = vst.msk [vmem:[%s3 + $0x94] sm:$0xf] %vm892, %v713
  %931 = vst.msk [vmem:[%s3 + $0x98] sm:$0xf] %vm892, %v714
  %932 = vst.msk [vmem:[%s3 + $0x9c] sm:$0xf] %vm892, %v715
  %933 = vst.msk [vmem:[%s3 + $0xa0] sm:$0xf] %vm892, %v716
  %934 = vst.msk [vmem:[%s3 + $0xa4] sm:$0xf] %vm892, %v717
  %935 = vst.msk [vmem:[%s3 + $0xa8] sm:$0xf] %vm892, %v718
  %936 = vst.msk [vmem:[%s3 + $0xac] sm:$0xf] %vm892, %v719
  %937 = vst.msk [vmem:[%s3 + $0xb0] sm:$0xf] %vm892, %v720
  %938 = vst.msk [vmem:[%s3 + $0xb4] sm:$0xf] %vm892, %v721
  %939 = vst.msk [vmem:[%s3 + $0xb8] sm:$0xf] %vm892, %v722
  %940 = vst.msk [vmem:[%s3 + $0xbc] sm:$0xf] %vm892, %v723
  %941 = vst.msk [vmem:[%s3 + $0xc0] sm:$0xf] %vm892, %v724
  %942 = vst.msk [vmem:[%s3 + $0xc4] sm:$0xf] %vm892, %v725
  %943 = vst.msk [vmem:[%s3 + $0xc8] sm:$0xf] %vm892, %v726
  %944 = vst.msk [vmem:[%s3 + $0xcc] sm:$0xf] %vm892, %v727
  %945 = vst.msk [vmem:[%s3 + $0xd0] sm:$0xf] %vm892, %v728
  %946 = vst.msk [vmem:[%s3 + $0xd4] sm:$0xf] %vm892, %v729
  %947 = vst.msk [vmem:[%s3 + $0xd8] sm:$0xf] %vm892, %v730
  %948 = vst.msk [vmem:[%s3 + $0xdc] sm:$0xf] %vm892, %v731
  %949 = vst.msk [vmem:[%s3 + $0xe0] sm:$0xf] %vm892, %v732
  %950 = vst.msk [vmem:[%s3 + $0xe4] sm:$0xf] %vm892, %v733
  %951 = vst.msk [vmem:[%s3 + $0xe8] sm:$0xf] %vm892, %v734
  %952 = vst.msk [vmem:[%s3 + $0xec] sm:$0xf] %vm892, %v735
  %953 = vst.msk [vmem:[%s3 + $0xf0] sm:$0xf] %vm892, %v736
  %954 = vst.msk [vmem:[%s3 + $0xf4] sm:$0xf] %vm892, %v737
  %955 = vst.msk [vmem:[%s3 + $0xf8] sm:$0xf] %vm892, %v738
  %956 = vst.msk [vmem:[%s3 + $0xfc] sm:$0xf] %vm892, %v739
  %957 = vst.msk [vmem:[%s3 + $0x100] sm:$0xf] %vm892, %v740
  %958 = vst.msk [vmem:[%s3 + $0x104] sm:$0xf] %vm892, %v741
  %959 = vst.msk [vmem:[%s3 + $0x108] sm:$0xf] %vm892, %v742
  %960 = vst.msk [vmem:[%s3 + $0x10c] sm:$0xf] %vm892, %v743
  %961 = vst.msk [vmem:[%s3 + $0x110] sm:$0xf] %vm892, %v744
  %962 = vst.msk [vmem:[%s3 + $0x114] sm:$0xf] %vm892, %v745
  %963 = vst.msk [vmem:[%s3 + $0x118] sm:$0xf] %vm892, %v746
  %964 = vst.msk [vmem:[%s3 + $0x11c] sm:$0xf] %vm892, %v747
  %965 = vst.msk [vmem:[%s3 + $0x120] sm:$0xf] %vm892, %v748
  %966 = vst.msk [vmem:[%s3 + $0x124] sm:$0xf] %vm892, %v749
  %967 = vst.msk [vmem:[%s3 + $0x128] sm:$0xf] %vm892, %v750
  %968 = vst.msk [vmem:[%s3 + $0x12c] sm:$0xf] %vm892, %v751
  %969 = vst.msk [vmem:[%s3 + $0x130] sm:$0xf] %vm892, %v752
  %970 = vst.msk [vmem:[%s3 + $0x134] sm:$0xf] %vm892, %v753
  %971 = vst.msk [vmem:[%s3 + $0x138] sm:$0xf] %vm892, %v754
  %972 = vst.msk [vmem:[%s3 + $0x13c] sm:$0xf] %vm892, %v755
  %973 = vst.msk [vmem:[%s3 + $0x140] sm:$0xf] %vm892, %v756
  %974 = vst.msk [vmem:[%s3 + $0x144] sm:$0xf] %vm892, %v757
  %975 = vst.msk [vmem:[%s3 + $0x148] sm:$0xf] %vm892, %v758
  %976 = vst.msk [vmem:[%s3 + $0x14c] sm:$0xf] %vm892, %v759
  %977 = vst.msk [vmem:[%s3 + $0x150] sm:$0xf] %vm892, %v760
  %978 = vst.msk [vmem:[%s3 + $0x154] sm:$0xf] %vm892, %v761
  %979 = vst.msk [vmem:[%s3 + $0x158] sm:$0xf] %vm892, %v762
  %980 = vst.msk [vmem:[%s3 + $0x15c] sm:$0xf] %vm892, %v763
  %981 = vst.msk [vmem:[%s3 + $0x160] sm:$0xf] %vm892, %v764
  %982 = vst.msk [vmem:[%s3 + $0x164] sm:$0xf] %vm892, %v765
  %983 = vst.msk [vmem:[%s3 + $0x168] sm:$0xf] %vm892, %v766
  %984 = vst.msk [vmem:[%s3 + $0x16c] sm:$0xf] %vm892, %v767
  %985 = vst.msk [vmem:[%s3 + $0x170] sm:$0xf] %vm892, %v768
  %986 = vst.msk [vmem:[%s3 + $0x174] sm:$0xf] %vm892, %v769
  %987 = vst.msk [vmem:[%s3 + $0x178] sm:$0xf] %vm892, %v770
  %988 = vst.msk [vmem:[%s3 + $0x17c] sm:$0xf] %vm892, %v771
  %989 = vst.msk [vmem:[%s3 + $0x180] sm:$0xf] %vm892, %v772
  %990 = vst.msk [vmem:[%s3 + $0x184] sm:$0xf] %vm892, %v773
  %991 = vst.msk [vmem:[%s3 + $0x188] sm:$0xf] %vm892, %v774
  %992 = vst.msk [vmem:[%s3 + $0x18c] sm:$0xf] %vm892, %v775
  %993 = vst.msk [vmem:[%s3 + $0x190] sm:$0xf] %vm892, %v776
  %994 = vst.msk [vmem:[%s3 + $0x194] sm:$0xf] %vm892, %v777
  %995 = vst.msk [vmem:[%s3 + $0x198] sm:$0xf] %vm892, %v778
  %996 = vst.msk [vmem:[%s3 + $0x19c] sm:$0xf] %vm892, %v779
  %997 = vst.msk [vmem:[%s3 + $0x1a0] sm:$0xf] %vm892, %v780
  %998 = vst.msk [vmem:[%s3 + $0x1a4] sm:$0xf] %vm892, %v781
  %999 = vst.msk [vmem:[%s3 + $0x1a8] sm:$0xf] %vm892, %v782
  %1000 = vst.msk [vmem:[%s3 + $0x1ac] sm:$0xf] %vm892, %v783
  // Predicated region
  $region14: #{wgan_g_forward.14} parent=0 // pred_check
    _
  $region15: #{wgan_g_forward.14} parent=0 // pred_check_branch
    %1002 = sbr.rel (0) target = $region17
  $region16: #{wgan_g_forward.14} parent=0 // pred_region
    _
  $region17: #{wgan_g_forward.14} parent=0 // pred_fallthru
    _
  // Predicated region
  $region18: #{wgan_g_forward.14} parent=0 // pred_check
    _
  $region19: #{wgan_g_forward.14} parent=0 // pred_check_branch
    %1004 = sbr.rel (0) target = $region21
  $region20: #{wgan_g_forward.14} parent=0 // pred_region
    _
  $region21: #{wgan_g_forward.14} parent=0 // pred_fallthru
    _

// kernel: wgan_g_forward.15
$region0: #{wgan_g_forward.15}
  #allocation0 [shape = 'u32[]', space=smem, size = 0x4, offset = 0x4, fixed_abs, tag = 'smem constant byte address 0x4 - core index']
  #allocation1 [shape = 'u32[144,128]{1,0:T(1,128)}', space=vmem, size = 0x12000, scoped, tag = 'internal scratch']
  %s0 = inlined_call_operand.vmem [shape: bf16[4,256,864], index: 0, kind: input, shape index: {}]
  %s1 = inlined_call_operand.vmem [shape: bf16[4,6,256], index: 1, kind: input, shape index: {}]
  %s2 = inlined_call_operand.vmem [shape: f32[6,1], index: 2, kind: input, shape index: {}]
  %s3 = inlined_call_operand.vmem [shape: f32[4,6,864], index: 3, kind: output, shape index: {}]
  %s4 = sld [smem:[#allocation0]]
  $region45: #{wgan_g_forward.15} parent=0
    _
  %s6 = ssub.s32 1, %s4
  %s7 = scalar_select 0, %s6, %s4
  loop: start=0, step=1, limit=6
  $region2: #{wgan_g_forward.15} parent=0 // loop_pre_header
    _
  $region3: #{wgan_g_forward.15} parent=0 // loop_header
    %s9 = sphi 0, %s13
    %p10 = scmp.ge.s32.totalorder %s9, 6
    %s16 = sphi 0, %s28
    %s17 = sphi 0, %s24
    %s18 = sphi 0, %s16
    %s19 = sphi 0, %s17
    %s20 = sphi 0, %s18
    %s21 = sphi 0, %s19
    %s33 = sphi 0, %s35
    %s36 = sphi 0, %s33
    %s37 = sphi 0, %s36
    %s53 = sphi 0, %s37
    %s59 = sphi 0, %s61
    %s62 = sphi 0, %s59
    %s63 = sphi 0, %s62
    %s79 = sphi 0, %s63
    %s83 = sphi 0, %s83
    %s85 = sphi 0, %s83
    %s86 = sphi 0, %s85
    %s100 = sphi 0, %s86
    %s108 = sphi 0, %s110
    %s111 = sphi 0, %s108
    %s112 = sphi 0, %s111
    %s128 = sphi 0, %s112
  $region4: #{wgan_g_forward.15} parent=0 // loop_header_branch
    %12 = sbr.rel (%p10) target = $region8
  $region5: #{wgan_g_forward.15} parent=0 // loop_body
    %s14 = ssub.s32 %s9, 1
    %s15 = ssub.s32 %s9, 2
    %s22 = sadd.s32 1, %s17
    %p23 = scmp.ge.s32.totalorder %s22, 1
    %s24 = scalar_select %p23, 0, %s22
    %s25 = sadd.s32 1, %s16
    %s26 = scalar_select %p23, %s25, %s16
    %p27 = scmp.ge.s32.totalorder %s26, 4
    %s28 = scalar_select %p27, 0, %s26
    %s29 = ssub.s32 %s16, %s28
    %s30 = ssub.s32 %s17, %s24
    %s31 = sor.u32 %s29, %s30
    %p32 = scmp.eq.s32.totalorder %s31, 0
    %s34 = sadd.s32 %s33, 1
    %s35 = scalar_select %p32, %s33, %s34
    %p38 = pneg %p32
    %p39 = scmp.eq.s32.totalorder %s9, 3
    %p40 = por %p38, %p39
    %p41 = scmp.ne.s32.totalorder %s33, %s36
    %p42 = scmp.eq.s32.totalorder %s9, 0
    %p43 = por %p41, %p42
    %p44 = scmp.ne.s32.totalorder %s33, %s36
    %p45 = scmp.eq.s32.totalorder %s14, 3
    %p46 = por %p44, %p45
    %p47 = scmp.ne.s32.totalorder %s36, %s37
    %p48 = scmp.eq.s32.totalorder %s14, 0
    %p49 = por %p47, %p48
    %p50 = scmp.ne.s32.totalorder %s36, %s37
    %p51 = scmp.eq.s32.totalorder %s15, 3
    %p52 = por %p50, %p51
    %p54 = scmp.ne.s32.totalorder %s37, %s53
    %p55 = scmp.eq.s32.totalorder %s15, 0
    %p56 = por %p54, %p55
    %s57 = ssub.s32 %s16, %s28
    %p58 = scmp.eq.s32.totalorder %s57, 0
    %s60 = sadd.s32 %s59, 1
    %s61 = scalar_select %p58, %s59, %s60
    %p64 = pneg %p58
    %p65 = scmp.eq.s32.totalorder %s9, 3
    %p66 = por %p64, %p65
    %p67 = scmp.ne.s32.totalorder %s59, %s62
    %p68 = scmp.eq.s32.totalorder %s9, 0
    %p69 = por %p67, %p68
    %p70 = scmp.ne.s32.totalorder %s59, %s62
    %p71 = scmp.eq.s32.totalorder %s14, 3
    %p72 = por %p70, %p71
    %p73 = scmp.ne.s32.totalorder %s62, %s63
    %p74 = scmp.eq.s32.totalorder %s14, 0
    %p75 = por %p73, %p74
    %p76 = scmp.ne.s32.totalorder %s62, %s63
    %p77 = scmp.eq.s32.totalorder %s15, 3
    %p78 = por %p76, %p77
    %p80 = scmp.ne.s32.totalorder %s63, %s79
    %p81 = scmp.eq.s32.totalorder %s15, 0
    %p82 = por %p80, %p81
    %s84 = sadd.s32 %s83, 1
    %p87 = scmp.eq.s32.totalorder %s9, 3
    %p88 = scmp.ne.s32.totalorder %s83, %s85
    %p89 = scmp.eq.s32.totalorder %s9, 0
    %p90 = por %p88, %p89
    %p91 = scmp.ne.s32.totalorder %s83, %s85
    %p92 = scmp.eq.s32.totalorder %s14, 3
    %p93 = por %p91, %p92
    %p94 = scmp.ne.s32.totalorder %s85, %s86
    %p95 = scmp.eq.s32.totalorder %s14, 0
    %p96 = por %p94, %p95
    %p97 = scmp.ne.s32.totalorder %s85, %s86
    %p98 = scmp.eq.s32.totalorder %s15, 3
    %p99 = por %p97, %p98
    %p101 = scmp.ne.s32.totalorder %s86, %s100
    %p102 = scmp.eq.s32.totalorder %s15, 0
    %p103 = por %p101, %p102
    %s104 = ssub.s32 %s16, %s28
    %s105 = ssub.s32 %s17, %s24
    %s106 = sor.u32 %s104, %s105
    %p107 = scmp.eq.s32.totalorder %s106, 0
    %s109 = sadd.s32 %s108, 1
    %s110 = scalar_select %p107, %s108, %s109
    %p113 = pneg %p107
    %p114 = scmp.eq.s32.totalorder %s9, 3
    %p115 = por %p113, %p114
    %p116 = scmp.ne.s32.totalorder %s108, %s111
    %p117 = scmp.eq.s32.totalorder %s9, 0
    %p118 = por %p116, %p117
    %p119 = scmp.ne.s32.totalorder %s108, %s111
    %p120 = scmp.eq.s32.totalorder %s14, 3
    %p121 = por %p119, %p120
    %p122 = scmp.ne.s32.totalorder %s111, %s112
    %p123 = scmp.eq.s32.totalorder %s14, 0
    %p124 = por %p122, %p123
    %p125 = scmp.ne.s32.totalorder %s111, %s112
    %p126 = scmp.eq.s32.totalorder %s15, 3
    %p127 = por %p125, %p126
    %p129 = scmp.ne.s32.totalorder %s112, %s128
    %p130 = scmp.eq.s32.totalorder %s15, 0
    %p131 = por %p129, %p130
    %p132 = scmp.le.s32.totalorder 1, %s9
    %p133 = scmp.lt.s32.totalorder %s9, 5
    %p134 = pnand %p132, %p133
    %p135 = pneg %p134
    // Predicated region
    $region9: #{wgan_g_forward.15} parent=5 // pred_check
      _
    $region10: #{wgan_g_forward.15} parent=5 // pred_check_branch
      %137 = sbr.rel (%p134) target = $region12
    $region11: #{wgan_g_forward.15} parent=5 // pred_region
      %s138 = ssub.s32 %s9, 1
      // Predicated region
      $region13: #{wgan_g_forward.15} parent=11 // pred_check
        %p139 = pneg %p96
      $region14: #{wgan_g_forward.15} parent=11 // pred_check_branch
        %141 = sbr.rel (%p139) target = $region16
      $region15: #{wgan_g_forward.15} parent=11 // pred_region
        _
      $region16: #{wgan_g_forward.15} parent=11 // pred_fallthru
        _
    $region12: #{wgan_g_forward.15} parent=5 // pred_fallthru
      _
    %p142 = scmp.lt.s32.totalorder %s9, 4
    // Predicated region
    $region17: #{wgan_g_forward.15} parent=5 // pred_check
      %p143 = pneg %p142
    $region18: #{wgan_g_forward.15} parent=5 // pred_check_branch
      %145 = sbr.rel (%p143) target = $region20
    $region19: #{wgan_g_forward.15} parent=5 // pred_region
      // Predicated region
      $region21: #{wgan_g_forward.15} parent=19 // pred_check
        %p146 = pneg %p43
      $region22: #{wgan_g_forward.15} parent=19 // pred_check_branch
        %148 = sbr.rel (%p146) target = $region24
      $region23: #{wgan_g_forward.15} parent=19 // pred_region
        %s149 = smul.u32 7, %s17
        %p150 = scmp.lt.s32.totalorder %s16, 3
        %s151 = scalar_select %p150, %s16, 3
        %p152 = scmp.lt.s32.totalorder %s149, 6
        %s153 = scalar_select %p152, %s149, 6
        %s154 = smul.addr %s151, 224
        %s155 = sadd.s32 %s153, %s154
        %s156 = smul.addr %s155, 4
        %s157 = scalar_lea.vmem %s0, %s156
        %s158 = smul.u32 7, %s17
      $region24: #{wgan_g_forward.15} parent=19 // pred_fallthru
        _
      // Predicated region
      $region25: #{wgan_g_forward.15} parent=19 // pred_check
        %p159 = pneg %p69
      $region26: #{wgan_g_forward.15} parent=19 // pred_check_branch
        %161 = sbr.rel (%p159) target = $region28
      $region27: #{wgan_g_forward.15} parent=19 // pred_region
        %p162 = scmp.lt.s32.totalorder %s16, 3
        %s163 = scalar_select %p162, %s16, 3
        %s164 = smul.addr %s163, 2
        %s165 = smul.addr %s164, 4
        %s166 = scalar_lea.vmem %s1, %s165
      $region28: #{wgan_g_forward.15} parent=19 // pred_fallthru
        _
    $region20: #{wgan_g_forward.15} parent=5 // pred_fallthru
      _
    %p167 = scmp.le.s32.totalorder 1, %s9
    %p168 = scmp.lt.s32.totalorder %s9, 5
    %p169 = pnand %p167, %p168
    %p170 = pneg %p169
    // Predicated region
    $region29: #{wgan_g_forward.15} parent=5 // pred_check
      _
    $region30: #{wgan_g_forward.15} parent=5 // pred_check_branch
      %172 = sbr.rel (%p169) target = $region32
    $region31: #{wgan_g_forward.15} parent=5 // pred_region
      %s173 = ssub.s32 %s9, 1
      %s174 = smul.u32 7, %s19
      %p175 = scmp.lt.s32.totalorder %s18, 3
      %s176 = scalar_select %p175, %s18, 3
      %p177 = scmp.lt.s32.totalorder %s174, 6
      %s178 = scalar_select %p177, %s174, 6
      %s179 = smul.addr %s176, 224
      %s180 = sadd.s32 %s178, %s179
      %s181 = smul.addr %s180, 4
      %s182 = scalar_lea.vmem %s0, %s181
      %p183 = pneg %p49
      %p184 = pneg %p46
      %p185 = scmp.lt.s32.totalorder %s18, 3
      %s186 = scalar_select %p185, %s18, 3
      %s187 = smul.addr %s186, 2
      %s188 = smul.addr %s187, 4
      %s189 = scalar_lea.vmem %s1, %s188
      %p190 = pneg %p75
      %p191 = pneg %p72
      %p192 = pneg %p96
      %p193 = pneg %p93
      %p194 = pneg %p124
      %p195 = pneg %p121
      %s196 = smul.u32 7, %s19
      %p197 = scmp.lt.s32.totalorder %s18, 3
      %s198 = scalar_select %p197, %s18, 3
      %p199 = scmp.lt.s32.totalorder %s196, 6
      %s200 = scalar_select %p199, %s196, 6
      %s201 = smul.addr %s198, 7
      %s202 = sadd.s32 %s200, %s201
      %s203 = smul.addr %s202, 8
      %s204 = scalar_lea.vmem %s3, %s203
      %s205 = smul.u32 7, %s19
      %p206 = scmp.lt.s32.totalorder %s18, 3
      %s207 = scalar_select %p206, %s18, 3
      %p208 = scmp.lt.s32.totalorder %s205, 6
      %s209 = scalar_select %p208, %s205, 6
      %s210 = smul.addr %s207, 224
      %s211 = sadd.s32 %s209, %s210
      %s212 = smul.addr %s211, 4
      %s213 = scalar_lea.vmem %s0, %s212
      %s214 = smul.u32 7, %s19
      %p215 = scmp.lt.s32.totalorder %s18, 3
      %s216 = scalar_select %p215, %s18, 3
      %s217 = smul.addr %s216, 2
      %s218 = smul.addr %s217, 4
      %s219 = scalar_lea.vmem %s1, %s218
      %s220 = smul.u32 7, %s19
      %p221 = scmp.lt.s32.totalorder %s18, 3
      %s222 = scalar_select %p221, %s18, 3
      %p223 = scmp.lt.s32.totalorder %s220, 6
      %s224 = scalar_select %p223, %s220, 6
      %s225 = smul.addr %s222, 7
      %s226 = sadd.s32 %s224, %s225
      %s227 = smul.addr %s226, 8
      %s228 = scalar_lea.vmem %s3, %s227
      %s229 = smul.u32 7, %s19
      %v231 = vld [vmem:[%s219] sm:$0x77]
      %v232 = vld [vmem:[%s213] sm:$0xff]
      %v233 = vld [vmem:[%s213 + $0x8] sm:$0xff]
      %v234 = vld [vmem:[%s213 + $0x10] sm:$0xff]
      %v235 = vld [vmem:[%s213 + $0x18] sm:$0xf]
      %v236 = vld [vmem:[%s213 + $0x1c] sm:$0xff]
      %v237 = vld [vmem:[%s213 + $0x24] sm:$0xff]
      %v238 = vld [vmem:[%s213 + $0x2c] sm:$0xff]
      %v239 = vld [vmem:[%s213 + $0x34] sm:$0xf]
      %v240 = vld [vmem:[%s213 + $0x38] sm:$0xff]
      %v241 = vld [vmem:[%s213 + $0x40] sm:$0xff]
      %v242 = vld [vmem:[%s213 + $0x48] sm:$0xff]
      %v243 = vld [vmem:[%s213 + $0x50] sm:$0xf]
      %v244 = vld [vmem:[%s213 + $0x54] sm:$0xff]
      %v245 = vld [vmem:[%s213 + $0x5c] sm:$0xff]
      %v246 = vld [vmem:[%s213 + $0x64] sm:$0xff]
      %v247 = vld [vmem:[%s213 + $0x6c] sm:$0xf]
      %v248 = vld [vmem:[%s213 + $0x70] sm:$0xff]
      %v249 = vld [vmem:[%s213 + $0x78] sm:$0xff]
      %v250 = vld [vmem:[%s213 + $0x80] sm:$0xff]
      %v251 = vld [vmem:[%s213 + $0x88] sm:$0xf]
      %v252 = vld [vmem:[%s213 + $0x8c] sm:$0xff]
      %v253 = vld [vmem:[%s213 + $0x94] sm:$0xff]
      %v254 = vld [vmem:[%s213 + $0x9c] sm:$0xff]
      %v255 = vld [vmem:[%s213 + $0xa4] sm:$0xf]
      %v256 = vld [vmem:[%s213 + $0xa8] sm:$0xff]
      %v257 = vld [vmem:[%s213 + $0xb0] sm:$0xff]
      %v258 = vld [vmem:[%s213 + $0xb8] sm:$0xff]
      %v259 = vld [vmem:[%s213 + $0xc0] sm:$0xf]
      %v260 = vld [vmem:[%s213 + $0xc4] sm:$0xff]
      %v261 = vld [vmem:[%s213 + $0xcc] sm:$0xff]
      %v262 = vld [vmem:[%s213 + $0xd4] sm:$0xff]
      %v263 = vld [vmem:[%s213 + $0xdc] sm:$0xf]
      %v264 = vld [vmem:[%s213 + $0xe0] sm:$0xff]
      %v265 = vld [vmem:[%s213 + $0xe8] sm:$0xff]
      %v266 = vld [vmem:[%s213 + $0xf0] sm:$0xff]
      %v267 = vld [vmem:[%s213 + $0xf8] sm:$0xf]
      %v268 = vld [vmem:[%s213 + $0xfc] sm:$0xff]
      %v269 = vld [vmem:[%s213 + $0x104] sm:$0xff]
      %v270 = vld [vmem:[%s213 + $0x10c] sm:$0xff]
      %v271 = vld [vmem:[%s213 + $0x114] sm:$0xf]
      %v272 = vld [vmem:[%s213 + $0x118] sm:$0xff]
      %v273 = vld [vmem:[%s213 + $0x120] sm:$0xff]
      %v274 = vld [vmem:[%s213 + $0x128] sm:$0xff]
      %v275 = vld [vmem:[%s213 + $0x130] sm:$0xf]
      %v276 = vld [vmem:[%s213 + $0x134] sm:$0xff]
      %v277 = vld [vmem:[%s213 + $0x13c] sm:$0xff]
      %v278 = vld [vmem:[%s213 + $0x144] sm:$0xff]
      %v279 = vld [vmem:[%s213 + $0x14c] sm:$0xf]
      %v280 = vld [vmem:[%s213 + $0x150] sm:$0xff]
      %v281 = vld [vmem:[%s213 + $0x158] sm:$0xff]
      %v282 = vld [vmem:[%s213 + $0x160] sm:$0xff]
      %v283 = vld [vmem:[%s213 + $0x168] sm:$0xf]
      %v284 = vld [vmem:[%s213 + $0x16c] sm:$0xff]
      %v285 = vld [vmem:[%s213 + $0x174] sm:$0xff]
      %v286 = vld [vmem:[%s213 + $0x17c] sm:$0xff]
      %v287 = vld [vmem:[%s213 + $0x184] sm:$0xf]
      %v288 = vld [vmem:[%s213 + $0x188] sm:$0xff]
      %v289 = vld [vmem:[%s213 + $0x190] sm:$0xff]
      %v290 = vld [vmem:[%s213 + $0x198] sm:$0xff]
      %v291 = vld [vmem:[%s213 + $0x1a0] sm:$0xf]
      %v292 = vld [vmem:[%s213 + $0x1a4] sm:$0xff]
      %v293 = vld [vmem:[%s213 + $0x1ac] sm:$0xff]
      %v294 = vld [vmem:[%s213 + $0x1b4] sm:$0xff]
      %v295 = vld [vmem:[%s213 + $0x1bc] sm:$0xf]
      %v296 = vld [vmem:[%s213 + $0x1c0] sm:$0xff]
      %v297 = vld [vmem:[%s213 + $0x1c8] sm:$0xff]
      %v298 = vld [vmem:[%s213 + $0x1d0] sm:$0xff]
      %v299 = vld [vmem:[%s213 + $0x1d8] sm:$0xf]
      %v300 = vld [vmem:[%s213 + $0x1dc] sm:$0xff]
      %v301 = vld [vmem:[%s213 + $0x1e4] sm:$0xff]
      %v302 = vld [vmem:[%s213 + $0x1ec] sm:$0xff]
      %v303 = vld [vmem:[%s213 + $0x1f4] sm:$0xf]
      %v304 = vld [vmem:[%s213 + $0x1f8] sm:$0xff]
      %v305 = vld [vmem:[%s213 + $0x200] sm:$0xff]
      %v306 = vld [vmem:[%s213 + $0x208] sm:$0xff]
      %v307 = vld [vmem:[%s213 + $0x210] sm:$0xf]
      %v308 = vld [vmem:[%s213 + $0x214] sm:$0xff]
      %v309 = vld [vmem:[%s213 + $0x21c] sm:$0xff]
      %v310 = vld [vmem:[%s213 + $0x224] sm:$0xff]
      %v311 = vld [vmem:[%s213 + $0x22c] sm:$0xf]
      %v312 = vld [vmem:[%s213 + $0x230] sm:$0xff]
      %v313 = vld [vmem:[%s213 + $0x238] sm:$0xff]
      %v314 = vld [vmem:[%s213 + $0x240] sm:$0xff]
      %v315 = vld [vmem:[%s213 + $0x248] sm:$0xf]
      %v316 = vld [vmem:[%s213 + $0x24c] sm:$0xff]
      %v317 = vld [vmem:[%s213 + $0x254] sm:$0xff]
      %v318 = vld [vmem:[%s213 + $0x25c] sm:$0xff]
      %v319 = vld [vmem:[%s213 + $0x264] sm:$0xf]
      %v320 = vld [vmem:[%s213 + $0x268] sm:$0xff]
      %v321 = vld [vmem:[%s213 + $0x270] sm:$0xff]
      %v322 = vld [vmem:[%s213 + $0x278] sm:$0xff]
      %v323 = vld [vmem:[%s213 + $0x280] sm:$0xf]
      %v324 = vld [vmem:[%s213 + $0x284] sm:$0xff]
      %v325 = vld [vmem:[%s213 + $0x28c] sm:$0xff]
      %v326 = vld [vmem:[%s213 + $0x294] sm:$0xff]
      %v327 = vld [vmem:[%s213 + $0x29c] sm:$0xf]
      %v328 = vld [vmem:[%s213 + $0x2a0] sm:$0xff]
      %v329 = vld [vmem:[%s213 + $0x2a8] sm:$0xff]
      %v330 = vld [vmem:[%s213 + $0x2b0] sm:$0xff]
      %v331 = vld [vmem:[%s213 + $0x2b8] sm:$0xf]
      %v332 = vld [vmem:[%s213 + $0x2bc] sm:$0xff]
      %v333 = vld [vmem:[%s213 + $0x2c4] sm:$0xff]
      %v334 = vld [vmem:[%s213 + $0x2cc] sm:$0xff]
      %v335 = vld [vmem:[%s213 + $0x2d4] sm:$0xf]
      %v336 = vld [vmem:[%s213 + $0x2d8] sm:$0xff]
      %v337 = vld [vmem:[%s213 + $0x2e0] sm:$0xff]
      %v338 = vld [vmem:[%s213 + $0x2e8] sm:$0xff]
      %v339 = vld [vmem:[%s213 + $0x2f0] sm:$0xf]
      %v340 = vld [vmem:[%s213 + $0x2f4] sm:$0xff]
      %v341 = vld [vmem:[%s213 + $0x2fc] sm:$0xff]
      %v342 = vld [vmem:[%s213 + $0x304] sm:$0xff]
      %v343 = vld [vmem:[%s213 + $0x30c] sm:$0xf]
      %v344 = vld [vmem:[%s213 + $0x310] sm:$0xff]
      %v345 = vld [vmem:[%s213 + $0x318] sm:$0xff]
      %v346 = vld [vmem:[%s213 + $0x320] sm:$0xff]
      %v347 = vld [vmem:[%s213 + $0x328] sm:$0xf]
      %v348 = vld [vmem:[%s213 + $0x32c] sm:$0xff]
      %v349 = vld [vmem:[%s213 + $0x334] sm:$0xff]
      %v350 = vld [vmem:[%s213 + $0x33c] sm:$0xff]
      %v351 = vld [vmem:[%s213 + $0x344] sm:$0xf]
      %v352 = vld [vmem:[%s213 + $0x348] sm:$0xff]
      %v353 = vld [vmem:[%s213 + $0x350] sm:$0xff]
      %v354 = vld [vmem:[%s213 + $0x358] sm:$0xff]
      %v355 = vld [vmem:[%s213 + $0x360] sm:$0xf]
      %v356 = vld [vmem:[%s213 + $0x364] sm:$0xff]
      %v357 = vld [vmem:[%s213 + $0x36c] sm:$0xff]
      %v358 = vld [vmem:[%s213 + $0x374] sm:$0xff]
      %v359 = vld [vmem:[%s213 + $0x37c] sm:$0xf]
      %v360 = vld [vmem:[%s2] sm:$0x3f]
      %362 = vset.pattern.permute.xlu0 0
      %363 = vperm.xlu0 %362, %v360
      %v364 = vpop.permute.xlu0 %363
      %v367 = vunpack.c.l.b16 %v231
      %v368 = vunpack.c.h.b16 %v231
      %v369 = vpack.c.b16 %v367, %v367
      %v370 = vpack.c.b16 %v368, %v368
      %v501 = vunpack.c.l.b16 %v232
      %v502 = vunpack.c.h.b16 %v232
      %v503 = vunpack.c.l.b16 %v233
      %v504 = vunpack.c.h.b16 %v233
      %v505 = vunpack.c.l.b16 %v234
      %v506 = vunpack.c.h.b16 %v234
      %v507 = vunpack.c.l.b16 %v235
      %v508 = vunpack.c.l.b16 %v236
      %v509 = vunpack.c.h.b16 %v236
      %v510 = vunpack.c.l.b16 %v237
      %v511 = vunpack.c.h.b16 %v237
      %v512 = vunpack.c.l.b16 %v238
      %v513 = vunpack.c.h.b16 %v238
      %v514 = vunpack.c.l.b16 %v239
      %v515 = vunpack.c.l.b16 %v240
      %v516 = vunpack.c.h.b16 %v240
      %v517 = vunpack.c.l.b16 %v241
      %v518 = vunpack.c.h.b16 %v241
      %v519 = vunpack.c.l.b16 %v242
      %v520 = vunpack.c.h.b16 %v242
      %v521 = vunpack.c.l.b16 %v243
      %v522 = vunpack.c.l.b16 %v244
      %v523 = vunpack.c.h.b16 %v244
      %v524 = vunpack.c.l.b16 %v245
      %v525 = vunpack.c.h.b16 %v245
      %v526 = vunpack.c.l.b16 %v246
      %v527 = vunpack.c.h.b16 %v246
      %v528 = vunpack.c.l.b16 %v247
      %v529 = vunpack.c.l.b16 %v248
      %v530 = vunpack.c.h.b16 %v248
      %v531 = vunpack.c.l.b16 %v249
      %v532 = vunpack.c.h.b16 %v249
      %v533 = vunpack.c.l.b16 %v250
      %v534 = vunpack.c.h.b16 %v250
      %v535 = vunpack.c.l.b16 %v251
      %v536 = vunpack.c.l.b16 %v252
      %v537 = vunpack.c.h.b16 %v252
      %v538 = vunpack.c.l.b16 %v253
      %v539 = vunpack.c.h.b16 %v253
      %v540 = vunpack.c.l.b16 %v254
      %v541 = vunpack.c.h.b16 %v254
      %v542 = vunpack.c.l.b16 %v255
      %v543 = vunpack.c.l.b16 %v256
      %v544 = vunpack.c.h.b16 %v256
      %v545 = vunpack.c.l.b16 %v257
      %v546 = vunpack.c.h.b16 %v257
      %v547 = vunpack.c.l.b16 %v258
      %v548 = vunpack.c.h.b16 %v258
      %v549 = vunpack.c.l.b16 %v259
      %v550 = vunpack.c.l.b16 %v260
      %v551 = vunpack.c.h.b16 %v260
      %v552 = vunpack.c.l.b16 %v261
      %v553 = vunpack.c.h.b16 %v261
      %v554 = vunpack.c.l.b16 %v262
      %v555 = vunpack.c.h.b16 %v262
      %v556 = vunpack.c.l.b16 %v263
      %v557 = vunpack.c.l.b16 %v264
      %v558 = vunpack.c.h.b16 %v264
      %v559 = vunpack.c.l.b16 %v265
      %v560 = vunpack.c.h.b16 %v265
      %v561 = vunpack.c.l.b16 %v266
      %v562 = vunpack.c.h.b16 %v266
      %v563 = vunpack.c.l.b16 %v267
      %v564 = vunpack.c.l.b16 %v268
      %v565 = vunpack.c.h.b16 %v268
      %v566 = vunpack.c.l.b16 %v269
      %v567 = vunpack.c.h.b16 %v269
      %v568 = vunpack.c.l.b16 %v270
      %v569 = vunpack.c.h.b16 %v270
      %v570 = vunpack.c.l.b16 %v271
      %v571 = vunpack.c.l.b16 %v272
      %v572 = vunpack.c.h.b16 %v272
      %v573 = vunpack.c.l.b16 %v273
      %v574 = vunpack.c.h.b16 %v273
      %v575 = vunpack.c.l.b16 %v274
      %v576 = vunpack.c.h.b16 %v274
      %v577 = vunpack.c.l.b16 %v275
      %v578 = vunpack.c.l.b16 %v276
      %v579 = vunpack.c.h.b16 %v276
      %v580 = vunpack.c.l.b16 %v277
      %v581 = vunpack.c.h.b16 %v277
      %v582 = vunpack.c.l.b16 %v278
      %v583 = vunpack.c.h.b16 %v278
      %v584 = vunpack.c.l.b16 %v279
      %v585 = vunpack.c.l.b16 %v280
      %v586 = vunpack.c.h.b16 %v280
      %v587 = vunpack.c.l.b16 %v281
      %v588 = vunpack.c.h.b16 %v281
      %v589 = vunpack.c.l.b16 %v282
      %v590 = vunpack.c.h.b16 %v282
      %v591 = vunpack.c.l.b16 %v283
      %v592 = vunpack.c.l.b16 %v284
      %v593 = vunpack.c.h.b16 %v284
      %v594 = vunpack.c.l.b16 %v285
      %v595 = vunpack.c.h.b16 %v285
      %v596 = vunpack.c.l.b16 %v286
      %v597 = vunpack.c.h.b16 %v286
      %v598 = vunpack.c.l.b16 %v287
      %v599 = vunpack.c.l.b16 %v288
      %v600 = vunpack.c.h.b16 %v288
      %v601 = vunpack.c.l.b16 %v289
      %v602 = vunpack.c.h.b16 %v289
      %v603 = vunpack.c.l.b16 %v290
      %v604 = vunpack.c.h.b16 %v290
      %v605 = vunpack.c.l.b16 %v291
      %v606 = vunpack.c.l.b16 %v292
      %v607 = vunpack.c.h.b16 %v292
      %v608 = vunpack.c.l.b16 %v293
      %v609 = vunpack.c.h.b16 %v293
      %v610 = vunpack.c.l.b16 %v294
      %v611 = vunpack.c.h.b16 %v294
      %v612 = vunpack.c.l.b16 %v295
      %v613 = vunpack.c.l.b16 %v296
      %v614 = vunpack.c.h.b16 %v296
      %v615 = vunpack.c.l.b16 %v297
      %v616 = vunpack.c.h.b16 %v297
      %v617 = vunpack.c.l.b16 %v298
      %v618 = vunpack.c.h.b16 %v298
      %v619 = vunpack.c.l.b16 %v299
      %v620 = vunpack.c.l.b16 %v300
      %v621 = vunpack.c.h.b16 %v300
      %v622 = vunpack.c.l.b16 %v301
      %v623 = vunpack.c.h.b16 %v301
      %v624 = vunpack.c.l.b16 %v302
      %v625 = vunpack.c.h.b16 %v302
      %v626 = vunpack.c.l.b16 %v303
      %v627 = vunpack.c.l.b16 %v304
      %v628 = vunpack.c.h.b16 %v304
      %v629 = vunpack.c.l.b16 %v305
      %v630 = vunpack.c.h.b16 %v305
      %v631 = vunpack.c.l.b16 %v306
      %v632 = vunpack.c.h.b16 %v306
      %v633 = vunpack.c.l.b16 %v307
      %v634 = vunpack.c.l.b16 %v308
      %v635 = vunpack.c.h.b16 %v308
      %v636 = vunpack.c.l.b16 %v309
      %v637 = vunpack.c.h.b16 %v309
      %v638 = vunpack.c.l.b16 %v310
      %v639 = vunpack.c.h.b16 %v310
      %v640 = vunpack.c.l.b16 %v311
      %v641 = vunpack.c.l.b16 %v312
      %v642 = vunpack.c.h.b16 %v312
      %v643 = vunpack.c.l.b16 %v313
      %v644 = vunpack.c.h.b16 %v313
      %v645 = vunpack.c.l.b16 %v314
      %v646 = vunpack.c.h.b16 %v314
      %v647 = vunpack.c.l.b16 %v315
      %v648 = vunpack.c.l.b16 %v316
      %v649 = vunpack.c.h.b16 %v316
      %v650 = vunpack.c.l.b16 %v317
      %v651 = vunpack.c.h.b16 %v317
      %v652 = vunpack.c.l.b16 %v318
      %v653 = vunpack.c.h.b16 %v318
      %v654 = vunpack.c.l.b16 %v319
      %v655 = vunpack.c.l.b16 %v320
      %v656 = vunpack.c.h.b16 %v320
      %v657 = vunpack.c.l.b16 %v321
      %v658 = vunpack.c.h.b16 %v321
      %v659 = vunpack.c.l.b16 %v322
      %v660 = vunpack.c.h.b16 %v322
      %v661 = vunpack.c.l.b16 %v323
      %v662 = vunpack.c.l.b16 %v324
      %v663 = vunpack.c.h.b16 %v324
      %v664 = vunpack.c.l.b16 %v325
      %v665 = vunpack.c.h.b16 %v325
      %v666 = vunpack.c.l.b16 %v326
      %v667 = vunpack.c.h.b16 %v326
      %v668 = vunpack.c.l.b16 %v327
      %v669 = vunpack.c.l.b16 %v328
      %v670 = vunpack.c.h.b16 %v328
      %v671 = vunpack.c.l.b16 %v329
      %v672 = vunpack.c.h.b16 %v329
      %v673 = vunpack.c.l.b16 %v330
      %v674 = vunpack.c.h.b16 %v330
      %v675 = vunpack.c.l.b16 %v331
      %v676 = vunpack.c.l.b16 %v332
      %v677 = vunpack.c.h.b16 %v332
      %v678 = vunpack.c.l.b16 %v333
      %v679 = vunpack.c.h.b16 %v333
      %v680 = vunpack.c.l.b16 %v334
      %v681 = vunpack.c.h.b16 %v334
      %v682 = vunpack.c.l.b16 %v335
      %v683 = vunpack.c.l.b16 %v336
      %v684 = vunpack.c.h.b16 %v336
      %v685 = vunpack.c.l.b16 %v337
      %v686 = vunpack.c.h.b16 %v337
      %v687 = vunpack.c.l.b16 %v338
      %v688 = vunpack.c.h.b16 %v338
      %v689 = vunpack.c.l.b16 %v339
      %v690 = vunpack.c.l.b16 %v340
      %v691 = vunpack.c.h.b16 %v340
      %v692 = vunpack.c.l.b16 %v341
      %v693 = vunpack.c.h.b16 %v341
      %v694 = vunpack.c.l.b16 %v342
      %v695 = vunpack.c.h.b16 %v342
      %v696 = vunpack.c.l.b16 %v343
      %v697 = vunpack.c.l.b16 %v344
      %v698 = vunpack.c.h.b16 %v344
      %v699 = vunpack.c.l.b16 %v345
      %v700 = vunpack.c.h.b16 %v345
      %v701 = vunpack.c.l.b16 %v346
      %v702 = vunpack.c.h.b16 %v346
      %v703 = vunpack.c.l.b16 %v347
      %v704 = vunpack.c.l.b16 %v348
      %v705 = vunpack.c.h.b16 %v348
      %v706 = vunpack.c.l.b16 %v349
      %v707 = vunpack.c.h.b16 %v349
      %v708 = vunpack.c.l.b16 %v350
      %v709 = vunpack.c.h.b16 %v350
      %v710 = vunpack.c.l.b16 %v351
      %v711 = vunpack.c.l.b16 %v352
      %v712 = vunpack.c.h.b16 %v352
      %v713 = vunpack.c.l.b16 %v353
      %v714 = vunpack.c.h.b16 %v353
      %v715 = vunpack.c.l.b16 %v354
      %v716 = vunpack.c.h.b16 %v354
      %v717 = vunpack.c.l.b16 %v355
      %v718 = vunpack.c.l.b16 %v356
      %v719 = vunpack.c.h.b16 %v356
      %v720 = vunpack.c.l.b16 %v357
      %v721 = vunpack.c.h.b16 %v357
      %v722 = vunpack.c.l.b16 %v358
      %v723 = vunpack.c.h.b16 %v358
      %v724 = vunpack.c.l.b16 %v359
      %v725 = vpack.c.b16 %v508, %v501
      %v726 = vpack.c.b16 %v509, %v502
      %v727 = vpack.c.b16 %v510, %v503
      %v728 = vpack.c.b16 %v511, %v504
      %v729 = vpack.c.b16 %v512, %v505
      %v730 = vpack.c.b16 %v513, %v506
      %v731 = vpack.c.b16 %v514, %v507
      %v732 = vpack.c.b16 %v522, %v515
      %v733 = vpack.c.b16 %v523, %v516
      %v734 = vpack.c.b16 %v524, %v517
      %v735 = vpack.c.b16 %v525, %v518
      %v736 = vpack.c.b16 %v526, %v519
      %v737 = vpack.c.b16 %v527, %v520
      %v738 = vpack.c.b16 %v528, %v521
      %v739 = vpack.c.b16 %v536, %v529
      %v740 = vpack.c.b16 %v537, %v530
      %v741 = vpack.c.b16 %v538, %v531
      %v742 = vpack.c.b16 %v539, %v532
      %v743 = vpack.c.b16 %v540, %v533
      %v744 = vpack.c.b16 %v541, %v534
      %v745 = vpack.c.b16 %v542, %v535
      %v746 = vpack.c.b16 %v550, %v543
      %v747 = vpack.c.b16 %v551, %v544
      %v748 = vpack.c.b16 %v552, %v545
      %v749 = vpack.c.b16 %v553, %v546
      %v750 = vpack.c.b16 %v554, %v547
      %v751 = vpack.c.b16 %v555, %v548
      %v752 = vpack.c.b16 %v556, %v549
      %v753 = vpack.c.b16 %v564, %v557
      %v754 = vpack.c.b16 %v565, %v558
      %v755 = vpack.c.b16 %v566, %v559
      %v756 = vpack.c.b16 %v567, %v560
      %v757 = vpack.c.b16 %v568, %v561
      %v758 = vpack.c.b16 %v569, %v562
      %v759 = vpack.c.b16 %v570, %v563
      %v760 = vpack.c.b16 %v578, %v571
      %v761 = vpack.c.b16 %v579, %v572
      %v762 = vpack.c.b16 %v580, %v573
      %v763 = vpack.c.b16 %v581, %v574
      %v764 = vpack.c.b16 %v582, %v575
      %v765 = vpack.c.b16 %v583, %v576
      %v766 = vpack.c.b16 %v584, %v577
      %v767 = vpack.c.b16 %v592, %v585
      %v768 = vpack.c.b16 %v593, %v586
      %v769 = vpack.c.b16 %v594, %v587
      %v770 = vpack.c.b16 %v595, %v588
      %v771 = vpack.c.b16 %v596, %v589
      %v772 = vpack.c.b16 %v597, %v590
      %v773 = vpack.c.b16 %v598, %v591
      %v774 = vpack.c.b16 %v606, %v599
      %v775 = vpack.c.b16 %v607, %v600
      %v776 = vpack.c.b16 %v608, %v601
      %v777 = vpack.c.b16 %v609, %v602
      %v778 = vpack.c.b16 %v610, %v603
      %v779 = vpack.c.b16 %v611, %v604
      %v780 = vpack.c.b16 %v612, %v605
      %v781 = vpack.c.b16 %v620, %v613
      %v782 = vpack.c.b16 %v621, %v614
      %v783 = vpack.c.b16 %v622, %v615
      %v784 = vpack.c.b16 %v623, %v616
      %v785 = vpack.c.b16 %v624, %v617
      %v786 = vpack.c.b16 %v625, %v618
      %v787 = vpack.c.b16 %v626, %v619
      %v788 = vpack.c.b16 %v634, %v627
      %v789 = vpack.c.b16 %v635, %v628
      %v790 = vpack.c.b16 %v636, %v629
      %v791 = vpack.c.b16 %v637, %v630
      %v792 = vpack.c.b16 %v638, %v631
      %v793 = vpack.c.b16 %v639, %v632
      %v794 = vpack.c.b16 %v640, %v633
      %v795 = vpack.c.b16 %v648, %v641
      %v796 = vpack.c.b16 %v649, %v642
      %v797 = vpack.c.b16 %v650, %v643
      %v798 = vpack.c.b16 %v651, %v644
      %v799 = vpack.c.b16 %v652, %v645
      %v800 = vpack.c.b16 %v653, %v646
      %v801 = vpack.c.b16 %v654, %v647
      %v802 = vpack.c.b16 %v662, %v655
      %v803 = vpack.c.b16 %v663, %v656
      %v804 = vpack.c.b16 %v664, %v657
      %v805 = vpack.c.b16 %v665, %v658
      %v806 = vpack.c.b16 %v666, %v659
      %v807 = vpack.c.b16 %v667, %v660
      %v808 = vpack.c.b16 %v668, %v661
      %v809 = vpack.c.b16 %v676, %v669
      %v810 = vpack.c.b16 %v677, %v670
      %v811 = vpack.c.b16 %v678, %v671
      %v812 = vpack.c.b16 %v679, %v672
      %v813 = vpack.c.b16 %v680, %v673
      %v814 = vpack.c.b16 %v681, %v674
      %v815 = vpack.c.b16 %v682, %v675
      %v816 = vpack.c.b16 %v690, %v683
      %v817 = vpack.c.b16 %v691, %v684
      %v818 = vpack.c.b16 %v692, %v685
      %v819 = vpack.c.b16 %v693, %v686
      %v820 = vpack.c.b16 %v694, %v687
      %v821 = vpack.c.b16 %v695, %v688
      %v822 = vpack.c.b16 %v696, %v689
      %v823 = vpack.c.b16 %v704, %v697
      %v824 = vpack.c.b16 %v705, %v698
      %v825 = vpack.c.b16 %v706, %v699
      %v826 = vpack.c.b16 %v707, %v700
      %v827 = vpack.c.b16 %v708, %v701
      %v828 = vpack.c.b16 %v709, %v702
      %v829 = vpack.c.b16 %v710, %v703
      %v830 = vpack.c.b16 %v718, %v711
      %v831 = vpack.c.b16 %v719, %v712
      %v832 = vpack.c.b16 %v720, %v713
      %v833 = vpack.c.b16 %v721, %v714
      %v834 = vpack.c.b16 %v722, %v715
      %v835 = vpack.c.b16 %v723, %v716
      %v836 = vpack.c.b16 %v724, %v717
      %949 = vmatprep.subr.bf16.mxu0 %v726
      %950 = vmatpush1.bf16.msra.mxu0 %v725
      %951 = vmatprep.subr.bf16.mxu0 %v733
      %952 = vmatpush1.bf16.msra.mxu0 %v732
      %953 = vmatprep.subr.bf16.mxu0 %v740
      %954 = vmatpush1.bf16.msra.mxu0 %v739
      %955 = vmatprep.subr.bf16.mxu0 %v747
      %956 = vmatpush1.bf16.msra.mxu0 %v746
      %957 = vmatprep.subr.bf16.mxu0 %v754
      %958 = vmatpush1.bf16.msra.mxu0 %v753
      %959 = vmatprep.subr.bf16.mxu0 %v761
      %960 = vmatpush1.bf16.msra.mxu0 %v760
      %961 = vmatprep.subr.bf16.mxu0 %v768
      %962 = vmatpush1.bf16.msra.mxu0 %v767
      %963 = vmatprep.subr.bf16.mxu0 %v775
      %964 = vmatpush1.bf16.msra.mxu0 %v774
      %965 = vmatprep.subr.bf16.mxu0 %v782
      %966 = vmatpush1.bf16.msra.mxu0 %v781
      %967 = vmatprep.subr.bf16.mxu0 %v789
      %968 = vmatpush1.bf16.msra.mxu0 %v788
      %969 = vmatprep.subr.bf16.mxu0 %v796
      %970 = vmatpush1.bf16.msra.mxu0 %v795
      %971 = vmatprep.subr.bf16.mxu0 %v803
      %972 = vmatpush1.bf16.msra.mxu0 %v802
      %973 = vmatprep.subr.bf16.mxu0 %v810
      %974 = vmatpush1.bf16.msra.mxu0 %v809
      %975 = vmatprep.subr.bf16.mxu0 %v817
      %976 = vmatpush1.bf16.msra.mxu0 %v816
      %977 = vmatprep.subr.bf16.mxu0 %v824
      %978 = vmatpush1.bf16.msra.mxu0 %v823
      %979 = vmatprep.subr.bf16.mxu0 %v831
      %980 = vmatpush1.bf16.msra.mxu0 %v830
      %981 = vmatprep.mubr.bf16.mxu0 %v370
      %982 = vmatmul.mubr.bf16.gmra.mrb[0].mxu0 %v369
      %v983 = vpop.f32.mrb[0].mxu0
      %v984 = vadd.f32 %v364, %v983
      %v985 = vpop.f32.mrb[0].mxu0
      %v986 = vadd.f32 %v364, %v985
      %v987 = vpop.f32.mrb[0].mxu0
      %v988 = vpop.f32.mrb[0].mxu0
      %989 = vdwg.mxu0
      %990 = vmatprep.subr.bf16.mxu0 %v728
      %991 = vmatpush1.bf16.msra.mxu0 %v727
      %992 = vmatprep.subr.bf16.mxu0 %v735
      %993 = vmatpush1.bf16.msra.mxu0 %v734
      %994 = vmatprep.subr.bf16.mxu0 %v742
      %995 = vmatpush1.bf16.msra.mxu0 %v741
      %996 = vmatprep.subr.bf16.mxu0 %v749
      %997 = vmatpush1.bf16.msra.mxu0 %v748
      %998 = vmatprep.subr.bf16.mxu0 %v756
      %999 = vmatpush1.bf16.msra.mxu0 %v755
      %1000 = vmatprep.subr.bf16.mxu0 %v763
      %1001 = vmatpush1.bf16.msra.mxu0 %v762
      %1002 = vmatprep.subr.bf16.mxu0 %v770
      %1003 = vmatpush1.bf16.msra.mxu0 %v769
      %1004 = vmatprep.subr.bf16.mxu0 %v777
      %1005 = vmatpush1.bf16.msra.mxu0 %v776
      %1006 = vmatprep.subr.bf16.mxu0 %v784
      %1007 = vmatpush1.bf16.msra.mxu0 %v783
      %1008 = vmatprep.subr.bf16.mxu0 %v791
      %1009 = vmatpush1.bf16.msra.mxu0 %v790
      %1010 = vmatprep.subr.bf16.mxu0 %v798
      %1011 = vmatpush1.bf16.msra.mxu0 %v797
      %1012 = vmatprep.subr.bf16.mxu0 %v805
      %1013 = vmatpush1.bf16.msra.mxu0 %v804
      %1014 = vmatprep.subr.bf16.mxu0 %v812
      %1015 = vmatpush1.bf16.msra.mxu0 %v811
      %1016 = vmatprep.subr.bf16.mxu0 %v819
      %1017 = vmatpush1.bf16.msra.mxu0 %v818
      %1018 = vmatprep.subr.bf16.mxu0 %v826
      %1019 = vmatpush1.bf16.msra.mxu0 %v825
      %1020 = vmatprep.subr.bf16.mxu0 %v833
      %1021 = vmatpush1.bf16.msra.mxu0 %v832
      %1022 = vmatprep.mubr.bf16.mxu0 %v370
      %1023 = vmatmul.mubr.bf16.gmra.mrb[0].mxu0 %v369
      %v1024 = vpop.f32.mrb[0].mxu0
      %v1025 = vadd.f32 %v364, %v1024
      %v1026 = vpop.f32.mrb[0].mxu0
      %v1027 = vadd.f32 %v364, %v1026
      %v1028 = vpop.f32.mrb[0].mxu0
      %v1029 = vpop.f32.mrb[0].mxu0
      %1030 = vdwg.mxu0
      %1031 = vmatprep.subr.bf16.mxu0 %v730
      %1032 = vmatpush1.bf16.msra.mxu0 %v729
      %1033 = vmatprep.subr.bf16.mxu0 %v737
      %1034 = vmatpush1.bf16.msra.mxu0 %v736
      %1035 = vmatprep.subr.bf16.mxu0 %v744
      %1036 = vmatpush1.bf16.msra.mxu0 %v743
      %1037 = vmatprep.subr.bf16.mxu0 %v751
      %1038 = vmatpush1.bf16.msra.mxu0 %v750
      %1039 = vmatprep.subr.bf16.mxu0 %v758
      %1040 = vmatpush1.bf16.msra.mxu0 %v757
      %1041 = vmatprep.subr.bf16.mxu0 %v765
      %1042 = vmatpush1.bf16.msra.mxu0 %v764
      %1043 = vmatprep.subr.bf16.mxu0 %v772
      %1044 = vmatpush1.bf16.msra.mxu0 %v771
      %1045 = vmatprep.subr.bf16.mxu0 %v779
      %1046 = vmatpush1.bf16.msra.mxu0 %v778
      %1047 = vmatprep.subr.bf16.mxu0 %v786
      %1048 = vmatpush1.bf16.msra.mxu0 %v785
      %1049 = vmatprep.subr.bf16.mxu0 %v793
      %1050 = vmatpush1.bf16.msra.mxu0 %v792
      %1051 = vmatprep.subr.bf16.mxu0 %v800
      %1052 = vmatpush1.bf16.msra.mxu0 %v799
      %1053 = vmatprep.subr.bf16.mxu0 %v807
      %1054 = vmatpush1.bf16.msra.mxu0 %v806
      %1055 = vmatprep.subr.bf16.mxu0 %v814
      %1056 = vmatpush1.bf16.msra.mxu0 %v813
      %1057 = vmatprep.subr.bf16.mxu0 %v821
      %1058 = vmatpush1.bf16.msra.mxu0 %v820
      %1059 = vmatprep.subr.bf16.mxu0 %v828
      %1060 = vmatpush1.bf16.msra.mxu0 %v827
      %1061 = vmatprep.subr.bf16.mxu0 %v835
      %1062 = vmatpush1.bf16.msra.mxu0 %v834
      %1063 = vmatprep.mubr.bf16.mxu0 %v370
      %1064 = vmatmul.mubr.bf16.gmra.mrb[0].mxu0 %v369
      %v1065 = vpop.f32.mrb[0].mxu0
      %v1066 = vadd.f32 %v364, %v1065
      %v1067 = vpop.f32.mrb[0].mxu0
      %v1068 = vadd.f32 %v364, %v1067
      %v1069 = vpop.f32.mrb[0].mxu0
      %v1070 = vpop.f32.mrb[0].mxu0
      %1071 = vdwg.mxu0
      %1072 = vmatprep.subr.bf16.mxu0 0
      %1073 = vmatpush1.bf16.msra.mxu0 %v731
      %1074 = vmatprep.subr.bf16.mxu0 0
      %1075 = vmatpush1.bf16.msra.mxu0 %v738
      %1076 = vmatprep.subr.bf16.mxu0 0
      %1077 = vmatpush1.bf16.msra.mxu0 %v745
      %1078 = vmatprep.subr.bf16.mxu0 0
      %1079 = vmatpush1.bf16.msra.mxu0 %v752
      %1080 = vmatprep.subr.bf16.mxu0 0
      %1081 = vmatpush1.bf16.msra.mxu0 %v759
      %1082 = vmatprep.subr.bf16.mxu0 0
      %1083 = vmatpush1.bf16.msra.mxu0 %v766
      %1084 = vmatprep.subr.bf16.mxu0 0
      %1085 = vmatpush1.bf16.msra.mxu0 %v773
      %1086 = vmatprep.subr.bf16.mxu0 0
      %1087 = vmatpush1.bf16.msra.mxu0 %v780
      %1088 = vmatprep.subr.bf16.mxu0 0
      %1089 = vmatpush1.bf16.msra.mxu0 %v787
      %1090 = vmatprep.subr.bf16.mxu0 0
      %1091 = vmatpush1.bf16.msra.mxu0 %v794
      %1092 = vmatprep.subr.bf16.mxu0 0
      %1093 = vmatpush1.bf16.msra.mxu0 %v801
      %1094 = vmatprep.subr.bf16.mxu0 0
      %1095 = vmatpush1.bf16.msra.mxu0 %v808
      %1096 = vmatprep.subr.bf16.mxu0 0
      %1097 = vmatpush1.bf16.msra.mxu0 %v815
      %1098 = vmatprep.subr.bf16.mxu0 0
      %1099 = vmatpush1.bf16.msra.mxu0 %v822
      %1100 = vmatprep.subr.bf16.mxu0 0
      %1101 = vmatpush1.bf16.msra.mxu0 %v829
      %1102 = vmatprep.subr.bf16.mxu0 0
      %1103 = vmatpush1.bf16.msra.mxu0 %v836
      %1104 = vmatprep.mubr.bf16.mxu0 %v370
      %1105 = vmatmul.mubr.bf16.gmra.mrb[0].mxu0 %v369
      %v1106 = vpop.f32.mrb[0].mxu0
      %v1107 = vadd.f32 %v364, %v1106
      %v1108 = vpop.f32.mrb[0].mxu0
      %v1109 = vpop.f32.mrb[0].mxu0
      %v1110 = vpop.f32.mrb[0].mxu0
      %1111 = vdwg.mxu0
      %v1112 = vtanh.pop %v984
      %v1113 = vtanh.pop %v986
      %v1114 = vtanh.pop %v1025
      %v1115 = vtanh.pop %v1027
      %v1116 = vtanh.pop %v1066
      %v1117 = vtanh.pop %v1068
      %v1118 = vtanh.pop %v1107
      %1119 = vst [vmem:[%s228] sm:$0x3f] %v1112
      %1120 = vst [vmem:[%s228 + $0x8] sm:$0x3f] %v1113
      %1121 = vst [vmem:[%s228 + $0x10] sm:$0x3f] %v1114
      %1122 = vst [vmem:[%s228 + $0x18] sm:$0x3f] %v1115
      %1123 = vst [vmem:[%s228 + $0x20] sm:$0x3f] %v1116
      %1124 = vst [vmem:[%s228 + $0x28] sm:$0x3f] %v1117
      %vm1125 = vcmask 783360
      %1126 = vst.msk [vmem:[%s228 + $0x30] sm:$0x3f] %vm1125, %v1118
      %s1127 = smul.u32 7, %s19
      %p1128 = scmp.lt.s32.totalorder %s18, 3
      %s1129 = scalar_select %p1128, %s18, 3
      %p1130 = scmp.lt.s32.totalorder %s1127, 6
      %s1131 = scalar_select %p1130, %s1127, 6
      %s1132 = smul.addr %s1129, 7
      %s1133 = sadd.s32 %s1131, %s1132
      %s1134 = smul.addr %s1133, 8
      %s1135 = scalar_lea.vmem %s3, %s1134
      // Predicated region
      $region33: #{wgan_g_forward.15} parent=31 // pred_check
        %p1136 = pneg %p121
      $region34: #{wgan_g_forward.15} parent=31 // pred_check_branch
        %1138 = sbr.rel (%p1136) target = $region36
      $region35: #{wgan_g_forward.15} parent=31 // pred_region
        %s1139 = smul.u32 7, %s19
      $region36: #{wgan_g_forward.15} parent=31 // pred_fallthru
        _
    $region32: #{wgan_g_forward.15} parent=5 // pred_fallthru
      _
    %p1140 = scmp.le.s32.totalorder 2, %s9
    // Predicated region
    $region37: #{wgan_g_forward.15} parent=5 // pred_check
      %p1141 = pneg %p1140
    $region38: #{wgan_g_forward.15} parent=5 // pred_check_branch
      %1143 = sbr.rel (%p1141) target = $region40
    $region39: #{wgan_g_forward.15} parent=5 // pred_region
      %s1144 = ssub.s32 %s9, 2
      // Predicated region
      $region41: #{wgan_g_forward.15} parent=39 // pred_check
        %p1145 = pneg %p127
      $region42: #{wgan_g_forward.15} parent=39 // pred_check_branch
        %1147 = sbr.rel (%p1145) target = $region44
      $region43: #{wgan_g_forward.15} parent=39 // pred_region
        %s1148 = smul.u32 7, %s21
        %p1149 = scmp.lt.s32.totalorder %s20, 3
        %s1150 = scalar_select %p1149, %s20, 3
        %p1151 = scmp.lt.s32.totalorder %s1148, 6
        %s1152 = scalar_select %p1151, %s1148, 6
        %s1153 = smul.addr %s1150, 7
        %s1154 = sadd.s32 %s1152, %s1153
        %s1155 = smul.addr %s1154, 8
        %s1156 = scalar_lea.vmem %s3, %s1155
      $region44: #{wgan_g_forward.15} parent=39 // pred_fallthru
        _
    $region40: #{wgan_g_forward.15} parent=5 // pred_fallthru
      _
  $region6: #{wgan_g_forward.15} parent=0 // loop_footer
    %s13 = sadd.s32 1, %s9
  $region7: #{wgan_g_forward.15} parent=0 // loop_footer_branch
    %8 = sbr.rel target = $region3
  $region8: #{wgan_g_forward.15} parent=0 // loop_exit
    _

</llo_original>
